<compile_context>
chip_gen: v5e
topology: v5e:2x2
jax: 0.10.0
libtpu: 0.0.40
codegen_flags: <defaults>
</compile_context>

<pallas_src>
import functools

import jax
import jax.numpy as jnp
from jax import lax
from jax.experimental import pallas as pl
from jax.experimental.pallas import tpu as pltpu

EPS = 1e-5


def _round_up(x, m):
    return ((x + m - 1) // m) * m


def _residual_kernel(x_ref, w1_ref, g1_ref, be1_ref, w2_ref, g2_ref, be2_ref,
                     out_ref, pad_ref, *, halo):
    """Whole residual block in one kernel invocation (fits in VMEM at toy sizes).

    x_ref   : (N, H, W, C)        raw NHWC input, f32 (un-padded)
    w*_ref  : (9, Cp, Cp)         per-tap weight matrices (cin x cout), compute dtype
    g*/be*  : (1, Cp)             bn gamma / beta zero-padded to Cp lanes, f32
    out_ref : (N, H, W, C)        real channels only (no lane-padded HBM writeback)
    pad_ref : (N, H+2, WPp, Cp)   VMEM scratch reused as padded input of both convs
    """
    N, H, W, C = x_ref.shape
    _, _, _, Cp = pad_ref.shape
    rows = N * H * W
    inv_rows = 1.0 / rows
    cdt = pad_ref.dtype

    x = x_ref[...]                                    # f32, exact residual input

    # ---- build the padded, lane-dense conv input once in VMEM ----------------
    # One memset covers the spatial halo AND the padded channel lanes; the
    # interior write (sublane-aligned at `halo`) then fills the real data.
    pad_ref[...] = jnp.zeros_like(pad_ref)
    pad_ref[:, 1:1 + H, halo:halo + W, :C] = x.astype(cdt)

    def conv3x3_bn(w_ref, g_ref, be_ref):
        # 9 accumulating per-tap matmuls (K = Cp each) into one f32 accumulator.
        # No im2col concat: peak VMEM is one tap window + the accumulator.
        acc = None
        for ky in range(3):
            for kx in range(3):
                a = pad_ref[:, ky:ky + H, halo - 1 + kx:halo - 1 + kx + W, :]
                a = a.reshape(rows, Cp)
                t = jnp.dot(a, w_ref[ky * 3 + kx],
                            preferred_element_type=jnp.float32)
                acc = t if acc is None else acc + t
        # Training-mode batch norm; two-pass variance in f32 (no E[x^2]-E[x]^2
        # cancellation).  Conv bias omitted: cancels exactly under batch-stat BN.
        mean = jnp.sum(acc, axis=0, keepdims=True) * inv_rows
        d = acc - mean
        var = jnp.sum(d * d, axis=0, keepdims=True) * inv_rows
        return d * lax.rsqrt(var + EPS) * g_ref[...] + be_ref[...]

    # ---- conv1 + bn1 + relu ---------------------------------------------------
    y1 = jnp.maximum(conv3x3_bn(w1_ref, g1_ref, be1_ref), 0.0)     # (rows, Cp) f32

    # ---- overwrite the (already halo/lane-zeroed) interior with y1 for conv2 --
    # y1 is exactly zero on padded output channels (zero weight columns, gamma=0,
    # beta=0), so the zero-padding invariant of the buffer is preserved.
    pad_ref[:, 1:1 + H, halo:halo + W, :] = y1.reshape(N, H, W, Cp).astype(cdt)

    # ---- conv2 + bn2 ------------------------------------------------------------
    y2 = conv3x3_bn(w2_ref, g2_ref, be2_ref)                       # (rows, Cp) f32

    # ---- residual add (conv3 is None, stride=1, Cin==Cout) + relu --------------
    y2 = y2.reshape(N, H, W, Cp)
    if Cp != C:
        y2 = y2[:, :, :, :C]
    out_ref[...] = jnp.maximum(y2 + x, 0.0).astype(out_ref.dtype)


def _full_spec(shape):
    return pl.BlockSpec(shape, lambda: (0,) * len(shape))


@functools.partial(jax.jit, static_argnames=("compute_dtype",))
def residual_forward(x_nchw, w1, b1, g1, be1, w2, b2, g2, be2,
                     *, compute_dtype=jnp.bfloat16):
    """PyTorch-convention inputs: x NCHW, conv weights OIHW, 1-D bn params.

    b1/b2 are accepted for API parity with nn.Conv2d but intentionally unused:
    a per-channel bias immediately followed by training-mode BatchNorm cancels
    exactly.  compute_dtype is the MXU operand dtype (bf16 default on all of
    v5e/v6e/v7x; accumulation and BN statistics are always f32).
    """
    del b1, b2
    N, C, H, W = x_nchw.shape
    Cout = w1.shape[0]
    assert Cout == C, "default Residual config requires in_channels == out_channels"

    Cp = _round_up(max(C, Cout), 128)        # lane-dense channels inside the kernel
    halo = 8                                 # sublane-aligned interior offset (W axis)
    HP = H + 2
    WPp = halo + _round_up(W + 1, 8)         # padded width, multiple of 8

    # Only cheap layout plumbing on UN-inflated data in the wrapper; all padding
    # (channel lanes + spatial halo) happens inside the kernel in VMEM.
    x_nhwc = jnp.transpose(x_nchw, (0, 2, 3, 1)).astype(jnp.float32)

    def prep_w(w):
        # OIHW -> (ky,kx,Cin,Cout), zero-pad channels, -> (9, Cp, Cp) per-tap mats.
        w = jnp.transpose(w, (2, 3, 1, 0)).astype(jnp.float32)       # (3,3,C,Cout)
        w = jnp.pad(w, ((0, 0), (0, 0), (0, Cp - C), (0, Cp - Cout)))
        return w.reshape(9, Cp, Cp).astype(compute_dtype)

    def prep_v(v):
        return jnp.pad(v.astype(jnp.float32), (0, Cp - Cout)).reshape(1, Cp)

    rows = N * H * W
    itemsize = jnp.dtype(compute_dtype).itemsize
    flops = 2 * (2 * rows * 9 * Cp * Cp)                     # two convs on the MXU
    bytes_accessed = (4 * x_nhwc.size + 2 * 9 * Cp * Cp * itemsize
                      + 4 * 4 * Cp + 4 * rows * C)

    # VMEM budget from actual buffer sizes (+headroom), capped well below 64 MiB.
    pad_bytes = N * HP * WPp * Cp * itemsize
    w_bytes = 2 * 9 * Cp * Cp * itemsize
    io_bytes = 2 * rows * C * 4 + 4 * Cp * 4
    tmp_bytes = 6 * rows * Cp * 4                            # acc + live f32 temps
    vmem_limit = int(min(max(2 * (pad_bytes + w_bytes + io_bytes + tmp_bytes)
                             + (4 << 20), 16 << 20), 48 << 20))

    out_nhwc = pl.pallas_call(
        functools.partial(_residual_kernel, halo=halo),
        out_shape=jax.ShapeDtypeStruct((N, H, W, C), jnp.float32),
        in_specs=[
            _full_spec((N, H, W, C)),
            _full_spec((9, Cp, Cp)), _full_spec((1, Cp)), _full_spec((1, Cp)),
            _full_spec((9, Cp, Cp)), _full_spec((1, Cp)), _full_spec((1, Cp)),
        ],
        out_specs=_full_spec((N, H, W, C)),
        scratch_shapes=[pltpu.VMEM((N, HP, WPp, Cp), compute_dtype)],
        compiler_params=pltpu.CompilerParams(vmem_limit_bytes=vmem_limit),
        cost_estimate=pl.CostEstimate(flops=flops, transcendentals=2 * Cp,
                                      bytes_accessed=bytes_accessed),
    )(x_nhwc, prep_w(w1), prep_v(g1), prep_v(be1),
      prep_w(w2), prep_v(g2), prep_v(be2))

    # Small (un-inflated) layout conversion back to the PyTorch NCHW convention.
    return jnp.transpose(out_nhwc, (0, 3, 1, 2))


# ---------------- pure-JAX reference (mirrors the PyTorch forward) -----------
def _bn_train(x_nchw, gamma, beta):
    mean = jnp.mean(x_nchw, axis=(0, 2, 3), keepdims=True)
    var = jnp.mean((x_nchw - mean) ** 2, axis=(0, 2, 3), keepdims=True)
    return ((x_nchw - mean) * lax.rsqrt(var + EPS)
            * gamma[None, :, None, None] + beta[None, :, None, None])


def _conv_nchw(x, w, b):
    y = lax.conv_general_dilated(
        x, w, window_strides=(1, 1), padding=((1, 1), (1, 1)),
        dimension_numbers=("NCHW", "OIHW", "NCHW"))
    return y + b[None, :, None, None]


def residual_reference(x, w1, b1, g1, be1, w2, b2, g2, be2):
    y = jnp.maximum(_bn_train(_conv_nchw(x, w1, b1), g1, be1), 0.0)
    y = _bn_train(_conv_nchw(y, w2, b2), g2, be2)
    return jnp.maximum(y + x, 0.0)


if __name__ == "__main__":
    N, C, H, W = 2, 8, 16, 16   # in_channels == out_channels (no 1x1 projection)

    key = jax.random.PRNGKey(0)
    ks = jax.random.split(key, 9)
    x = jax.random.normal(ks[0], (N, C, H, W), jnp.float32)          # NCHW input
    w1 = jax.random.normal(ks[1], (C, C, 3, 3), jnp.float32) * 0.1   # OIHW
    b1 = jax.random.normal(ks[2], (C,), jnp.float32) * 0.1
    w2 = jax.random.normal(ks[3], (C, C, 3, 3), jnp.float32) * 0.1
    b2 = jax.random.normal(ks[4], (C,), jnp.float32) * 0.1
    g1 = 1.0 + 0.1 * jax.random.normal(ks[5], (C,), jnp.float32)
    be1 = 0.1 * jax.random.normal(ks[6], (C,), jnp.float32)
    g2 = 1.0 + 0.1 * jax.random.normal(ks[7], (C,), jnp.float32)
    be2 = 0.1 * jax.random.normal(ks[8], (C,), jnp.float32)

    ref = jax.block_until_ready(
        residual_reference(x, w1, b1, g1, be1, w2, b2, g2, be2))

    # f32 MXU operands: tight agreement with the f32 reference.
    out_f32 = jax.block_until_ready(
        residual_forward(x, w1, b1, g1, be1, w2, b2, g2, be2,
                         compute_dtype=jnp.float32))
    assert out_f32.shape == (N, C, H, W)
    assert jnp.allclose(out_f32, ref, rtol=2e-4, atol=2e-4), (
        float(jnp.max(jnp.abs(out_f32 - ref))))

    # bf16 MXU operands (f32 accumulation & BN stats): the fast path on
    # v5e/v6e/v7x.  Tolerance reflects bf16 operand rounding (~2^-9 relative),
    # amplified by the two conv+BN stages.
    out_bf16 = jax.block_until_ready(
        residual_forward(x, w1, b1, g1, be1, w2, b2, g2, be2,
                         compute_dtype=jnp.bfloat16))
    assert out_bf16.shape == (N, C, H, W)
    assert jnp.allclose(out_bf16, ref, rtol=5e-2, atol=5e-2), (
        float(jnp.max(jnp.abs(out_bf16 - ref))))

    print("KERNEL_OK")
</pallas_src>

<mosaic_0001>
module attributes {stable_mosaic.version = 11 : i64} {
  func.func @_residual_kernel(%arg0: memref<2x16x16x8xf32, #tpu.memory_space<vmem>>, %arg1: memref<9x128x128xf32, #tpu.memory_space<vmem>>, %arg2: memref<1x128xf32, #tpu.memory_space<vmem>>, %arg3: memref<1x128xf32, #tpu.memory_space<vmem>>, %arg4: memref<9x128x128xf32, #tpu.memory_space<vmem>>, %arg5: memref<1x128xf32, #tpu.memory_space<vmem>>, %arg6: memref<1x128xf32, #tpu.memory_space<vmem>>, %arg7: memref<2x16x16x8xf32, #tpu.memory_space<vmem>>, %arg8: memref<2x18x32x128xf32, #tpu.memory_space<vmem>>) attributes {dimension_semantics = [], scalar_prefetch = 0 : i64, scratch_operands = 1 : i64, tpu.core_type = #tpu.core_type<tc>} {
    %c0 = arith.constant 0 : index
    %c0_0 = arith.constant 0 : index
    %c0_1 = arith.constant 0 : index
    %c0_2 = arith.constant 0 : index
    %0 = vector.load %arg0[%c0, %c0_0, %c0_1, %c0_2] : memref<2x16x16x8xf32, #tpu.memory_space<vmem>>, vector<2x16x16x8xf32>
    %cst = arith.constant 0.000000e+00 : f32
    %1 = vector.broadcast %cst : f32 to vector<2x18x32x128xf32>
    %c0_3 = arith.constant 0 : index
    %c0_4 = arith.constant 0 : index
    %c0_5 = arith.constant 0 : index
    %c0_6 = arith.constant 0 : index
    %2 = vector.load %arg8[%c0_3, %c0_4, %c0_5, %c0_6] : memref<2x18x32x128xf32, #tpu.memory_space<vmem>>, vector<2x18x32x128xf32>
    tpu.vector_store %arg8[%c0_3, %c0_4, %c0_5, %c0_6], %1 {strides = array<i32>} : memref<2x18x32x128xf32, #tpu.memory_space<vmem>>, vector<2x18x32x128xf32>,
    %c0_7 = arith.constant 0 : index
    %c1 = arith.constant 1 : index
    %c8 = arith.constant 8 : index
    %c0_8 = arith.constant 0 : index
    %3 = vector.load %arg8[%c0_7, %c1, %c8, %c0_8] : memref<2x18x32x128xf32, #tpu.memory_space<vmem>>, vector<2x16x16x8xf32>
    tpu.vector_store %arg8[%c0_7, %c1, %c8, %c0_8], %0 {strides = array<i32>} : memref<2x18x32x128xf32, #tpu.memory_space<vmem>>, vector<2x16x16x8xf32>,
    %c0_9 = arith.constant 0 : index
    %c0_10 = arith.constant 0 : index
    %c7 = arith.constant 7 : index
    %c0_11 = arith.constant 0 : index
    %4 = vector.load %arg8[%c0_9, %c0_10, %c7, %c0_11] : memref<2x18x32x128xf32, #tpu.memory_space<vmem>>, vector<2x16x16x128xf32>
    %5 = vector.shape_cast %4 : vector<2x16x16x128xf32> to vector<512x128xf32>
    %c0_12 = arith.constant 0 : index
    %c0_13 = arith.constant 0 : index
    %c0_14 = arith.constant 0 : index
    %6 = vector.load %arg1[%c0_12, %c0_13, %c0_14] : memref<9x128x128xf32, #tpu.memory_space<vmem>>, vector<1x128x128xf32>
    %7 = vector.shape_cast %6 : vector<1x128x128xf32> to vector<128x128xf32>
    %cst_15 = arith.constant dense<0.000000e+00> : vector<512x128xf32>
    %8 = tpu.matmul %5, %7, %cst_15 {dimension_numbers = #tpu.dot_dimension_numbers<[1], [0], [0], [1], [0, 0, 1, 1], [], []>} : vector<512x128xf32>, vector<128x128xf32>, vector<512x128xf32> -> vector<512x128xf32>
    %c0_16 = arith.constant 0 : index
    %c0_17 = arith.constant 0 : index
    %c8_18 = arith.constant 8 : index
    %c0_19 = arith.constant 0 : index
    %9 = vector.load %arg8[%c0_16, %c0_17, %c8_18, %c0_19] : memref<2x18x32x128xf32, #tpu.memory_space<vmem>>, vector<2x16x16x128xf32>
    %10 = vector.shape_cast %9 : vector<2x16x16x128xf32> to vector<512x128xf32>
    %c1_20 = arith.constant 1 : index
    %c0_21 = arith.constant 0 : index
    %c0_22 = arith.constant 0 : index
    %11 = vector.load %arg1[%c1_20, %c0_21, %c0_22] : memref<9x128x128xf32, #tpu.memory_space<vmem>>, vector<1x128x128xf32>
    %12 = vector.shape_cast %11 : vector<1x128x128xf32> to vector<128x128xf32>
    %cst_23 = arith.constant dense<0.000000e+00> : vector<512x128xf32>
    %13 = tpu.matmul %10, %12, %cst_23 {dimension_numbers = #tpu.dot_dimension_numbers<[1], [0], [0], [1], [0, 0, 1, 1], [], []>} : vector<512x128xf32>, vector<128x128xf32>, vector<512x128xf32> -> vector<512x128xf32>
    %14 = arith.addf %8, %13 : vector<512x128xf32>
    %c0_24 = arith.constant 0 : index
    %c0_25 = arith.constant 0 : index
    %c9 = arith.constant 9 : index
    %c0_26 = arith.constant 0 : index
    %15 = vector.load %arg8[%c0_24, %c0_25, %c9, %c0_26] : memref<2x18x32x128xf32, #tpu.memory_space<vmem>>, vector<2x16x16x128xf32>
    %16 = vector.shape_cast %15 : vector<2x16x16x128xf32> to vector<512x128xf32>
    %c2 = arith.constant 2 : index
    %c0_27 = arith.constant 0 : index
    %c0_28 = arith.constant 0 : index
    %17 = vector.load %arg1[%c2, %c0_27, %c0_28] : memref<9x128x128xf32, #tpu.memory_space<vmem>>, vector<1x128x128xf32>
    %18 = vector.shape_cast %17 : vector<1x128x128xf32> to vector<128x128xf32>
    %cst_29 = arith.constant dense<0.000000e+00> : vector<512x128xf32>
    %19 = tpu.matmul %16, %18, %cst_29 {dimension_numbers = #tpu.dot_dimension_numbers<[1], [0], [0], [1], [0, 0, 1, 1], [], []>} : vector<512x128xf32>, vector<128x128xf32>, vector<512x128xf32> -> vector<512x128xf32>
    %20 = arith.addf %14, %19 : vector<512x128xf32>
    %c0_30 = arith.constant 0 : index
    %c1_31 = arith.constant 1 : index
    %c7_32 = arith.constant 7 : index
    %c0_33 = arith.constant 0 : index
    %21 = vector.load %arg8[%c0_30, %c1_31, %c7_32, %c0_33] : memref<2x18x32x128xf32, #tpu.memory_space<vmem>>, vector<2x16x16x128xf32>
    %22 = vector.shape_cast %21 : vector<2x16x16x128xf32> to vector<512x128xf32>
    %c3 = arith.constant 3 : index
    %c0_34 = arith.constant 0 : index
    %c0_35 = arith.constant 0 : index
    %23 = vector.load %arg1[%c3, %c0_34, %c0_35] : memref<9x128x128xf32, #tpu.memory_space<vmem>>, vector<1x128x128xf32>
    %24 = vector.shape_cast %23 : vector<1x128x128xf32> to vector<128x128xf32>
    %cst_36 = arith.constant dense<0.000000e+00> : vector<512x128xf32>
    %25 = tpu.matmul %22, %24, %cst_36 {dimension_numbers = #tpu.dot_dimension_numbers<[1], [0], [0], [1], [0, 0, 1, 1], [], []>} : vector<512x128xf32>, vector<128x128xf32>, vector<512x128xf32> -> vector<512x128xf32>
    %26 = arith.addf %20, %25 : vector<512x128xf32>
    %c0_37 = arith.constant 0 : index
    %c1_38 = arith.constant 1 : index
    %c8_39 = arith.constant 8 : index
    %c0_40 = arith.constant 0 : index
    %27 = vector.load %arg8[%c0_37, %c1_38, %c8_39, %c0_40] : memref<2x18x32x128xf32, #tpu.memory_space<vmem>>, vector<2x16x16x128xf32>
    %28 = vector.shape_cast %27 : vector<2x16x16x128xf32> to vector<512x128xf32>
    %c4 = arith.constant 4 : index
    %c0_41 = arith.constant 0 : index
    %c0_42 = arith.constant 0 : index
    %29 = vector.load %arg1[%c4, %c0_41, %c0_42] : memref<9x128x128xf32, #tpu.memory_space<vmem>>, vector<1x128x128xf32>
    %30 = vector.shape_cast %29 : vector<1x128x128xf32> to vector<128x128xf32>
    %cst_43 = arith.constant dense<0.000000e+00> : vector<512x128xf32>
    %31 = tpu.matmul %28, %30, %cst_43 {dimension_numbers = #tpu.dot_dimension_numbers<[1], [0], [0], [1], [0, 0, 1, 1], [], []>} : vector<512x128xf32>, vector<128x128xf32>, vector<512x128xf32> -> vector<512x128xf32>
    %32 = arith.addf %26, %31 : vector<512x128xf32>
    %c0_44 = arith.constant 0 : index
    %c1_45 = arith.constant 1 : index
    %c9_46 = arith.constant 9 : index
    %c0_47 = arith.constant 0 : index
    %33 = vector.load %arg8[%c0_44, %c1_45, %c9_46, %c0_47] : memref<2x18x32x128xf32, #tpu.memory_space<vmem>>, vector<2x16x16x128xf32>
    %34 = vector.shape_cast %33 : vector<2x16x16x128xf32> to vector<512x128xf32>
    %c5 = arith.constant 5 : index
    %c0_48 = arith.constant 0 : index
    %c0_49 = arith.constant 0 : index
    %35 = vector.load %arg1[%c5, %c0_48, %c0_49] : memref<9x128x128xf32, #tpu.memory_space<vmem>>, vector<1x128x128xf32>
    %36 = vector.shape_cast %35 : vector<1x128x128xf32> to vector<128x128xf32>
    %cst_50 = arith.constant dense<0.000000e+00> : vector<512x128xf32>
    %37 = tpu.matmul %34, %36, %cst_50 {dimension_numbers = #tpu.dot_dimension_numbers<[1], [0], [0], [1], [0, 0, 1, 1], [], []>} : vector<512x128xf32>, vector<128x128xf32>, vector<512x128xf32> -> vector<512x128xf32>
    %38 = arith.addf %32, %37 : vector<512x128xf32>
    %c0_51 = arith.constant 0 : index
    %c2_52 = arith.constant 2 : index
    %c7_53 = arith.constant 7 : index
    %c0_54 = arith.constant 0 : index
    %39 = vector.load %arg8[%c0_51, %c2_52, %c7_53, %c0_54] : memref<2x18x32x128xf32, #tpu.memory_space<vmem>>, vector<2x16x16x128xf32>
    %40 = vector.shape_cast %39 : vector<2x16x16x128xf32> to vector<512x128xf32>
    %c6 = arith.constant 6 : index
    %c0_55 = arith.constant 0 : index
    %c0_56 = arith.constant 0 : index
    %41 = vector.load %arg1[%c6, %c0_55, %c0_56] : memref<9x128x128xf32, #tpu.memory_space<vmem>>, vector<1x128x128xf32>
    %42 = vector.shape_cast %41 : vector<1x128x128xf32> to vector<128x128xf32>
    %cst_57 = arith.constant dense<0.000000e+00> : vector<512x128xf32>
    %43 = tpu.matmul %40, %42, %cst_57 {dimension_numbers = #tpu.dot_dimension_numbers<[1], [0], [0], [1], [0, 0, 1, 1], [], []>} : vector<512x128xf32>, vector<128x128xf32>, vector<512x128xf32> -> vector<512x128xf32>
    %44 = arith.addf %38, %43 : vector<512x128xf32>
    %c0_58 = arith.constant 0 : index
    %c2_59 = arith.constant 2 : index
    %c8_60 = arith.constant 8 : index
    %c0_61 = arith.constant 0 : index
    %45 = vector.load %arg8[%c0_58, %c2_59, %c8_60, %c0_61] : memref<2x18x32x128xf32, #tpu.memory_space<vmem>>, vector<2x16x16x128xf32>
    %46 = vector.shape_cast %45 : vector<2x16x16x128xf32> to vector<512x128xf32>
    %c7_62 = arith.constant 7 : index
    %c0_63 = arith.constant 0 : index
    %c0_64 = arith.constant 0 : index
    %47 = vector.load %arg1[%c7_62, %c0_63, %c0_64] : memref<9x128x128xf32, #tpu.memory_space<vmem>>, vector<1x128x128xf32>
    %48 = vector.shape_cast %47 : vector<1x128x128xf32> to vector<128x128xf32>
    %cst_65 = arith.constant dense<0.000000e+00> : vector<512x128xf32>
    %49 = tpu.matmul %46, %48, %cst_65 {dimension_numbers = #tpu.dot_dimension_numbers<[1], [0], [0], [1], [0, 0, 1, 1], [], []>} : vector<512x128xf32>, vector<128x128xf32>, vector<512x128xf32> -> vector<512x128xf32>
    %50 = arith.addf %44, %49 : vector<512x128xf32>
    %c0_66 = arith.constant 0 : index
    %c2_67 = arith.constant 2 : index
    %c9_68 = arith.constant 9 : index
    %c0_69 = arith.constant 0 : index
    %51 = vector.load %arg8[%c0_66, %c2_67, %c9_68, %c0_69] : memref<2x18x32x128xf32, #tpu.memory_space<vmem>>, vector<2x16x16x128xf32>
    %52 = vector.shape_cast %51 : vector<2x16x16x128xf32> to vector<512x128xf32>
    %c8_70 = arith.constant 8 : index
    %c0_71 = arith.constant 0 : index
    %c0_72 = arith.constant 0 : index
    %53 = vector.load %arg1[%c8_70, %c0_71, %c0_72] : memref<9x128x128xf32, #tpu.memory_space<vmem>>, vector<1x128x128xf32>
    %54 = vector.shape_cast %53 : vector<1x128x128xf32> to vector<128x128xf32>
    %cst_73 = arith.constant dense<0.000000e+00> : vector<512x128xf32>
    %55 = tpu.matmul %52, %54, %cst_73 {dimension_numbers = #tpu.dot_dimension_numbers<[1], [0], [0], [1], [0, 0, 1, 1], [], []>} : vector<512x128xf32>, vector<128x128xf32>, vector<512x128xf32> -> vector<512x128xf32>
    %56 = arith.addf %50, %55 : vector<512x128xf32>
    %cst_74 = arith.constant dense<0.000000e+00> : vector<128xf32>
    %57 = vector.multi_reduction <add>, %56, %cst_74 [0] : vector<512x128xf32> to vector<128xf32>
    %58 = vector.shape_cast %57 : vector<128xf32> to vector<1x128xf32>
    %cst_75 = arith.constant 0.001953125 : f32
    %59 = vector.broadcast %cst_75 : f32 to vector<1x128xf32>
    %60 = arith.mulf %58, %59 : vector<1x128xf32>
    %61 = vector.broadcast %60 : vector<1x128xf32> to vector<512x128xf32>
    %62 = arith.subf %56, %61 : vector<512x128xf32>
    %63 = arith.mulf %62, %62 : vector<512x128xf32>
    %cst_76 = arith.constant dense<0.000000e+00> : vector<128xf32>
    %64 = vector.multi_reduction <add>, %63, %cst_76 [0] : vector<512x128xf32> to vector<128xf32>
    %65 = vector.shape_cast %64 : vector<128xf32> to vector<1x128xf32>
    %cst_77 = arith.constant 0.001953125 : f32
    %66 = vector.broadcast %cst_77 : f32 to vector<1x128xf32>
    %67 = arith.mulf %65, %66 : vector<1x128xf32>
    %cst_78 = arith.constant 9.99999974E-6 : f32
    %68 = vector.broadcast %cst_78 : f32 to vector<1x128xf32>
    %69 = arith.addf %67, %68 : vector<1x128xf32>
    %70 = math.rsqrt %69 : vector<1x128xf32>
    %71 = vector.broadcast %70 : vector<1x128xf32> to vector<512x128xf32>
    %72 = arith.mulf %62, %71 : vector<512x128xf32>
    %c0_79 = arith.constant 0 : index
    %c0_80 = arith.constant 0 : index
    %73 = vector.load %arg2[%c0_79, %c0_80] : memref<1x128xf32, #tpu.memory_space<vmem>>, vector<1x128xf32>
    %74 = vector.broadcast %73 : vector<1x128xf32> to vector<512x128xf32>
    %75 = arith.mulf %72, %74 : vector<512x128xf32>
    %c0_81 = arith.constant 0 : index
    %c0_82 = arith.constant 0 : index
    %76 = vector.load %arg3[%c0_81, %c0_82] : memref<1x128xf32, #tpu.memory_space<vmem>>, vector<1x128xf32>
    %77 = vector.broadcast %76 : vector<1x128xf32> to vector<512x128xf32>
    %78 = arith.addf %75, %77 : vector<512x128xf32>
    %cst_83 = arith.constant 0.000000e+00 : f32
    %79 = vector.broadcast %cst_83 : f32 to vector<512x128xf32>
    %80 = arith.maximumf %78, %79 : vector<512x128xf32>
    %81 = vector.shape_cast %80 : vector<512x128xf32> to vector<2x16x16x128xf32>
    %c0_84 = arith.constant 0 : index
    %c1_85 = arith.constant 1 : index
    %c8_86 = arith.constant 8 : index
    %c0_87 = arith.constant 0 : index
    %82 = vector.load %arg8[%c0_84, %c1_85, %c8_86, %c0_87] : memref<2x18x32x128xf32, #tpu.memory_space<vmem>>, vector<2x16x16x128xf32>
    tpu.vector_store %arg8[%c0_84, %c1_85, %c8_86, %c0_87], %81 {strides = array<i32>} : memref<2x18x32x128xf32, #tpu.memory_space<vmem>>, vector<2x16x16x128xf32>,
    %c0_88 = arith.constant 0 : index
    %c0_89 = arith.constant 0 : index
    %c7_90 = arith.constant 7 : index
    %c0_91 = arith.constant 0 : index
    %83 = vector.load %arg8[%c0_88, %c0_89, %c7_90, %c0_91] : memref<2x18x32x128xf32, #tpu.memory_space<vmem>>, vector<2x16x16x128xf32>
    %84 = vector.shape_cast %83 : vector<2x16x16x128xf32> to vector<512x128xf32>
    %c0_92 = arith.constant 0 : index
    %c0_93 = arith.constant 0 : index
    %c0_94 = arith.constant 0 : index
    %85 = vector.load %arg4[%c0_92, %c0_93, %c0_94] : memref<9x128x128xf32, #tpu.memory_space<vmem>>, vector<1x128x128xf32>
    %86 = vector.shape_cast %85 : vector<1x128x128xf32> to vector<128x128xf32>
    %cst_95 = arith.constant dense<0.000000e+00> : vector<512x128xf32>
    %87 = tpu.matmul %84, %86, %cst_95 {dimension_numbers = #tpu.dot_dimension_numbers<[1], [0], [0], [1], [0, 0, 1, 1], [], []>} : vector<512x128xf32>, vector<128x128xf32>, vector<512x128xf32> -> vector<512x128xf32>
    %c0_96 = arith.constant 0 : index
    %c0_97 = arith.constant 0 : index
    %c8_98 = arith.constant 8 : index
    %c0_99 = arith.constant 0 : index
    %88 = vector.load %arg8[%c0_96, %c0_97, %c8_98, %c0_99] : memref<2x18x32x128xf32, #tpu.memory_space<vmem>>, vector<2x16x16x128xf32>
    %89 = vector.shape_cast %88 : vector<2x16x16x128xf32> to vector<512x128xf32>
    %c1_100 = arith.constant 1 : index
    %c0_101 = arith.constant 0 : index
    %c0_102 = arith.constant 0 : index
    %90 = vector.load %arg4[%c1_100, %c0_101, %c0_102] : memref<9x128x128xf32, #tpu.memory_space<vmem>>, vector<1x128x128xf32>
    %91 = vector.shape_cast %90 : vector<1x128x128xf32> to vector<128x128xf32>
    %cst_103 = arith.constant dense<0.000000e+00> : vector<512x128xf32>
    %92 = tpu.matmul %89, %91, %cst_103 {dimension_numbers = #tpu.dot_dimension_numbers<[1], [0], [0], [1], [0, 0, 1, 1], [], []>} : vector<512x128xf32>, vector<128x128xf32>, vector<512x128xf32> -> vector<512x128xf32>
    %93 = arith.addf %87, %92 : vector<512x128xf32>
    %c0_104 = arith.constant 0 : index
    %c0_105 = arith.constant 0 : index
    %c9_106 = arith.constant 9 : index
    %c0_107 = arith.constant 0 : index
    %94 = vector.load %arg8[%c0_104, %c0_105, %c9_106, %c0_107] : memref<2x18x32x128xf32, #tpu.memory_space<vmem>>, vector<2x16x16x128xf32>
    %95 = vector.shape_cast %94 : vector<2x16x16x128xf32> to vector<512x128xf32>
    %c2_108 = arith.constant 2 : index
    %c0_109 = arith.constant 0 : index
    %c0_110 = arith.constant 0 : index
    %96 = vector.load %arg4[%c2_108, %c0_109, %c0_110] : memref<9x128x128xf32, #tpu.memory_space<vmem>>, vector<1x128x128xf32>
    %97 = vector.shape_cast %96 : vector<1x128x128xf32> to vector<128x128xf32>
    %cst_111 = arith.constant dense<0.000000e+00> : vector<512x128xf32>
    %98 = tpu.matmul %95, %97, %cst_111 {dimension_numbers = #tpu.dot_dimension_numbers<[1], [0], [0], [1], [0, 0, 1, 1], [], []>} : vector<512x128xf32>, vector<128x128xf32>, vector<512x128xf32> -> vector<512x128xf32>
    %99 = arith.addf %93, %98 : vector<512x128xf32>
    %c0_112 = arith.constant 0 : index
    %c1_113 = arith.constant 1 : index
    %c7_114 = arith.constant 7 : index
    %c0_115 = arith.constant 0 : index
    %100 = vector.load %arg8[%c0_112, %c1_113, %c7_114, %c0_115] : memref<2x18x32x128xf32, #tpu.memory_space<vmem>>, vector<2x16x16x128xf32>
    %101 = vector.shape_cast %100 : vector<2x16x16x128xf32> to vector<512x128xf32>
    %c3_116 = arith.constant 3 : index
    %c0_117 = arith.constant 0 : index
    %c0_118 = arith.constant 0 : index
    %102 = vector.load %arg4[%c3_116, %c0_117, %c0_118] : memref<9x128x128xf32, #tpu.memory_space<vmem>>, vector<1x128x128xf32>
    %103 = vector.shape_cast %102 : vector<1x128x128xf32> to vector<128x128xf32>
    %cst_119 = arith.constant dense<0.000000e+00> : vector<512x128xf32>
    %104 = tpu.matmul %101, %103, %cst_119 {dimension_numbers = #tpu.dot_dimension_numbers<[1], [0], [0], [1], [0, 0, 1, 1], [], []>} : vector<512x128xf32>, vector<128x128xf32>, vector<512x128xf32> -> vector<512x128xf32>
    %105 = arith.addf %99, %104 : vector<512x128xf32>
    %c0_120 = arith.constant 0 : index
    %c1_121 = arith.constant 1 : index
    %c8_122 = arith.constant 8 : index
    %c0_123 = arith.constant 0 : index
    %106 = vector.load %arg8[%c0_120, %c1_121, %c8_122, %c0_123] : memref<2x18x32x128xf32, #tpu.memory_space<vmem>>, vector<2x16x16x128xf32>
    %107 = vector.shape_cast %106 : vector<2x16x16x128xf32> to vector<512x128xf32>
    %c4_124 = arith.constant 4 : index
    %c0_125 = arith.constant 0 : index
    %c0_126 = arith.constant 0 : index
    %108 = vector.load %arg4[%c4_124, %c0_125, %c0_126] : memref<9x128x128xf32, #tpu.memory_space<vmem>>, vector<1x128x128xf32>
    %109 = vector.shape_cast %108 : vector<1x128x128xf32> to vector<128x128xf32>
    %cst_127 = arith.constant dense<0.000000e+00> : vector<512x128xf32>
    %110 = tpu.matmul %107, %109, %cst_127 {dimension_numbers = #tpu.dot_dimension_numbers<[1], [0], [0], [1], [0, 0, 1, 1], [], []>} : vector<512x128xf32>, vector<128x128xf32>, vector<512x128xf32> -> vector<512x128xf32>
    %111 = arith.addf %105, %110 : vector<512x128xf32>
    %c0_128 = arith.constant 0 : index
    %c1_129 = arith.constant 1 : index
    %c9_130 = arith.constant 9 : index
    %c0_131 = arith.constant 0 : index
    %112 = vector.load %arg8[%c0_128, %c1_129, %c9_130, %c0_131] : memref<2x18x32x128xf32, #tpu.memory_space<vmem>>, vector<2x16x16x128xf32>
    %113 = vector.shape_cast %112 : vector<2x16x16x128xf32> to vector<512x128xf32>
    %c5_132 = arith.constant 5 : index
    %c0_133 = arith.constant 0 : index
    %c0_134 = arith.constant 0 : index
    %114 = vector.load %arg4[%c5_132, %c0_133, %c0_134] : memref<9x128x128xf32, #tpu.memory_space<vmem>>, vector<1x128x128xf32>
    %115 = vector.shape_cast %114 : vector<1x128x128xf32> to vector<128x128xf32>
    %cst_135 = arith.constant dense<0.000000e+00> : vector<512x128xf32>
    %116 = tpu.matmul %113, %115, %cst_135 {dimension_numbers = #tpu.dot_dimension_numbers<[1], [0], [0], [1], [0, 0, 1, 1], [], []>} : vector<512x128xf32>, vector<128x128xf32>, vector<512x128xf32> -> vector<512x128xf32>
    %117 = arith.addf %111, %116 : vector<512x128xf32>
    %c0_136 = arith.constant 0 : index
    %c2_137 = arith.constant 2 : index
    %c7_138 = arith.constant 7 : index
    %c0_139 = arith.constant 0 : index
    %118 = vector.load %arg8[%c0_136, %c2_137, %c7_138, %c0_139] : memref<2x18x32x128xf32, #tpu.memory_space<vmem>>, vector<2x16x16x128xf32>
    %119 = vector.shape_cast %118 : vector<2x16x16x128xf32> to vector<512x128xf32>
    %c6_140 = arith.constant 6 : index
    %c0_141 = arith.constant 0 : index
    %c0_142 = arith.constant 0 : index
    %120 = vector.load %arg4[%c6_140, %c0_141, %c0_142] : memref<9x128x128xf32, #tpu.memory_space<vmem>>, vector<1x128x128xf32>
    %121 = vector.shape_cast %120 : vector<1x128x128xf32> to vector<128x128xf32>
    %cst_143 = arith.constant dense<0.000000e+00> : vector<512x128xf32>
    %122 = tpu.matmul %119, %121, %cst_143 {dimension_numbers = #tpu.dot_dimension_numbers<[1], [0], [0], [1], [0, 0, 1, 1], [], []>} : vector<512x128xf32>, vector<128x128xf32>, vector<512x128xf32> -> vector<512x128xf32>
    %123 = arith.addf %117, %122 : vector<512x128xf32>
    %c0_144 = arith.constant 0 : index
    %c2_145 = arith.constant 2 : index
    %c8_146 = arith.constant 8 : index
    %c0_147 = arith.constant 0 : index
    %124 = vector.load %arg8[%c0_144, %c2_145, %c8_146, %c0_147] : memref<2x18x32x128xf32, #tpu.memory_space<vmem>>, vector<2x16x16x128xf32>
    %125 = vector.shape_cast %124 : vector<2x16x16x128xf32> to vector<512x128xf32>
    %c7_148 = arith.constant 7 : index
    %c0_149 = arith.constant 0 : index
    %c0_150 = arith.constant 0 : index
    %126 = vector.load %arg4[%c7_148, %c0_149, %c0_150] : memref<9x128x128xf32, #tpu.memory_space<vmem>>, vector<1x128x128xf32>
    %127 = vector.shape_cast %126 : vector<1x128x128xf32> to vector<128x128xf32>
    %cst_151 = arith.constant dense<0.000000e+00> : vector<512x128xf32>
    %128 = tpu.matmul %125, %127, %cst_151 {dimension_numbers = #tpu.dot_dimension_numbers<[1], [0], [0], [1], [0, 0, 1, 1], [], []>} : vector<512x128xf32>, vector<128x128xf32>, vector<512x128xf32> -> vector<512x128xf32>
    %129 = arith.addf %123, %128 : vector<512x128xf32>
    %c0_152 = arith.constant 0 : index
    %c2_153 = arith.constant 2 : index
    %c9_154 = arith.constant 9 : index
    %c0_155 = arith.constant 0 : index
    %130 = vector.load %arg8[%c0_152, %c2_153, %c9_154, %c0_155] : memref<2x18x32x128xf32, #tpu.memory_space<vmem>>, vector<2x16x16x128xf32>
    %131 = vector.shape_cast %130 : vector<2x16x16x128xf32> to vector<512x128xf32>
    %c8_156 = arith.constant 8 : index
    %c0_157 = arith.constant 0 : index
    %c0_158 = arith.constant 0 : index
    %132 = vector.load %arg4[%c8_156, %c0_157, %c0_158] : memref<9x128x128xf32, #tpu.memory_space<vmem>>, vector<1x128x128xf32>
    %133 = vector.shape_cast %132 : vector<1x128x128xf32> to vector<128x128xf32>
    %cst_159 = arith.constant dense<0.000000e+00> : vector<512x128xf32>
    %134 = tpu.matmul %131, %133, %cst_159 {dimension_numbers = #tpu.dot_dimension_numbers<[1], [0], [0], [1], [0, 0, 1, 1], [], []>} : vector<512x128xf32>, vector<128x128xf32>, vector<512x128xf32> -> vector<512x128xf32>
    %135 = arith.addf %129, %134 : vector<512x128xf32>
    %cst_160 = arith.constant dense<0.000000e+00> : vector<128xf32>
    %136 = vector.multi_reduction <add>, %135, %cst_160 [0] : vector<512x128xf32> to vector<128xf32>
    %137 = vector.shape_cast %136 : vector<128xf32> to vector<1x128xf32>
    %cst_161 = arith.constant 0.001953125 : f32
    %138 = vector.broadcast %cst_161 : f32 to vector<1x128xf32>
    %139 = arith.mulf %137, %138 : vector<1x128xf32>
    %140 = vector.broadcast %139 : vector<1x128xf32> to vector<512x128xf32>
    %141 = arith.subf %135, %140 : vector<512x128xf32>
    %142 = arith.mulf %141, %141 : vector<512x128xf32>
    %cst_162 = arith.constant dense<0.000000e+00> : vector<128xf32>
    %143 = vector.multi_reduction <add>, %142, %cst_162 [0] : vector<512x128xf32> to vector<128xf32>
    %144 = vector.shape_cast %143 : vector<128xf32> to vector<1x128xf32>
    %cst_163 = arith.constant 0.001953125 : f32
    %145 = vector.broadcast %cst_163 : f32 to vector<1x128xf32>
    %146 = arith.mulf %144, %145 : vector<1x128xf32>
    %cst_164 = arith.constant 9.99999974E-6 : f32
    %147 = vector.broadcast %cst_164 : f32 to vector<1x128xf32>
    %148 = arith.addf %146, %147 : vector<1x128xf32>
    %149 = math.rsqrt %148 : vector<1x128xf32>
    %150 = vector.broadcast %149 : vector<1x128xf32> to vector<512x128xf32>
    %151 = arith.mulf %141, %150 : vector<512x128xf32>
    %c0_165 = arith.constant 0 : index
    %c0_166 = arith.constant 0 : index
    %152 = vector.load %arg5[%c0_165, %c0_166] : memref<1x128xf32, #tpu.memory_space<vmem>>, vector<1x128xf32>
    %153 = vector.broadcast %152 : vector<1x128xf32> to vector<512x128xf32>
    %154 = arith.mulf %151, %153 : vector<512x128xf32>
    %c0_167 = arith.constant 0 : index
    %c0_168 = arith.constant 0 : index
    %155 = vector.load %arg6[%c0_167, %c0_168] : memref<1x128xf32, #tpu.memory_space<vmem>>, vector<1x128xf32>
    %156 = vector.broadcast %155 : vector<1x128xf32> to vector<512x128xf32>
    %157 = arith.addf %154, %156 : vector<512x128xf32>
    %158 = vector.shape_cast %157 : vector<512x128xf32> to vector<2x16x16x128xf32>
    %159 = vector.extract_strided_slice %158 {offsets = [0, 0, 0, 0], sizes = [2, 16, 16, 8], strides = [1, 1, 1, 1]} : vector<2x16x16x128xf32> to vector<2x16x16x8xf32>
    %160 = arith.addf %159, %0 : vector<2x16x16x8xf32>
    %cst_169 = arith.constant 0.000000e+00 : f32
    %161 = vector.broadcast %cst_169 : f32 to vector<2x16x16x8xf32>
    %162 = arith.maximumf %160, %161 : vector<2x16x16x8xf32>
    %c0_170 = arith.constant 0 : index
    %c0_171 = arith.constant 0 : index
    %c0_172 = arith.constant 0 : index
    %c0_173 = arith.constant 0 : index
    %163 = vector.load %arg7[%c0_170, %c0_171, %c0_172, %c0_173] : memref<2x16x16x8xf32, #tpu.memory_space<vmem>>, vector<2x16x16x8xf32>
    tpu.vector_store %arg7[%c0_170, %c0_171, %c0_172, %c0_173], %162 {strides = array<i32>} : memref<2x16x16x8xf32, #tpu.memory_space<vmem>>, vector<2x16x16x8xf32>,
    return
  }
}

</mosaic_0001>

<llo_original>
// kernel: residual_forward.1
$region0: #{residual_forward.1}
  #allocation0 [shape = 'u32[]', space=smem, size = 0x4, offset = 0x4, fixed_abs, tag = 'smem constant byte address 0x4 - core index']
  #allocation1 [shape = 'u32[72,128]{1,0:T(1,128)}', space=vmem, size = 0x9000, scoped, tag = 'internal scratch']
  #allocation2 [shape = 'f32[2,18,32,128]{3,2,1,0:T(8,128)}', space=vmem, size = 0x90000, scoped, tag = 'scratch operand']
  %s0 = inlined_call_operand.vmem [shape: f32[2,16,16,8], index: 0, kind: input, shape index: {}]
  %s1 = inlined_call_operand.vmem [shape: f32[9,128,128], index: 1, kind: input, shape index: {}]
  %s2 = inlined_call_operand.vmem [shape: f32[1,128], index: 2, kind: input, shape index: {}]
  %s3 = inlined_call_operand.vmem [shape: f32[1,128], index: 3, kind: input, shape index: {}]
  %s4 = inlined_call_operand.vmem [shape: f32[9,128,128], index: 4, kind: input, shape index: {}]
  %s5 = inlined_call_operand.vmem [shape: f32[1,128], index: 5, kind: input, shape index: {}]
  %s6 = inlined_call_operand.vmem [shape: f32[1,128], index: 6, kind: input, shape index: {}]
  %s7 = inlined_call_operand.vmem [shape: f32[2,16,16,8], index: 7, kind: output, shape index: {}]
  %s8 = sld [smem:[#allocation0]]
  $region38: #{residual_forward.1} parent=0
    _
  %s10 = ssub.s32 1, %s8
  %s11 = scalar_select 0, %s10, %s8
  // Predicated region
  $region2: #{residual_forward.1} parent=0 // pred_check
    _
  $region3: #{residual_forward.1} parent=0 // pred_check_branch
    %13 = sbr.rel (0) target = $region5
  $region4: #{residual_forward.1} parent=0 // pred_region
    _
  $region5: #{residual_forward.1} parent=0 // pred_fallthru
    _
  // Predicated region
  $region6: #{residual_forward.1} parent=0 // pred_check
    _
  $region7: #{residual_forward.1} parent=0 // pred_check_branch
    %15 = sbr.rel (0) target = $region9
  $region8: #{residual_forward.1} parent=0 // pred_region
    _
  $region9: #{residual_forward.1} parent=0 // pred_fallthru
    _
  // Predicated region
  $region10: #{residual_forward.1} parent=0 // pred_check
    _
  $region11: #{residual_forward.1} parent=0 // pred_check_branch
    %17 = sbr.rel (0) target = $region13
  $region12: #{residual_forward.1} parent=0 // pred_region
    _
  $region13: #{residual_forward.1} parent=0 // pred_fallthru
    _
  // Predicated region
  $region14: #{residual_forward.1} parent=0 // pred_check
    _
  $region15: #{residual_forward.1} parent=0 // pred_check_branch
    %19 = sbr.rel (0) target = $region17
  $region16: #{residual_forward.1} parent=0 // pred_region
    _
  $region17: #{residual_forward.1} parent=0 // pred_fallthru
    _
  // Predicated region
  $region18: #{residual_forward.1} parent=0 // pred_check
    _
  $region19: #{residual_forward.1} parent=0 // pred_check_branch
    %21 = sbr.rel (0) target = $region21
  $region20: #{residual_forward.1} parent=0 // pred_region
    _
  $region21: #{residual_forward.1} parent=0 // pred_fallthru
    _
  // Predicated region
  $region22: #{residual_forward.1} parent=0 // pred_check
    _
  $region23: #{residual_forward.1} parent=0 // pred_check_branch
    %23 = sbr.rel (0) target = $region25
  $region24: #{residual_forward.1} parent=0 // pred_region
    _
  $region25: #{residual_forward.1} parent=0 // pred_fallthru
    _
  // Predicated region
  $region26: #{residual_forward.1} parent=0 // pred_check
    _
  $region27: #{residual_forward.1} parent=0 // pred_check_branch
    %25 = sbr.rel (0) target = $region29
  $region28: #{residual_forward.1} parent=0 // pred_region
    _
  $region29: #{residual_forward.1} parent=0 // pred_fallthru
    _
  %v26 = vld [vmem:[%s0] sm:$0xff]
  %v27 = vld [vmem:[%s0 + $0x8] sm:$0xff]
  %v28 = vld [vmem:[%s0 + $0x10] sm:$0xff]
  %v29 = vld [vmem:[%s0 + $0x18] sm:$0xff]
  %v30 = vld [vmem:[%s0 + $0x20] sm:$0xff]
  %v31 = vld [vmem:[%s0 + $0x28] sm:$0xff]
  %v32 = vld [vmem:[%s0 + $0x30] sm:$0xff]
  %v33 = vld [vmem:[%s0 + $0x38] sm:$0xff]
  %v34 = vld [vmem:[%s0 + $0x40] sm:$0xff]
  %v35 = vld [vmem:[%s0 + $0x48] sm:$0xff]
  %v36 = vld [vmem:[%s0 + $0x50] sm:$0xff]
  %v37 = vld [vmem:[%s0 + $0x58] sm:$0xff]
  %v38 = vld [vmem:[%s0 + $0x60] sm:$0xff]
  %v39 = vld [vmem:[%s0 + $0x68] sm:$0xff]
  %v40 = vld [vmem:[%s0 + $0x70] sm:$0xff]
  %v41 = vld [vmem:[%s0 + $0x78] sm:$0xff]
  %v42 = vld [vmem:[%s0 + $0x80] sm:$0xff]
  %v43 = vld [vmem:[%s0 + $0x88] sm:$0xff]
  %v44 = vld [vmem:[%s0 + $0x90] sm:$0xff]
  %v45 = vld [vmem:[%s0 + $0x98] sm:$0xff]
  %v46 = vld [vmem:[%s0 + $0xa0] sm:$0xff]
  %v47 = vld [vmem:[%s0 + $0xa8] sm:$0xff]
  %v48 = vld [vmem:[%s0 + $0xb0] sm:$0xff]
  %v49 = vld [vmem:[%s0 + $0xb8] sm:$0xff]
  %v50 = vld [vmem:[%s0 + $0xc0] sm:$0xff]
  %v51 = vld [vmem:[%s0 + $0xc8] sm:$0xff]
  %v52 = vld [vmem:[%s0 + $0xd0] sm:$0xff]
  %v53 = vld [vmem:[%s0 + $0xd8] sm:$0xff]
  %v54 = vld [vmem:[%s0 + $0xe0] sm:$0xff]
  %v55 = vld [vmem:[%s0 + $0xe8] sm:$0xff]
  %v56 = vld [vmem:[%s0 + $0xf0] sm:$0xff]
  %v57 = vld [vmem:[%s0 + $0xf8] sm:$0xff]
  %v58 = vld [vmem:[%s0 + $0x100] sm:$0xff]
  %v59 = vld [vmem:[%s0 + $0x108] sm:$0xff]
  %v60 = vld [vmem:[%s0 + $0x110] sm:$0xff]
  %v61 = vld [vmem:[%s0 + $0x118] sm:$0xff]
  %v62 = vld [vmem:[%s0 + $0x120] sm:$0xff]
  %v63 = vld [vmem:[%s0 + $0x128] sm:$0xff]
  %v64 = vld [vmem:[%s0 + $0x130] sm:$0xff]
  %v65 = vld [vmem:[%s0 + $0x138] sm:$0xff]
  %v66 = vld [vmem:[%s0 + $0x140] sm:$0xff]
  %v67 = vld [vmem:[%s0 + $0x148] sm:$0xff]
  %v68 = vld [vmem:[%s0 + $0x150] sm:$0xff]
  %v69 = vld [vmem:[%s0 + $0x158] sm:$0xff]
  %v70 = vld [vmem:[%s0 + $0x160] sm:$0xff]
  %v71 = vld [vmem:[%s0 + $0x168] sm:$0xff]
  %v72 = vld [vmem:[%s0 + $0x170] sm:$0xff]
  %v73 = vld [vmem:[%s0 + $0x178] sm:$0xff]
  %v74 = vld [vmem:[%s0 + $0x180] sm:$0xff]
  %v75 = vld [vmem:[%s0 + $0x188] sm:$0xff]
  %v76 = vld [vmem:[%s0 + $0x190] sm:$0xff]
  %v77 = vld [vmem:[%s0 + $0x198] sm:$0xff]
  %v78 = vld [vmem:[%s0 + $0x1a0] sm:$0xff]
  %v79 = vld [vmem:[%s0 + $0x1a8] sm:$0xff]
  %v80 = vld [vmem:[%s0 + $0x1b0] sm:$0xff]
  %v81 = vld [vmem:[%s0 + $0x1b8] sm:$0xff]
  %v82 = vld [vmem:[%s0 + $0x1c0] sm:$0xff]
  %v83 = vld [vmem:[%s0 + $0x1c8] sm:$0xff]
  %v84 = vld [vmem:[%s0 + $0x1d0] sm:$0xff]
  %v85 = vld [vmem:[%s0 + $0x1d8] sm:$0xff]
  %v86 = vld [vmem:[%s0 + $0x1e0] sm:$0xff]
  %v87 = vld [vmem:[%s0 + $0x1e8] sm:$0xff]
  %v88 = vld [vmem:[%s0 + $0x1f0] sm:$0xff]
  %v89 = vld [vmem:[%s0 + $0x1f8] sm:$0xff]
  %90 = vst [vmem:[#allocation2] sm:$0xff] 0.0
  %91 = vst [vmem:[#allocation2 + $0x8] sm:$0xff] 0.0
  %92 = vst [vmem:[#allocation2 + $0x10] sm:$0xff] 0.0
  %93 = vst [vmem:[#allocation2 + $0x18] sm:$0xff] 0.0
  %94 = vst [vmem:[#allocation2 + $0x20] sm:$0xff] 0.0
  %95 = vst [vmem:[#allocation2 + $0x28] sm:$0xff] 0.0
  %96 = vst [vmem:[#allocation2 + $0x30] sm:$0xff] 0.0
  %97 = vst [vmem:[#allocation2 + $0x38] sm:$0xff] 0.0
  %98 = vst [vmem:[#allocation2 + $0x40] sm:$0xff] 0.0
  %99 = vst [vmem:[#allocation2 + $0x48] sm:$0xff] 0.0
  %100 = vst [vmem:[#allocation2 + $0x50] sm:$0xff] 0.0
  %101 = vst [vmem:[#allocation2 + $0x58] sm:$0xff] 0.0
  %102 = vst [vmem:[#allocation2 + $0x60] sm:$0xff] 0.0
  %103 = vst [vmem:[#allocation2 + $0x68] sm:$0xff] 0.0
  %104 = vst [vmem:[#allocation2 + $0x70] sm:$0xff] 0.0
  %105 = vst [vmem:[#allocation2 + $0x78] sm:$0xff] 0.0
  %106 = vst [vmem:[#allocation2 + $0x80] sm:$0xff] 0.0
  %107 = vst [vmem:[#allocation2 + $0x88] sm:$0xff] 0.0
  %108 = vst [vmem:[#allocation2 + $0x90] sm:$0xff] 0.0
  %109 = vst [vmem:[#allocation2 + $0x98] sm:$0xff] 0.0
  %110 = vst [vmem:[#allocation2 + $0xa0] sm:$0xff] 0.0
  %111 = vst [vmem:[#allocation2 + $0xa8] sm:$0xff] 0.0
  %112 = vst [vmem:[#allocation2 + $0xb0] sm:$0xff] 0.0
  %113 = vst [vmem:[#allocation2 + $0xb8] sm:$0xff] 0.0
  %114 = vst [vmem:[#allocation2 + $0xc0] sm:$0xff] 0.0
  %115 = vst [vmem:[#allocation2 + $0xc8] sm:$0xff] 0.0
  %116 = vst [vmem:[#allocation2 + $0xd0] sm:$0xff] 0.0
  %117 = vst [vmem:[#allocation2 + $0xd8] sm:$0xff] 0.0
  %118 = vst [vmem:[#allocation2 + $0xe0] sm:$0xff] 0.0
  %119 = vst [vmem:[#allocation2 + $0xe8] sm:$0xff] 0.0
  %120 = vst [vmem:[#allocation2 + $0xf0] sm:$0xff] 0.0
  %121 = vst [vmem:[#allocation2 + $0xf8] sm:$0xff] 0.0
  %122 = vst [vmem:[#allocation2 + $0x100] sm:$0xff] 0.0
  %123 = vst [vmem:[#allocation2 + $0x108] sm:$0xff] 0.0
  %124 = vst [vmem:[#allocation2 + $0x110] sm:$0xff] 0.0
  %125 = vst [vmem:[#allocation2 + $0x118] sm:$0xff] 0.0
  %126 = vst [vmem:[#allocation2 + $0x120] sm:$0xff] 0.0
  %127 = vst [vmem:[#allocation2 + $0x128] sm:$0xff] 0.0
  %128 = vst [vmem:[#allocation2 + $0x130] sm:$0xff] 0.0
  %129 = vst [vmem:[#allocation2 + $0x138] sm:$0xff] 0.0
  %130 = vst [vmem:[#allocation2 + $0x140] sm:$0xff] 0.0
  %131 = vst [vmem:[#allocation2 + $0x148] sm:$0xff] 0.0
  %132 = vst [vmem:[#allocation2 + $0x150] sm:$0xff] 0.0
  %133 = vst [vmem:[#allocation2 + $0x158] sm:$0xff] 0.0
  %134 = vst [vmem:[#allocation2 + $0x160] sm:$0xff] 0.0
  %135 = vst [vmem:[#allocation2 + $0x168] sm:$0xff] 0.0
  %136 = vst [vmem:[#allocation2 + $0x170] sm:$0xff] 0.0
  %137 = vst [vmem:[#allocation2 + $0x178] sm:$0xff] 0.0
  %138 = vst [vmem:[#allocation2 + $0x180] sm:$0xff] 0.0
  %139 = vst [vmem:[#allocation2 + $0x188] sm:$0xff] 0.0
  %140 = vst [vmem:[#allocation2 + $0x190] sm:$0xff] 0.0
  %141 = vst [vmem:[#allocation2 + $0x198] sm:$0xff] 0.0
  %142 = vst [vmem:[#allocation2 + $0x1a0] sm:$0xff] 0.0
  %143 = vst [vmem:[#allocation2 + $0x1a8] sm:$0xff] 0.0
  %144 = vst [vmem:[#allocation2 + $0x1b0] sm:$0xff] 0.0
  %145 = vst [vmem:[#allocation2 + $0x1b8] sm:$0xff] 0.0
  %146 = vst [vmem:[#allocation2 + $0x1c0] sm:$0xff] 0.0
  %147 = vst [vmem:[#allocation2 + $0x1c8] sm:$0xff] 0.0
  %148 = vst [vmem:[#allocation2 + $0x1d0] sm:$0xff] 0.0
  %149 = vst [vmem:[#allocation2 + $0x1d8] sm:$0xff] 0.0
  %150 = vst [vmem:[#allocation2 + $0x1e0] sm:$0xff] 0.0
  %151 = vst [vmem:[#allocation2 + $0x1e8] sm:$0xff] 0.0
  %152 = vst [vmem:[#allocation2 + $0x1f0] sm:$0xff] 0.0
  %153 = vst [vmem:[#allocation2 + $0x1f8] sm:$0xff] 0.0
  %154 = vst [vmem:[#allocation2 + $0x200] sm:$0xff] 0.0
  %155 = vst [vmem:[#allocation2 + $0x208] sm:$0xff] 0.0
  %156 = vst [vmem:[#allocation2 + $0x210] sm:$0xff] 0.0
  %157 = vst [vmem:[#allocation2 + $0x218] sm:$0xff] 0.0
  %158 = vst [vmem:[#allocation2 + $0x220] sm:$0xff] 0.0
  %159 = vst [vmem:[#allocation2 + $0x228] sm:$0xff] 0.0
  %160 = vst [vmem:[#allocation2 + $0x230] sm:$0xff] 0.0
  %161 = vst [vmem:[#allocation2 + $0x238] sm:$0xff] 0.0
  %162 = vst [vmem:[#allocation2 + $0x240] sm:$0xff] 0.0
  %163 = vst [vmem:[#allocation2 + $0x248] sm:$0xff] 0.0
  %164 = vst [vmem:[#allocation2 + $0x250] sm:$0xff] 0.0
  %165 = vst [vmem:[#allocation2 + $0x258] sm:$0xff] 0.0
  %166 = vst [vmem:[#allocation2 + $0x260] sm:$0xff] 0.0
  %167 = vst [vmem:[#allocation2 + $0x268] sm:$0xff] 0.0
  %168 = vst [vmem:[#allocation2 + $0x270] sm:$0xff] 0.0
  %169 = vst [vmem:[#allocation2 + $0x278] sm:$0xff] 0.0
  %170 = vst [vmem:[#allocation2 + $0x280] sm:$0xff] 0.0
  %171 = vst [vmem:[#allocation2 + $0x288] sm:$0xff] 0.0
  %172 = vst [vmem:[#allocation2 + $0x290] sm:$0xff] 0.0
  %173 = vst [vmem:[#allocation2 + $0x298] sm:$0xff] 0.0
  %174 = vst [vmem:[#allocation2 + $0x2a0] sm:$0xff] 0.0
  %175 = vst [vmem:[#allocation2 + $0x2a8] sm:$0xff] 0.0
  %176 = vst [vmem:[#allocation2 + $0x2b0] sm:$0xff] 0.0
  %177 = vst [vmem:[#allocation2 + $0x2b8] sm:$0xff] 0.0
  %178 = vst [vmem:[#allocation2 + $0x2c0] sm:$0xff] 0.0
  %179 = vst [vmem:[#allocation2 + $0x2c8] sm:$0xff] 0.0
  %180 = vst [vmem:[#allocation2 + $0x2d0] sm:$0xff] 0.0
  %181 = vst [vmem:[#allocation2 + $0x2d8] sm:$0xff] 0.0
  %182 = vst [vmem:[#allocation2 + $0x2e0] sm:$0xff] 0.0
  %183 = vst [vmem:[#allocation2 + $0x2e8] sm:$0xff] 0.0
  %184 = vst [vmem:[#allocation2 + $0x2f0] sm:$0xff] 0.0
  %185 = vst [vmem:[#allocation2 + $0x2f8] sm:$0xff] 0.0
  %186 = vst [vmem:[#allocation2 + $0x300] sm:$0xff] 0.0
  %187 = vst [vmem:[#allocation2 + $0x308] sm:$0xff] 0.0
  %188 = vst [vmem:[#allocation2 + $0x310] sm:$0xff] 0.0
  %189 = vst [vmem:[#allocation2 + $0x318] sm:$0xff] 0.0
  %190 = vst [vmem:[#allocation2 + $0x320] sm:$0xff] 0.0
  %191 = vst [vmem:[#allocation2 + $0x328] sm:$0xff] 0.0
  %192 = vst [vmem:[#allocation2 + $0x330] sm:$0xff] 0.0
  %193 = vst [vmem:[#allocation2 + $0x338] sm:$0xff] 0.0
  %194 = vst [vmem:[#allocation2 + $0x340] sm:$0xff] 0.0
  %195 = vst [vmem:[#allocation2 + $0x348] sm:$0xff] 0.0
  %196 = vst [vmem:[#allocation2 + $0x350] sm:$0xff] 0.0
  %197 = vst [vmem:[#allocation2 + $0x358] sm:$0xff] 0.0
  %198 = vst [vmem:[#allocation2 + $0x360] sm:$0xff] 0.0
  %199 = vst [vmem:[#allocation2 + $0x368] sm:$0xff] 0.0
  %200 = vst [vmem:[#allocation2 + $0x370] sm:$0xff] 0.0
  %201 = vst [vmem:[#allocation2 + $0x378] sm:$0xff] 0.0
  %202 = vst [vmem:[#allocation2 + $0x380] sm:$0xff] 0.0
  %203 = vst [vmem:[#allocation2 + $0x388] sm:$0xff] 0.0
  %204 = vst [vmem:[#allocation2 + $0x390] sm:$0xff] 0.0
  %205 = vst [vmem:[#allocation2 + $0x398] sm:$0xff] 0.0
  %206 = vst [vmem:[#allocation2 + $0x3a0] sm:$0xff] 0.0
  %207 = vst [vmem:[#allocation2 + $0x3a8] sm:$0xff] 0.0
  %208 = vst [vmem:[#allocation2 + $0x3b0] sm:$0xff] 0.0
  %209 = vst [vmem:[#allocation2 + $0x3b8] sm:$0xff] 0.0
  %210 = vst [vmem:[#allocation2 + $0x3c0] sm:$0xff] 0.0
  %211 = vst [vmem:[#allocation2 + $0x3c8] sm:$0xff] 0.0
  %212 = vst [vmem:[#allocation2 + $0x3d0] sm:$0xff] 0.0
  %213 = vst [vmem:[#allocation2 + $0x3d8] sm:$0xff] 0.0
  %214 = vst [vmem:[#allocation2 + $0x3e0] sm:$0xff] 0.0
  %215 = vst [vmem:[#allocation2 + $0x3e8] sm:$0xff] 0.0
  %216 = vst [vmem:[#allocation2 + $0x3f0] sm:$0xff] 0.0
  %217 = vst [vmem:[#allocation2 + $0x3f8] sm:$0xff] 0.0
  %218 = vst [vmem:[#allocation2 + $0x400] sm:$0xff] 0.0
  %219 = vst [vmem:[#allocation2 + $0x408] sm:$0xff] 0.0
  %220 = vst [vmem:[#allocation2 + $0x410] sm:$0xff] 0.0
  %221 = vst [vmem:[#allocation2 + $0x418] sm:$0xff] 0.0
  %222 = vst [vmem:[#allocation2 + $0x420] sm:$0xff] 0.0
  %223 = vst [vmem:[#allocation2 + $0x428] sm:$0xff] 0.0
  %224 = vst [vmem:[#allocation2 + $0x430] sm:$0xff] 0.0
  %225 = vst [vmem:[#allocation2 + $0x438] sm:$0xff] 0.0
  %226 = vst [vmem:[#allocation2 + $0x440] sm:$0xff] 0.0
  %227 = vst [vmem:[#allocation2 + $0x448] sm:$0xff] 0.0
  %228 = vst [vmem:[#allocation2 + $0x450] sm:$0xff] 0.0
  %229 = vst [vmem:[#allocation2 + $0x458] sm:$0xff] 0.0
  %230 = vst [vmem:[#allocation2 + $0x460] sm:$0xff] 0.0
  %231 = vst [vmem:[#allocation2 + $0x468] sm:$0xff] 0.0
  %232 = vst [vmem:[#allocation2 + $0x470] sm:$0xff] 0.0
  %233 = vst [vmem:[#allocation2 + $0x478] sm:$0xff] 0.0
  %s234 = scalar_lea.vmem [#allocation2], 32
  %vm235 = vcmask 64512
  %236 = vst.msk [vmem:[%s234 + $0x8] sm:$0xff] %vm235, %v26
  %237 = vst.msk [vmem:[%s234 + $0x10] sm:$0xff] %vm235, %v27
  %238 = vst.msk [vmem:[%s234 + $0x28] sm:$0xff] %vm235, %v28
  %239 = vst.msk [vmem:[%s234 + $0x30] sm:$0xff] %vm235, %v29
  %240 = vst.msk [vmem:[%s234 + $0x48] sm:$0xff] %vm235, %v30
  %241 = vst.msk [vmem:[%s234 + $0x50] sm:$0xff] %vm235, %v31
  %242 = vst.msk [vmem:[%s234 + $0x68] sm:$0xff] %vm235, %v32
  %243 = vst.msk [vmem:[%s234 + $0x70] sm:$0xff] %vm235, %v33
  %244 = vst.msk [vmem:[%s234 + $0x88] sm:$0xff] %vm235, %v34
  %245 = vst.msk [vmem:[%s234 + $0x90] sm:$0xff] %vm235, %v35
  %246 = vst.msk [vmem:[%s234 + $0xa8] sm:$0xff] %vm235, %v36
  %247 = vst.msk [vmem:[%s234 + $0xb0] sm:$0xff] %vm235, %v37
  %248 = vst.msk [vmem:[%s234 + $0xc8] sm:$0xff] %vm235, %v38
  %249 = vst.msk [vmem:[%s234 + $0xd0] sm:$0xff] %vm235, %v39
  %250 = vst.msk [vmem:[%s234 + $0xe8] sm:$0xff] %vm235, %v40
  %251 = vst.msk [vmem:[%s234 + $0xf0] sm:$0xff] %vm235, %v41
  %252 = vst.msk [vmem:[%s234 + $0x108] sm:$0xff] %vm235, %v42
  %253 = vst.msk [vmem:[%s234 + $0x110] sm:$0xff] %vm235, %v43
  %254 = vst.msk [vmem:[%s234 + $0x128] sm:$0xff] %vm235, %v44
  %255 = vst.msk [vmem:[%s234 + $0x130] sm:$0xff] %vm235, %v45
  %256 = vst.msk [vmem:[%s234 + $0x148] sm:$0xff] %vm235, %v46
  %257 = vst.msk [vmem:[%s234 + $0x150] sm:$0xff] %vm235, %v47
  %258 = vst.msk [vmem:[%s234 + $0x168] sm:$0xff] %vm235, %v48
  %259 = vst.msk [vmem:[%s234 + $0x170] sm:$0xff] %vm235, %v49
  %260 = vst.msk [vmem:[%s234 + $0x188] sm:$0xff] %vm235, %v50
  %261 = vst.msk [vmem:[%s234 + $0x190] sm:$0xff] %vm235, %v51
  %262 = vst.msk [vmem:[%s234 + $0x1a8] sm:$0xff] %vm235, %v52
  %263 = vst.msk [vmem:[%s234 + $0x1b0] sm:$0xff] %vm235, %v53
  %264 = vst.msk [vmem:[%s234 + $0x1c8] sm:$0xff] %vm235, %v54
  %265 = vst.msk [vmem:[%s234 + $0x1d0] sm:$0xff] %vm235, %v55
  %266 = vst.msk [vmem:[%s234 + $0x1e8] sm:$0xff] %vm235, %v56
  %267 = vst.msk [vmem:[%s234 + $0x1f0] sm:$0xff] %vm235, %v57
  %268 = vst.msk [vmem:[%s234 + $0x248] sm:$0xff] %vm235, %v58
  %269 = vst.msk [vmem:[%s234 + $0x250] sm:$0xff] %vm235, %v59
  %270 = vst.msk [vmem:[%s234 + $0x268] sm:$0xff] %vm235, %v60
  %271 = vst.msk [vmem:[%s234 + $0x270] sm:$0xff] %vm235, %v61
  %272 = vst.msk [vmem:[%s234 + $0x288] sm:$0xff] %vm235, %v62
  %273 = vst.msk [vmem:[%s234 + $0x290] sm:$0xff] %vm235, %v63
  %274 = vst.msk [vmem:[%s234 + $0x2a8] sm:$0xff] %vm235, %v64
  %275 = vst.msk [vmem:[%s234 + $0x2b0] sm:$0xff] %vm235, %v65
  %276 = vst.msk [vmem:[%s234 + $0x2c8] sm:$0xff] %vm235, %v66
  %277 = vst.msk [vmem:[%s234 + $0x2d0] sm:$0xff] %vm235, %v67
  %278 = vst.msk [vmem:[%s234 + $0x2e8] sm:$0xff] %vm235, %v68
  %279 = vst.msk [vmem:[%s234 + $0x2f0] sm:$0xff] %vm235, %v69
  %280 = vst.msk [vmem:[%s234 + $0x308] sm:$0xff] %vm235, %v70
  %281 = vst.msk [vmem:[%s234 + $0x310] sm:$0xff] %vm235, %v71
  %282 = vst.msk [vmem:[%s234 + $0x328] sm:$0xff] %vm235, %v72
  %283 = vst.msk [vmem:[%s234 + $0x330] sm:$0xff] %vm235, %v73
  %284 = vst.msk [vmem:[%s234 + $0x348] sm:$0xff] %vm235, %v74
  %285 = vst.msk [vmem:[%s234 + $0x350] sm:$0xff] %vm235, %v75
  %286 = vst.msk [vmem:[%s234 + $0x368] sm:$0xff] %vm235, %v76
  %287 = vst.msk [vmem:[%s234 + $0x370] sm:$0xff] %vm235, %v77
  %288 = vst.msk [vmem:[%s234 + $0x388] sm:$0xff] %vm235, %v78
  %289 = vst.msk [vmem:[%s234 + $0x390] sm:$0xff] %vm235, %v79
  %290 = vst.msk [vmem:[%s234 + $0x3a8] sm:$0xff] %vm235, %v80
  %291 = vst.msk [vmem:[%s234 + $0x3b0] sm:$0xff] %vm235, %v81
  %292 = vst.msk [vmem:[%s234 + $0x3c8] sm:$0xff] %vm235, %v82
  %293 = vst.msk [vmem:[%s234 + $0x3d0] sm:$0xff] %vm235, %v83
  %294 = vst.msk [vmem:[%s234 + $0x3e8] sm:$0xff] %vm235, %v84
  %295 = vst.msk [vmem:[%s234 + $0x3f0] sm:$0xff] %vm235, %v85
  %296 = vst.msk [vmem:[%s234 + $0x408] sm:$0xff] %vm235, %v86
  %297 = vst.msk [vmem:[%s234 + $0x410] sm:$0xff] %vm235, %v87
  %298 = vst.msk [vmem:[%s234 + $0x428] sm:$0xff] %vm235, %v88
  %299 = vst.msk [vmem:[%s234 + $0x430] sm:$0xff] %vm235, %v89
  %v300 = vld [vmem:[#allocation2 + $0x7] sm:$0xff]
  %v301 = vld [vmem:[#allocation2 + $0xf] sm:$0xff]
  %v302 = vld [vmem:[#allocation2 + $0x27] sm:$0xff]
  %v303 = vld [vmem:[#allocation2 + $0x2f] sm:$0xff]
  %v304 = vld [vmem:[#allocation2 + $0x47] sm:$0xff]
  %v305 = vld [vmem:[#allocation2 + $0x4f] sm:$0xff]
  %v306 = vld [vmem:[#allocation2 + $0x67] sm:$0xff]
  %v307 = vld [vmem:[#allocation2 + $0x6f] sm:$0xff]
  %v308 = vld [vmem:[#allocation2 + $0x87] sm:$0xff]
  %v309 = vld [vmem:[#allocation2 + $0x8f] sm:$0xff]
  %v310 = vld [vmem:[#allocation2 + $0xa7] sm:$0xff]
  %v311 = vld [vmem:[#allocation2 + $0xaf] sm:$0xff]
  %v312 = vld [vmem:[#allocation2 + $0xc7] sm:$0xff]
  %v313 = vld [vmem:[#allocation2 + $0xcf] sm:$0xff]
  %v314 = vld [vmem:[#allocation2 + $0xe7] sm:$0xff]
  %v315 = vld [vmem:[#allocation2 + $0xef] sm:$0xff]
  %v316 = vld [vmem:[#allocation2 + $0x107] sm:$0xff]
  %v317 = vld [vmem:[#allocation2 + $0x10f] sm:$0xff]
  %v318 = vld [vmem:[#allocation2 + $0x127] sm:$0xff]
  %v319 = vld [vmem:[#allocation2 + $0x12f] sm:$0xff]
  %v320 = vld [vmem:[#allocation2 + $0x147] sm:$0xff]
  %v321 = vld [vmem:[#allocation2 + $0x14f] sm:$0xff]
  %v322 = vld [vmem:[#allocation2 + $0x167] sm:$0xff]
  %v323 = vld [vmem:[#allocation2 + $0x16f] sm:$0xff]
  %v324 = vld [vmem:[#allocation2 + $0x187] sm:$0xff]
  %v325 = vld [vmem:[#allocation2 + $0x18f] sm:$0xff]
  %v326 = vld [vmem:[#allocation2 + $0x1a7] sm:$0xff]
  %v327 = vld [vmem:[#allocation2 + $0x1af] sm:$0xff]
  %v328 = vld [vmem:[#allocation2 + $0x1c7] sm:$0xff]
  %v329 = vld [vmem:[#allocation2 + $0x1cf] sm:$0xff]
  %v330 = vld [vmem:[#allocation2 + $0x1e7] sm:$0xff]
  %v331 = vld [vmem:[#allocation2 + $0x1ef] sm:$0xff]
  %v332 = vld [vmem:[#allocation2 + $0x247] sm:$0xff]
  %v333 = vld [vmem:[#allocation2 + $0x24f] sm:$0xff]
  %v334 = vld [vmem:[#allocation2 + $0x267] sm:$0xff]
  %v335 = vld [vmem:[#allocation2 + $0x26f] sm:$0xff]
  %v336 = vld [vmem:[#allocation2 + $0x287] sm:$0xff]
  %v337 = vld [vmem:[#allocation2 + $0x28f] sm:$0xff]
  %v338 = vld [vmem:[#allocation2 + $0x2a7] sm:$0xff]
  %v339 = vld [vmem:[#allocation2 + $0x2af] sm:$0xff]
  %v340 = vld [vmem:[#allocation2 + $0x2c7] sm:$0xff]
  %v341 = vld [vmem:[#allocation2 + $0x2cf] sm:$0xff]
  %v342 = vld [vmem:[#allocation2 + $0x2e7] sm:$0xff]
  %v343 = vld [vmem:[#allocation2 + $0x2ef] sm:$0xff]
  %v344 = vld [vmem:[#allocation2 + $0x307] sm:$0xff]
  %v345 = vld [vmem:[#allocation2 + $0x30f] sm:$0xff]
  %v346 = vld [vmem:[#allocation2 + $0x327] sm:$0xff]
  %v347 = vld [vmem:[#allocation2 + $0x32f] sm:$0xff]
  %v348 = vld [vmem:[#allocation2 + $0x347] sm:$0xff]
  %v349 = vld [vmem:[#allocation2 + $0x34f] sm:$0xff]
  %v350 = vld [vmem:[#allocation2 + $0x367] sm:$0xff]
  %v351 = vld [vmem:[#allocation2 + $0x36f] sm:$0xff]
  %v352 = vld [vmem:[#allocation2 + $0x387] sm:$0xff]
  %v353 = vld [vmem:[#allocation2 + $0x38f] sm:$0xff]
  %v354 = vld [vmem:[#allocation2 + $0x3a7] sm:$0xff]
  %v355 = vld [vmem:[#allocation2 + $0x3af] sm:$0xff]
  %v356 = vld [vmem:[#allocation2 + $0x3c7] sm:$0xff]
  %v357 = vld [vmem:[#allocation2 + $0x3cf] sm:$0xff]
  %v358 = vld [vmem:[#allocation2 + $0x3e7] sm:$0xff]
  %v359 = vld [vmem:[#allocation2 + $0x3ef] sm:$0xff]
  %v360 = vld [vmem:[#allocation2 + $0x407] sm:$0xff]
  %v361 = vld [vmem:[#allocation2 + $0x40f] sm:$0xff]
  %v362 = vld [vmem:[#allocation2 + $0x427] sm:$0xff]
  %v363 = vld [vmem:[#allocation2 + $0x42f] sm:$0xff]
  %v364 = vld [vmem:[%s1] sm:$0xff]
  %v365 = vld [vmem:[%s1 + $0x8] sm:$0xff]
  %v366 = vld [vmem:[%s1 + $0x10] sm:$0xff]
  %v367 = vld [vmem:[%s1 + $0x18] sm:$0xff]
  %v368 = vld [vmem:[%s1 + $0x20] sm:$0xff]
  %v369 = vld [vmem:[%s1 + $0x28] sm:$0xff]
  %v370 = vld [vmem:[%s1 + $0x30] sm:$0xff]
  %v371 = vld [vmem:[%s1 + $0x38] sm:$0xff]
  %v372 = vld [vmem:[%s1 + $0x40] sm:$0xff]
  %v373 = vld [vmem:[%s1 + $0x48] sm:$0xff]
  %v374 = vld [vmem:[%s1 + $0x50] sm:$0xff]
  %v375 = vld [vmem:[%s1 + $0x58] sm:$0xff]
  %v376 = vld [vmem:[%s1 + $0x60] sm:$0xff]
  %v377 = vld [vmem:[%s1 + $0x68] sm:$0xff]
  %v378 = vld [vmem:[%s1 + $0x70] sm:$0xff]
  %v379 = vld [vmem:[%s1 + $0x78] sm:$0xff]
  %v380 = vld [vmem:[#allocation2 + $0x8] sm:$0xff]
  %v381 = vld [vmem:[#allocation2 + $0x10] sm:$0xff]
  %v382 = vld [vmem:[#allocation2 + $0x28] sm:$0xff]
  %v383 = vld [vmem:[#allocation2 + $0x30] sm:$0xff]
  %v384 = vld [vmem:[#allocation2 + $0x48] sm:$0xff]
  %v385 = vld [vmem:[#allocation2 + $0x50] sm:$0xff]
  %v386 = vld [vmem:[#allocation2 + $0x68] sm:$0xff]
  %v387 = vld [vmem:[#allocation2 + $0x70] sm:$0xff]
  %v388 = vld [vmem:[#allocation2 + $0x88] sm:$0xff]
  %v389 = vld [vmem:[#allocation2 + $0x90] sm:$0xff]
  %v390 = vld [vmem:[#allocation2 + $0xa8] sm:$0xff]
  %v391 = vld [vmem:[#allocation2 + $0xb0] sm:$0xff]
  %v392 = vld [vmem:[#allocation2 + $0xc8] sm:$0xff]
  %v393 = vld [vmem:[#allocation2 + $0xd0] sm:$0xff]
  %v394 = vld [vmem:[#allocation2 + $0xe8] sm:$0xff]
  %v395 = vld [vmem:[#allocation2 + $0xf0] sm:$0xff]
  %v396 = vld [vmem:[#allocation2 + $0x108] sm:$0xff]
  %v397 = vld [vmem:[#allocation2 + $0x110] sm:$0xff]
  %v398 = vld [vmem:[#allocation2 + $0x128] sm:$0xff]
  %v399 = vld [vmem:[#allocation2 + $0x130] sm:$0xff]
  %v400 = vld [vmem:[#allocation2 + $0x148] sm:$0xff]
  %v401 = vld [vmem:[#allocation2 + $0x150] sm:$0xff]
  %v402 = vld [vmem:[#allocation2 + $0x168] sm:$0xff]
  %v403 = vld [vmem:[#allocation2 + $0x170] sm:$0xff]
  %v404 = vld [vmem:[#allocation2 + $0x188] sm:$0xff]
  %v405 = vld [vmem:[#allocation2 + $0x190] sm:$0xff]
  %v406 = vld [vmem:[#allocation2 + $0x1a8] sm:$0xff]
  %v407 = vld [vmem:[#allocation2 + $0x1b0] sm:$0xff]
  %v408 = vld [vmem:[#allocation2 + $0x1c8] sm:$0xff]
  %v409 = vld [vmem:[#allocation2 + $0x1d0] sm:$0xff]
  %v410 = vld [vmem:[#allocation2 + $0x1e8] sm:$0xff]
  %v411 = vld [vmem:[#allocation2 + $0x1f0] sm:$0xff]
  %v412 = vld [vmem:[#allocation2 + $0x248] sm:$0xff]
  %v413 = vld [vmem:[#allocation2 + $0x250] sm:$0xff]
  %v414 = vld [vmem:[#allocation2 + $0x268] sm:$0xff]
  %v415 = vld [vmem:[#allocation2 + $0x270] sm:$0xff]
  %v416 = vld [vmem:[#allocation2 + $0x288] sm:$0xff]
  %v417 = vld [vmem:[#allocation2 + $0x290] sm:$0xff]
  %v418 = vld [vmem:[#allocation2 + $0x2a8] sm:$0xff]
  %v419 = vld [vmem:[#allocation2 + $0x2b0] sm:$0xff]
  %v420 = vld [vmem:[#allocation2 + $0x2c8] sm:$0xff]
  %v421 = vld [vmem:[#allocation2 + $0x2d0] sm:$0xff]
  %v422 = vld [vmem:[#allocation2 + $0x2e8] sm:$0xff]
  %v423 = vld [vmem:[#allocation2 + $0x2f0] sm:$0xff]
  %v424 = vld [vmem:[#allocation2 + $0x308] sm:$0xff]
  %v425 = vld [vmem:[#allocation2 + $0x310] sm:$0xff]
  %v426 = vld [vmem:[#allocation2 + $0x328] sm:$0xff]
  %v427 = vld [vmem:[#allocation2 + $0x330] sm:$0xff]
  %v428 = vld [vmem:[#allocation2 + $0x348] sm:$0xff]
  %v429 = vld [vmem:[#allocation2 + $0x350] sm:$0xff]
  %v430 = vld [vmem:[#allocation2 + $0x368] sm:$0xff]
  %v431 = vld [vmem:[#allocation2 + $0x370] sm:$0xff]
  %v432 = vld [vmem:[#allocation2 + $0x388] sm:$0xff]
  %v433 = vld [vmem:[#allocation2 + $0x390] sm:$0xff]
  %v434 = vld [vmem:[#allocation2 + $0x3a8] sm:$0xff]
  %v435 = vld [vmem:[#allocation2 + $0x3b0] sm:$0xff]
  %v436 = vld [vmem:[#allocation2 + $0x3c8] sm:$0xff]
  %v437 = vld [vmem:[#allocation2 + $0x3d0] sm:$0xff]
  %v438 = vld [vmem:[#allocation2 + $0x3e8] sm:$0xff]
  %v439 = vld [vmem:[#allocation2 + $0x3f0] sm:$0xff]
  %v440 = vld [vmem:[#allocation2 + $0x408] sm:$0xff]
  %v441 = vld [vmem:[#allocation2 + $0x410] sm:$0xff]
  %v442 = vld [vmem:[#allocation2 + $0x428] sm:$0xff]
  %v443 = vld [vmem:[#allocation2 + $0x430] sm:$0xff]
  %s444 = scalar_lea.vmem %s1, 128
  %v445 = vld [vmem:[%s444] sm:$0xff]
  %v446 = vld [vmem:[%s444 + $0x8] sm:$0xff]
  %v447 = vld [vmem:[%s444 + $0x10] sm:$0xff]
  %v448 = vld [vmem:[%s444 + $0x18] sm:$0xff]
  %v449 = vld [vmem:[%s444 + $0x20] sm:$0xff]
  %v450 = vld [vmem:[%s444 + $0x28] sm:$0xff]
  %v451 = vld [vmem:[%s444 + $0x30] sm:$0xff]
  %v452 = vld [vmem:[%s444 + $0x38] sm:$0xff]
  %v453 = vld [vmem:[%s444 + $0x40] sm:$0xff]
  %v454 = vld [vmem:[%s444 + $0x48] sm:$0xff]
  %v455 = vld [vmem:[%s444 + $0x50] sm:$0xff]
  %v456 = vld [vmem:[%s444 + $0x58] sm:$0xff]
  %v457 = vld [vmem:[%s444 + $0x60] sm:$0xff]
  %v458 = vld [vmem:[%s444 + $0x68] sm:$0xff]
  %v459 = vld [vmem:[%s444 + $0x70] sm:$0xff]
  %v460 = vld [vmem:[%s444 + $0x78] sm:$0xff]
  %461 = vmatpush.msra.mxu0 %v460
  %462 = vmatpush.msra.mxu0 %v459
  %463 = vmatpush.msra.mxu0 %v458
  %464 = vmatpush.msra.mxu0 %v457
  %465 = vmatpush.msra.mxu0 %v456
  %466 = vmatpush.msra.mxu0 %v455
  %467 = vmatpush.msra.mxu0 %v454
  %468 = vmatpush.msra.mxu0 %v453
  %469 = vmatpush.msra.mxu0 %v452
  %470 = vmatpush.msra.mxu0 %v451
  %471 = vmatpush.msra.mxu0 %v450
  %472 = vmatpush.msra.mxu0 %v449
  %473 = vmatpush.msra.mxu0 %v448
  %474 = vmatpush.msra.mxu0 %v447
  %475 = vmatpush.msra.mxu0 %v446
  %476 = vmatpush.msra.mxu0 %v445
  %477 = vmatmul.f32.gmra.mxu0 %v380
  %v478 = vpop.f32.mrf.mxu0
  %v479 = vadd.f32 0.0, %v478
  %480 = vmatmul.f32.gmra.mxu0 %v381
  %v481 = vpop.f32.mrf.mxu0
  %v482 = vadd.f32 0.0, %v481
  %483 = vmatmul.f32.gmra.mxu0 %v382
  %v484 = vpop.f32.mrf.mxu0
  %v485 = vadd.f32 0.0, %v484
  %486 = vmatmul.f32.gmra.mxu0 %v383
  %v487 = vpop.f32.mrf.mxu0
  %v488 = vadd.f32 0.0, %v487
  %489 = vmatmul.f32.gmra.mxu0 %v384
  %v490 = vpop.f32.mrf.mxu0
  %v491 = vadd.f32 0.0, %v490
  %492 = vmatmul.f32.gmra.mxu0 %v385
  %v493 = vpop.f32.mrf.mxu0
  %v494 = vadd.f32 0.0, %v493
  %495 = vmatmul.f32.gmra.mxu0 %v386
  %v496 = vpop.f32.mrf.mxu0
  %v497 = vadd.f32 0.0, %v496
  %498 = vmatmul.f32.gmra.mxu0 %v387
  %v499 = vpop.f32.mrf.mxu0
  %v500 = vadd.f32 0.0, %v499
  %501 = vmatmul.f32.gmra.mxu0 %v388
  %v502 = vpop.f32.mrf.mxu0
  %v503 = vadd.f32 0.0, %v502
  %504 = vmatmul.f32.gmra.mxu0 %v389
  %v505 = vpop.f32.mrf.mxu0
  %v506 = vadd.f32 0.0, %v505
  %507 = vmatmul.f32.gmra.mxu0 %v390
  %v508 = vpop.f32.mrf.mxu0
  %v509 = vadd.f32 0.0, %v508
  %510 = vmatmul.f32.gmra.mxu0 %v391
  %v511 = vpop.f32.mrf.mxu0
  %v512 = vadd.f32 0.0, %v511
  %513 = vmatmul.f32.gmra.mxu0 %v392
  %v514 = vpop.f32.mrf.mxu0
  %v515 = vadd.f32 0.0, %v514
  %516 = vmatmul.f32.gmra.mxu0 %v393
  %v517 = vpop.f32.mrf.mxu0
  %v518 = vadd.f32 0.0, %v517
  %519 = vmatmul.f32.gmra.mxu0 %v394
  %v520 = vpop.f32.mrf.mxu0
  %v521 = vadd.f32 0.0, %v520
  %522 = vmatmul.f32.gmra.mxu0 %v395
  %v523 = vpop.f32.mrf.mxu0
  %v524 = vadd.f32 0.0, %v523
  %525 = vmatmul.f32.gmra.mxu0 %v396
  %v526 = vpop.f32.mrf.mxu0
  %v527 = vadd.f32 0.0, %v526
  %528 = vmatmul.f32.gmra.mxu0 %v397
  %v529 = vpop.f32.mrf.mxu0
  %v530 = vadd.f32 0.0, %v529
  %531 = vmatmul.f32.gmra.mxu0 %v398
  %v532 = vpop.f32.mrf.mxu0
  %v533 = vadd.f32 0.0, %v532
  %534 = vmatmul.f32.gmra.mxu0 %v399
  %v535 = vpop.f32.mrf.mxu0
  %v536 = vadd.f32 0.0, %v535
  %537 = vmatmul.f32.gmra.mxu0 %v400
  %v538 = vpop.f32.mrf.mxu0
  %v539 = vadd.f32 0.0, %v538
  %540 = vmatmul.f32.gmra.mxu0 %v401
  %v541 = vpop.f32.mrf.mxu0
  %v542 = vadd.f32 0.0, %v541
  %543 = vmatmul.f32.gmra.mxu0 %v402
  %v544 = vpop.f32.mrf.mxu0
  %v545 = vadd.f32 0.0, %v544
  %546 = vmatmul.f32.gmra.mxu0 %v403
  %v547 = vpop.f32.mrf.mxu0
  %v548 = vadd.f32 0.0, %v547
  %549 = vmatmul.f32.gmra.mxu0 %v404
  %v550 = vpop.f32.mrf.mxu0
  %v551 = vadd.f32 0.0, %v550
  %552 = vmatmul.f32.gmra.mxu0 %v405
  %v553 = vpop.f32.mrf.mxu0
  %v554 = vadd.f32 0.0, %v553
  %555 = vmatmul.f32.gmra.mxu0 %v406
  %v556 = vpop.f32.mrf.mxu0
  %v557 = vadd.f32 0.0, %v556
  %558 = vmatmul.f32.gmra.mxu0 %v407
  %v559 = vpop.f32.mrf.mxu0
  %v560 = vadd.f32 0.0, %v559
  %561 = vmatmul.f32.gmra.mxu0 %v408
  %v562 = vpop.f32.mrf.mxu0
  %v563 = vadd.f32 0.0, %v562
  %564 = vmatmul.f32.gmra.mxu0 %v409
  %v565 = vpop.f32.mrf.mxu0
  %v566 = vadd.f32 0.0, %v565
  %567 = vmatmul.f32.gmra.mxu0 %v410
  %v568 = vpop.f32.mrf.mxu0
  %v569 = vadd.f32 0.0, %v568
  %570 = vmatmul.f32.gmra.mxu0 %v411
  %v571 = vpop.f32.mrf.mxu0
  %v572 = vadd.f32 0.0, %v571
  %573 = vmatmul.f32.gmra.mxu0 %v412
  %v574 = vpop.f32.mrf.mxu0
  %v575 = vadd.f32 0.0, %v574
  %576 = vmatmul.f32.gmra.mxu0 %v413
  %v577 = vpop.f32.mrf.mxu0
  %v578 = vadd.f32 0.0, %v577
  %579 = vmatmul.f32.gmra.mxu0 %v414
  %v580 = vpop.f32.mrf.mxu0
  %v581 = vadd.f32 0.0, %v580
  %582 = vmatmul.f32.gmra.mxu0 %v415
  %v583 = vpop.f32.mrf.mxu0
  %v584 = vadd.f32 0.0, %v583
  %585 = vmatmul.f32.gmra.mxu0 %v416
  %v586 = vpop.f32.mrf.mxu0
  %v587 = vadd.f32 0.0, %v586
  %588 = vmatmul.f32.gmra.mxu0 %v417
  %v589 = vpop.f32.mrf.mxu0
  %v590 = vadd.f32 0.0, %v589
  %591 = vmatmul.f32.gmra.mxu0 %v418
  %v592 = vpop.f32.mrf.mxu0
  %v593 = vadd.f32 0.0, %v592
  %594 = vmatmul.f32.gmra.mxu0 %v419
  %v595 = vpop.f32.mrf.mxu0
  %v596 = vadd.f32 0.0, %v595
  %597 = vmatmul.f32.gmra.mxu0 %v420
  %v598 = vpop.f32.mrf.mxu0
  %v599 = vadd.f32 0.0, %v598
  %600 = vmatmul.f32.gmra.mxu0 %v421
  %v601 = vpop.f32.mrf.mxu0
  %v602 = vadd.f32 0.0, %v601
  %603 = vmatmul.f32.gmra.mxu0 %v422
  %v604 = vpop.f32.mrf.mxu0
  %v605 = vadd.f32 0.0, %v604
  %606 = vmatmul.f32.gmra.mxu0 %v423
  %v607 = vpop.f32.mrf.mxu0
  %v608 = vadd.f32 0.0, %v607
  %609 = vmatmul.f32.gmra.mxu0 %v424
  %v610 = vpop.f32.mrf.mxu0
  %v611 = vadd.f32 0.0, %v610
  %612 = vmatmul.f32.gmra.mxu0 %v425
  %v613 = vpop.f32.mrf.mxu0
  %v614 = vadd.f32 0.0, %v613
  %615 = vmatmul.f32.gmra.mxu0 %v426
  %v616 = vpop.f32.mrf.mxu0
  %v617 = vadd.f32 0.0, %v616
  %618 = vmatmul.f32.gmra.mxu0 %v427
  %v619 = vpop.f32.mrf.mxu0
  %v620 = vadd.f32 0.0, %v619
  %621 = vmatmul.f32.gmra.mxu0 %v428
  %v622 = vpop.f32.mrf.mxu0
  %v623 = vadd.f32 0.0, %v622
  %624 = vmatmul.f32.gmra.mxu0 %v429
  %v625 = vpop.f32.mrf.mxu0
  %v626 = vadd.f32 0.0, %v625
  %627 = vmatmul.f32.gmra.mxu0 %v430
  %v628 = vpop.f32.mrf.mxu0
  %v629 = vadd.f32 0.0, %v628
  %630 = vmatmul.f32.gmra.mxu0 %v431
  %v631 = vpop.f32.mrf.mxu0
  %v632 = vadd.f32 0.0, %v631
  %633 = vmatmul.f32.gmra.mxu0 %v432
  %v634 = vpop.f32.mrf.mxu0
  %v635 = vadd.f32 0.0, %v634
  %636 = vmatmul.f32.gmra.mxu0 %v433
  %v637 = vpop.f32.mrf.mxu0
  %v638 = vadd.f32 0.0, %v637
  %639 = vmatmul.f32.gmra.mxu0 %v434
  %v640 = vpop.f32.mrf.mxu0
  %v641 = vadd.f32 0.0, %v640
  %642 = vmatmul.f32.gmra.mxu0 %v435
  %v643 = vpop.f32.mrf.mxu0
  %v644 = vadd.f32 0.0, %v643
  %645 = vmatmul.f32.gmra.mxu0 %v436
  %v646 = vpop.f32.mrf.mxu0
  %v647 = vadd.f32 0.0, %v646
  %648 = vmatmul.f32.gmra.mxu0 %v437
  %v649 = vpop.f32.mrf.mxu0
  %v650 = vadd.f32 0.0, %v649
  %651 = vmatmul.f32.gmra.mxu0 %v438
  %v652 = vpop.f32.mrf.mxu0
  %v653 = vadd.f32 0.0, %v652
  %654 = vmatmul.f32.gmra.mxu0 %v439
  %v655 = vpop.f32.mrf.mxu0
  %v656 = vadd.f32 0.0, %v655
  %657 = vmatmul.f32.gmra.mxu0 %v440
  %v658 = vpop.f32.mrf.mxu0
  %v659 = vadd.f32 0.0, %v658
  %660 = vmatmul.f32.gmra.mxu0 %v441
  %v661 = vpop.f32.mrf.mxu0
  %v662 = vadd.f32 0.0, %v661
  %663 = vmatmul.f32.gmra.mxu0 %v442
  %v664 = vpop.f32.mrf.mxu0
  %v665 = vadd.f32 0.0, %v664
  %666 = vmatmul.f32.gmra.mxu0 %v443
  %v667 = vpop.f32.mrf.mxu0
  %v668 = vadd.f32 0.0, %v667
  %669 = vdwg.mxu0
  %670 = vmatpush.msra.mxu0 %v379
  %671 = vmatpush.msra.mxu0 %v378
  %672 = vmatpush.msra.mxu0 %v377
  %673 = vmatpush.msra.mxu0 %v376
  %674 = vmatpush.msra.mxu0 %v375
  %675 = vmatpush.msra.mxu0 %v374
  %676 = vmatpush.msra.mxu0 %v373
  %677 = vmatpush.msra.mxu0 %v372
  %678 = vmatpush.msra.mxu0 %v371
  %679 = vmatpush.msra.mxu0 %v370
  %680 = vmatpush.msra.mxu0 %v369
  %681 = vmatpush.msra.mxu0 %v368
  %682 = vmatpush.msra.mxu0 %v367
  %683 = vmatpush.msra.mxu0 %v366
  %684 = vmatpush.msra.mxu0 %v365
  %685 = vmatpush.msra.mxu0 %v364
  %686 = vmatmul.f32.gmra.mxu0 %v300
  %v687 = vpop.f32.mrf.mxu0
  %v688 = vadd.f32 %v479, %v687
  %689 = vmatmul.f32.gmra.mxu0 %v301
  %v690 = vpop.f32.mrf.mxu0
  %v691 = vadd.f32 %v482, %v690
  %692 = vmatmul.f32.gmra.mxu0 %v302
  %v693 = vpop.f32.mrf.mxu0
  %v694 = vadd.f32 %v485, %v693
  %695 = vmatmul.f32.gmra.mxu0 %v303
  %v696 = vpop.f32.mrf.mxu0
  %v697 = vadd.f32 %v488, %v696
  %698 = vmatmul.f32.gmra.mxu0 %v304
  %v699 = vpop.f32.mrf.mxu0
  %v700 = vadd.f32 %v491, %v699
  %701 = vmatmul.f32.gmra.mxu0 %v305
  %v702 = vpop.f32.mrf.mxu0
  %v703 = vadd.f32 %v494, %v702
  %704 = vmatmul.f32.gmra.mxu0 %v306
  %v705 = vpop.f32.mrf.mxu0
  %v706 = vadd.f32 %v497, %v705
  %707 = vmatmul.f32.gmra.mxu0 %v307
  %v708 = vpop.f32.mrf.mxu0
  %v709 = vadd.f32 %v500, %v708
  %710 = vmatmul.f32.gmra.mxu0 %v308
  %v711 = vpop.f32.mrf.mxu0
  %v712 = vadd.f32 %v503, %v711
  %713 = vmatmul.f32.gmra.mxu0 %v309
  %v714 = vpop.f32.mrf.mxu0
  %v715 = vadd.f32 %v506, %v714
  %716 = vmatmul.f32.gmra.mxu0 %v310
  %v717 = vpop.f32.mrf.mxu0
  %v718 = vadd.f32 %v509, %v717
  %719 = vmatmul.f32.gmra.mxu0 %v311
  %v720 = vpop.f32.mrf.mxu0
  %v721 = vadd.f32 %v512, %v720
  %722 = vmatmul.f32.gmra.mxu0 %v312
  %v723 = vpop.f32.mrf.mxu0
  %v724 = vadd.f32 %v515, %v723
  %725 = vmatmul.f32.gmra.mxu0 %v313
  %v726 = vpop.f32.mrf.mxu0
  %v727 = vadd.f32 %v518, %v726
  %728 = vmatmul.f32.gmra.mxu0 %v314
  %v729 = vpop.f32.mrf.mxu0
  %v730 = vadd.f32 %v521, %v729
  %731 = vmatmul.f32.gmra.mxu0 %v315
  %v732 = vpop.f32.mrf.mxu0
  %v733 = vadd.f32 %v524, %v732
  %734 = vmatmul.f32.gmra.mxu0 %v316
  %v735 = vpop.f32.mrf.mxu0
  %v736 = vadd.f32 %v527, %v735
  %737 = vmatmul.f32.gmra.mxu0 %v317
  %v738 = vpop.f32.mrf.mxu0
  %v739 = vadd.f32 %v530, %v738
  %740 = vmatmul.f32.gmra.mxu0 %v318
  %v741 = vpop.f32.mrf.mxu0
  %v742 = vadd.f32 %v533, %v741
  %743 = vmatmul.f32.gmra.mxu0 %v319
  %v744 = vpop.f32.mrf.mxu0
  %v745 = vadd.f32 %v536, %v744
  %746 = vmatmul.f32.gmra.mxu0 %v320
  %v747 = vpop.f32.mrf.mxu0
  %v748 = vadd.f32 %v539, %v747
  %749 = vmatmul.f32.gmra.mxu0 %v321
  %v750 = vpop.f32.mrf.mxu0
  %v751 = vadd.f32 %v542, %v750
  %752 = vmatmul.f32.gmra.mxu0 %v322
  %v753 = vpop.f32.mrf.mxu0
  %v754 = vadd.f32 %v545, %v753
  %755 = vmatmul.f32.gmra.mxu0 %v323
  %v756 = vpop.f32.mrf.mxu0
  %v757 = vadd.f32 %v548, %v756
  %758 = vmatmul.f32.gmra.mxu0 %v324
  %v759 = vpop.f32.mrf.mxu0
  %v760 = vadd.f32 %v551, %v759
  %761 = vmatmul.f32.gmra.mxu0 %v325
  %v762 = vpop.f32.mrf.mxu0
  %v763 = vadd.f32 %v554, %v762
  %764 = vmatmul.f32.gmra.mxu0 %v326
  %v765 = vpop.f32.mrf.mxu0
  %v766 = vadd.f32 %v557, %v765
  %767 = vmatmul.f32.gmra.mxu0 %v327
  %v768 = vpop.f32.mrf.mxu0
  %v769 = vadd.f32 %v560, %v768
  %770 = vmatmul.f32.gmra.mxu0 %v328
  %v771 = vpop.f32.mrf.mxu0
  %v772 = vadd.f32 %v563, %v771
  %773 = vmatmul.f32.gmra.mxu0 %v329
  %v774 = vpop.f32.mrf.mxu0
  %v775 = vadd.f32 %v566, %v774
  %776 = vmatmul.f32.gmra.mxu0 %v330
  %v777 = vpop.f32.mrf.mxu0
  %v778 = vadd.f32 %v569, %v777
  %779 = vmatmul.f32.gmra.mxu0 %v331
  %v780 = vpop.f32.mrf.mxu0
  %v781 = vadd.f32 %v572, %v780
  %782 = vmatmul.f32.gmra.mxu0 %v332
  %v783 = vpop.f32.mrf.mxu0
  %v784 = vadd.f32 %v575, %v783
  %785 = vmatmul.f32.gmra.mxu0 %v333
  %v786 = vpop.f32.mrf.mxu0
  %v787 = vadd.f32 %v578, %v786
  %788 = vmatmul.f32.gmra.mxu0 %v334
  %v789 = vpop.f32.mrf.mxu0
  %v790 = vadd.f32 %v581, %v789
  %791 = vmatmul.f32.gmra.mxu0 %v335
  %v792 = vpop.f32.mrf.mxu0
  %v793 = vadd.f32 %v584, %v792
  %794 = vmatmul.f32.gmra.mxu0 %v336
  %v795 = vpop.f32.mrf.mxu0
  %v796 = vadd.f32 %v587, %v795
  %797 = vmatmul.f32.gmra.mxu0 %v337
  %v798 = vpop.f32.mrf.mxu0
  %v799 = vadd.f32 %v590, %v798
  %800 = vmatmul.f32.gmra.mxu0 %v338
  %v801 = vpop.f32.mrf.mxu0
  %v802 = vadd.f32 %v593, %v801
  %803 = vmatmul.f32.gmra.mxu0 %v339
  %v804 = vpop.f32.mrf.mxu0
  %v805 = vadd.f32 %v596, %v804
  %806 = vmatmul.f32.gmra.mxu0 %v340
  %v807 = vpop.f32.mrf.mxu0
  %v808 = vadd.f32 %v599, %v807
  %809 = vmatmul.f32.gmra.mxu0 %v341
  %v810 = vpop.f32.mrf.mxu0
  %v811 = vadd.f32 %v602, %v810
  %812 = vmatmul.f32.gmra.mxu0 %v342
  %v813 = vpop.f32.mrf.mxu0
  %v814 = vadd.f32 %v605, %v813
  %815 = vmatmul.f32.gmra.mxu0 %v343
  %v816 = vpop.f32.mrf.mxu0
  %v817 = vadd.f32 %v608, %v816
  %818 = vmatmul.f32.gmra.mxu0 %v344
  %v819 = vpop.f32.mrf.mxu0
  %v820 = vadd.f32 %v611, %v819
  %821 = vmatmul.f32.gmra.mxu0 %v345
  %v822 = vpop.f32.mrf.mxu0
  %v823 = vadd.f32 %v614, %v822
  %824 = vmatmul.f32.gmra.mxu0 %v346
  %v825 = vpop.f32.mrf.mxu0
  %v826 = vadd.f32 %v617, %v825
  %827 = vmatmul.f32.gmra.mxu0 %v347
  %v828 = vpop.f32.mrf.mxu0
  %v829 = vadd.f32 %v620, %v828
  %830 = vmatmul.f32.gmra.mxu0 %v348
  %v831 = vpop.f32.mrf.mxu0
  %v832 = vadd.f32 %v623, %v831
  %833 = vmatmul.f32.gmra.mxu0 %v349
  %v834 = vpop.f32.mrf.mxu0
  %v835 = vadd.f32 %v626, %v834
  %836 = vmatmul.f32.gmra.mxu0 %v350
  %v837 = vpop.f32.mrf.mxu0
  %v838 = vadd.f32 %v629, %v837
  %839 = vmatmul.f32.gmra.mxu0 %v351
  %v840 = vpop.f32.mrf.mxu0
  %v841 = vadd.f32 %v632, %v840
  %842 = vmatmul.f32.gmra.mxu0 %v352
  %v843 = vpop.f32.mrf.mxu0
  %v844 = vadd.f32 %v635, %v843
  %845 = vmatmul.f32.gmra.mxu0 %v353
  %v846 = vpop.f32.mrf.mxu0
  %v847 = vadd.f32 %v638, %v846
  %848 = vmatmul.f32.gmra.mxu0 %v354
  %v849 = vpop.f32.mrf.mxu0
  %v850 = vadd.f32 %v641, %v849
  %851 = vmatmul.f32.gmra.mxu0 %v355
  %v852 = vpop.f32.mrf.mxu0
  %v853 = vadd.f32 %v644, %v852
  %854 = vmatmul.f32.gmra.mxu0 %v356
  %v855 = vpop.f32.mrf.mxu0
  %v856 = vadd.f32 %v647, %v855
  %857 = vmatmul.f32.gmra.mxu0 %v357
  %v858 = vpop.f32.mrf.mxu0
  %v859 = vadd.f32 %v650, %v858
  %860 = vmatmul.f32.gmra.mxu0 %v358
  %v861 = vpop.f32.mrf.mxu0
  %v862 = vadd.f32 %v653, %v861
  %863 = vmatmul.f32.gmra.mxu0 %v359
  %v864 = vpop.f32.mrf.mxu0
  %v865 = vadd.f32 %v656, %v864
  %866 = vmatmul.f32.gmra.mxu0 %v360
  %v867 = vpop.f32.mrf.mxu0
  %v868 = vadd.f32 %v659, %v867
  %869 = vmatmul.f32.gmra.mxu0 %v361
  %v870 = vpop.f32.mrf.mxu0
  %v871 = vadd.f32 %v662, %v870
  %872 = vmatmul.f32.gmra.mxu0 %v362
  %v873 = vpop.f32.mrf.mxu0
  %v874 = vadd.f32 %v665, %v873
  %875 = vmatmul.f32.gmra.mxu0 %v363
  %v876 = vpop.f32.mrf.mxu0
  %v877 = vadd.f32 %v668, %v876
  %878 = vdwg.mxu0
  %v879 = vld [vmem:[#allocation2 + $0x9] sm:$0xff]
  %v880 = vld [vmem:[#allocation2 + $0x11] sm:$0xff]
  %v881 = vld [vmem:[#allocation2 + $0x29] sm:$0xff]
  %v882 = vld [vmem:[#allocation2 + $0x31] sm:$0xff]
  %v883 = vld [vmem:[#allocation2 + $0x49] sm:$0xff]
  %v884 = vld [vmem:[#allocation2 + $0x51] sm:$0xff]
  %v885 = vld [vmem:[#allocation2 + $0x69] sm:$0xff]
  %v886 = vld [vmem:[#allocation2 + $0x71] sm:$0xff]
  %v887 = vld [vmem:[#allocation2 + $0x89] sm:$0xff]
  %v888 = vld [vmem:[#allocation2 + $0x91] sm:$0xff]
  %v889 = vld [vmem:[#allocation2 + $0xa9] sm:$0xff]
  %v890 = vld [vmem:[#allocation2 + $0xb1] sm:$0xff]
  %v891 = vld [vmem:[#allocation2 + $0xc9] sm:$0xff]
  %v892 = vld [vmem:[#allocation2 + $0xd1] sm:$0xff]
  %v893 = vld [vmem:[#allocation2 + $0xe9] sm:$0xff]
  %v894 = vld [vmem:[#allocation2 + $0xf1] sm:$0xff]
  %v895 = vld [vmem:[#allocation2 + $0x109] sm:$0xff]
  %v896 = vld [vmem:[#allocation2 + $0x111] sm:$0xff]
  %v897 = vld [vmem:[#allocation2 + $0x129] sm:$0xff]
  %v898 = vld [vmem:[#allocation2 + $0x131] sm:$0xff]
  %v899 = vld [vmem:[#allocation2 + $0x149] sm:$0xff]
  %v900 = vld [vmem:[#allocation2 + $0x151] sm:$0xff]
  %v901 = vld [vmem:[#allocation2 + $0x169] sm:$0xff]
  %v902 = vld [vmem:[#allocation2 + $0x171] sm:$0xff]
  %v903 = vld [vmem:[#allocation2 + $0x189] sm:$0xff]
  %v904 = vld [vmem:[#allocation2 + $0x191] sm:$0xff]
  %v905 = vld [vmem:[#allocation2 + $0x1a9] sm:$0xff]
  %v906 = vld [vmem:[#allocation2 + $0x1b1] sm:$0xff]
  %v907 = vld [vmem:[#allocation2 + $0x1c9] sm:$0xff]
  %v908 = vld [vmem:[#allocation2 + $0x1d1] sm:$0xff]
  %v909 = vld [vmem:[#allocation2 + $0x1e9] sm:$0xff]
  %v910 = vld [vmem:[#allocation2 + $0x1f1] sm:$0xff]
  %v911 = vld [vmem:[#allocation2 + $0x249] sm:$0xff]
  %v912 = vld [vmem:[#allocation2 + $0x251] sm:$0xff]
  %v913 = vld [vmem:[#allocation2 + $0x269] sm:$0xff]
  %v914 = vld [vmem:[#allocation2 + $0x271] sm:$0xff]
  %v915 = vld [vmem:[#allocation2 + $0x289] sm:$0xff]
  %v916 = vld [vmem:[#allocation2 + $0x291] sm:$0xff]
  %v917 = vld [vmem:[#allocation2 + $0x2a9] sm:$0xff]
  %v918 = vld [vmem:[#allocation2 + $0x2b1] sm:$0xff]
  %v919 = vld [vmem:[#allocation2 + $0x2c9] sm:$0xff]
  %v920 = vld [vmem:[#allocation2 + $0x2d1] sm:$0xff]
  %v921 = vld [vmem:[#allocation2 + $0x2e9] sm:$0xff]
  %v922 = vld [vmem:[#allocation2 + $0x2f1] sm:$0xff]
  %v923 = vld [vmem:[#allocation2 + $0x309] sm:$0xff]
  %v924 = vld [vmem:[#allocation2 + $0x311] sm:$0xff]
  %v925 = vld [vmem:[#allocation2 + $0x329] sm:$0xff]
  %v926 = vld [vmem:[#allocation2 + $0x331] sm:$0xff]
  %v927 = vld [vmem:[#allocation2 + $0x349] sm:$0xff]
  %v928 = vld [vmem:[#allocation2 + $0x351] sm:$0xff]
  %v929 = vld [vmem:[#allocation2 + $0x369] sm:$0xff]
  %v930 = vld [vmem:[#allocation2 + $0x371] sm:$0xff]
  %v931 = vld [vmem:[#allocation2 + $0x389] sm:$0xff]
  %v932 = vld [vmem:[#allocation2 + $0x391] sm:$0xff]
  %v933 = vld [vmem:[#allocation2 + $0x3a9] sm:$0xff]
  %v934 = vld [vmem:[#allocation2 + $0x3b1] sm:$0xff]
  %v935 = vld [vmem:[#allocation2 + $0x3c9] sm:$0xff]
  %v936 = vld [vmem:[#allocation2 + $0x3d1] sm:$0xff]
  %v937 = vld [vmem:[#allocation2 + $0x3e9] sm:$0xff]
  %v938 = vld [vmem:[#allocation2 + $0x3f1] sm:$0xff]
  %v939 = vld [vmem:[#allocation2 + $0x409] sm:$0xff]
  %v940 = vld [vmem:[#allocation2 + $0x411] sm:$0xff]
  %v941 = vld [vmem:[#allocation2 + $0x429] sm:$0xff]
  %v942 = vld [vmem:[#allocation2 + $0x431] sm:$0xff]
  %s943 = scalar_lea.vmem %s1, 256
  %v944 = vld [vmem:[%s943] sm:$0xff]
  %v945 = vld [vmem:[%s943 + $0x8] sm:$0xff]
  %v946 = vld [vmem:[%s943 + $0x10] sm:$0xff]
  %v947 = vld [vmem:[%s943 + $0x18] sm:$0xff]
  %v948 = vld [vmem:[%s943 + $0x20] sm:$0xff]
  %v949 = vld [vmem:[%s943 + $0x28] sm:$0xff]
  %v950 = vld [vmem:[%s943 + $0x30] sm:$0xff]
  %v951 = vld [vmem:[%s943 + $0x38] sm:$0xff]
  %v952 = vld [vmem:[%s943 + $0x40] sm:$0xff]
  %v953 = vld [vmem:[%s943 + $0x48] sm:$0xff]
  %v954 = vld [vmem:[%s943 + $0x50] sm:$0xff]
  %v955 = vld [vmem:[%s943 + $0x58] sm:$0xff]
  %v956 = vld [vmem:[%s943 + $0x60] sm:$0xff]
  %v957 = vld [vmem:[%s943 + $0x68] sm:$0xff]
  %v958 = vld [vmem:[%s943 + $0x70] sm:$0xff]
  %v959 = vld [vmem:[%s943 + $0x78] sm:$0xff]
  %960 = vmatpush.msra.mxu0 %v959
  %961 = vmatpush.msra.mxu0 %v958
  %962 = vmatpush.msra.mxu0 %v957
  %963 = vmatpush.msra.mxu0 %v956
  %964 = vmatpush.msra.mxu0 %v955
  %965 = vmatpush.msra.mxu0 %v954
  %966 = vmatpush.msra.mxu0 %v953
  %967 = vmatpush.msra.mxu0 %v952
  %968 = vmatpush.msra.mxu0 %v951
  %969 = vmatpush.msra.mxu0 %v950
  %970 = vmatpush.msra.mxu0 %v949
  %971 = vmatpush.msra.mxu0 %v948
  %972 = vmatpush.msra.mxu0 %v947
  %973 = vmatpush.msra.mxu0 %v946
  %974 = vmatpush.msra.mxu0 %v945
  %975 = vmatpush.msra.mxu0 %v944
  %976 = vmatmul.f32.gmra.mxu0 %v879
  %v977 = vpop.f32.mrf.mxu0
  %v978 = vadd.f32 0.0, %v977
  %979 = vmatmul.f32.gmra.mxu0 %v880
  %v980 = vpop.f32.mrf.mxu0
  %v981 = vadd.f32 0.0, %v980
  %982 = vmatmul.f32.gmra.mxu0 %v881
  %v983 = vpop.f32.mrf.mxu0
  %v984 = vadd.f32 0.0, %v983
  %985 = vmatmul.f32.gmra.mxu0 %v882
  %v986 = vpop.f32.mrf.mxu0
  %v987 = vadd.f32 0.0, %v986
  %988 = vmatmul.f32.gmra.mxu0 %v883
  %v989 = vpop.f32.mrf.mxu0
  %v990 = vadd.f32 0.0, %v989
  %991 = vmatmul.f32.gmra.mxu0 %v884
  %v992 = vpop.f32.mrf.mxu0
  %v993 = vadd.f32 0.0, %v992
  %994 = vmatmul.f32.gmra.mxu0 %v885
  %v995 = vpop.f32.mrf.mxu0
  %v996 = vadd.f32 0.0, %v995
  %997 = vmatmul.f32.gmra.mxu0 %v886
  %v998 = vpop.f32.mrf.mxu0
  %v999 = vadd.f32 0.0, %v998
  %1000 = vmatmul.f32.gmra.mxu0 %v887
  %v1001 = vpop.f32.mrf.mxu0
  %v1002 = vadd.f32 0.0, %v1001
  %1003 = vmatmul.f32.gmra.mxu0 %v888
  %v1004 = vpop.f32.mrf.mxu0
  %v1005 = vadd.f32 0.0, %v1004
  %1006 = vmatmul.f32.gmra.mxu0 %v889
  %v1007 = vpop.f32.mrf.mxu0
  %v1008 = vadd.f32 0.0, %v1007
  %1009 = vmatmul.f32.gmra.mxu0 %v890
  %v1010 = vpop.f32.mrf.mxu0
  %v1011 = vadd.f32 0.0, %v1010
  %1012 = vmatmul.f32.gmra.mxu0 %v891
  %v1013 = vpop.f32.mrf.mxu0
  %v1014 = vadd.f32 0.0, %v1013
  %1015 = vmatmul.f32.gmra.mxu0 %v892
  %v1016 = vpop.f32.mrf.mxu0
  %v1017 = vadd.f32 0.0, %v1016
  %1018 = vmatmul.f32.gmra.mxu0 %v893
  %v1019 = vpop.f32.mrf.mxu0
  %v1020 = vadd.f32 0.0, %v1019
  %1021 = vmatmul.f32.gmra.mxu0 %v894
  %v1022 = vpop.f32.mrf.mxu0
  %v1023 = vadd.f32 0.0, %v1022
  %1024 = vmatmul.f32.gmra.mxu0 %v895
  %v1025 = vpop.f32.mrf.mxu0
  %v1026 = vadd.f32 0.0, %v1025
  %1027 = vmatmul.f32.gmra.mxu0 %v896
  %v1028 = vpop.f32.mrf.mxu0
  %v1029 = vadd.f32 0.0, %v1028
  %1030 = vmatmul.f32.gmra.mxu0 %v897
  %v1031 = vpop.f32.mrf.mxu0
  %v1032 = vadd.f32 0.0, %v1031
  %1033 = vmatmul.f32.gmra.mxu0 %v898
  %v1034 = vpop.f32.mrf.mxu0
  %v1035 = vadd.f32 0.0, %v1034
  %1036 = vmatmul.f32.gmra.mxu0 %v899
  %v1037 = vpop.f32.mrf.mxu0
  %v1038 = vadd.f32 0.0, %v1037
  %1039 = vmatmul.f32.gmra.mxu0 %v900
  %v1040 = vpop.f32.mrf.mxu0
  %v1041 = vadd.f32 0.0, %v1040
  %1042 = vmatmul.f32.gmra.mxu0 %v901
  %v1043 = vpop.f32.mrf.mxu0
  %v1044 = vadd.f32 0.0, %v1043
  %1045 = vmatmul.f32.gmra.mxu0 %v902
  %v1046 = vpop.f32.mrf.mxu0
  %v1047 = vadd.f32 0.0, %v1046
  %1048 = vmatmul.f32.gmra.mxu0 %v903
  %v1049 = vpop.f32.mrf.mxu0
  %v1050 = vadd.f32 0.0, %v1049
  %1051 = vmatmul.f32.gmra.mxu0 %v904
  %v1052 = vpop.f32.mrf.mxu0
  %v1053 = vadd.f32 0.0, %v1052
  %1054 = vmatmul.f32.gmra.mxu0 %v905
  %v1055 = vpop.f32.mrf.mxu0
  %v1056 = vadd.f32 0.0, %v1055
  %1057 = vmatmul.f32.gmra.mxu0 %v906
  %v1058 = vpop.f32.mrf.mxu0
  %v1059 = vadd.f32 0.0, %v1058
  %1060 = vmatmul.f32.gmra.mxu0 %v907
  %v1061 = vpop.f32.mrf.mxu0
  %v1062 = vadd.f32 0.0, %v1061
  %1063 = vmatmul.f32.gmra.mxu0 %v908
  %v1064 = vpop.f32.mrf.mxu0
  %v1065 = vadd.f32 0.0, %v1064
  %1066 = vmatmul.f32.gmra.mxu0 %v909
  %v1067 = vpop.f32.mrf.mxu0
  %v1068 = vadd.f32 0.0, %v1067
  %1069 = vmatmul.f32.gmra.mxu0 %v910
  %v1070 = vpop.f32.mrf.mxu0
  %v1071 = vadd.f32 0.0, %v1070
  %1072 = vmatmul.f32.gmra.mxu0 %v911
  %v1073 = vpop.f32.mrf.mxu0
  %v1074 = vadd.f32 0.0, %v1073
  %1075 = vmatmul.f32.gmra.mxu0 %v912
  %v1076 = vpop.f32.mrf.mxu0
  %v1077 = vadd.f32 0.0, %v1076
  %1078 = vmatmul.f32.gmra.mxu0 %v913
  %v1079 = vpop.f32.mrf.mxu0
  %v1080 = vadd.f32 0.0, %v1079
  %1081 = vmatmul.f32.gmra.mxu0 %v914
  %v1082 = vpop.f32.mrf.mxu0
  %v1083 = vadd.f32 0.0, %v1082
  %1084 = vmatmul.f32.gmra.mxu0 %v915
  %v1085 = vpop.f32.mrf.mxu0
  %v1086 = vadd.f32 0.0, %v1085
  %1087 = vmatmul.f32.gmra.mxu0 %v916
  %v1088 = vpop.f32.mrf.mxu0
  %v1089 = vadd.f32 0.0, %v1088
  %1090 = vmatmul.f32.gmra.mxu0 %v917
  %v1091 = vpop.f32.mrf.mxu0
  %v1092 = vadd.f32 0.0, %v1091
  %1093 = vmatmul.f32.gmra.mxu0 %v918
  %v1094 = vpop.f32.mrf.mxu0
  %v1095 = vadd.f32 0.0, %v1094
  %1096 = vmatmul.f32.gmra.mxu0 %v919
  %v1097 = vpop.f32.mrf.mxu0
  %v1098 = vadd.f32 0.0, %v1097
  %1099 = vmatmul.f32.gmra.mxu0 %v920
  %v1100 = vpop.f32.mrf.mxu0
  %v1101 = vadd.f32 0.0, %v1100
  %1102 = vmatmul.f32.gmra.mxu0 %v921
  %v1103 = vpop.f32.mrf.mxu0
  %v1104 = vadd.f32 0.0, %v1103
  %1105 = vmatmul.f32.gmra.mxu0 %v922
  %v1106 = vpop.f32.mrf.mxu0
  %v1107 = vadd.f32 0.0, %v1106
  %1108 = vmatmul.f32.gmra.mxu0 %v923
  %v1109 = vpop.f32.mrf.mxu0
  %v1110 = vadd.f32 0.0, %v1109
  %1111 = vmatmul.f32.gmra.mxu0 %v924
  %v1112 = vpop.f32.mrf.mxu0
  %v1113 = vadd.f32 0.0, %v1112
  %1114 = vmatmul.f32.gmra.mxu0 %v925
  %v1115 = vpop.f32.mrf.mxu0
  %v1116 = vadd.f32 0.0, %v1115
  %1117 = vmatmul.f32.gmra.mxu0 %v926
  %v1118 = vpop.f32.mrf.mxu0
  %v1119 = vadd.f32 0.0, %v1118
  %1120 = vmatmul.f32.gmra.mxu0 %v927
  %v1121 = vpop.f32.mrf.mxu0
  %v1122 = vadd.f32 0.0, %v1121
  %1123 = vmatmul.f32.gmra.mxu0 %v928
  %v1124 = vpop.f32.mrf.mxu0
  %v1125 = vadd.f32 0.0, %v1124
  %1126 = vmatmul.f32.gmra.mxu0 %v929
  %v1127 = vpop.f32.mrf.mxu0
  %v1128 = vadd.f32 0.0, %v1127
  %1129 = vmatmul.f32.gmra.mxu0 %v930
  %v1130 = vpop.f32.mrf.mxu0
  %v1131 = vadd.f32 0.0, %v1130
  %1132 = vmatmul.f32.gmra.mxu0 %v931
  %v1133 = vpop.f32.mrf.mxu0
  %v1134 = vadd.f32 0.0, %v1133
  %1135 = vmatmul.f32.gmra.mxu0 %v932
  %v1136 = vpop.f32.mrf.mxu0
  %v1137 = vadd.f32 0.0, %v1136
  %1138 = vmatmul.f32.gmra.mxu0 %v933
  %v1139 = vpop.f32.mrf.mxu0
  %v1140 = vadd.f32 0.0, %v1139
  %1141 = vmatmul.f32.gmra.mxu0 %v934
  %v1142 = vpop.f32.mrf.mxu0
  %v1143 = vadd.f32 0.0, %v1142
  %1144 = vmatmul.f32.gmra.mxu0 %v935
  %v1145 = vpop.f32.mrf.mxu0
  %v1146 = vadd.f32 0.0, %v1145
  %1147 = vmatmul.f32.gmra.mxu0 %v936
  %v1148 = vpop.f32.mrf.mxu0
  %v1149 = vadd.f32 0.0, %v1148
  %1150 = vmatmul.f32.gmra.mxu0 %v937
  %v1151 = vpop.f32.mrf.mxu0
  %v1152 = vadd.f32 0.0, %v1151
  %1153 = vmatmul.f32.gmra.mxu0 %v938
  %v1154 = vpop.f32.mrf.mxu0
  %v1155 = vadd.f32 0.0, %v1154
  %1156 = vmatmul.f32.gmra.mxu0 %v939
  %v1157 = vpop.f32.mrf.mxu0
  %v1158 = vadd.f32 0.0, %v1157
  %1159 = vmatmul.f32.gmra.mxu0 %v940
  %v1160 = vpop.f32.mrf.mxu0
  %v1161 = vadd.f32 0.0, %v1160
  %1162 = vmatmul.f32.gmra.mxu0 %v941
  %v1163 = vpop.f32.mrf.mxu0
  %v1164 = vadd.f32 0.0, %v1163
  %1165 = vmatmul.f32.gmra.mxu0 %v942
  %v1166 = vpop.f32.mrf.mxu0
  %v1167 = vadd.f32 0.0, %v1166
  %1168 = vdwg.mxu0
  %v1169 = vadd.f32 %v688, %v978
  %v1170 = vadd.f32 %v691, %v981
  %v1171 = vadd.f32 %v694, %v984
  %v1172 = vadd.f32 %v697, %v987
  %v1173 = vadd.f32 %v700, %v990
  %v1174 = vadd.f32 %v703, %v993
  %v1175 = vadd.f32 %v706, %v996
  %v1176 = vadd.f32 %v709, %v999
  %v1177 = vadd.f32 %v712, %v1002
  %v1178 = vadd.f32 %v715, %v1005
  %v1179 = vadd.f32 %v718, %v1008
  %v1180 = vadd.f32 %v721, %v1011
  %v1181 = vadd.f32 %v724, %v1014
  %v1182 = vadd.f32 %v727, %v1017
  %v1183 = vadd.f32 %v730, %v1020
  %v1184 = vadd.f32 %v733, %v1023
  %v1185 = vadd.f32 %v736, %v1026
  %v1186 = vadd.f32 %v739, %v1029
  %v1187 = vadd.f32 %v742, %v1032
  %v1188 = vadd.f32 %v745, %v1035
  %v1189 = vadd.f32 %v748, %v1038
  %v1190 = vadd.f32 %v751, %v1041
  %v1191 = vadd.f32 %v754, %v1044
  %v1192 = vadd.f32 %v757, %v1047
  %v1193 = vadd.f32 %v760, %v1050
  %v1194 = vadd.f32 %v763, %v1053
  %v1195 = vadd.f32 %v766, %v1056
  %v1196 = vadd.f32 %v769, %v1059
  %v1197 = vadd.f32 %v772, %v1062
  %v1198 = vadd.f32 %v775, %v1065
  %v1199 = vadd.f32 %v778, %v1068
  %v1200 = vadd.f32 %v781, %v1071
  %v1201 = vadd.f32 %v784, %v1074
  %v1202 = vadd.f32 %v787, %v1077
  %v1203 = vadd.f32 %v790, %v1080
  %v1204 = vadd.f32 %v793, %v1083
  %v1205 = vadd.f32 %v796, %v1086
  %v1206 = vadd.f32 %v799, %v1089
  %v1207 = vadd.f32 %v802, %v1092
  %v1208 = vadd.f32 %v805, %v1095
  %v1209 = vadd.f32 %v808, %v1098
  %v1210 = vadd.f32 %v811, %v1101
  %v1211 = vadd.f32 %v814, %v1104
  %v1212 = vadd.f32 %v817, %v1107
  %v1213 = vadd.f32 %v820, %v1110
  %v1214 = vadd.f32 %v823, %v1113
  %v1215 = vadd.f32 %v826, %v1116
  %v1216 = vadd.f32 %v829, %v1119
  %v1217 = vadd.f32 %v832, %v1122
  %v1218 = vadd.f32 %v835, %v1125
  %v1219 = vadd.f32 %v838, %v1128
  %v1220 = vadd.f32 %v841, %v1131
  %v1221 = vadd.f32 %v844, %v1134
  %v1222 = vadd.f32 %v847, %v1137
  %v1223 = vadd.f32 %v850, %v1140
  %v1224 = vadd.f32 %v853, %v1143
  %v1225 = vadd.f32 %v856, %v1146
  %v1226 = vadd.f32 %v859, %v1149
  %v1227 = vadd.f32 %v862, %v1152
  %v1228 = vadd.f32 %v865, %v1155
  %v1229 = vadd.f32 %v868, %v1158
  %v1230 = vadd.f32 %v871, %v1161
  %v1231 = vadd.f32 %v874, %v1164
  %v1232 = vadd.f32 %v877, %v1167
  %v1233 = vld [vmem:[%s234 + $0x7] sm:$0xff]
  %v1234 = vld [vmem:[%s234 + $0xf] sm:$0xff]
  %v1235 = vld [vmem:[%s234 + $0x27] sm:$0xff]
  %v1236 = vld [vmem:[%s234 + $0x2f] sm:$0xff]
  %v1237 = vld [vmem:[%s234 + $0x47] sm:$0xff]
  %v1238 = vld [vmem:[%s234 + $0x4f] sm:$0xff]
  %v1239 = vld [vmem:[%s234 + $0x67] sm:$0xff]
  %v1240 = vld [vmem:[%s234 + $0x6f] sm:$0xff]
  %v1241 = vld [vmem:[%s234 + $0x87] sm:$0xff]
  %v1242 = vld [vmem:[%s234 + $0x8f] sm:$0xff]
  %v1243 = vld [vmem:[%s234 + $0xa7] sm:$0xff]
  %v1244 = vld [vmem:[%s234 + $0xaf] sm:$0xff]
  %v1245 = vld [vmem:[%s234 + $0xc7] sm:$0xff]
  %v1246 = vld [vmem:[%s234 + $0xcf] sm:$0xff]
  %v1247 = vld [vmem:[%s234 + $0xe7] sm:$0xff]
  %v1248 = vld [vmem:[%s234 + $0xef] sm:$0xff]
  %v1249 = vld [vmem:[%s234 + $0x107] sm:$0xff]
  %v1250 = vld [vmem:[%s234 + $0x10f] sm:$0xff]
  %v1251 = vld [vmem:[%s234 + $0x127] sm:$0xff]
  %v1252 = vld [vmem:[%s234 + $0x12f] sm:$0xff]
  %v1253 = vld [vmem:[%s234 + $0x147] sm:$0xff]
  %v1254 = vld [vmem:[%s234 + $0x14f] sm:$0xff]
  %v1255 = vld [vmem:[%s234 + $0x167] sm:$0xff]
  %v1256 = vld [vmem:[%s234 + $0x16f] sm:$0xff]
  %v1257 = vld [vmem:[%s234 + $0x187] sm:$0xff]
  %v1258 = vld [vmem:[%s234 + $0x18f] sm:$0xff]
  %v1259 = vld [vmem:[%s234 + $0x1a7] sm:$0xff]
  %v1260 = vld [vmem:[%s234 + $0x1af] sm:$0xff]
  %v1261 = vld [vmem:[%s234 + $0x1c7] sm:$0xff]
  %v1262 = vld [vmem:[%s234 + $0x1cf] sm:$0xff]
  %v1263 = vld [vmem:[%s234 + $0x1e7] sm:$0xff]
  %v1264 = vld [vmem:[%s234 + $0x1ef] sm:$0xff]
  %v1265 = vld [vmem:[%s234 + $0x247] sm:$0xff]
  %v1266 = vld [vmem:[%s234 + $0x24f] sm:$0xff]
  %v1267 = vld [vmem:[%s234 + $0x267] sm:$0xff]
  %v1268 = vld [vmem:[%s234 + $0x26f] sm:$0xff]
  %v1269 = vld [vmem:[%s234 + $0x287] sm:$0xff]
  %v1270 = vld [vmem:[%s234 + $0x28f] sm:$0xff]
  %v1271 = vld [vmem:[%s234 + $0x2a7] sm:$0xff]
  %v1272 = vld [vmem:[%s234 + $0x2af] sm:$0xff]
  %v1273 = vld [vmem:[%s234 + $0x2c7] sm:$0xff]
  %v1274 = vld [vmem:[%s234 + $0x2cf] sm:$0xff]
  %v1275 = vld [vmem:[%s234 + $0x2e7] sm:$0xff]
  %v1276 = vld [vmem:[%s234 + $0x2ef] sm:$0xff]
  %v1277 = vld [vmem:[%s234 + $0x307] sm:$0xff]
  %v1278 = vld [vmem:[%s234 + $0x30f] sm:$0xff]
  %v1279 = vld [vmem:[%s234 + $0x327] sm:$0xff]
  %v1280 = vld [vmem:[%s234 + $0x32f] sm:$0xff]
  %v1281 = vld [vmem:[%s234 + $0x347] sm:$0xff]
  %v1282 = vld [vmem:[%s234 + $0x34f] sm:$0xff]
  %v1283 = vld [vmem:[%s234 + $0x367] sm:$0xff]
  %v1284 = vld [vmem:[%s234 + $0x36f] sm:$0xff]
  %v1285 = vld [vmem:[%s234 + $0x387] sm:$0xff]
  %v1286 = vld [vmem:[%s234 + $0x38f] sm:$0xff]
  %v1287 = vld [vmem:[%s234 + $0x3a7] sm:$0xff]
  %v1288 = vld [vmem:[%s234 + $0x3af] sm:$0xff]
  %v1289 = vld [vmem:[%s234 + $0x3c7] sm:$0xff]
  %v1290 = vld [vmem:[%s234 + $0x3cf] sm:$0xff]
  %v1291 = vld [vmem:[%s234 + $0x3e7] sm:$0xff]
  %v1292 = vld [vmem:[%s234 + $0x3ef] sm:$0xff]
  %v1293 = vld [vmem:[%s234 + $0x407] sm:$0xff]
  %v1294 = vld [vmem:[%s234 + $0x40f] sm:$0xff]
  %v1295 = vld [vmem:[%s234 + $0x427] sm:$0xff]
  %v1296 = vld [vmem:[%s234 + $0x42f] sm:$0xff]
  %s1297 = scalar_lea.vmem %s1, 384
  %v1298 = vld [vmem:[%s1297] sm:$0xff]
  %v1299 = vld [vmem:[%s1297 + $0x8] sm:$0xff]
  %v1300 = vld [vmem:[%s1297 + $0x10] sm:$0xff]
  %v1301 = vld [vmem:[%s1297 + $0x18] sm:$0xff]
  %v1302 = vld [vmem:[%s1297 + $0x20] sm:$0xff]
  %v1303 = vld [vmem:[%s1297 + $0x28] sm:$0xff]
  %v1304 = vld [vmem:[%s1297 + $0x30] sm:$0xff]
  %v1305 = vld [vmem:[%s1297 + $0x38] sm:$0xff]
  %v1306 = vld [vmem:[%s1297 + $0x40] sm:$0xff]
  %v1307 = vld [vmem:[%s1297 + $0x48] sm:$0xff]
  %v1308 = vld [vmem:[%s1297 + $0x50] sm:$0xff]
  %v1309 = vld [vmem:[%s1297 + $0x58] sm:$0xff]
  %v1310 = vld [vmem:[%s1297 + $0x60] sm:$0xff]
  %v1311 = vld [vmem:[%s1297 + $0x68] sm:$0xff]
  %v1312 = vld [vmem:[%s1297 + $0x70] sm:$0xff]
  %v1313 = vld [vmem:[%s1297 + $0x78] sm:$0xff]
  %1314 = vmatpush.msra.mxu0 %v1313
  %1315 = vmatpush.msra.mxu0 %v1312
  %1316 = vmatpush.msra.mxu0 %v1311
  %1317 = vmatpush.msra.mxu0 %v1310
  %1318 = vmatpush.msra.mxu0 %v1309
  %1319 = vmatpush.msra.mxu0 %v1308
  %1320 = vmatpush.msra.mxu0 %v1307
  %1321 = vmatpush.msra.mxu0 %v1306
  %1322 = vmatpush.msra.mxu0 %v1305
  %1323 = vmatpush.msra.mxu0 %v1304
  %1324 = vmatpush.msra.mxu0 %v1303
  %1325 = vmatpush.msra.mxu0 %v1302
  %1326 = vmatpush.msra.mxu0 %v1301
  %1327 = vmatpush.msra.mxu0 %v1300
  %1328 = vmatpush.msra.mxu0 %v1299
  %1329 = vmatpush.msra.mxu0 %v1298
  %1330 = vmatmul.f32.gmra.mxu0 %v1233
  %v1331 = vpop.f32.mrf.mxu0
  %v1332 = vadd.f32 0.0, %v1331
  %1333 = vmatmul.f32.gmra.mxu0 %v1234
  %v1334 = vpop.f32.mrf.mxu0
  %v1335 = vadd.f32 0.0, %v1334
  %1336 = vmatmul.f32.gmra.mxu0 %v1235
  %v1337 = vpop.f32.mrf.mxu0
  %v1338 = vadd.f32 0.0, %v1337
  %1339 = vmatmul.f32.gmra.mxu0 %v1236
  %v1340 = vpop.f32.mrf.mxu0
  %v1341 = vadd.f32 0.0, %v1340
  %1342 = vmatmul.f32.gmra.mxu0 %v1237
  %v1343 = vpop.f32.mrf.mxu0
  %v1344 = vadd.f32 0.0, %v1343
  %1345 = vmatmul.f32.gmra.mxu0 %v1238
  %v1346 = vpop.f32.mrf.mxu0
  %v1347 = vadd.f32 0.0, %v1346
  %1348 = vmatmul.f32.gmra.mxu0 %v1239
  %v1349 = vpop.f32.mrf.mxu0
  %v1350 = vadd.f32 0.0, %v1349
  %1351 = vmatmul.f32.gmra.mxu0 %v1240
  %v1352 = vpop.f32.mrf.mxu0
  %v1353 = vadd.f32 0.0, %v1352
  %1354 = vmatmul.f32.gmra.mxu0 %v1241
  %v1355 = vpop.f32.mrf.mxu0
  %v1356 = vadd.f32 0.0, %v1355
  %1357 = vmatmul.f32.gmra.mxu0 %v1242
  %v1358 = vpop.f32.mrf.mxu0
  %v1359 = vadd.f32 0.0, %v1358
  %1360 = vmatmul.f32.gmra.mxu0 %v1243
  %v1361 = vpop.f32.mrf.mxu0
  %v1362 = vadd.f32 0.0, %v1361
  %1363 = vmatmul.f32.gmra.mxu0 %v1244
  %v1364 = vpop.f32.mrf.mxu0
  %v1365 = vadd.f32 0.0, %v1364
  %1366 = vmatmul.f32.gmra.mxu0 %v1245
  %v1367 = vpop.f32.mrf.mxu0
  %v1368 = vadd.f32 0.0, %v1367
  %1369 = vmatmul.f32.gmra.mxu0 %v1246
  %v1370 = vpop.f32.mrf.mxu0
  %v1371 = vadd.f32 0.0, %v1370
  %1372 = vmatmul.f32.gmra.mxu0 %v1247
  %v1373 = vpop.f32.mrf.mxu0
  %v1374 = vadd.f32 0.0, %v1373
  %1375 = vmatmul.f32.gmra.mxu0 %v1248
  %v1376 = vpop.f32.mrf.mxu0
  %v1377 = vadd.f32 0.0, %v1376
  %1378 = vmatmul.f32.gmra.mxu0 %v1249
  %v1379 = vpop.f32.mrf.mxu0
  %v1380 = vadd.f32 0.0, %v1379
  %1381 = vmatmul.f32.gmra.mxu0 %v1250
  %v1382 = vpop.f32.mrf.mxu0
  %v1383 = vadd.f32 0.0, %v1382
  %1384 = vmatmul.f32.gmra.mxu0 %v1251
  %v1385 = vpop.f32.mrf.mxu0
  %v1386 = vadd.f32 0.0, %v1385
  %1387 = vmatmul.f32.gmra.mxu0 %v1252
  %v1388 = vpop.f32.mrf.mxu0
  %v1389 = vadd.f32 0.0, %v1388
  %1390 = vmatmul.f32.gmra.mxu0 %v1253
  %v1391 = vpop.f32.mrf.mxu0
  %v1392 = vadd.f32 0.0, %v1391
  %1393 = vmatmul.f32.gmra.mxu0 %v1254
  %v1394 = vpop.f32.mrf.mxu0
  %v1395 = vadd.f32 0.0, %v1394
  %1396 = vmatmul.f32.gmra.mxu0 %v1255
  %v1397 = vpop.f32.mrf.mxu0
  %v1398 = vadd.f32 0.0, %v1397
  %1399 = vmatmul.f32.gmra.mxu0 %v1256
  %v1400 = vpop.f32.mrf.mxu0
  %v1401 = vadd.f32 0.0, %v1400
  %1402 = vmatmul.f32.gmra.mxu0 %v1257
  %v1403 = vpop.f32.mrf.mxu0
  %v1404 = vadd.f32 0.0, %v1403
  %1405 = vmatmul.f32.gmra.mxu0 %v1258
  %v1406 = vpop.f32.mrf.mxu0
  %v1407 = vadd.f32 0.0, %v1406
  %1408 = vmatmul.f32.gmra.mxu0 %v1259
  %v1409 = vpop.f32.mrf.mxu0
  %v1410 = vadd.f32 0.0, %v1409
  %1411 = vmatmul.f32.gmra.mxu0 %v1260
  %v1412 = vpop.f32.mrf.mxu0
  %v1413 = vadd.f32 0.0, %v1412
  %1414 = vmatmul.f32.gmra.mxu0 %v1261
  %v1415 = vpop.f32.mrf.mxu0
  %v1416 = vadd.f32 0.0, %v1415
  %1417 = vmatmul.f32.gmra.mxu0 %v1262
  %v1418 = vpop.f32.mrf.mxu0
  %v1419 = vadd.f32 0.0, %v1418
  %1420 = vmatmul.f32.gmra.mxu0 %v1263
  %v1421 = vpop.f32.mrf.mxu0
  %v1422 = vadd.f32 0.0, %v1421
  %1423 = vmatmul.f32.gmra.mxu0 %v1264
  %v1424 = vpop.f32.mrf.mxu0
  %v1425 = vadd.f32 0.0, %v1424
  %1426 = vmatmul.f32.gmra.mxu0 %v1265
  %v1427 = vpop.f32.mrf.mxu0
  %v1428 = vadd.f32 0.0, %v1427
  %1429 = vmatmul.f32.gmra.mxu0 %v1266
  %v1430 = vpop.f32.mrf.mxu0
  %v1431 = vadd.f32 0.0, %v1430
  %1432 = vmatmul.f32.gmra.mxu0 %v1267
  %v1433 = vpop.f32.mrf.mxu0
  %v1434 = vadd.f32 0.0, %v1433
  %1435 = vmatmul.f32.gmra.mxu0 %v1268
  %v1436 = vpop.f32.mrf.mxu0
  %v1437 = vadd.f32 0.0, %v1436
  %1438 = vmatmul.f32.gmra.mxu0 %v1269
  %v1439 = vpop.f32.mrf.mxu0
  %v1440 = vadd.f32 0.0, %v1439
  %1441 = vmatmul.f32.gmra.mxu0 %v1270
  %v1442 = vpop.f32.mrf.mxu0
  %v1443 = vadd.f32 0.0, %v1442
  %1444 = vmatmul.f32.gmra.mxu0 %v1271
  %v1445 = vpop.f32.mrf.mxu0
  %v1446 = vadd.f32 0.0, %v1445
  %1447 = vmatmul.f32.gmra.mxu0 %v1272
  %v1448 = vpop.f32.mrf.mxu0
  %v1449 = vadd.f32 0.0, %v1448
  %1450 = vmatmul.f32.gmra.mxu0 %v1273
  %v1451 = vpop.f32.mrf.mxu0
  %v1452 = vadd.f32 0.0, %v1451
  %1453 = vmatmul.f32.gmra.mxu0 %v1274
  %v1454 = vpop.f32.mrf.mxu0
  %v1455 = vadd.f32 0.0, %v1454
  %1456 = vmatmul.f32.gmra.mxu0 %v1275
  %v1457 = vpop.f32.mrf.mxu0
  %v1458 = vadd.f32 0.0, %v1457
  %1459 = vmatmul.f32.gmra.mxu0 %v1276
  %v1460 = vpop.f32.mrf.mxu0
  %v1461 = vadd.f32 0.0, %v1460
  %1462 = vmatmul.f32.gmra.mxu0 %v1277
  %v1463 = vpop.f32.mrf.mxu0
  %v1464 = vadd.f32 0.0, %v1463
  %1465 = vmatmul.f32.gmra.mxu0 %v1278
  %v1466 = vpop.f32.mrf.mxu0
  %v1467 = vadd.f32 0.0, %v1466
  %1468 = vmatmul.f32.gmra.mxu0 %v1279
  %v1469 = vpop.f32.mrf.mxu0
  %v1470 = vadd.f32 0.0, %v1469
  %1471 = vmatmul.f32.gmra.mxu0 %v1280
  %v1472 = vpop.f32.mrf.mxu0
  %v1473 = vadd.f32 0.0, %v1472
  %1474 = vmatmul.f32.gmra.mxu0 %v1281
  %v1475 = vpop.f32.mrf.mxu0
  %v1476 = vadd.f32 0.0, %v1475
  %1477 = vmatmul.f32.gmra.mxu0 %v1282
  %v1478 = vpop.f32.mrf.mxu0
  %v1479 = vadd.f32 0.0, %v1478
  %1480 = vmatmul.f32.gmra.mxu0 %v1283
  %v1481 = vpop.f32.mrf.mxu0
  %v1482 = vadd.f32 0.0, %v1481
  %1483 = vmatmul.f32.gmra.mxu0 %v1284
  %v1484 = vpop.f32.mrf.mxu0
  %v1485 = vadd.f32 0.0, %v1484
  %1486 = vmatmul.f32.gmra.mxu0 %v1285
  %v1487 = vpop.f32.mrf.mxu0
  %v1488 = vadd.f32 0.0, %v1487
  %1489 = vmatmul.f32.gmra.mxu0 %v1286
  %v1490 = vpop.f32.mrf.mxu0
  %v1491 = vadd.f32 0.0, %v1490
  %1492 = vmatmul.f32.gmra.mxu0 %v1287
  %v1493 = vpop.f32.mrf.mxu0
  %v1494 = vadd.f32 0.0, %v1493
  %1495 = vmatmul.f32.gmra.mxu0 %v1288
  %v1496 = vpop.f32.mrf.mxu0
  %v1497 = vadd.f32 0.0, %v1496
  %1498 = vmatmul.f32.gmra.mxu0 %v1289
  %v1499 = vpop.f32.mrf.mxu0
  %v1500 = vadd.f32 0.0, %v1499
  %1501 = vmatmul.f32.gmra.mxu0 %v1290
  %v1502 = vpop.f32.mrf.mxu0
  %v1503 = vadd.f32 0.0, %v1502
  %1504 = vmatmul.f32.gmra.mxu0 %v1291
  %v1505 = vpop.f32.mrf.mxu0
  %v1506 = vadd.f32 0.0, %v1505
  %1507 = vmatmul.f32.gmra.mxu0 %v1292
  %v1508 = vpop.f32.mrf.mxu0
  %v1509 = vadd.f32 0.0, %v1508
  %1510 = vmatmul.f32.gmra.mxu0 %v1293
  %v1511 = vpop.f32.mrf.mxu0
  %v1512 = vadd.f32 0.0, %v1511
  %1513 = vmatmul.f32.gmra.mxu0 %v1294
  %v1514 = vpop.f32.mrf.mxu0
  %v1515 = vadd.f32 0.0, %v1514
  %1516 = vmatmul.f32.gmra.mxu0 %v1295
  %v1517 = vpop.f32.mrf.mxu0
  %v1518 = vadd.f32 0.0, %v1517
  %1519 = vmatmul.f32.gmra.mxu0 %v1296
  %v1520 = vpop.f32.mrf.mxu0
  %v1521 = vadd.f32 0.0, %v1520
  %1522 = vdwg.mxu0
  %v1523 = vadd.f32 %v1169, %v1332
  %v1524 = vadd.f32 %v1170, %v1335
  %v1525 = vadd.f32 %v1171, %v1338
  %v1526 = vadd.f32 %v1172, %v1341
  %v1527 = vadd.f32 %v1173, %v1344
  %v1528 = vadd.f32 %v1174, %v1347
  %v1529 = vadd.f32 %v1175, %v1350
  %v1530 = vadd.f32 %v1176, %v1353
  %v1531 = vadd.f32 %v1177, %v1356
  %v1532 = vadd.f32 %v1178, %v1359
  %v1533 = vadd.f32 %v1179, %v1362
  %v1534 = vadd.f32 %v1180, %v1365
  %v1535 = vadd.f32 %v1181, %v1368
  %v1536 = vadd.f32 %v1182, %v1371
  %v1537 = vadd.f32 %v1183, %v1374
  %v1538 = vadd.f32 %v1184, %v1377
  %v1539 = vadd.f32 %v1185, %v1380
  %v1540 = vadd.f32 %v1186, %v1383
  %v1541 = vadd.f32 %v1187, %v1386
  %v1542 = vadd.f32 %v1188, %v1389
  %v1543 = vadd.f32 %v1189, %v1392
  %v1544 = vadd.f32 %v1190, %v1395
  %v1545 = vadd.f32 %v1191, %v1398
  %v1546 = vadd.f32 %v1192, %v1401
  %v1547 = vadd.f32 %v1193, %v1404
  %v1548 = vadd.f32 %v1194, %v1407
  %v1549 = vadd.f32 %v1195, %v1410
  %v1550 = vadd.f32 %v1196, %v1413
  %v1551 = vadd.f32 %v1197, %v1416
  %v1552 = vadd.f32 %v1198, %v1419
  %v1553 = vadd.f32 %v1199, %v1422
  %v1554 = vadd.f32 %v1200, %v1425
  %v1555 = vadd.f32 %v1201, %v1428
  %v1556 = vadd.f32 %v1202, %v1431
  %v1557 = vadd.f32 %v1203, %v1434
  %v1558 = vadd.f32 %v1204, %v1437
  %v1559 = vadd.f32 %v1205, %v1440
  %v1560 = vadd.f32 %v1206, %v1443
  %v1561 = vadd.f32 %v1207, %v1446
  %v1562 = vadd.f32 %v1208, %v1449
  %v1563 = vadd.f32 %v1209, %v1452
  %v1564 = vadd.f32 %v1210, %v1455
  %v1565 = vadd.f32 %v1211, %v1458
  %v1566 = vadd.f32 %v1212, %v1461
  %v1567 = vadd.f32 %v1213, %v1464
  %v1568 = vadd.f32 %v1214, %v1467
  %v1569 = vadd.f32 %v1215, %v1470
  %v1570 = vadd.f32 %v1216, %v1473
  %v1571 = vadd.f32 %v1217, %v1476
  %v1572 = vadd.f32 %v1218, %v1479
  %v1573 = vadd.f32 %v1219, %v1482
  %v1574 = vadd.f32 %v1220, %v1485
  %v1575 = vadd.f32 %v1221, %v1488
  %v1576 = vadd.f32 %v1222, %v1491
  %v1577 = vadd.f32 %v1223, %v1494
  %v1578 = vadd.f32 %v1224, %v1497
  %v1579 = vadd.f32 %v1225, %v1500
  %v1580 = vadd.f32 %v1226, %v1503
  %v1581 = vadd.f32 %v1227, %v1506
  %v1582 = vadd.f32 %v1228, %v1509
  %v1583 = vadd.f32 %v1229, %v1512
  %v1584 = vadd.f32 %v1230, %v1515
  %v1585 = vadd.f32 %v1231, %v1518
  %v1586 = vadd.f32 %v1232, %v1521
  %v1587 = vld [vmem:[%s234 + $0x8] sm:$0xff]
  %v1588 = vld [vmem:[%s234 + $0x10] sm:$0xff]
  %v1589 = vld [vmem:[%s234 + $0x28] sm:$0xff]
  %v1590 = vld [vmem:[%s234 + $0x30] sm:$0xff]
  %v1591 = vld [vmem:[%s234 + $0x48] sm:$0xff]
  %v1592 = vld [vmem:[%s234 + $0x50] sm:$0xff]
  %v1593 = vld [vmem:[%s234 + $0x68] sm:$0xff]
  %v1594 = vld [vmem:[%s234 + $0x70] sm:$0xff]
  %v1595 = vld [vmem:[%s234 + $0x88] sm:$0xff]
  %v1596 = vld [vmem:[%s234 + $0x90] sm:$0xff]
  %v1597 = vld [vmem:[%s234 + $0xa8] sm:$0xff]
  %v1598 = vld [vmem:[%s234 + $0xb0] sm:$0xff]
  %v1599 = vld [vmem:[%s234 + $0xc8] sm:$0xff]
  %v1600 = vld [vmem:[%s234 + $0xd0] sm:$0xff]
  %v1601 = vld [vmem:[%s234 + $0xe8] sm:$0xff]
  %v1602 = vld [vmem:[%s234 + $0xf0] sm:$0xff]
  %v1603 = vld [vmem:[%s234 + $0x108] sm:$0xff]
  %v1604 = vld [vmem:[%s234 + $0x110] sm:$0xff]
  %v1605 = vld [vmem:[%s234 + $0x128] sm:$0xff]
  %v1606 = vld [vmem:[%s234 + $0x130] sm:$0xff]
  %v1607 = vld [vmem:[%s234 + $0x148] sm:$0xff]
  %v1608 = vld [vmem:[%s234 + $0x150] sm:$0xff]
  %v1609 = vld [vmem:[%s234 + $0x168] sm:$0xff]
  %v1610 = vld [vmem:[%s234 + $0x170] sm:$0xff]
  %v1611 = vld [vmem:[%s234 + $0x188] sm:$0xff]
  %v1612 = vld [vmem:[%s234 + $0x190] sm:$0xff]
  %v1613 = vld [vmem:[%s234 + $0x1a8] sm:$0xff]
  %v1614 = vld [vmem:[%s234 + $0x1b0] sm:$0xff]
  %v1615 = vld [vmem:[%s234 + $0x1c8] sm:$0xff]
  %v1616 = vld [vmem:[%s234 + $0x1d0] sm:$0xff]
  %v1617 = vld [vmem:[%s234 + $0x1e8] sm:$0xff]
  %v1618 = vld [vmem:[%s234 + $0x1f0] sm:$0xff]
  %v1619 = vld [vmem:[%s234 + $0x248] sm:$0xff]
  %v1620 = vld [vmem:[%s234 + $0x250] sm:$0xff]
  %v1621 = vld [vmem:[%s234 + $0x268] sm:$0xff]
  %v1622 = vld [vmem:[%s234 + $0x270] sm:$0xff]
  %v1623 = vld [vmem:[%s234 + $0x288] sm:$0xff]
  %v1624 = vld [vmem:[%s234 + $0x290] sm:$0xff]
  %v1625 = vld [vmem:[%s234 + $0x2a8] sm:$0xff]
  %v1626 = vld [vmem:[%s234 + $0x2b0] sm:$0xff]
  %v1627 = vld [vmem:[%s234 + $0x2c8] sm:$0xff]
  %v1628 = vld [vmem:[%s234 + $0x2d0] sm:$0xff]
  %v1629 = vld [vmem:[%s234 + $0x2e8] sm:$0xff]
  %v1630 = vld [vmem:[%s234 + $0x2f0] sm:$0xff]
  %v1631 = vld [vmem:[%s234 + $0x308] sm:$0xff]
  %v1632 = vld [vmem:[%s234 + $0x310] sm:$0xff]
  %v1633 = vld [vmem:[%s234 + $0x328] sm:$0xff]
  %v1634 = vld [vmem:[%s234 + $0x330] sm:$0xff]
  %v1635 = vld [vmem:[%s234 + $0x348] sm:$0xff]
  %v1636 = vld [vmem:[%s234 + $0x350] sm:$0xff]
  %v1637 = vld [vmem:[%s234 + $0x368] sm:$0xff]
  %v1638 = vld [vmem:[%s234 + $0x370] sm:$0xff]
  %v1639 = vld [vmem:[%s234 + $0x388] sm:$0xff]
  %v1640 = vld [vmem:[%s234 + $0x390] sm:$0xff]
  %v1641 = vld [vmem:[%s234 + $0x3a8] sm:$0xff]
  %v1642 = vld [vmem:[%s234 + $0x3b0] sm:$0xff]
  %v1643 = vld [vmem:[%s234 + $0x3c8] sm:$0xff]
  %v1644 = vld [vmem:[%s234 + $0x3d0] sm:$0xff]
  %v1645 = vld [vmem:[%s234 + $0x3e8] sm:$0xff]
  %v1646 = vld [vmem:[%s234 + $0x3f0] sm:$0xff]
  %v1647 = vld [vmem:[%s234 + $0x408] sm:$0xff]
  %v1648 = vld [vmem:[%s234 + $0x410] sm:$0xff]
  %v1649 = vld [vmem:[%s234 + $0x428] sm:$0xff]
  %v1650 = vld [vmem:[%s234 + $0x430] sm:$0xff]
  %s1651 = scalar_lea.vmem %s1, 512
  %v1652 = vld [vmem:[%s1651] sm:$0xff]
  %v1653 = vld [vmem:[%s1651 + $0x8] sm:$0xff]
  %v1654 = vld [vmem:[%s1651 + $0x10] sm:$0xff]
  %v1655 = vld [vmem:[%s1651 + $0x18] sm:$0xff]
  %v1656 = vld [vmem:[%s1651 + $0x20] sm:$0xff]
  %v1657 = vld [vmem:[%s1651 + $0x28] sm:$0xff]
  %v1658 = vld [vmem:[%s1651 + $0x30] sm:$0xff]
  %v1659 = vld [vmem:[%s1651 + $0x38] sm:$0xff]
  %v1660 = vld [vmem:[%s1651 + $0x40] sm:$0xff]
  %v1661 = vld [vmem:[%s1651 + $0x48] sm:$0xff]
  %v1662 = vld [vmem:[%s1651 + $0x50] sm:$0xff]
  %v1663 = vld [vmem:[%s1651 + $0x58] sm:$0xff]
  %v1664 = vld [vmem:[%s1651 + $0x60] sm:$0xff]
  %v1665 = vld [vmem:[%s1651 + $0x68] sm:$0xff]
  %v1666 = vld [vmem:[%s1651 + $0x70] sm:$0xff]
  %v1667 = vld [vmem:[%s1651 + $0x78] sm:$0xff]
  %1668 = vmatpush.msra.mxu0 %v1667
  %1669 = vmatpush.msra.mxu0 %v1666
  %1670 = vmatpush.msra.mxu0 %v1665
  %1671 = vmatpush.msra.mxu0 %v1664
  %1672 = vmatpush.msra.mxu0 %v1663
  %1673 = vmatpush.msra.mxu0 %v1662
  %1674 = vmatpush.msra.mxu0 %v1661
  %1675 = vmatpush.msra.mxu0 %v1660
  %1676 = vmatpush.msra.mxu0 %v1659
  %1677 = vmatpush.msra.mxu0 %v1658
  %1678 = vmatpush.msra.mxu0 %v1657
  %1679 = vmatpush.msra.mxu0 %v1656
  %1680 = vmatpush.msra.mxu0 %v1655
  %1681 = vmatpush.msra.mxu0 %v1654
  %1682 = vmatpush.msra.mxu0 %v1653
  %1683 = vmatpush.msra.mxu0 %v1652
  %1684 = vmatmul.f32.gmra.mxu0 %v1587
  %v1685 = vpop.f32.mrf.mxu0
  %v1686 = vadd.f32 0.0, %v1685
  %1687 = vmatmul.f32.gmra.mxu0 %v1588
  %v1688 = vpop.f32.mrf.mxu0
  %v1689 = vadd.f32 0.0, %v1688
  %1690 = vmatmul.f32.gmra.mxu0 %v1589
  %v1691 = vpop.f32.mrf.mxu0
  %v1692 = vadd.f32 0.0, %v1691
  %1693 = vmatmul.f32.gmra.mxu0 %v1590
  %v1694 = vpop.f32.mrf.mxu0
  %v1695 = vadd.f32 0.0, %v1694
  %1696 = vmatmul.f32.gmra.mxu0 %v1591
  %v1697 = vpop.f32.mrf.mxu0
  %v1698 = vadd.f32 0.0, %v1697
  %1699 = vmatmul.f32.gmra.mxu0 %v1592
  %v1700 = vpop.f32.mrf.mxu0
  %v1701 = vadd.f32 0.0, %v1700
  %1702 = vmatmul.f32.gmra.mxu0 %v1593
  %v1703 = vpop.f32.mrf.mxu0
  %v1704 = vadd.f32 0.0, %v1703
  %1705 = vmatmul.f32.gmra.mxu0 %v1594
  %v1706 = vpop.f32.mrf.mxu0
  %v1707 = vadd.f32 0.0, %v1706
  %1708 = vmatmul.f32.gmra.mxu0 %v1595
  %v1709 = vpop.f32.mrf.mxu0
  %v1710 = vadd.f32 0.0, %v1709
  %1711 = vmatmul.f32.gmra.mxu0 %v1596
  %v1712 = vpop.f32.mrf.mxu0
  %v1713 = vadd.f32 0.0, %v1712
  %1714 = vmatmul.f32.gmra.mxu0 %v1597
  %v1715 = vpop.f32.mrf.mxu0
  %v1716 = vadd.f32 0.0, %v1715
  %1717 = vmatmul.f32.gmra.mxu0 %v1598
  %v1718 = vpop.f32.mrf.mxu0
  %v1719 = vadd.f32 0.0, %v1718
  %1720 = vmatmul.f32.gmra.mxu0 %v1599
  %v1721 = vpop.f32.mrf.mxu0
  %v1722 = vadd.f32 0.0, %v1721
  %1723 = vmatmul.f32.gmra.mxu0 %v1600
  %v1724 = vpop.f32.mrf.mxu0
  %v1725 = vadd.f32 0.0, %v1724
  %1726 = vmatmul.f32.gmra.mxu0 %v1601
  %v1727 = vpop.f32.mrf.mxu0
  %v1728 = vadd.f32 0.0, %v1727
  %1729 = vmatmul.f32.gmra.mxu0 %v1602
  %v1730 = vpop.f32.mrf.mxu0
  %v1731 = vadd.f32 0.0, %v1730
  %1732 = vmatmul.f32.gmra.mxu0 %v1603
  %v1733 = vpop.f32.mrf.mxu0
  %v1734 = vadd.f32 0.0, %v1733
  %1735 = vmatmul.f32.gmra.mxu0 %v1604
  %v1736 = vpop.f32.mrf.mxu0
  %v1737 = vadd.f32 0.0, %v1736
  %1738 = vmatmul.f32.gmra.mxu0 %v1605
  %v1739 = vpop.f32.mrf.mxu0
  %v1740 = vadd.f32 0.0, %v1739
  %1741 = vmatmul.f32.gmra.mxu0 %v1606
  %v1742 = vpop.f32.mrf.mxu0
  %v1743 = vadd.f32 0.0, %v1742
  %1744 = vmatmul.f32.gmra.mxu0 %v1607
  %v1745 = vpop.f32.mrf.mxu0
  %v1746 = vadd.f32 0.0, %v1745
  %1747 = vmatmul.f32.gmra.mxu0 %v1608
  %v1748 = vpop.f32.mrf.mxu0
  %v1749 = vadd.f32 0.0, %v1748
  %1750 = vmatmul.f32.gmra.mxu0 %v1609
  %v1751 = vpop.f32.mrf.mxu0
  %v1752 = vadd.f32 0.0, %v1751
  %1753 = vmatmul.f32.gmra.mxu0 %v1610
  %v1754 = vpop.f32.mrf.mxu0
  %v1755 = vadd.f32 0.0, %v1754
  %1756 = vmatmul.f32.gmra.mxu0 %v1611
  %v1757 = vpop.f32.mrf.mxu0
  %v1758 = vadd.f32 0.0, %v1757
  %1759 = vmatmul.f32.gmra.mxu0 %v1612
  %v1760 = vpop.f32.mrf.mxu0
  %v1761 = vadd.f32 0.0, %v1760
  %1762 = vmatmul.f32.gmra.mxu0 %v1613
  %v1763 = vpop.f32.mrf.mxu0
  %v1764 = vadd.f32 0.0, %v1763
  %1765 = vmatmul.f32.gmra.mxu0 %v1614
  %v1766 = vpop.f32.mrf.mxu0
  %v1767 = vadd.f32 0.0, %v1766
  %1768 = vmatmul.f32.gmra.mxu0 %v1615
  %v1769 = vpop.f32.mrf.mxu0
  %v1770 = vadd.f32 0.0, %v1769
  %1771 = vmatmul.f32.gmra.mxu0 %v1616
  %v1772 = vpop.f32.mrf.mxu0
  %v1773 = vadd.f32 0.0, %v1772
  %1774 = vmatmul.f32.gmra.mxu0 %v1617
  %v1775 = vpop.f32.mrf.mxu0
  %v1776 = vadd.f32 0.0, %v1775
  %1777 = vmatmul.f32.gmra.mxu0 %v1618
  %v1778 = vpop.f32.mrf.mxu0
  %v1779 = vadd.f32 0.0, %v1778
  %1780 = vmatmul.f32.gmra.mxu0 %v1619
  %v1781 = vpop.f32.mrf.mxu0
  %v1782 = vadd.f32 0.0, %v1781
  %1783 = vmatmul.f32.gmra.mxu0 %v1620
  %v1784 = vpop.f32.mrf.mxu0
  %v1785 = vadd.f32 0.0, %v1784
  %1786 = vmatmul.f32.gmra.mxu0 %v1621
  %v1787 = vpop.f32.mrf.mxu0
  %v1788 = vadd.f32 0.0, %v1787
  %1789 = vmatmul.f32.gmra.mxu0 %v1622
  %v1790 = vpop.f32.mrf.mxu0
  %v1791 = vadd.f32 0.0, %v1790
  %1792 = vmatmul.f32.gmra.mxu0 %v1623
  %v1793 = vpop.f32.mrf.mxu0
  %v1794 = vadd.f32 0.0, %v1793
  %1795 = vmatmul.f32.gmra.mxu0 %v1624
  %v1796 = vpop.f32.mrf.mxu0
  %v1797 = vadd.f32 0.0, %v1796
  %1798 = vmatmul.f32.gmra.mxu0 %v1625
  %v1799 = vpop.f32.mrf.mxu0
  %v1800 = vadd.f32 0.0, %v1799
  %1801 = vmatmul.f32.gmra.mxu0 %v1626
  %v1802 = vpop.f32.mrf.mxu0
  %v1803 = vadd.f32 0.0, %v1802
  %1804 = vmatmul.f32.gmra.mxu0 %v1627
  %v1805 = vpop.f32.mrf.mxu0
  %v1806 = vadd.f32 0.0, %v1805
  %1807 = vmatmul.f32.gmra.mxu0 %v1628
  %v1808 = vpop.f32.mrf.mxu0
  %v1809 = vadd.f32 0.0, %v1808
  %1810 = vmatmul.f32.gmra.mxu0 %v1629
  %v1811 = vpop.f32.mrf.mxu0
  %v1812 = vadd.f32 0.0, %v1811
  %1813 = vmatmul.f32.gmra.mxu0 %v1630
  %v1814 = vpop.f32.mrf.mxu0
  %v1815 = vadd.f32 0.0, %v1814
  %1816 = vmatmul.f32.gmra.mxu0 %v1631
  %v1817 = vpop.f32.mrf.mxu0
  %v1818 = vadd.f32 0.0, %v1817
  %1819 = vmatmul.f32.gmra.mxu0 %v1632
  %v1820 = vpop.f32.mrf.mxu0
  %v1821 = vadd.f32 0.0, %v1820
  %1822 = vmatmul.f32.gmra.mxu0 %v1633
  %v1823 = vpop.f32.mrf.mxu0
  %v1824 = vadd.f32 0.0, %v1823
  %1825 = vmatmul.f32.gmra.mxu0 %v1634
  %v1826 = vpop.f32.mrf.mxu0
  %v1827 = vadd.f32 0.0, %v1826
  %1828 = vmatmul.f32.gmra.mxu0 %v1635
  %v1829 = vpop.f32.mrf.mxu0
  %v1830 = vadd.f32 0.0, %v1829
  %1831 = vmatmul.f32.gmra.mxu0 %v1636
  %v1832 = vpop.f32.mrf.mxu0
  %v1833 = vadd.f32 0.0, %v1832
  %1834 = vmatmul.f32.gmra.mxu0 %v1637
  %v1835 = vpop.f32.mrf.mxu0
  %v1836 = vadd.f32 0.0, %v1835
  %1837 = vmatmul.f32.gmra.mxu0 %v1638
  %v1838 = vpop.f32.mrf.mxu0
  %v1839 = vadd.f32 0.0, %v1838
  %1840 = vmatmul.f32.gmra.mxu0 %v1639
  %v1841 = vpop.f32.mrf.mxu0
  %v1842 = vadd.f32 0.0, %v1841
  %1843 = vmatmul.f32.gmra.mxu0 %v1640
  %v1844 = vpop.f32.mrf.mxu0
  %v1845 = vadd.f32 0.0, %v1844
  %1846 = vmatmul.f32.gmra.mxu0 %v1641
  %v1847 = vpop.f32.mrf.mxu0
  %v1848 = vadd.f32 0.0, %v1847
  %1849 = vmatmul.f32.gmra.mxu0 %v1642
  %v1850 = vpop.f32.mrf.mxu0
  %v1851 = vadd.f32 0.0, %v1850
  %1852 = vmatmul.f32.gmra.mxu0 %v1643
  %v1853 = vpop.f32.mrf.mxu0
  %v1854 = vadd.f32 0.0, %v1853
  %1855 = vmatmul.f32.gmra.mxu0 %v1644
  %v1856 = vpop.f32.mrf.mxu0
  %v1857 = vadd.f32 0.0, %v1856
  %1858 = vmatmul.f32.gmra.mxu0 %v1645
  %v1859 = vpop.f32.mrf.mxu0
  %v1860 = vadd.f32 0.0, %v1859
  %1861 = vmatmul.f32.gmra.mxu0 %v1646
  %v1862 = vpop.f32.mrf.mxu0
  %v1863 = vadd.f32 0.0, %v1862
  %1864 = vmatmul.f32.gmra.mxu0 %v1647
  %v1865 = vpop.f32.mrf.mxu0
  %v1866 = vadd.f32 0.0, %v1865
  %1867 = vmatmul.f32.gmra.mxu0 %v1648
  %v1868 = vpop.f32.mrf.mxu0
  %v1869 = vadd.f32 0.0, %v1868
  %1870 = vmatmul.f32.gmra.mxu0 %v1649
  %v1871 = vpop.f32.mrf.mxu0
  %v1872 = vadd.f32 0.0, %v1871
  %1873 = vmatmul.f32.gmra.mxu0 %v1650
  %v1874 = vpop.f32.mrf.mxu0
  %v1875 = vadd.f32 0.0, %v1874
  %1876 = vdwg.mxu0
  %v1877 = vadd.f32 %v1523, %v1686
  %v1878 = vadd.f32 %v1524, %v1689
  %v1879 = vadd.f32 %v1525, %v1692
  %v1880 = vadd.f32 %v1526, %v1695
  %v1881 = vadd.f32 %v1527, %v1698
  %v1882 = vadd.f32 %v1528, %v1701
  %v1883 = vadd.f32 %v1529, %v1704
  %v1884 = vadd.f32 %v1530, %v1707
  %v1885 = vadd.f32 %v1531, %v1710
  %v1886 = vadd.f32 %v1532, %v1713
  %v1887 = vadd.f32 %v1533, %v1716
  %v1888 = vadd.f32 %v1534, %v1719
  %v1889 = vadd.f32 %v1535, %v1722
  %v1890 = vadd.f32 %v1536, %v1725
  %v1891 = vadd.f32 %v1537, %v1728
  %v1892 = vadd.f32 %v1538, %v1731
  %v1893 = vadd.f32 %v1539, %v1734
  %v1894 = vadd.f32 %v1540, %v1737
  %v1895 = vadd.f32 %v1541, %v1740
  %v1896 = vadd.f32 %v1542, %v1743
  %v1897 = vadd.f32 %v1543, %v1746
  %v1898 = vadd.f32 %v1544, %v1749
  %v1899 = vadd.f32 %v1545, %v1752
  %v1900 = vadd.f32 %v1546, %v1755
  %v1901 = vadd.f32 %v1547, %v1758
  %v1902 = vadd.f32 %v1548, %v1761
  %v1903 = vadd.f32 %v1549, %v1764
  %v1904 = vadd.f32 %v1550, %v1767
  %v1905 = vadd.f32 %v1551, %v1770
  %v1906 = vadd.f32 %v1552, %v1773
  %v1907 = vadd.f32 %v1553, %v1776
  %v1908 = vadd.f32 %v1554, %v1779
  %v1909 = vadd.f32 %v1555, %v1782
  %v1910 = vadd.f32 %v1556, %v1785
  %v1911 = vadd.f32 %v1557, %v1788
  %v1912 = vadd.f32 %v1558, %v1791
  %v1913 = vadd.f32 %v1559, %v1794
  %v1914 = vadd.f32 %v1560, %v1797
  %v1915 = vadd.f32 %v1561, %v1800
  %v1916 = vadd.f32 %v1562, %v1803
  %v1917 = vadd.f32 %v1563, %v1806
  %v1918 = vadd.f32 %v1564, %v1809
  %v1919 = vadd.f32 %v1565, %v1812
  %v1920 = vadd.f32 %v1566, %v1815
  %v1921 = vadd.f32 %v1567, %v1818
  %v1922 = vadd.f32 %v1568, %v1821
  %v1923 = vadd.f32 %v1569, %v1824
  %v1924 = vadd.f32 %v1570, %v1827
  %v1925 = vadd.f32 %v1571, %v1830
  %v1926 = vadd.f32 %v1572, %v1833
  %v1927 = vadd.f32 %v1573, %v1836
  %v1928 = vadd.f32 %v1574, %v1839
  %v1929 = vadd.f32 %v1575, %v1842
  %v1930 = vadd.f32 %v1576, %v1845
  %v1931 = vadd.f32 %v1577, %v1848
  %v1932 = vadd.f32 %v1578, %v1851
  %v1933 = vadd.f32 %v1579, %v1854
  %v1934 = vadd.f32 %v1580, %v1857
  %v1935 = vadd.f32 %v1581, %v1860
  %v1936 = vadd.f32 %v1582, %v1863
  %v1937 = vadd.f32 %v1583, %v1866
  %v1938 = vadd.f32 %v1584, %v1869
  %v1939 = vadd.f32 %v1585, %v1872
  %v1940 = vadd.f32 %v1586, %v1875
  %v1941 = vld [vmem:[%s234 + $0x9] sm:$0xff]
  %v1942 = vld [vmem:[%s234 + $0x11] sm:$0xff]
  %v1943 = vld [vmem:[%s234 + $0x29] sm:$0xff]
  %v1944 = vld [vmem:[%s234 + $0x31] sm:$0xff]
  %v1945 = vld [vmem:[%s234 + $0x49] sm:$0xff]
  %v1946 = vld [vmem:[%s234 + $0x51] sm:$0xff]
  %v1947 = vld [vmem:[%s234 + $0x69] sm:$0xff]
  %v1948 = vld [vmem:[%s234 + $0x71] sm:$0xff]
  %v1949 = vld [vmem:[%s234 + $0x89] sm:$0xff]
  %v1950 = vld [vmem:[%s234 + $0x91] sm:$0xff]
  %v1951 = vld [vmem:[%s234 + $0xa9] sm:$0xff]
  %v1952 = vld [vmem:[%s234 + $0xb1] sm:$0xff]
  %v1953 = vld [vmem:[%s234 + $0xc9] sm:$0xff]
  %v1954 = vld [vmem:[%s234 + $0xd1] sm:$0xff]
  %v1955 = vld [vmem:[%s234 + $0xe9] sm:$0xff]
  %v1956 = vld [vmem:[%s234 + $0xf1] sm:$0xff]
  %v1957 = vld [vmem:[%s234 + $0x109] sm:$0xff]
  %v1958 = vld [vmem:[%s234 + $0x111] sm:$0xff]
  %v1959 = vld [vmem:[%s234 + $0x129] sm:$0xff]
  %v1960 = vld [vmem:[%s234 + $0x131] sm:$0xff]
  %v1961 = vld [vmem:[%s234 + $0x149] sm:$0xff]
  %v1962 = vld [vmem:[%s234 + $0x151] sm:$0xff]
  %v1963 = vld [vmem:[%s234 + $0x169] sm:$0xff]
  %v1964 = vld [vmem:[%s234 + $0x171] sm:$0xff]
  %v1965 = vld [vmem:[%s234 + $0x189] sm:$0xff]
  %v1966 = vld [vmem:[%s234 + $0x191] sm:$0xff]
  %v1967 = vld [vmem:[%s234 + $0x1a9] sm:$0xff]
  %v1968 = vld [vmem:[%s234 + $0x1b1] sm:$0xff]
  %v1969 = vld [vmem:[%s234 + $0x1c9] sm:$0xff]
  %v1970 = vld [vmem:[%s234 + $0x1d1] sm:$0xff]
  %v1971 = vld [vmem:[%s234 + $0x1e9] sm:$0xff]
  %v1972 = vld [vmem:[%s234 + $0x1f1] sm:$0xff]
  %v1973 = vld [vmem:[%s234 + $0x249] sm:$0xff]
  %v1974 = vld [vmem:[%s234 + $0x251] sm:$0xff]
  %v1975 = vld [vmem:[%s234 + $0x269] sm:$0xff]
  %v1976 = vld [vmem:[%s234 + $0x271] sm:$0xff]
  %v1977 = vld [vmem:[%s234 + $0x289] sm:$0xff]
  %v1978 = vld [vmem:[%s234 + $0x291] sm:$0xff]
  %v1979 = vld [vmem:[%s234 + $0x2a9] sm:$0xff]
  %v1980 = vld [vmem:[%s234 + $0x2b1] sm:$0xff]
  %v1981 = vld [vmem:[%s234 + $0x2c9] sm:$0xff]
  %v1982 = vld [vmem:[%s234 + $0x2d1] sm:$0xff]
  %v1983 = vld [vmem:[%s234 + $0x2e9] sm:$0xff]
  %v1984 = vld [vmem:[%s234 + $0x2f1] sm:$0xff]
  %v1985 = vld [vmem:[%s234 + $0x309] sm:$0xff]
  %v1986 = vld [vmem:[%s234 + $0x311] sm:$0xff]
  %v1987 = vld [vmem:[%s234 + $0x329] sm:$0xff]
  %v1988 = vld [vmem:[%s234 + $0x331] sm:$0xff]
  %v1989 = vld [vmem:[%s234 + $0x349] sm:$0xff]
  %v1990 = vld [vmem:[%s234 + $0x351] sm:$0xff]
  %v1991 = vld [vmem:[%s234 + $0x369] sm:$0xff]
  %v1992 = vld [vmem:[%s234 + $0x371] sm:$0xff]
  %v1993 = vld [vmem:[%s234 + $0x389] sm:$0xff]
  %v1994 = vld [vmem:[%s234 + $0x391] sm:$0xff]
  %v1995 = vld [vmem:[%s234 + $0x3a9] sm:$0xff]
  %v1996 = vld [vmem:[%s234 + $0x3b1] sm:$0xff]
  %v1997 = vld [vmem:[%s234 + $0x3c9] sm:$0xff]
  %v1998 = vld [vmem:[%s234 + $0x3d1] sm:$0xff]
  %v1999 = vld [vmem:[%s234 + $0x3e9] sm:$0xff]
  %v2000 = vld [vmem:[%s234 + $0x3f1] sm:$0xff]
  %v2001 = vld [vmem:[%s234 + $0x409] sm:$0xff]
  %v2002 = vld [vmem:[%s234 + $0x411] sm:$0xff]
  %v2003 = vld [vmem:[%s234 + $0x429] sm:$0xff]
  %v2004 = vld [vmem:[%s234 + $0x431] sm:$0xff]
  %s2005 = scalar_lea.vmem %s1, 640
  %v2006 = vld [vmem:[%s2005] sm:$0xff]
  %v2007 = vld [vmem:[%s2005 + $0x8] sm:$0xff]
  %v2008 = vld [vmem:[%s2005 + $0x10] sm:$0xff]
  %v2009 = vld [vmem:[%s2005 + $0x18] sm:$0xff]
  %v2010 = vld [vmem:[%s2005 + $0x20] sm:$0xff]
  %v2011 = vld [vmem:[%s2005 + $0x28] sm:$0xff]
  %v2012 = vld [vmem:[%s2005 + $0x30] sm:$0xff]
  %v2013 = vld [vmem:[%s2005 + $0x38] sm:$0xff]
  %v2014 = vld [vmem:[%s2005 + $0x40] sm:$0xff]
  %v2015 = vld [vmem:[%s2005 + $0x48] sm:$0xff]
  %v2016 = vld [vmem:[%s2005 + $0x50] sm:$0xff]
  %v2017 = vld [vmem:[%s2005 + $0x58] sm:$0xff]
  %v2018 = vld [vmem:[%s2005 + $0x60] sm:$0xff]
  %v2019 = vld [vmem:[%s2005 + $0x68] sm:$0xff]
  %v2020 = vld [vmem:[%s2005 + $0x70] sm:$0xff]
  %v2021 = vld [vmem:[%s2005 + $0x78] sm:$0xff]
  %2022 = vmatpush.msra.mxu0 %v2021
  %2023 = vmatpush.msra.mxu0 %v2020
  %2024 = vmatpush.msra.mxu0 %v2019
  %2025 = vmatpush.msra.mxu0 %v2018
  %2026 = vmatpush.msra.mxu0 %v2017
  %2027 = vmatpush.msra.mxu0 %v2016
  %2028 = vmatpush.msra.mxu0 %v2015
  %2029 = vmatpush.msra.mxu0 %v2014
  %2030 = vmatpush.msra.mxu0 %v2013
  %2031 = vmatpush.msra.mxu0 %v2012
  %2032 = vmatpush.msra.mxu0 %v2011
  %2033 = vmatpush.msra.mxu0 %v2010
  %2034 = vmatpush.msra.mxu0 %v2009
  %2035 = vmatpush.msra.mxu0 %v2008
  %2036 = vmatpush.msra.mxu0 %v2007
  %2037 = vmatpush.msra.mxu0 %v2006
  %2038 = vmatmul.f32.gmra.mxu0 %v1941
  %v2039 = vpop.f32.mrf.mxu0
  %v2040 = vadd.f32 0.0, %v2039
  %2041 = vmatmul.f32.gmra.mxu0 %v1942
  %v2042 = vpop.f32.mrf.mxu0
  %v2043 = vadd.f32 0.0, %v2042
  %2044 = vmatmul.f32.gmra.mxu0 %v1943
  %v2045 = vpop.f32.mrf.mxu0
  %v2046 = vadd.f32 0.0, %v2045
  %2047 = vmatmul.f32.gmra.mxu0 %v1944
  %v2048 = vpop.f32.mrf.mxu0
  %v2049 = vadd.f32 0.0, %v2048
  %2050 = vmatmul.f32.gmra.mxu0 %v1945
  %v2051 = vpop.f32.mrf.mxu0
  %v2052 = vadd.f32 0.0, %v2051
  %2053 = vmatmul.f32.gmra.mxu0 %v1946
  %v2054 = vpop.f32.mrf.mxu0
  %v2055 = vadd.f32 0.0, %v2054
  %2056 = vmatmul.f32.gmra.mxu0 %v1947
  %v2057 = vpop.f32.mrf.mxu0
  %v2058 = vadd.f32 0.0, %v2057
  %2059 = vmatmul.f32.gmra.mxu0 %v1948
  %v2060 = vpop.f32.mrf.mxu0
  %v2061 = vadd.f32 0.0, %v2060
  %2062 = vmatmul.f32.gmra.mxu0 %v1949
  %v2063 = vpop.f32.mrf.mxu0
  %v2064 = vadd.f32 0.0, %v2063
  %2065 = vmatmul.f32.gmra.mxu0 %v1950
  %v2066 = vpop.f32.mrf.mxu0
  %v2067 = vadd.f32 0.0, %v2066
  %2068 = vmatmul.f32.gmra.mxu0 %v1951
  %v2069 = vpop.f32.mrf.mxu0
  %v2070 = vadd.f32 0.0, %v2069
  %2071 = vmatmul.f32.gmra.mxu0 %v1952
  %v2072 = vpop.f32.mrf.mxu0
  %v2073 = vadd.f32 0.0, %v2072
  %2074 = vmatmul.f32.gmra.mxu0 %v1953
  %v2075 = vpop.f32.mrf.mxu0
  %v2076 = vadd.f32 0.0, %v2075
  %2077 = vmatmul.f32.gmra.mxu0 %v1954
  %v2078 = vpop.f32.mrf.mxu0
  %v2079 = vadd.f32 0.0, %v2078
  %2080 = vmatmul.f32.gmra.mxu0 %v1955
  %v2081 = vpop.f32.mrf.mxu0
  %v2082 = vadd.f32 0.0, %v2081
  %2083 = vmatmul.f32.gmra.mxu0 %v1956
  %v2084 = vpop.f32.mrf.mxu0
  %v2085 = vadd.f32 0.0, %v2084
  %2086 = vmatmul.f32.gmra.mxu0 %v1957
  %v2087 = vpop.f32.mrf.mxu0
  %v2088 = vadd.f32 0.0, %v2087
  %2089 = vmatmul.f32.gmra.mxu0 %v1958
  %v2090 = vpop.f32.mrf.mxu0
  %v2091 = vadd.f32 0.0, %v2090
  %2092 = vmatmul.f32.gmra.mxu0 %v1959
  %v2093 = vpop.f32.mrf.mxu0
  %v2094 = vadd.f32 0.0, %v2093
  %2095 = vmatmul.f32.gmra.mxu0 %v1960
  %v2096 = vpop.f32.mrf.mxu0
  %v2097 = vadd.f32 0.0, %v2096
  %2098 = vmatmul.f32.gmra.mxu0 %v1961
  %v2099 = vpop.f32.mrf.mxu0
  %v2100 = vadd.f32 0.0, %v2099
  %2101 = vmatmul.f32.gmra.mxu0 %v1962
  %v2102 = vpop.f32.mrf.mxu0
  %v2103 = vadd.f32 0.0, %v2102
  %2104 = vmatmul.f32.gmra.mxu0 %v1963
  %v2105 = vpop.f32.mrf.mxu0
  %v2106 = vadd.f32 0.0, %v2105
  %2107 = vmatmul.f32.gmra.mxu0 %v1964
  %v2108 = vpop.f32.mrf.mxu0
  %v2109 = vadd.f32 0.0, %v2108
  %2110 = vmatmul.f32.gmra.mxu0 %v1965
  %v2111 = vpop.f32.mrf.mxu0
  %v2112 = vadd.f32 0.0, %v2111
  %2113 = vmatmul.f32.gmra.mxu0 %v1966
  %v2114 = vpop.f32.mrf.mxu0
  %v2115 = vadd.f32 0.0, %v2114
  %2116 = vmatmul.f32.gmra.mxu0 %v1967
  %v2117 = vpop.f32.mrf.mxu0
  %v2118 = vadd.f32 0.0, %v2117
  %2119 = vmatmul.f32.gmra.mxu0 %v1968
  %v2120 = vpop.f32.mrf.mxu0
  %v2121 = vadd.f32 0.0, %v2120
  %2122 = vmatmul.f32.gmra.mxu0 %v1969
  %v2123 = vpop.f32.mrf.mxu0
  %v2124 = vadd.f32 0.0, %v2123
  %2125 = vmatmul.f32.gmra.mxu0 %v1970
  %v2126 = vpop.f32.mrf.mxu0
  %v2127 = vadd.f32 0.0, %v2126
  %2128 = vmatmul.f32.gmra.mxu0 %v1971
  %v2129 = vpop.f32.mrf.mxu0
  %v2130 = vadd.f32 0.0, %v2129
  %2131 = vmatmul.f32.gmra.mxu0 %v1972
  %v2132 = vpop.f32.mrf.mxu0
  %v2133 = vadd.f32 0.0, %v2132
  %2134 = vmatmul.f32.gmra.mxu0 %v1973
  %v2135 = vpop.f32.mrf.mxu0
  %v2136 = vadd.f32 0.0, %v2135
  %2137 = vmatmul.f32.gmra.mxu0 %v1974
  %v2138 = vpop.f32.mrf.mxu0
  %v2139 = vadd.f32 0.0, %v2138
  %2140 = vmatmul.f32.gmra.mxu0 %v1975
  %v2141 = vpop.f32.mrf.mxu0
  %v2142 = vadd.f32 0.0, %v2141
  %2143 = vmatmul.f32.gmra.mxu0 %v1976
  %v2144 = vpop.f32.mrf.mxu0
  %v2145 = vadd.f32 0.0, %v2144
  %2146 = vmatmul.f32.gmra.mxu0 %v1977
  %v2147 = vpop.f32.mrf.mxu0
  %v2148 = vadd.f32 0.0, %v2147
  %2149 = vmatmul.f32.gmra.mxu0 %v1978
  %v2150 = vpop.f32.mrf.mxu0
  %v2151 = vadd.f32 0.0, %v2150
  %2152 = vmatmul.f32.gmra.mxu0 %v1979
  %v2153 = vpop.f32.mrf.mxu0
  %v2154 = vadd.f32 0.0, %v2153
  %2155 = vmatmul.f32.gmra.mxu0 %v1980
  %v2156 = vpop.f32.mrf.mxu0
  %v2157 = vadd.f32 0.0, %v2156
  %2158 = vmatmul.f32.gmra.mxu0 %v1981
  %v2159 = vpop.f32.mrf.mxu0
  %v2160 = vadd.f32 0.0, %v2159
  %2161 = vmatmul.f32.gmra.mxu0 %v1982
  %v2162 = vpop.f32.mrf.mxu0
  %v2163 = vadd.f32 0.0, %v2162
  %2164 = vmatmul.f32.gmra.mxu0 %v1983
  %v2165 = vpop.f32.mrf.mxu0
  %v2166 = vadd.f32 0.0, %v2165
  %2167 = vmatmul.f32.gmra.mxu0 %v1984
  %v2168 = vpop.f32.mrf.mxu0
  %v2169 = vadd.f32 0.0, %v2168
  %2170 = vmatmul.f32.gmra.mxu0 %v1985
  %v2171 = vpop.f32.mrf.mxu0
  %v2172 = vadd.f32 0.0, %v2171
  %2173 = vmatmul.f32.gmra.mxu0 %v1986
  %v2174 = vpop.f32.mrf.mxu0
  %v2175 = vadd.f32 0.0, %v2174
  %2176 = vmatmul.f32.gmra.mxu0 %v1987
  %v2177 = vpop.f32.mrf.mxu0
  %v2178 = vadd.f32 0.0, %v2177
  %2179 = vmatmul.f32.gmra.mxu0 %v1988
  %v2180 = vpop.f32.mrf.mxu0
  %v2181 = vadd.f32 0.0, %v2180
  %2182 = vmatmul.f32.gmra.mxu0 %v1989
  %v2183 = vpop.f32.mrf.mxu0
  %v2184 = vadd.f32 0.0, %v2183
  %2185 = vmatmul.f32.gmra.mxu0 %v1990
  %v2186 = vpop.f32.mrf.mxu0
  %v2187 = vadd.f32 0.0, %v2186
  %2188 = vmatmul.f32.gmra.mxu0 %v1991
  %v2189 = vpop.f32.mrf.mxu0
  %v2190 = vadd.f32 0.0, %v2189
  %2191 = vmatmul.f32.gmra.mxu0 %v1992
  %v2192 = vpop.f32.mrf.mxu0
  %v2193 = vadd.f32 0.0, %v2192
  %2194 = vmatmul.f32.gmra.mxu0 %v1993
  %v2195 = vpop.f32.mrf.mxu0
  %v2196 = vadd.f32 0.0, %v2195
  %2197 = vmatmul.f32.gmra.mxu0 %v1994
  %v2198 = vpop.f32.mrf.mxu0
  %v2199 = vadd.f32 0.0, %v2198
  %2200 = vmatmul.f32.gmra.mxu0 %v1995
  %v2201 = vpop.f32.mrf.mxu0
  %v2202 = vadd.f32 0.0, %v2201
  %2203 = vmatmul.f32.gmra.mxu0 %v1996
  %v2204 = vpop.f32.mrf.mxu0
  %v2205 = vadd.f32 0.0, %v2204
  %2206 = vmatmul.f32.gmra.mxu0 %v1997
  %v2207 = vpop.f32.mrf.mxu0
  %v2208 = vadd.f32 0.0, %v2207
  %2209 = vmatmul.f32.gmra.mxu0 %v1998
  %v2210 = vpop.f32.mrf.mxu0
  %v2211 = vadd.f32 0.0, %v2210
  %2212 = vmatmul.f32.gmra.mxu0 %v1999
  %v2213 = vpop.f32.mrf.mxu0
  %v2214 = vadd.f32 0.0, %v2213
  %2215 = vmatmul.f32.gmra.mxu0 %v2000
  %v2216 = vpop.f32.mrf.mxu0
  %v2217 = vadd.f32 0.0, %v2216
  %2218 = vmatmul.f32.gmra.mxu0 %v2001
  %v2219 = vpop.f32.mrf.mxu0
  %v2220 = vadd.f32 0.0, %v2219
  %2221 = vmatmul.f32.gmra.mxu0 %v2002
  %v2222 = vpop.f32.mrf.mxu0
  %v2223 = vadd.f32 0.0, %v2222
  %2224 = vmatmul.f32.gmra.mxu0 %v2003
  %v2225 = vpop.f32.mrf.mxu0
  %v2226 = vadd.f32 0.0, %v2225
  %2227 = vmatmul.f32.gmra.mxu0 %v2004
  %v2228 = vpop.f32.mrf.mxu0
  %v2229 = vadd.f32 0.0, %v2228
  %2230 = vdwg.mxu0
  %v2231 = vadd.f32 %v1877, %v2040
  %v2232 = vadd.f32 %v1878, %v2043
  %v2233 = vadd.f32 %v1879, %v2046
  %v2234 = vadd.f32 %v1880, %v2049
  %v2235 = vadd.f32 %v1881, %v2052
  %v2236 = vadd.f32 %v1882, %v2055
  %v2237 = vadd.f32 %v1883, %v2058
  %v2238 = vadd.f32 %v1884, %v2061
  %v2239 = vadd.f32 %v1885, %v2064
  %v2240 = vadd.f32 %v1886, %v2067
  %v2241 = vadd.f32 %v1887, %v2070
  %v2242 = vadd.f32 %v1888, %v2073
  %v2243 = vadd.f32 %v1889, %v2076
  %v2244 = vadd.f32 %v1890, %v2079
  %v2245 = vadd.f32 %v1891, %v2082
  %v2246 = vadd.f32 %v1892, %v2085
  %v2247 = vadd.f32 %v1893, %v2088
  %v2248 = vadd.f32 %v1894, %v2091
  %v2249 = vadd.f32 %v1895, %v2094
  %v2250 = vadd.f32 %v1896, %v2097
  %v2251 = vadd.f32 %v1897, %v2100
  %v2252 = vadd.f32 %v1898, %v2103
  %v2253 = vadd.f32 %v1899, %v2106
  %v2254 = vadd.f32 %v1900, %v2109
  %v2255 = vadd.f32 %v1901, %v2112
  %v2256 = vadd.f32 %v1902, %v2115
  %v2257 = vadd.f32 %v1903, %v2118
  %v2258 = vadd.f32 %v1904, %v2121
  %v2259 = vadd.f32 %v1905, %v2124
  %v2260 = vadd.f32 %v1906, %v2127
  %v2261 = vadd.f32 %v1907, %v2130
  %v2262 = vadd.f32 %v1908, %v2133
  %v2263 = vadd.f32 %v1909, %v2136
  %v2264 = vadd.f32 %v1910, %v2139
  %v2265 = vadd.f32 %v1911, %v2142
  %v2266 = vadd.f32 %v1912, %v2145
  %v2267 = vadd.f32 %v1913, %v2148
  %v2268 = vadd.f32 %v1914, %v2151
  %v2269 = vadd.f32 %v1915, %v2154
  %v2270 = vadd.f32 %v1916, %v2157
  %v2271 = vadd.f32 %v1917, %v2160
  %v2272 = vadd.f32 %v1918, %v2163
  %v2273 = vadd.f32 %v1919, %v2166
  %v2274 = vadd.f32 %v1920, %v2169
  %v2275 = vadd.f32 %v1921, %v2172
  %v2276 = vadd.f32 %v1922, %v2175
  %v2277 = vadd.f32 %v1923, %v2178
  %v2278 = vadd.f32 %v1924, %v2181
  %v2279 = vadd.f32 %v1925, %v2184
  %v2280 = vadd.f32 %v1926, %v2187
  %v2281 = vadd.f32 %v1927, %v2190
  %v2282 = vadd.f32 %v1928, %v2193
  %v2283 = vadd.f32 %v1929, %v2196
  %v2284 = vadd.f32 %v1930, %v2199
  %v2285 = vadd.f32 %v1931, %v2202
  %v2286 = vadd.f32 %v1932, %v2205
  %v2287 = vadd.f32 %v1933, %v2208
  %v2288 = vadd.f32 %v1934, %v2211
  %v2289 = vadd.f32 %v1935, %v2214
  %v2290 = vadd.f32 %v1936, %v2217
  %v2291 = vadd.f32 %v1937, %v2220
  %v2292 = vadd.f32 %v1938, %v2223
  %v2293 = vadd.f32 %v1939, %v2226
  %v2294 = vadd.f32 %v1940, %v2229
  %s2295 = scalar_lea.vmem [#allocation2], 64
  %v2296 = vld [vmem:[%s2295 + $0x7] sm:$0xff]
  %v2297 = vld [vmem:[%s2295 + $0xf] sm:$0xff]
  %v2298 = vld [vmem:[%s2295 + $0x27] sm:$0xff]
  %v2299 = vld [vmem:[%s2295 + $0x2f] sm:$0xff]
  %v2300 = vld [vmem:[%s2295 + $0x47] sm:$0xff]
  %v2301 = vld [vmem:[%s2295 + $0x4f] sm:$0xff]
  %v2302 = vld [vmem:[%s2295 + $0x67] sm:$0xff]
  %v2303 = vld [vmem:[%s2295 + $0x6f] sm:$0xff]
  %v2304 = vld [vmem:[%s2295 + $0x87] sm:$0xff]
  %v2305 = vld [vmem:[%s2295 + $0x8f] sm:$0xff]
  %v2306 = vld [vmem:[%s2295 + $0xa7] sm:$0xff]
  %v2307 = vld [vmem:[%s2295 + $0xaf] sm:$0xff]
  %v2308 = vld [vmem:[%s2295 + $0xc7] sm:$0xff]
  %v2309 = vld [vmem:[%s2295 + $0xcf] sm:$0xff]
  %v2310 = vld [vmem:[%s2295 + $0xe7] sm:$0xff]
  %v2311 = vld [vmem:[%s2295 + $0xef] sm:$0xff]
  %v2312 = vld [vmem:[%s2295 + $0x107] sm:$0xff]
  %v2313 = vld [vmem:[%s2295 + $0x10f] sm:$0xff]
  %v2314 = vld [vmem:[%s2295 + $0x127] sm:$0xff]
  %v2315 = vld [vmem:[%s2295 + $0x12f] sm:$0xff]
  %v2316 = vld [vmem:[%s2295 + $0x147] sm:$0xff]
  %v2317 = vld [vmem:[%s2295 + $0x14f] sm:$0xff]
  %v2318 = vld [vmem:[%s2295 + $0x167] sm:$0xff]
  %v2319 = vld [vmem:[%s2295 + $0x16f] sm:$0xff]
  %v2320 = vld [vmem:[%s2295 + $0x187] sm:$0xff]
  %v2321 = vld [vmem:[%s2295 + $0x18f] sm:$0xff]
  %v2322 = vld [vmem:[%s2295 + $0x1a7] sm:$0xff]
  %v2323 = vld [vmem:[%s2295 + $0x1af] sm:$0xff]
  %v2324 = vld [vmem:[%s2295 + $0x1c7] sm:$0xff]
  %v2325 = vld [vmem:[%s2295 + $0x1cf] sm:$0xff]
  %v2326 = vld [vmem:[%s2295 + $0x1e7] sm:$0xff]
  %v2327 = vld [vmem:[%s2295 + $0x1ef] sm:$0xff]
  %v2328 = vld [vmem:[%s2295 + $0x247] sm:$0xff]
  %v2329 = vld [vmem:[%s2295 + $0x24f] sm:$0xff]
  %v2330 = vld [vmem:[%s2295 + $0x267] sm:$0xff]
  %v2331 = vld [vmem:[%s2295 + $0x26f] sm:$0xff]
  %v2332 = vld [vmem:[%s2295 + $0x287] sm:$0xff]
  %v2333 = vld [vmem:[%s2295 + $0x28f] sm:$0xff]
  %v2334 = vld [vmem:[%s2295 + $0x2a7] sm:$0xff]
  %v2335 = vld [vmem:[%s2295 + $0x2af] sm:$0xff]
  %v2336 = vld [vmem:[%s2295 + $0x2c7] sm:$0xff]
  %v2337 = vld [vmem:[%s2295 + $0x2cf] sm:$0xff]
  %v2338 = vld [vmem:[%s2295 + $0x2e7] sm:$0xff]
  %v2339 = vld [vmem:[%s2295 + $0x2ef] sm:$0xff]
  %v2340 = vld [vmem:[%s2295 + $0x307] sm:$0xff]
  %v2341 = vld [vmem:[%s2295 + $0x30f] sm:$0xff]
  %v2342 = vld [vmem:[%s2295 + $0x327] sm:$0xff]
  %v2343 = vld [vmem:[%s2295 + $0x32f] sm:$0xff]
  %v2344 = vld [vmem:[%s2295 + $0x347] sm:$0xff]
  %v2345 = vld [vmem:[%s2295 + $0x34f] sm:$0xff]
  %v2346 = vld [vmem:[%s2295 + $0x367] sm:$0xff]
  %v2347 = vld [vmem:[%s2295 + $0x36f] sm:$0xff]
  %v2348 = vld [vmem:[%s2295 + $0x387] sm:$0xff]
  %v2349 = vld [vmem:[%s2295 + $0x38f] sm:$0xff]
  %v2350 = vld [vmem:[%s2295 + $0x3a7] sm:$0xff]
  %v2351 = vld [vmem:[%s2295 + $0x3af] sm:$0xff]
  %v2352 = vld [vmem:[%s2295 + $0x3c7] sm:$0xff]
  %v2353 = vld [vmem:[%s2295 + $0x3cf] sm:$0xff]
  %v2354 = vld [vmem:[%s2295 + $0x3e7] sm:$0xff]
  %v2355 = vld [vmem:[%s2295 + $0x3ef] sm:$0xff]
  %v2356 = vld [vmem:[%s2295 + $0x407] sm:$0xff]
  %v2357 = vld [vmem:[%s2295 + $0x40f] sm:$0xff]
  %v2358 = vld [vmem:[%s2295 + $0x427] sm:$0xff]
  %v2359 = vld [vmem:[%s2295 + $0x42f] sm:$0xff]
  %s2360 = scalar_lea.vmem %s1, 768
  %v2361 = vld [vmem:[%s2360] sm:$0xff]
  %v2362 = vld [vmem:[%s2360 + $0x8] sm:$0xff]
  %v2363 = vld [vmem:[%s2360 + $0x10] sm:$0xff]
  %v2364 = vld [vmem:[%s2360 + $0x18] sm:$0xff]
  %v2365 = vld [vmem:[%s2360 + $0x20] sm:$0xff]
  %v2366 = vld [vmem:[%s2360 + $0x28] sm:$0xff]
  %v2367 = vld [vmem:[%s2360 + $0x30] sm:$0xff]
  %v2368 = vld [vmem:[%s2360 + $0x38] sm:$0xff]
  %v2369 = vld [vmem:[%s2360 + $0x40] sm:$0xff]
  %v2370 = vld [vmem:[%s2360 + $0x48] sm:$0xff]
  %v2371 = vld [vmem:[%s2360 + $0x50] sm:$0xff]
  %v2372 = vld [vmem:[%s2360 + $0x58] sm:$0xff]
  %v2373 = vld [vmem:[%s2360 + $0x60] sm:$0xff]
  %v2374 = vld [vmem:[%s2360 + $0x68] sm:$0xff]
  %v2375 = vld [vmem:[%s2360 + $0x70] sm:$0xff]
  %v2376 = vld [vmem:[%s2360 + $0x78] sm:$0xff]
  %2377 = vmatpush.msra.mxu0 %v2376
  %2378 = vmatpush.msra.mxu0 %v2375
  %2379 = vmatpush.msra.mxu0 %v2374
  %2380 = vmatpush.msra.mxu0 %v2373
  %2381 = vmatpush.msra.mxu0 %v2372
  %2382 = vmatpush.msra.mxu0 %v2371
  %2383 = vmatpush.msra.mxu0 %v2370
  %2384 = vmatpush.msra.mxu0 %v2369
  %2385 = vmatpush.msra.mxu0 %v2368
  %2386 = vmatpush.msra.mxu0 %v2367
  %2387 = vmatpush.msra.mxu0 %v2366
  %2388 = vmatpush.msra.mxu0 %v2365
  %2389 = vmatpush.msra.mxu0 %v2364
  %2390 = vmatpush.msra.mxu0 %v2363
  %2391 = vmatpush.msra.mxu0 %v2362
  %2392 = vmatpush.msra.mxu0 %v2361
  %2393 = vmatmul.f32.gmra.mxu0 %v2296
  %v2394 = vpop.f32.mrf.mxu0
  %v2395 = vadd.f32 0.0, %v2394
  %2396 = vmatmul.f32.gmra.mxu0 %v2297
  %v2397 = vpop.f32.mrf.mxu0
  %v2398 = vadd.f32 0.0, %v2397
  %2399 = vmatmul.f32.gmra.mxu0 %v2298
  %v2400 = vpop.f32.mrf.mxu0
  %v2401 = vadd.f32 0.0, %v2400
  %2402 = vmatmul.f32.gmra.mxu0 %v2299
  %v2403 = vpop.f32.mrf.mxu0
  %v2404 = vadd.f32 0.0, %v2403
  %2405 = vmatmul.f32.gmra.mxu0 %v2300
  %v2406 = vpop.f32.mrf.mxu0
  %v2407 = vadd.f32 0.0, %v2406
  %2408 = vmatmul.f32.gmra.mxu0 %v2301
  %v2409 = vpop.f32.mrf.mxu0
  %v2410 = vadd.f32 0.0, %v2409
  %2411 = vmatmul.f32.gmra.mxu0 %v2302
  %v2412 = vpop.f32.mrf.mxu0
  %v2413 = vadd.f32 0.0, %v2412
  %2414 = vmatmul.f32.gmra.mxu0 %v2303
  %v2415 = vpop.f32.mrf.mxu0
  %v2416 = vadd.f32 0.0, %v2415
  %2417 = vmatmul.f32.gmra.mxu0 %v2304
  %v2418 = vpop.f32.mrf.mxu0
  %v2419 = vadd.f32 0.0, %v2418
  %2420 = vmatmul.f32.gmra.mxu0 %v2305
  %v2421 = vpop.f32.mrf.mxu0
  %v2422 = vadd.f32 0.0, %v2421
  %2423 = vmatmul.f32.gmra.mxu0 %v2306
  %v2424 = vpop.f32.mrf.mxu0
  %v2425 = vadd.f32 0.0, %v2424
  %2426 = vmatmul.f32.gmra.mxu0 %v2307
  %v2427 = vpop.f32.mrf.mxu0
  %v2428 = vadd.f32 0.0, %v2427
  %2429 = vmatmul.f32.gmra.mxu0 %v2308
  %v2430 = vpop.f32.mrf.mxu0
  %v2431 = vadd.f32 0.0, %v2430
  %2432 = vmatmul.f32.gmra.mxu0 %v2309
  %v2433 = vpop.f32.mrf.mxu0
  %v2434 = vadd.f32 0.0, %v2433
  %2435 = vmatmul.f32.gmra.mxu0 %v2310
  %v2436 = vpop.f32.mrf.mxu0
  %v2437 = vadd.f32 0.0, %v2436
  %2438 = vmatmul.f32.gmra.mxu0 %v2311
  %v2439 = vpop.f32.mrf.mxu0
  %v2440 = vadd.f32 0.0, %v2439
  %2441 = vmatmul.f32.gmra.mxu0 %v2312
  %v2442 = vpop.f32.mrf.mxu0
  %v2443 = vadd.f32 0.0, %v2442
  %2444 = vmatmul.f32.gmra.mxu0 %v2313
  %v2445 = vpop.f32.mrf.mxu0
  %v2446 = vadd.f32 0.0, %v2445
  %2447 = vmatmul.f32.gmra.mxu0 %v2314
  %v2448 = vpop.f32.mrf.mxu0
  %v2449 = vadd.f32 0.0, %v2448
  %2450 = vmatmul.f32.gmra.mxu0 %v2315
  %v2451 = vpop.f32.mrf.mxu0
  %v2452 = vadd.f32 0.0, %v2451
  %2453 = vmatmul.f32.gmra.mxu0 %v2316
  %v2454 = vpop.f32.mrf.mxu0
  %v2455 = vadd.f32 0.0, %v2454
  %2456 = vmatmul.f32.gmra.mxu0 %v2317
  %v2457 = vpop.f32.mrf.mxu0
  %v2458 = vadd.f32 0.0, %v2457
  %2459 = vmatmul.f32.gmra.mxu0 %v2318
  %v2460 = vpop.f32.mrf.mxu0
  %v2461 = vadd.f32 0.0, %v2460
  %2462 = vmatmul.f32.gmra.mxu0 %v2319
  %v2463 = vpop.f32.mrf.mxu0
  %v2464 = vadd.f32 0.0, %v2463
  %2465 = vmatmul.f32.gmra.mxu0 %v2320
  %v2466 = vpop.f32.mrf.mxu0
  %v2467 = vadd.f32 0.0, %v2466
  %2468 = vmatmul.f32.gmra.mxu0 %v2321
  %v2469 = vpop.f32.mrf.mxu0
  %v2470 = vadd.f32 0.0, %v2469
  %2471 = vmatmul.f32.gmra.mxu0 %v2322
  %v2472 = vpop.f32.mrf.mxu0
  %v2473 = vadd.f32 0.0, %v2472
  %2474 = vmatmul.f32.gmra.mxu0 %v2323
  %v2475 = vpop.f32.mrf.mxu0
  %v2476 = vadd.f32 0.0, %v2475
  %2477 = vmatmul.f32.gmra.mxu0 %v2324
  %v2478 = vpop.f32.mrf.mxu0
  %v2479 = vadd.f32 0.0, %v2478
  %2480 = vmatmul.f32.gmra.mxu0 %v2325
  %v2481 = vpop.f32.mrf.mxu0
  %v2482 = vadd.f32 0.0, %v2481
  %2483 = vmatmul.f32.gmra.mxu0 %v2326
  %v2484 = vpop.f32.mrf.mxu0
  %v2485 = vadd.f32 0.0, %v2484
  %2486 = vmatmul.f32.gmra.mxu0 %v2327
  %v2487 = vpop.f32.mrf.mxu0
  %v2488 = vadd.f32 0.0, %v2487
  %2489 = vmatmul.f32.gmra.mxu0 %v2328
  %v2490 = vpop.f32.mrf.mxu0
  %v2491 = vadd.f32 0.0, %v2490
  %2492 = vmatmul.f32.gmra.mxu0 %v2329
  %v2493 = vpop.f32.mrf.mxu0
  %v2494 = vadd.f32 0.0, %v2493
  %2495 = vmatmul.f32.gmra.mxu0 %v2330
  %v2496 = vpop.f32.mrf.mxu0
  %v2497 = vadd.f32 0.0, %v2496
  %2498 = vmatmul.f32.gmra.mxu0 %v2331
  %v2499 = vpop.f32.mrf.mxu0
  %v2500 = vadd.f32 0.0, %v2499
  %2501 = vmatmul.f32.gmra.mxu0 %v2332
  %v2502 = vpop.f32.mrf.mxu0
  %v2503 = vadd.f32 0.0, %v2502
  %2504 = vmatmul.f32.gmra.mxu0 %v2333
  %v2505 = vpop.f32.mrf.mxu0
  %v2506 = vadd.f32 0.0, %v2505
  %2507 = vmatmul.f32.gmra.mxu0 %v2334
  %v2508 = vpop.f32.mrf.mxu0
  %v2509 = vadd.f32 0.0, %v2508
  %2510 = vmatmul.f32.gmra.mxu0 %v2335
  %v2511 = vpop.f32.mrf.mxu0
  %v2512 = vadd.f32 0.0, %v2511
  %2513 = vmatmul.f32.gmra.mxu0 %v2336
  %v2514 = vpop.f32.mrf.mxu0
  %v2515 = vadd.f32 0.0, %v2514
  %2516 = vmatmul.f32.gmra.mxu0 %v2337
  %v2517 = vpop.f32.mrf.mxu0
  %v2518 = vadd.f32 0.0, %v2517
  %2519 = vmatmul.f32.gmra.mxu0 %v2338
  %v2520 = vpop.f32.mrf.mxu0
  %v2521 = vadd.f32 0.0, %v2520
  %2522 = vmatmul.f32.gmra.mxu0 %v2339
  %v2523 = vpop.f32.mrf.mxu0
  %v2524 = vadd.f32 0.0, %v2523
  %2525 = vmatmul.f32.gmra.mxu0 %v2340
  %v2526 = vpop.f32.mrf.mxu0
  %v2527 = vadd.f32 0.0, %v2526
  %2528 = vmatmul.f32.gmra.mxu0 %v2341
  %v2529 = vpop.f32.mrf.mxu0
  %v2530 = vadd.f32 0.0, %v2529
  %2531 = vmatmul.f32.gmra.mxu0 %v2342
  %v2532 = vpop.f32.mrf.mxu0
  %v2533 = vadd.f32 0.0, %v2532
  %2534 = vmatmul.f32.gmra.mxu0 %v2343
  %v2535 = vpop.f32.mrf.mxu0
  %v2536 = vadd.f32 0.0, %v2535
  %2537 = vmatmul.f32.gmra.mxu0 %v2344
  %v2538 = vpop.f32.mrf.mxu0
  %v2539 = vadd.f32 0.0, %v2538
  %2540 = vmatmul.f32.gmra.mxu0 %v2345
  %v2541 = vpop.f32.mrf.mxu0
  %v2542 = vadd.f32 0.0, %v2541
  %2543 = vmatmul.f32.gmra.mxu0 %v2346
  %v2544 = vpop.f32.mrf.mxu0
  %v2545 = vadd.f32 0.0, %v2544
  %2546 = vmatmul.f32.gmra.mxu0 %v2347
  %v2547 = vpop.f32.mrf.mxu0
  %v2548 = vadd.f32 0.0, %v2547
  %2549 = vmatmul.f32.gmra.mxu0 %v2348
  %v2550 = vpop.f32.mrf.mxu0
  %v2551 = vadd.f32 0.0, %v2550
  %2552 = vmatmul.f32.gmra.mxu0 %v2349
  %v2553 = vpop.f32.mrf.mxu0
  %v2554 = vadd.f32 0.0, %v2553
  %2555 = vmatmul.f32.gmra.mxu0 %v2350
  %v2556 = vpop.f32.mrf.mxu0
  %v2557 = vadd.f32 0.0, %v2556
  %2558 = vmatmul.f32.gmra.mxu0 %v2351
  %v2559 = vpop.f32.mrf.mxu0
  %v2560 = vadd.f32 0.0, %v2559
  %2561 = vmatmul.f32.gmra.mxu0 %v2352
  %v2562 = vpop.f32.mrf.mxu0
  %v2563 = vadd.f32 0.0, %v2562
  %2564 = vmatmul.f32.gmra.mxu0 %v2353
  %v2565 = vpop.f32.mrf.mxu0
  %v2566 = vadd.f32 0.0, %v2565
  %2567 = vmatmul.f32.gmra.mxu0 %v2354
  %v2568 = vpop.f32.mrf.mxu0
  %v2569 = vadd.f32 0.0, %v2568
  %2570 = vmatmul.f32.gmra.mxu0 %v2355
  %v2571 = vpop.f32.mrf.mxu0
  %v2572 = vadd.f32 0.0, %v2571
  %2573 = vmatmul.f32.gmra.mxu0 %v2356
  %v2574 = vpop.f32.mrf.mxu0
  %v2575 = vadd.f32 0.0, %v2574
  %2576 = vmatmul.f32.gmra.mxu0 %v2357
  %v2577 = vpop.f32.mrf.mxu0
  %v2578 = vadd.f32 0.0, %v2577
  %2579 = vmatmul.f32.gmra.mxu0 %v2358
  %v2580 = vpop.f32.mrf.mxu0
  %v2581 = vadd.f32 0.0, %v2580
  %2582 = vmatmul.f32.gmra.mxu0 %v2359
  %v2583 = vpop.f32.mrf.mxu0
  %v2584 = vadd.f32 0.0, %v2583
  %2585 = vdwg.mxu0
  %v2586 = vadd.f32 %v2231, %v2395
  %v2587 = vadd.f32 %v2232, %v2398
  %v2588 = vadd.f32 %v2233, %v2401
  %v2589 = vadd.f32 %v2234, %v2404
  %v2590 = vadd.f32 %v2235, %v2407
  %v2591 = vadd.f32 %v2236, %v2410
  %v2592 = vadd.f32 %v2237, %v2413
  %v2593 = vadd.f32 %v2238, %v2416
  %v2594 = vadd.f32 %v2239, %v2419
  %v2595 = vadd.f32 %v2240, %v2422
  %v2596 = vadd.f32 %v2241, %v2425
  %v2597 = vadd.f32 %v2242, %v2428
  %v2598 = vadd.f32 %v2243, %v2431
  %v2599 = vadd.f32 %v2244, %v2434
  %v2600 = vadd.f32 %v2245, %v2437
  %v2601 = vadd.f32 %v2246, %v2440
  %v2602 = vadd.f32 %v2247, %v2443
  %v2603 = vadd.f32 %v2248, %v2446
  %v2604 = vadd.f32 %v2249, %v2449
  %v2605 = vadd.f32 %v2250, %v2452
  %v2606 = vadd.f32 %v2251, %v2455
  %v2607 = vadd.f32 %v2252, %v2458
  %v2608 = vadd.f32 %v2253, %v2461
  %v2609 = vadd.f32 %v2254, %v2464
  %v2610 = vadd.f32 %v2255, %v2467
  %v2611 = vadd.f32 %v2256, %v2470
  %v2612 = vadd.f32 %v2257, %v2473
  %v2613 = vadd.f32 %v2258, %v2476
  %v2614 = vadd.f32 %v2259, %v2479
  %v2615 = vadd.f32 %v2260, %v2482
  %v2616 = vadd.f32 %v2261, %v2485
  %v2617 = vadd.f32 %v2262, %v2488
  %v2618 = vadd.f32 %v2263, %v2491
  %v2619 = vadd.f32 %v2264, %v2494
  %v2620 = vadd.f32 %v2265, %v2497
  %v2621 = vadd.f32 %v2266, %v2500
  %v2622 = vadd.f32 %v2267, %v2503
  %v2623 = vadd.f32 %v2268, %v2506
  %v2624 = vadd.f32 %v2269, %v2509
  %v2625 = vadd.f32 %v2270, %v2512
  %v2626 = vadd.f32 %v2271, %v2515
  %v2627 = vadd.f32 %v2272, %v2518
  %v2628 = vadd.f32 %v2273, %v2521
  %v2629 = vadd.f32 %v2274, %v2524
  %v2630 = vadd.f32 %v2275, %v2527
  %v2631 = vadd.f32 %v2276, %v2530
  %v2632 = vadd.f32 %v2277, %v2533
  %v2633 = vadd.f32 %v2278, %v2536
  %v2634 = vadd.f32 %v2279, %v2539
  %v2635 = vadd.f32 %v2280, %v2542
  %v2636 = vadd.f32 %v2281, %v2545
  %v2637 = vadd.f32 %v2282, %v2548
  %v2638 = vadd.f32 %v2283, %v2551
  %v2639 = vadd.f32 %v2284, %v2554
  %v2640 = vadd.f32 %v2285, %v2557
  %v2641 = vadd.f32 %v2286, %v2560
  %v2642 = vadd.f32 %v2287, %v2563
  %v2643 = vadd.f32 %v2288, %v2566
  %v2644 = vadd.f32 %v2289, %v2569
  %v2645 = vadd.f32 %v2290, %v2572
  %v2646 = vadd.f32 %v2291, %v2575
  %v2647 = vadd.f32 %v2292, %v2578
  %v2648 = vadd.f32 %v2293, %v2581
  %v2649 = vadd.f32 %v2294, %v2584
  %v2650 = vld [vmem:[%s2295 + $0x8] sm:$0xff]
  %v2651 = vld [vmem:[%s2295 + $0x10] sm:$0xff]
  %v2652 = vld [vmem:[%s2295 + $0x28] sm:$0xff]
  %v2653 = vld [vmem:[%s2295 + $0x30] sm:$0xff]
  %v2654 = vld [vmem:[%s2295 + $0x48] sm:$0xff]
  %v2655 = vld [vmem:[%s2295 + $0x50] sm:$0xff]
  %v2656 = vld [vmem:[%s2295 + $0x68] sm:$0xff]
  %v2657 = vld [vmem:[%s2295 + $0x70] sm:$0xff]
  %v2658 = vld [vmem:[%s2295 + $0x88] sm:$0xff]
  %v2659 = vld [vmem:[%s2295 + $0x90] sm:$0xff]
  %v2660 = vld [vmem:[%s2295 + $0xa8] sm:$0xff]
  %v2661 = vld [vmem:[%s2295 + $0xb0] sm:$0xff]
  %v2662 = vld [vmem:[%s2295 + $0xc8] sm:$0xff]
  %v2663 = vld [vmem:[%s2295 + $0xd0] sm:$0xff]
  %v2664 = vld [vmem:[%s2295 + $0xe8] sm:$0xff]
  %v2665 = vld [vmem:[%s2295 + $0xf0] sm:$0xff]
  %v2666 = vld [vmem:[%s2295 + $0x108] sm:$0xff]
  %v2667 = vld [vmem:[%s2295 + $0x110] sm:$0xff]
  %v2668 = vld [vmem:[%s2295 + $0x128] sm:$0xff]
  %v2669 = vld [vmem:[%s2295 + $0x130] sm:$0xff]
  %v2670 = vld [vmem:[%s2295 + $0x148] sm:$0xff]
  %v2671 = vld [vmem:[%s2295 + $0x150] sm:$0xff]
  %v2672 = vld [vmem:[%s2295 + $0x168] sm:$0xff]
  %v2673 = vld [vmem:[%s2295 + $0x170] sm:$0xff]
  %v2674 = vld [vmem:[%s2295 + $0x188] sm:$0xff]
  %v2675 = vld [vmem:[%s2295 + $0x190] sm:$0xff]
  %v2676 = vld [vmem:[%s2295 + $0x1a8] sm:$0xff]
  %v2677 = vld [vmem:[%s2295 + $0x1b0] sm:$0xff]
  %v2678 = vld [vmem:[%s2295 + $0x1c8] sm:$0xff]
  %v2679 = vld [vmem:[%s2295 + $0x1d0] sm:$0xff]
  %v2680 = vld [vmem:[%s2295 + $0x1e8] sm:$0xff]
  %v2681 = vld [vmem:[%s2295 + $0x1f0] sm:$0xff]
  %v2682 = vld [vmem:[%s2295 + $0x248] sm:$0xff]
  %v2683 = vld [vmem:[%s2295 + $0x250] sm:$0xff]
  %v2684 = vld [vmem:[%s2295 + $0x268] sm:$0xff]
  %v2685 = vld [vmem:[%s2295 + $0x270] sm:$0xff]
  %v2686 = vld [vmem:[%s2295 + $0x288] sm:$0xff]
  %v2687 = vld [vmem:[%s2295 + $0x290] sm:$0xff]
  %v2688 = vld [vmem:[%s2295 + $0x2a8] sm:$0xff]
  %v2689 = vld [vmem:[%s2295 + $0x2b0] sm:$0xff]
  %v2690 = vld [vmem:[%s2295 + $0x2c8] sm:$0xff]
  %v2691 = vld [vmem:[%s2295 + $0x2d0] sm:$0xff]
  %v2692 = vld [vmem:[%s2295 + $0x2e8] sm:$0xff]
  %v2693 = vld [vmem:[%s2295 + $0x2f0] sm:$0xff]
  %v2694 = vld [vmem:[%s2295 + $0x308] sm:$0xff]
  %v2695 = vld [vmem:[%s2295 + $0x310] sm:$0xff]
  %v2696 = vld [vmem:[%s2295 + $0x328] sm:$0xff]
  %v2697 = vld [vmem:[%s2295 + $0x330] sm:$0xff]
  %v2698 = vld [vmem:[%s2295 + $0x348] sm:$0xff]
  %v2699 = vld [vmem:[%s2295 + $0x350] sm:$0xff]
  %v2700 = vld [vmem:[%s2295 + $0x368] sm:$0xff]
  %v2701 = vld [vmem:[%s2295 + $0x370] sm:$0xff]
  %v2702 = vld [vmem:[%s2295 + $0x388] sm:$0xff]
  %v2703 = vld [vmem:[%s2295 + $0x390] sm:$0xff]
  %v2704 = vld [vmem:[%s2295 + $0x3a8] sm:$0xff]
  %v2705 = vld [vmem:[%s2295 + $0x3b0] sm:$0xff]
  %v2706 = vld [vmem:[%s2295 + $0x3c8] sm:$0xff]
  %v2707 = vld [vmem:[%s2295 + $0x3d0] sm:$0xff]
  %v2708 = vld [vmem:[%s2295 + $0x3e8] sm:$0xff]
  %v2709 = vld [vmem:[%s2295 + $0x3f0] sm:$0xff]
  %v2710 = vld [vmem:[%s2295 + $0x408] sm:$0xff]
  %v2711 = vld [vmem:[%s2295 + $0x410] sm:$0xff]
  %v2712 = vld [vmem:[%s2295 + $0x428] sm:$0xff]
  %v2713 = vld [vmem:[%s2295 + $0x430] sm:$0xff]
  %s2714 = scalar_lea.vmem %s1, 896
  %v2715 = vld [vmem:[%s2714] sm:$0xff]
  %v2716 = vld [vmem:[%s2714 + $0x8] sm:$0xff]
  %v2717 = vld [vmem:[%s2714 + $0x10] sm:$0xff]
  %v2718 = vld [vmem:[%s2714 + $0x18] sm:$0xff]
  %v2719 = vld [vmem:[%s2714 + $0x20] sm:$0xff]
  %v2720 = vld [vmem:[%s2714 + $0x28] sm:$0xff]
  %v2721 = vld [vmem:[%s2714 + $0x30] sm:$0xff]
  %v2722 = vld [vmem:[%s2714 + $0x38] sm:$0xff]
  %v2723 = vld [vmem:[%s2714 + $0x40] sm:$0xff]
  %v2724 = vld [vmem:[%s2714 + $0x48] sm:$0xff]
  %v2725 = vld [vmem:[%s2714 + $0x50] sm:$0xff]
  %v2726 = vld [vmem:[%s2714 + $0x58] sm:$0xff]
  %v2727 = vld [vmem:[%s2714 + $0x60] sm:$0xff]
  %v2728 = vld [vmem:[%s2714 + $0x68] sm:$0xff]
  %v2729 = vld [vmem:[%s2714 + $0x70] sm:$0xff]
  %v2730 = vld [vmem:[%s2714 + $0x78] sm:$0xff]
  %2731 = vmatpush.msra.mxu0 %v2730
  %2732 = vmatpush.msra.mxu0 %v2729
  %2733 = vmatpush.msra.mxu0 %v2728
  %2734 = vmatpush.msra.mxu0 %v2727
  %2735 = vmatpush.msra.mxu0 %v2726
  %2736 = vmatpush.msra.mxu0 %v2725
  %2737 = vmatpush.msra.mxu0 %v2724
  %2738 = vmatpush.msra.mxu0 %v2723
  %2739 = vmatpush.msra.mxu0 %v2722
  %2740 = vmatpush.msra.mxu0 %v2721
  %2741 = vmatpush.msra.mxu0 %v2720
  %2742 = vmatpush.msra.mxu0 %v2719
  %2743 = vmatpush.msra.mxu0 %v2718
  %2744 = vmatpush.msra.mxu0 %v2717
  %2745 = vmatpush.msra.mxu0 %v2716
  %2746 = vmatpush.msra.mxu0 %v2715
  %2747 = vmatmul.f32.gmra.mxu0 %v2650
  %v2748 = vpop.f32.mrf.mxu0
  %v2749 = vadd.f32 0.0, %v2748
  %2750 = vmatmul.f32.gmra.mxu0 %v2651
  %v2751 = vpop.f32.mrf.mxu0
  %v2752 = vadd.f32 0.0, %v2751
  %2753 = vmatmul.f32.gmra.mxu0 %v2652
  %v2754 = vpop.f32.mrf.mxu0
  %v2755 = vadd.f32 0.0, %v2754
  %2756 = vmatmul.f32.gmra.mxu0 %v2653
  %v2757 = vpop.f32.mrf.mxu0
  %v2758 = vadd.f32 0.0, %v2757
  %2759 = vmatmul.f32.gmra.mxu0 %v2654
  %v2760 = vpop.f32.mrf.mxu0
  %v2761 = vadd.f32 0.0, %v2760
  %2762 = vmatmul.f32.gmra.mxu0 %v2655
  %v2763 = vpop.f32.mrf.mxu0
  %v2764 = vadd.f32 0.0, %v2763
  %2765 = vmatmul.f32.gmra.mxu0 %v2656
  %v2766 = vpop.f32.mrf.mxu0
  %v2767 = vadd.f32 0.0, %v2766
  %2768 = vmatmul.f32.gmra.mxu0 %v2657
  %v2769 = vpop.f32.mrf.mxu0
  %v2770 = vadd.f32 0.0, %v2769
  %2771 = vmatmul.f32.gmra.mxu0 %v2658
  %v2772 = vpop.f32.mrf.mxu0
  %v2773 = vadd.f32 0.0, %v2772
  %2774 = vmatmul.f32.gmra.mxu0 %v2659
  %v2775 = vpop.f32.mrf.mxu0
  %v2776 = vadd.f32 0.0, %v2775
  %2777 = vmatmul.f32.gmra.mxu0 %v2660
  %v2778 = vpop.f32.mrf.mxu0
  %v2779 = vadd.f32 0.0, %v2778
  %2780 = vmatmul.f32.gmra.mxu0 %v2661
  %v2781 = vpop.f32.mrf.mxu0
  %v2782 = vadd.f32 0.0, %v2781
  %2783 = vmatmul.f32.gmra.mxu0 %v2662
  %v2784 = vpop.f32.mrf.mxu0
  %v2785 = vadd.f32 0.0, %v2784
  %2786 = vmatmul.f32.gmra.mxu0 %v2663
  %v2787 = vpop.f32.mrf.mxu0
  %v2788 = vadd.f32 0.0, %v2787
  %2789 = vmatmul.f32.gmra.mxu0 %v2664
  %v2790 = vpop.f32.mrf.mxu0
  %v2791 = vadd.f32 0.0, %v2790
  %2792 = vmatmul.f32.gmra.mxu0 %v2665
  %v2793 = vpop.f32.mrf.mxu0
  %v2794 = vadd.f32 0.0, %v2793
  %2795 = vmatmul.f32.gmra.mxu0 %v2666
  %v2796 = vpop.f32.mrf.mxu0
  %v2797 = vadd.f32 0.0, %v2796
  %2798 = vmatmul.f32.gmra.mxu0 %v2667
  %v2799 = vpop.f32.mrf.mxu0
  %v2800 = vadd.f32 0.0, %v2799
  %2801 = vmatmul.f32.gmra.mxu0 %v2668
  %v2802 = vpop.f32.mrf.mxu0
  %v2803 = vadd.f32 0.0, %v2802
  %2804 = vmatmul.f32.gmra.mxu0 %v2669
  %v2805 = vpop.f32.mrf.mxu0
  %v2806 = vadd.f32 0.0, %v2805
  %2807 = vmatmul.f32.gmra.mxu0 %v2670
  %v2808 = vpop.f32.mrf.mxu0
  %v2809 = vadd.f32 0.0, %v2808
  %2810 = vmatmul.f32.gmra.mxu0 %v2671
  %v2811 = vpop.f32.mrf.mxu0
  %v2812 = vadd.f32 0.0, %v2811
  %2813 = vmatmul.f32.gmra.mxu0 %v2672
  %v2814 = vpop.f32.mrf.mxu0
  %v2815 = vadd.f32 0.0, %v2814
  %2816 = vmatmul.f32.gmra.mxu0 %v2673
  %v2817 = vpop.f32.mrf.mxu0
  %v2818 = vadd.f32 0.0, %v2817
  %2819 = vmatmul.f32.gmra.mxu0 %v2674
  %v2820 = vpop.f32.mrf.mxu0
  %v2821 = vadd.f32 0.0, %v2820
  %2822 = vmatmul.f32.gmra.mxu0 %v2675
  %v2823 = vpop.f32.mrf.mxu0
  %v2824 = vadd.f32 0.0, %v2823
  %2825 = vmatmul.f32.gmra.mxu0 %v2676
  %v2826 = vpop.f32.mrf.mxu0
  %v2827 = vadd.f32 0.0, %v2826
  %2828 = vmatmul.f32.gmra.mxu0 %v2677
  %v2829 = vpop.f32.mrf.mxu0
  %v2830 = vadd.f32 0.0, %v2829
  %2831 = vmatmul.f32.gmra.mxu0 %v2678
  %v2832 = vpop.f32.mrf.mxu0
  %v2833 = vadd.f32 0.0, %v2832
  %2834 = vmatmul.f32.gmra.mxu0 %v2679
  %v2835 = vpop.f32.mrf.mxu0
  %v2836 = vadd.f32 0.0, %v2835
  %2837 = vmatmul.f32.gmra.mxu0 %v2680
  %v2838 = vpop.f32.mrf.mxu0
  %v2839 = vadd.f32 0.0, %v2838
  %2840 = vmatmul.f32.gmra.mxu0 %v2681
  %v2841 = vpop.f32.mrf.mxu0
  %v2842 = vadd.f32 0.0, %v2841
  %2843 = vmatmul.f32.gmra.mxu0 %v2682
  %v2844 = vpop.f32.mrf.mxu0
  %v2845 = vadd.f32 0.0, %v2844
  %2846 = vmatmul.f32.gmra.mxu0 %v2683
  %v2847 = vpop.f32.mrf.mxu0
  %v2848 = vadd.f32 0.0, %v2847
  %2849 = vmatmul.f32.gmra.mxu0 %v2684
  %v2850 = vpop.f32.mrf.mxu0
  %v2851 = vadd.f32 0.0, %v2850
  %2852 = vmatmul.f32.gmra.mxu0 %v2685
  %v2853 = vpop.f32.mrf.mxu0
  %v2854 = vadd.f32 0.0, %v2853
  %2855 = vmatmul.f32.gmra.mxu0 %v2686
  %v2856 = vpop.f32.mrf.mxu0
  %v2857 = vadd.f32 0.0, %v2856
  %2858 = vmatmul.f32.gmra.mxu0 %v2687
  %v2859 = vpop.f32.mrf.mxu0
  %v2860 = vadd.f32 0.0, %v2859
  %2861 = vmatmul.f32.gmra.mxu0 %v2688
  %v2862 = vpop.f32.mrf.mxu0
  %v2863 = vadd.f32 0.0, %v2862
  %2864 = vmatmul.f32.gmra.mxu0 %v2689
  %v2865 = vpop.f32.mrf.mxu0
  %v2866 = vadd.f32 0.0, %v2865
  %2867 = vmatmul.f32.gmra.mxu0 %v2690
  %v2868 = vpop.f32.mrf.mxu0
  %v2869 = vadd.f32 0.0, %v2868
  %2870 = vmatmul.f32.gmra.mxu0 %v2691
  %v2871 = vpop.f32.mrf.mxu0
  %v2872 = vadd.f32 0.0, %v2871
  %2873 = vmatmul.f32.gmra.mxu0 %v2692
  %v2874 = vpop.f32.mrf.mxu0
  %v2875 = vadd.f32 0.0, %v2874
  %2876 = vmatmul.f32.gmra.mxu0 %v2693
  %v2877 = vpop.f32.mrf.mxu0
  %v2878 = vadd.f32 0.0, %v2877
  %2879 = vmatmul.f32.gmra.mxu0 %v2694
  %v2880 = vpop.f32.mrf.mxu0
  %v2881 = vadd.f32 0.0, %v2880
  %2882 = vmatmul.f32.gmra.mxu0 %v2695
  %v2883 = vpop.f32.mrf.mxu0
  %v2884 = vadd.f32 0.0, %v2883
  %2885 = vmatmul.f32.gmra.mxu0 %v2696
  %v2886 = vpop.f32.mrf.mxu0
  %v2887 = vadd.f32 0.0, %v2886
  %2888 = vmatmul.f32.gmra.mxu0 %v2697
  %v2889 = vpop.f32.mrf.mxu0
  %v2890 = vadd.f32 0.0, %v2889
  %2891 = vmatmul.f32.gmra.mxu0 %v2698
  %v2892 = vpop.f32.mrf.mxu0
  %v2893 = vadd.f32 0.0, %v2892
  %2894 = vmatmul.f32.gmra.mxu0 %v2699
  %v2895 = vpop.f32.mrf.mxu0
  %v2896 = vadd.f32 0.0, %v2895
  %2897 = vmatmul.f32.gmra.mxu0 %v2700
  %v2898 = vpop.f32.mrf.mxu0
  %v2899 = vadd.f32 0.0, %v2898
  %2900 = vmatmul.f32.gmra.mxu0 %v2701
  %v2901 = vpop.f32.mrf.mxu0
  %v2902 = vadd.f32 0.0, %v2901
  %2903 = vmatmul.f32.gmra.mxu0 %v2702
  %v2904 = vpop.f32.mrf.mxu0
  %v2905 = vadd.f32 0.0, %v2904
  %2906 = vmatmul.f32.gmra.mxu0 %v2703
  %v2907 = vpop.f32.mrf.mxu0
  %v2908 = vadd.f32 0.0, %v2907
  %2909 = vmatmul.f32.gmra.mxu0 %v2704
  %v2910 = vpop.f32.mrf.mxu0
  %v2911 = vadd.f32 0.0, %v2910
  %2912 = vmatmul.f32.gmra.mxu0 %v2705
  %v2913 = vpop.f32.mrf.mxu0
  %v2914 = vadd.f32 0.0, %v2913
  %2915 = vmatmul.f32.gmra.mxu0 %v2706
  %v2916 = vpop.f32.mrf.mxu0
  %v2917 = vadd.f32 0.0, %v2916
  %2918 = vmatmul.f32.gmra.mxu0 %v2707
  %v2919 = vpop.f32.mrf.mxu0
  %v2920 = vadd.f32 0.0, %v2919
  %2921 = vmatmul.f32.gmra.mxu0 %v2708
  %v2922 = vpop.f32.mrf.mxu0
  %v2923 = vadd.f32 0.0, %v2922
  %2924 = vmatmul.f32.gmra.mxu0 %v2709
  %v2925 = vpop.f32.mrf.mxu0
  %v2926 = vadd.f32 0.0, %v2925
  %2927 = vmatmul.f32.gmra.mxu0 %v2710
  %v2928 = vpop.f32.mrf.mxu0
  %v2929 = vadd.f32 0.0, %v2928
  %2930 = vmatmul.f32.gmra.mxu0 %v2711
  %v2931 = vpop.f32.mrf.mxu0
  %v2932 = vadd.f32 0.0, %v2931
  %2933 = vmatmul.f32.gmra.mxu0 %v2712
  %v2934 = vpop.f32.mrf.mxu0
  %v2935 = vadd.f32 0.0, %v2934
  %2936 = vmatmul.f32.gmra.mxu0 %v2713
  %v2937 = vpop.f32.mrf.mxu0
  %v2938 = vadd.f32 0.0, %v2937
  %2939 = vdwg.mxu0
  %v2940 = vadd.f32 %v2586, %v2749
  %v2941 = vadd.f32 %v2587, %v2752
  %v2942 = vadd.f32 %v2588, %v2755
  %v2943 = vadd.f32 %v2589, %v2758
  %v2944 = vadd.f32 %v2590, %v2761
  %v2945 = vadd.f32 %v2591, %v2764
  %v2946 = vadd.f32 %v2592, %v2767
  %v2947 = vadd.f32 %v2593, %v2770
  %v2948 = vadd.f32 %v2594, %v2773
  %v2949 = vadd.f32 %v2595, %v2776
  %v2950 = vadd.f32 %v2596, %v2779
  %v2951 = vadd.f32 %v2597, %v2782
  %v2952 = vadd.f32 %v2598, %v2785
  %v2953 = vadd.f32 %v2599, %v2788
  %v2954 = vadd.f32 %v2600, %v2791
  %v2955 = vadd.f32 %v2601, %v2794
  %v2956 = vadd.f32 %v2602, %v2797
  %v2957 = vadd.f32 %v2603, %v2800
  %v2958 = vadd.f32 %v2604, %v2803
  %v2959 = vadd.f32 %v2605, %v2806
  %v2960 = vadd.f32 %v2606, %v2809
  %v2961 = vadd.f32 %v2607, %v2812
  %v2962 = vadd.f32 %v2608, %v2815
  %v2963 = vadd.f32 %v2609, %v2818
  %v2964 = vadd.f32 %v2610, %v2821
  %v2965 = vadd.f32 %v2611, %v2824
  %v2966 = vadd.f32 %v2612, %v2827
  %v2967 = vadd.f32 %v2613, %v2830
  %v2968 = vadd.f32 %v2614, %v2833
  %v2969 = vadd.f32 %v2615, %v2836
  %v2970 = vadd.f32 %v2616, %v2839
  %v2971 = vadd.f32 %v2617, %v2842
  %v2972 = vadd.f32 %v2618, %v2845
  %v2973 = vadd.f32 %v2619, %v2848
  %v2974 = vadd.f32 %v2620, %v2851
  %v2975 = vadd.f32 %v2621, %v2854
  %v2976 = vadd.f32 %v2622, %v2857
  %v2977 = vadd.f32 %v2623, %v2860
  %v2978 = vadd.f32 %v2624, %v2863
  %v2979 = vadd.f32 %v2625, %v2866
  %v2980 = vadd.f32 %v2626, %v2869
  %v2981 = vadd.f32 %v2627, %v2872
  %v2982 = vadd.f32 %v2628, %v2875
  %v2983 = vadd.f32 %v2629, %v2878
  %v2984 = vadd.f32 %v2630, %v2881
  %v2985 = vadd.f32 %v2631, %v2884
  %v2986 = vadd.f32 %v2632, %v2887
  %v2987 = vadd.f32 %v2633, %v2890
  %v2988 = vadd.f32 %v2634, %v2893
  %v2989 = vadd.f32 %v2635, %v2896
  %v2990 = vadd.f32 %v2636, %v2899
  %v2991 = vadd.f32 %v2637, %v2902
  %v2992 = vadd.f32 %v2638, %v2905
  %v2993 = vadd.f32 %v2639, %v2908
  %v2994 = vadd.f32 %v2640, %v2911
  %v2995 = vadd.f32 %v2641, %v2914
  %v2996 = vadd.f32 %v2642, %v2917
  %v2997 = vadd.f32 %v2643, %v2920
  %v2998 = vadd.f32 %v2644, %v2923
  %v2999 = vadd.f32 %v2645, %v2926
  %v3000 = vadd.f32 %v2646, %v2929
  %v3001 = vadd.f32 %v2647, %v2932
  %v3002 = vadd.f32 %v2648, %v2935
  %v3003 = vadd.f32 %v2649, %v2938
  %v3004 = vld [vmem:[%s2295 + $0x9] sm:$0xff]
  %v3005 = vld [vmem:[%s2295 + $0x11] sm:$0xff]
  %v3006 = vld [vmem:[%s2295 + $0x29] sm:$0xff]
  %v3007 = vld [vmem:[%s2295 + $0x31] sm:$0xff]
  %v3008 = vld [vmem:[%s2295 + $0x49] sm:$0xff]
  %v3009 = vld [vmem:[%s2295 + $0x51] sm:$0xff]
  %v3010 = vld [vmem:[%s2295 + $0x69] sm:$0xff]
  %v3011 = vld [vmem:[%s2295 + $0x71] sm:$0xff]
  %v3012 = vld [vmem:[%s2295 + $0x89] sm:$0xff]
  %v3013 = vld [vmem:[%s2295 + $0x91] sm:$0xff]
  %v3014 = vld [vmem:[%s2295 + $0xa9] sm:$0xff]
  %v3015 = vld [vmem:[%s2295 + $0xb1] sm:$0xff]
  %v3016 = vld [vmem:[%s2295 + $0xc9] sm:$0xff]
  %v3017 = vld [vmem:[%s2295 + $0xd1] sm:$0xff]
  %v3018 = vld [vmem:[%s2295 + $0xe9] sm:$0xff]
  %v3019 = vld [vmem:[%s2295 + $0xf1] sm:$0xff]
  %v3020 = vld [vmem:[%s2295 + $0x109] sm:$0xff]
  %v3021 = vld [vmem:[%s2295 + $0x111] sm:$0xff]
  %v3022 = vld [vmem:[%s2295 + $0x129] sm:$0xff]
  %v3023 = vld [vmem:[%s2295 + $0x131] sm:$0xff]
  %v3024 = vld [vmem:[%s2295 + $0x149] sm:$0xff]
  %v3025 = vld [vmem:[%s2295 + $0x151] sm:$0xff]
  %v3026 = vld [vmem:[%s2295 + $0x169] sm:$0xff]
  %v3027 = vld [vmem:[%s2295 + $0x171] sm:$0xff]
  %v3028 = vld [vmem:[%s2295 + $0x189] sm:$0xff]
  %v3029 = vld [vmem:[%s2295 + $0x191] sm:$0xff]
  %v3030 = vld [vmem:[%s2295 + $0x1a9] sm:$0xff]
  %v3031 = vld [vmem:[%s2295 + $0x1b1] sm:$0xff]
  %v3032 = vld [vmem:[%s2295 + $0x1c9] sm:$0xff]
  %v3033 = vld [vmem:[%s2295 + $0x1d1] sm:$0xff]
  %v3034 = vld [vmem:[%s2295 + $0x1e9] sm:$0xff]
  %v3035 = vld [vmem:[%s2295 + $0x1f1] sm:$0xff]
  %v3036 = vld [vmem:[%s2295 + $0x249] sm:$0xff]
  %v3037 = vld [vmem:[%s2295 + $0x251] sm:$0xff]
  %v3038 = vld [vmem:[%s2295 + $0x269] sm:$0xff]
  %v3039 = vld [vmem:[%s2295 + $0x271] sm:$0xff]
  %v3040 = vld [vmem:[%s2295 + $0x289] sm:$0xff]
  %v3041 = vld [vmem:[%s2295 + $0x291] sm:$0xff]
  %v3042 = vld [vmem:[%s2295 + $0x2a9] sm:$0xff]
  %v3043 = vld [vmem:[%s2295 + $0x2b1] sm:$0xff]
  %v3044 = vld [vmem:[%s2295 + $0x2c9] sm:$0xff]
  %v3045 = vld [vmem:[%s2295 + $0x2d1] sm:$0xff]
  %v3046 = vld [vmem:[%s2295 + $0x2e9] sm:$0xff]
  %v3047 = vld [vmem:[%s2295 + $0x2f1] sm:$0xff]
  %v3048 = vld [vmem:[%s2295 + $0x309] sm:$0xff]
  %v3049 = vld [vmem:[%s2295 + $0x311] sm:$0xff]
  %v3050 = vld [vmem:[%s2295 + $0x329] sm:$0xff]
  %v3051 = vld [vmem:[%s2295 + $0x331] sm:$0xff]
  %v3052 = vld [vmem:[%s2295 + $0x349] sm:$0xff]
  %v3053 = vld [vmem:[%s2295 + $0x351] sm:$0xff]
  %v3054 = vld [vmem:[%s2295 + $0x369] sm:$0xff]
  %v3055 = vld [vmem:[%s2295 + $0x371] sm:$0xff]
  %v3056 = vld [vmem:[%s2295 + $0x389] sm:$0xff]
  %v3057 = vld [vmem:[%s2295 + $0x391] sm:$0xff]
  %v3058 = vld [vmem:[%s2295 + $0x3a9] sm:$0xff]
  %v3059 = vld [vmem:[%s2295 + $0x3b1] sm:$0xff]
  %v3060 = vld [vmem:[%s2295 + $0x3c9] sm:$0xff]
  %v3061 = vld [vmem:[%s2295 + $0x3d1] sm:$0xff]
  %v3062 = vld [vmem:[%s2295 + $0x3e9] sm:$0xff]
  %v3063 = vld [vmem:[%s2295 + $0x3f1] sm:$0xff]
  %v3064 = vld [vmem:[%s2295 + $0x409] sm:$0xff]
  %v3065 = vld [vmem:[%s2295 + $0x411] sm:$0xff]
  %v3066 = vld [vmem:[%s2295 + $0x429] sm:$0xff]
  %v3067 = vld [vmem:[%s2295 + $0x431] sm:$0xff]
  %s3068 = scalar_lea.vmem %s1, 1024
  %v3069 = vld [vmem:[%s3068] sm:$0xff]
  %v3070 = vld [vmem:[%s3068 + $0x8] sm:$0xff]
  %v3071 = vld [vmem:[%s3068 + $0x10] sm:$0xff]
  %v3072 = vld [vmem:[%s3068 + $0x18] sm:$0xff]
  %v3073 = vld [vmem:[%s3068 + $0x20] sm:$0xff]
  %v3074 = vld [vmem:[%s3068 + $0x28] sm:$0xff]
  %v3075 = vld [vmem:[%s3068 + $0x30] sm:$0xff]
  %v3076 = vld [vmem:[%s3068 + $0x38] sm:$0xff]
  %v3077 = vld [vmem:[%s3068 + $0x40] sm:$0xff]
  %v3078 = vld [vmem:[%s3068 + $0x48] sm:$0xff]
  %v3079 = vld [vmem:[%s3068 + $0x50] sm:$0xff]
  %v3080 = vld [vmem:[%s3068 + $0x58] sm:$0xff]
  %v3081 = vld [vmem:[%s3068 + $0x60] sm:$0xff]
  %v3082 = vld [vmem:[%s3068 + $0x68] sm:$0xff]
  %v3083 = vld [vmem:[%s3068 + $0x70] sm:$0xff]
  %v3084 = vld [vmem:[%s3068 + $0x78] sm:$0xff]
  %3085 = vmatpush.msra.mxu0 %v3084
  %3086 = vmatpush.msra.mxu0 %v3083
  %3087 = vmatpush.msra.mxu0 %v3082
  %3088 = vmatpush.msra.mxu0 %v3081
  %3089 = vmatpush.msra.mxu0 %v3080
  %3090 = vmatpush.msra.mxu0 %v3079
  %3091 = vmatpush.msra.mxu0 %v3078
  %3092 = vmatpush.msra.mxu0 %v3077
  %3093 = vmatpush.msra.mxu0 %v3076
  %3094 = vmatpush.msra.mxu0 %v3075
  %3095 = vmatpush.msra.mxu0 %v3074
  %3096 = vmatpush.msra.mxu0 %v3073
  %3097 = vmatpush.msra.mxu0 %v3072
  %3098 = vmatpush.msra.mxu0 %v3071
  %3099 = vmatpush.msra.mxu0 %v3070
  %3100 = vmatpush.msra.mxu0 %v3069
  %3101 = vmatmul.f32.gmra.mxu0 %v3004
  %v3102 = vpop.f32.mrf.mxu0
  %v3103 = vadd.f32 0.0, %v3102
  %3104 = vmatmul.f32.gmra.mxu0 %v3005
  %v3105 = vpop.f32.mrf.mxu0
  %v3106 = vadd.f32 0.0, %v3105
  %3107 = vmatmul.f32.gmra.mxu0 %v3006
  %v3108 = vpop.f32.mrf.mxu0
  %v3109 = vadd.f32 0.0, %v3108
  %3110 = vmatmul.f32.gmra.mxu0 %v3007
  %v3111 = vpop.f32.mrf.mxu0
  %v3112 = vadd.f32 0.0, %v3111
  %3113 = vmatmul.f32.gmra.mxu0 %v3008
  %v3114 = vpop.f32.mrf.mxu0
  %v3115 = vadd.f32 0.0, %v3114
  %3116 = vmatmul.f32.gmra.mxu0 %v3009
  %v3117 = vpop.f32.mrf.mxu0
  %v3118 = vadd.f32 0.0, %v3117
  %3119 = vmatmul.f32.gmra.mxu0 %v3010
  %v3120 = vpop.f32.mrf.mxu0
  %v3121 = vadd.f32 0.0, %v3120
  %3122 = vmatmul.f32.gmra.mxu0 %v3011
  %v3123 = vpop.f32.mrf.mxu0
  %v3124 = vadd.f32 0.0, %v3123
  %3125 = vmatmul.f32.gmra.mxu0 %v3012
  %v3126 = vpop.f32.mrf.mxu0
  %v3127 = vadd.f32 0.0, %v3126
  %3128 = vmatmul.f32.gmra.mxu0 %v3013
  %v3129 = vpop.f32.mrf.mxu0
  %v3130 = vadd.f32 0.0, %v3129
  %3131 = vmatmul.f32.gmra.mxu0 %v3014
  %v3132 = vpop.f32.mrf.mxu0
  %v3133 = vadd.f32 0.0, %v3132
  %3134 = vmatmul.f32.gmra.mxu0 %v3015
  %v3135 = vpop.f32.mrf.mxu0
  %v3136 = vadd.f32 0.0, %v3135
  %3137 = vmatmul.f32.gmra.mxu0 %v3016
  %v3138 = vpop.f32.mrf.mxu0
  %v3139 = vadd.f32 0.0, %v3138
  %3140 = vmatmul.f32.gmra.mxu0 %v3017
  %v3141 = vpop.f32.mrf.mxu0
  %v3142 = vadd.f32 0.0, %v3141
  %3143 = vmatmul.f32.gmra.mxu0 %v3018
  %v3144 = vpop.f32.mrf.mxu0
  %v3145 = vadd.f32 0.0, %v3144
  %3146 = vmatmul.f32.gmra.mxu0 %v3019
  %v3147 = vpop.f32.mrf.mxu0
  %v3148 = vadd.f32 0.0, %v3147
  %3149 = vmatmul.f32.gmra.mxu0 %v3020
  %v3150 = vpop.f32.mrf.mxu0
  %v3151 = vadd.f32 0.0, %v3150
  %3152 = vmatmul.f32.gmra.mxu0 %v3021
  %v3153 = vpop.f32.mrf.mxu0
  %v3154 = vadd.f32 0.0, %v3153
  %3155 = vmatmul.f32.gmra.mxu0 %v3022
  %v3156 = vpop.f32.mrf.mxu0
  %v3157 = vadd.f32 0.0, %v3156
  %3158 = vmatmul.f32.gmra.mxu0 %v3023
  %v3159 = vpop.f32.mrf.mxu0
  %v3160 = vadd.f32 0.0, %v3159
  %3161 = vmatmul.f32.gmra.mxu0 %v3024
  %v3162 = vpop.f32.mrf.mxu0
  %v3163 = vadd.f32 0.0, %v3162
  %3164 = vmatmul.f32.gmra.mxu0 %v3025
  %v3165 = vpop.f32.mrf.mxu0
  %v3166 = vadd.f32 0.0, %v3165
  %3167 = vmatmul.f32.gmra.mxu0 %v3026
  %v3168 = vpop.f32.mrf.mxu0
  %v3169 = vadd.f32 0.0, %v3168
  %3170 = vmatmul.f32.gmra.mxu0 %v3027
  %v3171 = vpop.f32.mrf.mxu0
  %v3172 = vadd.f32 0.0, %v3171
  %3173 = vmatmul.f32.gmra.mxu0 %v3028
  %v3174 = vpop.f32.mrf.mxu0
  %v3175 = vadd.f32 0.0, %v3174
  %3176 = vmatmul.f32.gmra.mxu0 %v3029
  %v3177 = vpop.f32.mrf.mxu0
  %v3178 = vadd.f32 0.0, %v3177
  %3179 = vmatmul.f32.gmra.mxu0 %v3030
  %v3180 = vpop.f32.mrf.mxu0
  %v3181 = vadd.f32 0.0, %v3180
  %3182 = vmatmul.f32.gmra.mxu0 %v3031
  %v3183 = vpop.f32.mrf.mxu0
  %v3184 = vadd.f32 0.0, %v3183
  %3185 = vmatmul.f32.gmra.mxu0 %v3032
  %v3186 = vpop.f32.mrf.mxu0
  %v3187 = vadd.f32 0.0, %v3186
  %3188 = vmatmul.f32.gmra.mxu0 %v3033
  %v3189 = vpop.f32.mrf.mxu0
  %v3190 = vadd.f32 0.0, %v3189
  %3191 = vmatmul.f32.gmra.mxu0 %v3034
  %v3192 = vpop.f32.mrf.mxu0
  %v3193 = vadd.f32 0.0, %v3192
  %3194 = vmatmul.f32.gmra.mxu0 %v3035
  %v3195 = vpop.f32.mrf.mxu0
  %v3196 = vadd.f32 0.0, %v3195
  %3197 = vmatmul.f32.gmra.mxu0 %v3036
  %v3198 = vpop.f32.mrf.mxu0
  %v3199 = vadd.f32 0.0, %v3198
  %3200 = vmatmul.f32.gmra.mxu0 %v3037
  %v3201 = vpop.f32.mrf.mxu0
  %v3202 = vadd.f32 0.0, %v3201
  %3203 = vmatmul.f32.gmra.mxu0 %v3038
  %v3204 = vpop.f32.mrf.mxu0
  %v3205 = vadd.f32 0.0, %v3204
  %3206 = vmatmul.f32.gmra.mxu0 %v3039
  %v3207 = vpop.f32.mrf.mxu0
  %v3208 = vadd.f32 0.0, %v3207
  %3209 = vmatmul.f32.gmra.mxu0 %v3040
  %v3210 = vpop.f32.mrf.mxu0
  %v3211 = vadd.f32 0.0, %v3210
  %3212 = vmatmul.f32.gmra.mxu0 %v3041
  %v3213 = vpop.f32.mrf.mxu0
  %v3214 = vadd.f32 0.0, %v3213
  %3215 = vmatmul.f32.gmra.mxu0 %v3042
  %v3216 = vpop.f32.mrf.mxu0
  %v3217 = vadd.f32 0.0, %v3216
  %3218 = vmatmul.f32.gmra.mxu0 %v3043
  %v3219 = vpop.f32.mrf.mxu0
  %v3220 = vadd.f32 0.0, %v3219
  %3221 = vmatmul.f32.gmra.mxu0 %v3044
  %v3222 = vpop.f32.mrf.mxu0
  %v3223 = vadd.f32 0.0, %v3222
  %3224 = vmatmul.f32.gmra.mxu0 %v3045
  %v3225 = vpop.f32.mrf.mxu0
  %v3226 = vadd.f32 0.0, %v3225
  %3227 = vmatmul.f32.gmra.mxu0 %v3046
  %v3228 = vpop.f32.mrf.mxu0
  %v3229 = vadd.f32 0.0, %v3228
  %3230 = vmatmul.f32.gmra.mxu0 %v3047
  %v3231 = vpop.f32.mrf.mxu0
  %v3232 = vadd.f32 0.0, %v3231
  %3233 = vmatmul.f32.gmra.mxu0 %v3048
  %v3234 = vpop.f32.mrf.mxu0
  %v3235 = vadd.f32 0.0, %v3234
  %3236 = vmatmul.f32.gmra.mxu0 %v3049
  %v3237 = vpop.f32.mrf.mxu0
  %v3238 = vadd.f32 0.0, %v3237
  %3239 = vmatmul.f32.gmra.mxu0 %v3050
  %v3240 = vpop.f32.mrf.mxu0
  %v3241 = vadd.f32 0.0, %v3240
  %3242 = vmatmul.f32.gmra.mxu0 %v3051
  %v3243 = vpop.f32.mrf.mxu0
  %v3244 = vadd.f32 0.0, %v3243
  %3245 = vmatmul.f32.gmra.mxu0 %v3052
  %v3246 = vpop.f32.mrf.mxu0
  %v3247 = vadd.f32 0.0, %v3246
  %3248 = vmatmul.f32.gmra.mxu0 %v3053
  %v3249 = vpop.f32.mrf.mxu0
  %v3250 = vadd.f32 0.0, %v3249
  %3251 = vmatmul.f32.gmra.mxu0 %v3054
  %v3252 = vpop.f32.mrf.mxu0
  %v3253 = vadd.f32 0.0, %v3252
  %3254 = vmatmul.f32.gmra.mxu0 %v3055
  %v3255 = vpop.f32.mrf.mxu0
  %v3256 = vadd.f32 0.0, %v3255
  %3257 = vmatmul.f32.gmra.mxu0 %v3056
  %v3258 = vpop.f32.mrf.mxu0
  %v3259 = vadd.f32 0.0, %v3258
  %3260 = vmatmul.f32.gmra.mxu0 %v3057
  %v3261 = vpop.f32.mrf.mxu0
  %v3262 = vadd.f32 0.0, %v3261
  %3263 = vmatmul.f32.gmra.mxu0 %v3058
  %v3264 = vpop.f32.mrf.mxu0
  %v3265 = vadd.f32 0.0, %v3264
  %3266 = vmatmul.f32.gmra.mxu0 %v3059
  %v3267 = vpop.f32.mrf.mxu0
  %v3268 = vadd.f32 0.0, %v3267
  %3269 = vmatmul.f32.gmra.mxu0 %v3060
  %v3270 = vpop.f32.mrf.mxu0
  %v3271 = vadd.f32 0.0, %v3270
  %3272 = vmatmul.f32.gmra.mxu0 %v3061
  %v3273 = vpop.f32.mrf.mxu0
  %v3274 = vadd.f32 0.0, %v3273
  %3275 = vmatmul.f32.gmra.mxu0 %v3062
  %v3276 = vpop.f32.mrf.mxu0
  %v3277 = vadd.f32 0.0, %v3276
  %3278 = vmatmul.f32.gmra.mxu0 %v3063
  %v3279 = vpop.f32.mrf.mxu0
  %v3280 = vadd.f32 0.0, %v3279
  %3281 = vmatmul.f32.gmra.mxu0 %v3064
  %v3282 = vpop.f32.mrf.mxu0
  %v3283 = vadd.f32 0.0, %v3282
  %3284 = vmatmul.f32.gmra.mxu0 %v3065
  %v3285 = vpop.f32.mrf.mxu0
  %v3286 = vadd.f32 0.0, %v3285
  %3287 = vmatmul.f32.gmra.mxu0 %v3066
  %v3288 = vpop.f32.mrf.mxu0
  %v3289 = vadd.f32 0.0, %v3288
  %3290 = vmatmul.f32.gmra.mxu0 %v3067
  %v3291 = vpop.f32.mrf.mxu0
  %v3292 = vadd.f32 0.0, %v3291
  %3293 = vdwg.mxu0
  %v3294 = vadd.f32 %v2940, %v3103
  %v3295 = vadd.f32 %v2941, %v3106
  %v3296 = vadd.f32 %v2942, %v3109
  %v3297 = vadd.f32 %v2943, %v3112
  %v3298 = vadd.f32 %v2944, %v3115
  %v3299 = vadd.f32 %v2945, %v3118
  %v3300 = vadd.f32 %v2946, %v3121
  %v3301 = vadd.f32 %v2947, %v3124
  %v3302 = vadd.f32 %v2948, %v3127
  %v3303 = vadd.f32 %v2949, %v3130
  %v3304 = vadd.f32 %v2950, %v3133
  %v3305 = vadd.f32 %v2951, %v3136
  %v3306 = vadd.f32 %v2952, %v3139
  %v3307 = vadd.f32 %v2953, %v3142
  %v3308 = vadd.f32 %v2954, %v3145
  %v3309 = vadd.f32 %v2955, %v3148
  %v3310 = vadd.f32 %v2956, %v3151
  %v3311 = vadd.f32 %v2957, %v3154
  %v3312 = vadd.f32 %v2958, %v3157
  %v3313 = vadd.f32 %v2959, %v3160
  %v3314 = vadd.f32 %v2960, %v3163
  %v3315 = vadd.f32 %v2961, %v3166
  %v3316 = vadd.f32 %v2962, %v3169
  %v3317 = vadd.f32 %v2963, %v3172
  %v3318 = vadd.f32 %v2964, %v3175
  %v3319 = vadd.f32 %v2965, %v3178
  %v3320 = vadd.f32 %v2966, %v3181
  %v3321 = vadd.f32 %v2967, %v3184
  %v3322 = vadd.f32 %v2968, %v3187
  %v3323 = vadd.f32 %v2969, %v3190
  %v3324 = vadd.f32 %v2970, %v3193
  %v3325 = vadd.f32 %v2971, %v3196
  %v3326 = vadd.f32 %v2972, %v3199
  %v3327 = vadd.f32 %v2973, %v3202
  %v3328 = vadd.f32 %v2974, %v3205
  %v3329 = vadd.f32 %v2975, %v3208
  %v3330 = vadd.f32 %v2976, %v3211
  %v3331 = vadd.f32 %v2977, %v3214
  %v3332 = vadd.f32 %v2978, %v3217
  %v3333 = vadd.f32 %v2979, %v3220
  %v3334 = vadd.f32 %v2980, %v3223
  %v3335 = vadd.f32 %v2981, %v3226
  %v3336 = vadd.f32 %v2982, %v3229
  %v3337 = vadd.f32 %v2983, %v3232
  %v3338 = vadd.f32 %v2984, %v3235
  %v3339 = vadd.f32 %v2985, %v3238
  %v3340 = vadd.f32 %v2986, %v3241
  %v3341 = vadd.f32 %v2987, %v3244
  %v3342 = vadd.f32 %v2988, %v3247
  %v3343 = vadd.f32 %v2989, %v3250
  %v3344 = vadd.f32 %v2990, %v3253
  %v3345 = vadd.f32 %v2991, %v3256
  %v3346 = vadd.f32 %v2992, %v3259
  %v3347 = vadd.f32 %v2993, %v3262
  %v3348 = vadd.f32 %v2994, %v3265
  %v3349 = vadd.f32 %v2995, %v3268
  %v3350 = vadd.f32 %v2996, %v3271
  %v3351 = vadd.f32 %v2997, %v3274
  %v3352 = vadd.f32 %v2998, %v3277
  %v3353 = vadd.f32 %v2999, %v3280
  %v3354 = vadd.f32 %v3000, %v3283
  %v3355 = vadd.f32 %v3001, %v3286
  %v3356 = vadd.f32 %v3002, %v3289
  %v3357 = vadd.f32 %v3003, %v3292
  %v3358 = vadd.f32 %v3294, %v3295
  %v3359 = vadd.f32 %v3358, %v3296
  %v3360 = vadd.f32 %v3359, %v3297
  %v3361 = vadd.f32 %v3360, %v3298
  %v3362 = vadd.f32 %v3361, %v3299
  %v3363 = vadd.f32 %v3362, %v3300
  %v3364 = vadd.f32 %v3363, %v3301
  %v3365 = vadd.f32 %v3364, %v3302
  %v3366 = vadd.f32 %v3365, %v3303
  %v3367 = vadd.f32 %v3366, %v3304
  %v3368 = vadd.f32 %v3367, %v3305
  %v3369 = vadd.f32 %v3368, %v3306
  %v3370 = vadd.f32 %v3369, %v3307
  %v3371 = vadd.f32 %v3370, %v3308
  %v3372 = vadd.f32 %v3371, %v3309
  %v3373 = vadd.f32 %v3372, %v3310
  %v3374 = vadd.f32 %v3373, %v3311
  %v3375 = vadd.f32 %v3374, %v3312
  %v3376 = vadd.f32 %v3375, %v3313
  %v3377 = vadd.f32 %v3376, %v3314
  %v3378 = vadd.f32 %v3377, %v3315
  %v3379 = vadd.f32 %v3378, %v3316
  %v3380 = vadd.f32 %v3379, %v3317
  %v3381 = vadd.f32 %v3380, %v3318
  %v3382 = vadd.f32 %v3381, %v3319
  %v3383 = vadd.f32 %v3382, %v3320
  %v3384 = vadd.f32 %v3383, %v3321
  %v3385 = vadd.f32 %v3384, %v3322
  %v3386 = vadd.f32 %v3385, %v3323
  %v3387 = vadd.f32 %v3386, %v3324
  %v3388 = vadd.f32 %v3387, %v3325
  %v3389 = vadd.f32 %v3388, %v3326
  %v3390 = vadd.f32 %v3389, %v3327
  %v3391 = vadd.f32 %v3390, %v3328
  %v3392 = vadd.f32 %v3391, %v3329
  %v3393 = vadd.f32 %v3392, %v3330
  %v3394 = vadd.f32 %v3393, %v3331
  %v3395 = vadd.f32 %v3394, %v3332
  %v3396 = vadd.f32 %v3395, %v3333
  %v3397 = vadd.f32 %v3396, %v3334
  %v3398 = vadd.f32 %v3397, %v3335
  %v3399 = vadd.f32 %v3398, %v3336
  %v3400 = vadd.f32 %v3399, %v3337
  %v3401 = vadd.f32 %v3400, %v3338
  %v3402 = vadd.f32 %v3401, %v3339
  %v3403 = vadd.f32 %v3402, %v3340
  %v3404 = vadd.f32 %v3403, %v3341
  %v3405 = vadd.f32 %v3404, %v3342
  %v3406 = vadd.f32 %v3405, %v3343
  %v3407 = vadd.f32 %v3406, %v3344
  %v3408 = vadd.f32 %v3407, %v3345
  %v3409 = vadd.f32 %v3408, %v3346
  %v3410 = vadd.f32 %v3409, %v3347
  %v3411 = vadd.f32 %v3410, %v3348
  %v3412 = vadd.f32 %v3411, %v3349
  %v3413 = vadd.f32 %v3412, %v3350
  %v3414 = vadd.f32 %v3413, %v3351
  %v3415 = vadd.f32 %v3414, %v3352
  %v3416 = vadd.f32 %v3415, %v3353
  %v3417 = vadd.f32 %v3416, %v3354
  %v3418 = vadd.f32 %v3417, %v3355
  %v3419 = vadd.f32 %v3418, %v3356
  %v3420 = vadd.f32 %v3419, %v3357
  %v3421 = vrot.slane %v3420, 4
  %v3422 = vadd.f32 %v3420, %v3421
  %v3423 = vrot.slane %v3422, 2
  %v3424 = vadd.f32 %v3422, %v3423
  %v3425 = vrot.slane %v3424, 1
  %v3426 = vadd.f32 %v3424, %v3425
  %v3427 = vmul.f32 %v3426, 0.001953125
  %v3428 = vsub.f32 %v3294, %v3427
  %v3429 = vsub.f32 %v3295, %v3427
  %v3430 = vsub.f32 %v3296, %v3427
  %v3431 = vsub.f32 %v3297, %v3427
  %v3432 = vsub.f32 %v3298, %v3427
  %v3433 = vsub.f32 %v3299, %v3427
  %v3434 = vsub.f32 %v3300, %v3427
  %v3435 = vsub.f32 %v3301, %v3427
  %v3436 = vsub.f32 %v3302, %v3427
  %v3437 = vsub.f32 %v3303, %v3427
  %v3438 = vsub.f32 %v3304, %v3427
  %v3439 = vsub.f32 %v3305, %v3427
  %v3440 = vsub.f32 %v3306, %v3427
  %v3441 = vsub.f32 %v3307, %v3427
  %v3442 = vsub.f32 %v3308, %v3427
  %v3443 = vsub.f32 %v3309, %v3427
  %v3444 = vsub.f32 %v3310, %v3427
  %v3445 = vsub.f32 %v3311, %v3427
  %v3446 = vsub.f32 %v3312, %v3427
  %v3447 = vsub.f32 %v3313, %v3427
  %v3448 = vsub.f32 %v3314, %v3427
  %v3449 = vsub.f32 %v3315, %v3427
  %v3450 = vsub.f32 %v3316, %v3427
  %v3451 = vsub.f32 %v3317, %v3427
  %v3452 = vsub.f32 %v3318, %v3427
  %v3453 = vsub.f32 %v3319, %v3427
  %v3454 = vsub.f32 %v3320, %v3427
  %v3455 = vsub.f32 %v3321, %v3427
  %v3456 = vsub.f32 %v3322, %v3427
  %v3457 = vsub.f32 %v3323, %v3427
  %v3458 = vsub.f32 %v3324, %v3427
  %v3459 = vsub.f32 %v3325, %v3427
  %v3460 = vsub.f32 %v3326, %v3427
  %v3461 = vsub.f32 %v3327, %v3427
  %v3462 = vsub.f32 %v3328, %v3427
  %v3463 = vsub.f32 %v3329, %v3427
  %v3464 = vsub.f32 %v3330, %v3427
  %v3465 = vsub.f32 %v3331, %v3427
  %v3466 = vsub.f32 %v3332, %v3427
  %v3467 = vsub.f32 %v3333, %v3427
  %v3468 = vsub.f32 %v3334, %v3427
  %v3469 = vsub.f32 %v3335, %v3427
  %v3470 = vsub.f32 %v3336, %v3427
  %v3471 = vsub.f32 %v3337, %v3427
  %v3472 = vsub.f32 %v3338, %v3427
  %v3473 = vsub.f32 %v3339, %v3427
  %v3474 = vsub.f32 %v3340, %v3427
  %v3475 = vsub.f32 %v3341, %v3427
  %v3476 = vsub.f32 %v3342, %v3427
  %v3477 = vsub.f32 %v3343, %v3427
  %v3478 = vsub.f32 %v3344, %v3427
  %v3479 = vsub.f32 %v3345, %v3427
  %v3480 = vsub.f32 %v3346, %v3427
  %v3481 = vsub.f32 %v3347, %v3427
  %v3482 = vsub.f32 %v3348, %v3427
  %v3483 = vsub.f32 %v3349, %v3427
  %v3484 = vsub.f32 %v3350, %v3427
  %v3485 = vsub.f32 %v3351, %v3427
  %v3486 = vsub.f32 %v3352, %v3427
  %v3487 = vsub.f32 %v3353, %v3427
  %v3488 = vsub.f32 %v3354, %v3427
  %v3489 = vsub.f32 %v3355, %v3427
  %v3490 = vsub.f32 %v3356, %v3427
  %v3491 = vsub.f32 %v3357, %v3427
  %v3492 = vmul.f32 %v3428, %v3428
  %v3493 = vmul.f32 %v3429, %v3429
  %v3494 = vmul.f32 %v3430, %v3430
  %v3495 = vmul.f32 %v3431, %v3431
  %v3496 = vmul.f32 %v3432, %v3432
  %v3497 = vmul.f32 %v3433, %v3433
  %v3498 = vmul.f32 %v3434, %v3434
  %v3499 = vmul.f32 %v3435, %v3435
  %v3500 = vmul.f32 %v3436, %v3436
  %v3501 = vmul.f32 %v3437, %v3437
  %v3502 = vmul.f32 %v3438, %v3438
  %v3503 = vmul.f32 %v3439, %v3439
  %v3504 = vmul.f32 %v3440, %v3440
  %v3505 = vmul.f32 %v3441, %v3441
  %v3506 = vmul.f32 %v3442, %v3442
  %v3507 = vmul.f32 %v3443, %v3443
  %v3508 = vmul.f32 %v3444, %v3444
  %v3509 = vmul.f32 %v3445, %v3445
  %v3510 = vmul.f32 %v3446, %v3446
  %v3511 = vmul.f32 %v3447, %v3447
  %v3512 = vmul.f32 %v3448, %v3448
  %v3513 = vmul.f32 %v3449, %v3449
  %v3514 = vmul.f32 %v3450, %v3450
  %v3515 = vmul.f32 %v3451, %v3451
  %v3516 = vmul.f32 %v3452, %v3452
  %v3517 = vmul.f32 %v3453, %v3453
  %v3518 = vmul.f32 %v3454, %v3454
  %v3519 = vmul.f32 %v3455, %v3455
  %v3520 = vmul.f32 %v3456, %v3456
  %v3521 = vmul.f32 %v3457, %v3457
  %v3522 = vmul.f32 %v3458, %v3458
  %v3523 = vmul.f32 %v3459, %v3459
  %v3524 = vmul.f32 %v3460, %v3460
  %v3525 = vmul.f32 %v3461, %v3461
  %v3526 = vmul.f32 %v3462, %v3462
  %v3527 = vmul.f32 %v3463, %v3463
  %v3528 = vmul.f32 %v3464, %v3464
  %v3529 = vmul.f32 %v3465, %v3465
  %v3530 = vmul.f32 %v3466, %v3466
  %v3531 = vmul.f32 %v3467, %v3467
  %v3532 = vmul.f32 %v3468, %v3468
  %v3533 = vmul.f32 %v3469, %v3469
  %v3534 = vmul.f32 %v3470, %v3470
  %v3535 = vmul.f32 %v3471, %v3471
  %v3536 = vmul.f32 %v3472, %v3472
  %v3537 = vmul.f32 %v3473, %v3473
  %v3538 = vmul.f32 %v3474, %v3474
  %v3539 = vmul.f32 %v3475, %v3475
  %v3540 = vmul.f32 %v3476, %v3476
  %v3541 = vmul.f32 %v3477, %v3477
  %v3542 = vmul.f32 %v3478, %v3478
  %v3543 = vmul.f32 %v3479, %v3479
  %v3544 = vmul.f32 %v3480, %v3480
  %v3545 = vmul.f32 %v3481, %v3481
  %v3546 = vmul.f32 %v3482, %v3482
  %v3547 = vmul.f32 %v3483, %v3483
  %v3548 = vmul.f32 %v3484, %v3484
  %v3549 = vmul.f32 %v3485, %v3485
  %v3550 = vmul.f32 %v3486, %v3486
  %v3551 = vmul.f32 %v3487, %v3487
  %v3552 = vmul.f32 %v3488, %v3488
  %v3553 = vmul.f32 %v3489, %v3489
  %v3554 = vmul.f32 %v3490, %v3490
  %v3555 = vmul.f32 %v3491, %v3491
  %v3556 = vadd.f32 %v3492, %v3493
  %v3557 = vadd.f32 %v3556, %v3494
  %v3558 = vadd.f32 %v3557, %v3495
  %v3559 = vadd.f32 %v3558, %v3496
  %v3560 = vadd.f32 %v3559, %v3497
  %v3561 = vadd.f32 %v3560, %v3498
  %v3562 = vadd.f32 %v3561, %v3499
  %v3563 = vadd.f32 %v3562, %v3500
  %v3564 = vadd.f32 %v3563, %v3501
  %v3565 = vadd.f32 %v3564, %v3502
  %v3566 = vadd.f32 %v3565, %v3503
  %v3567 = vadd.f32 %v3566, %v3504
  %v3568 = vadd.f32 %v3567, %v3505
  %v3569 = vadd.f32 %v3568, %v3506
  %v3570 = vadd.f32 %v3569, %v3507
  %v3571 = vadd.f32 %v3570, %v3508
  %v3572 = vadd.f32 %v3571, %v3509
  %v3573 = vadd.f32 %v3572, %v3510
  %v3574 = vadd.f32 %v3573, %v3511
  %v3575 = vadd.f32 %v3574, %v3512
  %v3576 = vadd.f32 %v3575, %v3513
  %v3577 = vadd.f32 %v3576, %v3514
  %v3578 = vadd.f32 %v3577, %v3515
  %v3579 = vadd.f32 %v3578, %v3516
  %v3580 = vadd.f32 %v3579, %v3517
  %v3581 = vadd.f32 %v3580, %v3518
  %v3582 = vadd.f32 %v3581, %v3519
  %v3583 = vadd.f32 %v3582, %v3520
  %v3584 = vadd.f32 %v3583, %v3521
  %v3585 = vadd.f32 %v3584, %v3522
  %v3586 = vadd.f32 %v3585, %v3523
  %v3587 = vadd.f32 %v3586, %v3524
  %v3588 = vadd.f32 %v3587, %v3525
  %v3589 = vadd.f32 %v3588, %v3526
  %v3590 = vadd.f32 %v3589, %v3527
  %v3591 = vadd.f32 %v3590, %v3528
  %v3592 = vadd.f32 %v3591, %v3529
  %v3593 = vadd.f32 %v3592, %v3530
  %v3594 = vadd.f32 %v3593, %v3531
  %v3595 = vadd.f32 %v3594, %v3532
  %v3596 = vadd.f32 %v3595, %v3533
  %v3597 = vadd.f32 %v3596, %v3534
  %v3598 = vadd.f32 %v3597, %v3535
  %v3599 = vadd.f32 %v3598, %v3536
  %v3600 = vadd.f32 %v3599, %v3537
  %v3601 = vadd.f32 %v3600, %v3538
  %v3602 = vadd.f32 %v3601, %v3539
  %v3603 = vadd.f32 %v3602, %v3540
  %v3604 = vadd.f32 %v3603, %v3541
  %v3605 = vadd.f32 %v3604, %v3542
  %v3606 = vadd.f32 %v3605, %v3543
  %v3607 = vadd.f32 %v3606, %v3544
  %v3608 = vadd.f32 %v3607, %v3545
  %v3609 = vadd.f32 %v3608, %v3546
  %v3610 = vadd.f32 %v3609, %v3547
  %v3611 = vadd.f32 %v3610, %v3548
  %v3612 = vadd.f32 %v3611, %v3549
  %v3613 = vadd.f32 %v3612, %v3550
  %v3614 = vadd.f32 %v3613, %v3551
  %v3615 = vadd.f32 %v3614, %v3552
  %v3616 = vadd.f32 %v3615, %v3553
  %v3617 = vadd.f32 %v3616, %v3554
  %v3618 = vadd.f32 %v3617, %v3555
  %v3619 = vrot.slane %v3618, 4
  %v3620 = vadd.f32 %v3618, %v3619
  %v3621 = vrot.slane %v3620, 2
  %v3622 = vadd.f32 %v3620, %v3621
  %v3623 = vrot.slane %v3622, 1
  %v3624 = vadd.f32 %v3622, %v3623
  %v3625 = vmul.f32 %v3624, 0.001953125
  %v3626 = vadd.f32 %v3625, 1e-05
  %v3627 = vrsqrt.pop %v3626
  %v3628 = vmul.f32 %v3627, %v3626
  %v3629 = vmul.f32 %v3628, %v3627
  %v3630 = vmul.f32 0.5, %v3629
  %v3631 = vsub.f32 1.5, %v3630
  %v3632 = vmul.f32 %v3627, %v3631
  %vm3633 = vweird.f32 %v3626
  %vm3634 = vweird.f32 %v3627
  %vm3635 = vmor %vm3633, %vm3634
  %v3636 = vsel %vm3635, %v3627, %v3632
  %v3637 = vmul.f32 %v3428, %v3636
  %v3638 = vmul.f32 %v3429, %v3636
  %v3639 = vmul.f32 %v3430, %v3636
  %v3640 = vmul.f32 %v3431, %v3636
  %v3641 = vmul.f32 %v3432, %v3636
  %v3642 = vmul.f32 %v3433, %v3636
  %v3643 = vmul.f32 %v3434, %v3636
  %v3644 = vmul.f32 %v3435, %v3636
  %v3645 = vmul.f32 %v3436, %v3636
  %v3646 = vmul.f32 %v3437, %v3636
  %v3647 = vmul.f32 %v3438, %v3636
  %v3648 = vmul.f32 %v3439, %v3636
  %v3649 = vmul.f32 %v3440, %v3636
  %v3650 = vmul.f32 %v3441, %v3636
  %v3651 = vmul.f32 %v3442, %v3636
  %v3652 = vmul.f32 %v3443, %v3636
  %v3653 = vmul.f32 %v3444, %v3636
  %v3654 = vmul.f32 %v3445, %v3636
  %v3655 = vmul.f32 %v3446, %v3636
  %v3656 = vmul.f32 %v3447, %v3636
  %v3657 = vmul.f32 %v3448, %v3636
  %v3658 = vmul.f32 %v3449, %v3636
  %v3659 = vmul.f32 %v3450, %v3636
  %v3660 = vmul.f32 %v3451, %v3636
  %v3661 = vmul.f32 %v3452, %v3636
  %v3662 = vmul.f32 %v3453, %v3636
  %v3663 = vmul.f32 %v3454, %v3636
  %v3664 = vmul.f32 %v3455, %v3636
  %v3665 = vmul.f32 %v3456, %v3636
  %v3666 = vmul.f32 %v3457, %v3636
  %v3667 = vmul.f32 %v3458, %v3636
  %v3668 = vmul.f32 %v3459, %v3636
  %v3669 = vmul.f32 %v3460, %v3636
  %v3670 = vmul.f32 %v3461, %v3636
  %v3671 = vmul.f32 %v3462, %v3636
  %v3672 = vmul.f32 %v3463, %v3636
  %v3673 = vmul.f32 %v3464, %v3636
  %v3674 = vmul.f32 %v3465, %v3636
  %v3675 = vmul.f32 %v3466, %v3636
  %v3676 = vmul.f32 %v3467, %v3636
  %v3677 = vmul.f32 %v3468, %v3636
  %v3678 = vmul.f32 %v3469, %v3636
  %v3679 = vmul.f32 %v3470, %v3636
  %v3680 = vmul.f32 %v3471, %v3636
  %v3681 = vmul.f32 %v3472, %v3636
  %v3682 = vmul.f32 %v3473, %v3636
  %v3683 = vmul.f32 %v3474, %v3636
  %v3684 = vmul.f32 %v3475, %v3636
  %v3685 = vmul.f32 %v3476, %v3636
  %v3686 = vmul.f32 %v3477, %v3636
  %v3687 = vmul.f32 %v3478, %v3636
  %v3688 = vmul.f32 %v3479, %v3636
  %v3689 = vmul.f32 %v3480, %v3636
  %v3690 = vmul.f32 %v3481, %v3636
  %v3691 = vmul.f32 %v3482, %v3636
  %v3692 = vmul.f32 %v3483, %v3636
  %v3693 = vmul.f32 %v3484, %v3636
  %v3694 = vmul.f32 %v3485, %v3636
  %v3695 = vmul.f32 %v3486, %v3636
  %v3696 = vmul.f32 %v3487, %v3636
  %v3697 = vmul.f32 %v3488, %v3636
  %v3698 = vmul.f32 %v3489, %v3636
  %v3699 = vmul.f32 %v3490, %v3636
  %v3700 = vmul.f32 %v3491, %v3636
  %v3701 = vld [vmem:[%s2] sm:$0x1]
  %v3703 = vperm.slane %v3701, 0
  %v3705 = vmul.f32 %v3637, %v3703
  %v3706 = vmul.f32 %v3638, %v3703
  %v3707 = vmul.f32 %v3639, %v3703
  %v3708 = vmul.f32 %v3640, %v3703
  %v3709 = vmul.f32 %v3641, %v3703
  %v3710 = vmul.f32 %v3642, %v3703
  %v3711 = vmul.f32 %v3643, %v3703
  %v3712 = vmul.f32 %v3644, %v3703
  %v3713 = vmul.f32 %v3645, %v3703
  %v3714 = vmul.f32 %v3646, %v3703
  %v3715 = vmul.f32 %v3647, %v3703
  %v3716 = vmul.f32 %v3648, %v3703
  %v3717 = vmul.f32 %v3649, %v3703
  %v3718 = vmul.f32 %v3650, %v3703
  %v3719 = vmul.f32 %v3651, %v3703
  %v3720 = vmul.f32 %v3652, %v3703
  %v3721 = vmul.f32 %v3653, %v3703
  %v3722 = vmul.f32 %v3654, %v3703
  %v3723 = vmul.f32 %v3655, %v3703
  %v3724 = vmul.f32 %v3656, %v3703
  %v3725 = vmul.f32 %v3657, %v3703
  %v3726 = vmul.f32 %v3658, %v3703
  %v3727 = vmul.f32 %v3659, %v3703
  %v3728 = vmul.f32 %v3660, %v3703
  %v3729 = vmul.f32 %v3661, %v3703
  %v3730 = vmul.f32 %v3662, %v3703
  %v3731 = vmul.f32 %v3663, %v3703
  %v3732 = vmul.f32 %v3664, %v3703
  %v3733 = vmul.f32 %v3665, %v3703
  %v3734 = vmul.f32 %v3666, %v3703
  %v3735 = vmul.f32 %v3667, %v3703
  %v3736 = vmul.f32 %v3668, %v3703
  %v3737 = vmul.f32 %v3669, %v3703
  %v3738 = vmul.f32 %v3670, %v3703
  %v3739 = vmul.f32 %v3671, %v3703
  %v3740 = vmul.f32 %v3672, %v3703
  %v3741 = vmul.f32 %v3673, %v3703
  %v3742 = vmul.f32 %v3674, %v3703
  %v3743 = vmul.f32 %v3675, %v3703
  %v3744 = vmul.f32 %v3676, %v3703
  %v3745 = vmul.f32 %v3677, %v3703
  %v3746 = vmul.f32 %v3678, %v3703
  %v3747 = vmul.f32 %v3679, %v3703
  %v3748 = vmul.f32 %v3680, %v3703
  %v3749 = vmul.f32 %v3681, %v3703
  %v3750 = vmul.f32 %v3682, %v3703
  %v3751 = vmul.f32 %v3683, %v3703
  %v3752 = vmul.f32 %v3684, %v3703
  %v3753 = vmul.f32 %v3685, %v3703
  %v3754 = vmul.f32 %v3686, %v3703
  %v3755 = vmul.f32 %v3687, %v3703
  %v3756 = vmul.f32 %v3688, %v3703
  %v3757 = vmul.f32 %v3689, %v3703
  %v3758 = vmul.f32 %v3690, %v3703
  %v3759 = vmul.f32 %v3691, %v3703
  %v3760 = vmul.f32 %v3692, %v3703
  %v3761 = vmul.f32 %v3693, %v3703
  %v3762 = vmul.f32 %v3694, %v3703
  %v3763 = vmul.f32 %v3695, %v3703
  %v3764 = vmul.f32 %v3696, %v3703
  %v3765 = vmul.f32 %v3697, %v3703
  %v3766 = vmul.f32 %v3698, %v3703
  %v3767 = vmul.f32 %v3699, %v3703
  %v3768 = vmul.f32 %v3700, %v3703
  %v3769 = vld [vmem:[%s3] sm:$0x1]
  %v3771 = vperm.slane %v3769, 0
  %v3773 = vadd.f32 %v3705, %v3771
  %v3774 = vadd.f32 %v3706, %v3771
  %v3775 = vadd.f32 %v3707, %v3771
  %v3776 = vadd.f32 %v3708, %v3771
  %v3777 = vadd.f32 %v3709, %v3771
  %v3778 = vadd.f32 %v3710, %v3771
  %v3779 = vadd.f32 %v3711, %v3771
  %v3780 = vadd.f32 %v3712, %v3771
  %v3781 = vadd.f32 %v3713, %v3771
  %v3782 = vadd.f32 %v3714, %v3771
  %v3783 = vadd.f32 %v3715, %v3771
  %v3784 = vadd.f32 %v3716, %v3771
  %v3785 = vadd.f32 %v3717, %v3771
  %v3786 = vadd.f32 %v3718, %v3771
  %v3787 = vadd.f32 %v3719, %v3771
  %v3788 = vadd.f32 %v3720, %v3771
  %v3789 = vadd.f32 %v3721, %v3771
  %v3790 = vadd.f32 %v3722, %v3771
  %v3791 = vadd.f32 %v3723, %v3771
  %v3792 = vadd.f32 %v3724, %v3771
  %v3793 = vadd.f32 %v3725, %v3771
  %v3794 = vadd.f32 %v3726, %v3771
  %v3795 = vadd.f32 %v3727, %v3771
  %v3796 = vadd.f32 %v3728, %v3771
  %v3797 = vadd.f32 %v3729, %v3771
  %v3798 = vadd.f32 %v3730, %v3771
  %v3799 = vadd.f32 %v3731, %v3771
  %v3800 = vadd.f32 %v3732, %v3771
  %v3801 = vadd.f32 %v3733, %v3771
  %v3802 = vadd.f32 %v3734, %v3771
  %v3803 = vadd.f32 %v3735, %v3771
  %v3804 = vadd.f32 %v3736, %v3771
  %v3805 = vadd.f32 %v3737, %v3771
  %v3806 = vadd.f32 %v3738, %v3771
  %v3807 = vadd.f32 %v3739, %v3771
  %v3808 = vadd.f32 %v3740, %v3771
  %v3809 = vadd.f32 %v3741, %v3771
  %v3810 = vadd.f32 %v3742, %v3771
  %v3811 = vadd.f32 %v3743, %v3771
  %v3812 = vadd.f32 %v3744, %v3771
  %v3813 = vadd.f32 %v3745, %v3771
  %v3814 = vadd.f32 %v3746, %v3771
  %v3815 = vadd.f32 %v3747, %v3771
  %v3816 = vadd.f32 %v3748, %v3771
  %v3817 = vadd.f32 %v3749, %v3771
  %v3818 = vadd.f32 %v3750, %v3771
  %v3819 = vadd.f32 %v3751, %v3771
  %v3820 = vadd.f32 %v3752, %v3771
  %v3821 = vadd.f32 %v3753, %v3771
  %v3822 = vadd.f32 %v3754, %v3771
  %v3823 = vadd.f32 %v3755, %v3771
  %v3824 = vadd.f32 %v3756, %v3771
  %v3825 = vadd.f32 %v3757, %v3771
  %v3826 = vadd.f32 %v3758, %v3771
  %v3827 = vadd.f32 %v3759, %v3771
  %v3828 = vadd.f32 %v3760, %v3771
  %v3829 = vadd.f32 %v3761, %v3771
  %v3830 = vadd.f32 %v3762, %v3771
  %v3831 = vadd.f32 %v3763, %v3771
  %v3832 = vadd.f32 %v3764, %v3771
  %v3833 = vadd.f32 %v3765, %v3771
  %v3834 = vadd.f32 %v3766, %v3771
  %v3835 = vadd.f32 %v3767, %v3771
  %v3836 = vadd.f32 %v3768, %v3771
  %v3837 = vmax.f32 %v3773, 0.0
  %v3838 = vmax.f32 %v3774, 0.0
  %v3839 = vmax.f32 %v3775, 0.0
  %v3840 = vmax.f32 %v3776, 0.0
  %v3841 = vmax.f32 %v3777, 0.0
  %v3842 = vmax.f32 %v3778, 0.0
  %v3843 = vmax.f32 %v3779, 0.0
  %v3844 = vmax.f32 %v3780, 0.0
  %v3845 = vmax.f32 %v3781, 0.0
  %v3846 = vmax.f32 %v3782, 0.0
  %v3847 = vmax.f32 %v3783, 0.0
  %v3848 = vmax.f32 %v3784, 0.0
  %v3849 = vmax.f32 %v3785, 0.0
  %v3850 = vmax.f32 %v3786, 0.0
  %v3851 = vmax.f32 %v3787, 0.0
  %v3852 = vmax.f32 %v3788, 0.0
  %v3853 = vmax.f32 %v3789, 0.0
  %v3854 = vmax.f32 %v3790, 0.0
  %v3855 = vmax.f32 %v3791, 0.0
  %v3856 = vmax.f32 %v3792, 0.0
  %v3857 = vmax.f32 %v3793, 0.0
  %v3858 = vmax.f32 %v3794, 0.0
  %v3859 = vmax.f32 %v3795, 0.0
  %v3860 = vmax.f32 %v3796, 0.0
  %v3861 = vmax.f32 %v3797, 0.0
  %v3862 = vmax.f32 %v3798, 0.0
  %v3863 = vmax.f32 %v3799, 0.0
  %v3864 = vmax.f32 %v3800, 0.0
  %v3865 = vmax.f32 %v3801, 0.0
  %v3866 = vmax.f32 %v3802, 0.0
  %v3867 = vmax.f32 %v3803, 0.0
  %v3868 = vmax.f32 %v3804, 0.0
  %v3869 = vmax.f32 %v3805, 0.0
  %v3870 = vmax.f32 %v3806, 0.0
  %v3871 = vmax.f32 %v3807, 0.0
  %v3872 = vmax.f32 %v3808, 0.0
  %v3873 = vmax.f32 %v3809, 0.0
  %v3874 = vmax.f32 %v3810, 0.0
  %v3875 = vmax.f32 %v3811, 0.0
  %v3876 = vmax.f32 %v3812, 0.0
  %v3877 = vmax.f32 %v3813, 0.0
  %v3878 = vmax.f32 %v3814, 0.0
  %v3879 = vmax.f32 %v3815, 0.0
  %v3880 = vmax.f32 %v3816, 0.0
  %v3881 = vmax.f32 %v3817, 0.0
  %v3882 = vmax.f32 %v3818, 0.0
  %v3883 = vmax.f32 %v3819, 0.0
  %v3884 = vmax.f32 %v3820, 0.0
  %v3885 = vmax.f32 %v3821, 0.0
  %v3886 = vmax.f32 %v3822, 0.0
  %v3887 = vmax.f32 %v3823, 0.0
  %v3888 = vmax.f32 %v3824, 0.0
  %v3889 = vmax.f32 %v3825, 0.0
  %v3890 = vmax.f32 %v3826, 0.0
  %v3891 = vmax.f32 %v3827, 0.0
  %v3892 = vmax.f32 %v3828, 0.0
  %v3893 = vmax.f32 %v3829, 0.0
  %v3894 = vmax.f32 %v3830, 0.0
  %v3895 = vmax.f32 %v3831, 0.0
  %v3896 = vmax.f32 %v3832, 0.0
  %v3897 = vmax.f32 %v3833, 0.0
  %v3898 = vmax.f32 %v3834, 0.0
  %v3899 = vmax.f32 %v3835, 0.0
  %v3900 = vmax.f32 %v3836, 0.0
  %3901 = vst [vmem:[%s234 + $0x8] sm:$0xff] %v3837
  %3902 = vst [vmem:[%s234 + $0x10] sm:$0xff] %v3838
  %3903 = vst [vmem:[%s234 + $0x28] sm:$0xff] %v3839
  %3904 = vst [vmem:[%s234 + $0x30] sm:$0xff] %v3840
  %3905 = vst [vmem:[%s234 + $0x48] sm:$0xff] %v3841
  %3906 = vst [vmem:[%s234 + $0x50] sm:$0xff] %v3842
  %3907 = vst [vmem:[%s234 + $0x68] sm:$0xff] %v3843
  %3908 = vst [vmem:[%s234 + $0x70] sm:$0xff] %v3844
  %3909 = vst [vmem:[%s234 + $0x88] sm:$0xff] %v3845
  %3910 = vst [vmem:[%s234 + $0x90] sm:$0xff] %v3846
  %3911 = vst [vmem:[%s234 + $0xa8] sm:$0xff] %v3847
  %3912 = vst [vmem:[%s234 + $0xb0] sm:$0xff] %v3848
  %3913 = vst [vmem:[%s234 + $0xc8] sm:$0xff] %v3849
  %3914 = vst [vmem:[%s234 + $0xd0] sm:$0xff] %v3850
  %3915 = vst [vmem:[%s234 + $0xe8] sm:$0xff] %v3851
  %3916 = vst [vmem:[%s234 + $0xf0] sm:$0xff] %v3852
  %3917 = vst [vmem:[%s234 + $0x108] sm:$0xff] %v3853
  %3918 = vst [vmem:[%s234 + $0x110] sm:$0xff] %v3854
  %3919 = vst [vmem:[%s234 + $0x128] sm:$0xff] %v3855
  %3920 = vst [vmem:[%s234 + $0x130] sm:$0xff] %v3856
  %3921 = vst [vmem:[%s234 + $0x148] sm:$0xff] %v3857
  %3922 = vst [vmem:[%s234 + $0x150] sm:$0xff] %v3858
  %3923 = vst [vmem:[%s234 + $0x168] sm:$0xff] %v3859
  %3924 = vst [vmem:[%s234 + $0x170] sm:$0xff] %v3860
  %3925 = vst [vmem:[%s234 + $0x188] sm:$0xff] %v3861
  %3926 = vst [vmem:[%s234 + $0x190] sm:$0xff] %v3862
  %3927 = vst [vmem:[%s234 + $0x1a8] sm:$0xff] %v3863
  %3928 = vst [vmem:[%s234 + $0x1b0] sm:$0xff] %v3864
  %3929 = vst [vmem:[%s234 + $0x1c8] sm:$0xff] %v3865
  %3930 = vst [vmem:[%s234 + $0x1d0] sm:$0xff] %v3866
  %3931 = vst [vmem:[%s234 + $0x1e8] sm:$0xff] %v3867
  %3932 = vst [vmem:[%s234 + $0x1f0] sm:$0xff] %v3868
  %3933 = vst [vmem:[%s234 + $0x248] sm:$0xff] %v3869
  %3934 = vst [vmem:[%s234 + $0x250] sm:$0xff] %v3870
  %3935 = vst [vmem:[%s234 + $0x268] sm:$0xff] %v3871
  %3936 = vst [vmem:[%s234 + $0x270] sm:$0xff] %v3872
  %3937 = vst [vmem:[%s234 + $0x288] sm:$0xff] %v3873
  %3938 = vst [vmem:[%s234 + $0x290] sm:$0xff] %v3874
  %3939 = vst [vmem:[%s234 + $0x2a8] sm:$0xff] %v3875
  %3940 = vst [vmem:[%s234 + $0x2b0] sm:$0xff] %v3876
  %3941 = vst [vmem:[%s234 + $0x2c8] sm:$0xff] %v3877
  %3942 = vst [vmem:[%s234 + $0x2d0] sm:$0xff] %v3878
  %3943 = vst [vmem:[%s234 + $0x2e8] sm:$0xff] %v3879
  %3944 = vst [vmem:[%s234 + $0x2f0] sm:$0xff] %v3880
  %3945 = vst [vmem:[%s234 + $0x308] sm:$0xff] %v3881
  %3946 = vst [vmem:[%s234 + $0x310] sm:$0xff] %v3882
  %3947 = vst [vmem:[%s234 + $0x328] sm:$0xff] %v3883
  %3948 = vst [vmem:[%s234 + $0x330] sm:$0xff] %v3884
  %3949 = vst [vmem:[%s234 + $0x348] sm:$0xff] %v3885
  %3950 = vst [vmem:[%s234 + $0x350] sm:$0xff] %v3886
  %3951 = vst [vmem:[%s234 + $0x368] sm:$0xff] %v3887
  %3952 = vst [vmem:[%s234 + $0x370] sm:$0xff] %v3888
  %3953 = vst [vmem:[%s234 + $0x388] sm:$0xff] %v3889
  %3954 = vst [vmem:[%s234 + $0x390] sm:$0xff] %v3890
  %3955 = vst [vmem:[%s234 + $0x3a8] sm:$0xff] %v3891
  %3956 = vst [vmem:[%s234 + $0x3b0] sm:$0xff] %v3892
  %3957 = vst [vmem:[%s234 + $0x3c8] sm:$0xff] %v3893
  %3958 = vst [vmem:[%s234 + $0x3d0] sm:$0xff] %v3894
  %3959 = vst [vmem:[%s234 + $0x3e8] sm:$0xff] %v3895
  %3960 = vst [vmem:[%s234 + $0x3f0] sm:$0xff] %v3896
  %3961 = vst [vmem:[%s234 + $0x408] sm:$0xff] %v3897
  %3962 = vst [vmem:[%s234 + $0x410] sm:$0xff] %v3898
  %3963 = vst [vmem:[%s234 + $0x428] sm:$0xff] %v3899
  %3964 = vst [vmem:[%s234 + $0x430] sm:$0xff] %v3900
  %v3965 = vld [vmem:[#allocation2 + $0x7] sm:$0xff]
  %v3966 = vld [vmem:[#allocation2 + $0xf] sm:$0xff]
  %v3967 = vld [vmem:[#allocation2 + $0x27] sm:$0xff]
  %v3968 = vld [vmem:[#allocation2 + $0x2f] sm:$0xff]
  %v3969 = vld [vmem:[#allocation2 + $0x47] sm:$0xff]
  %v3970 = vld [vmem:[#allocation2 + $0x4f] sm:$0xff]
  %v3971 = vld [vmem:[#allocation2 + $0x67] sm:$0xff]
  %v3972 = vld [vmem:[#allocation2 + $0x6f] sm:$0xff]
  %v3973 = vld [vmem:[#allocation2 + $0x87] sm:$0xff]
  %v3974 = vld [vmem:[#allocation2 + $0x8f] sm:$0xff]
  %v3975 = vld [vmem:[#allocation2 + $0xa7] sm:$0xff]
  %v3976 = vld [vmem:[#allocation2 + $0xaf] sm:$0xff]
  %v3977 = vld [vmem:[#allocation2 + $0xc7] sm:$0xff]
  %v3978 = vld [vmem:[#allocation2 + $0xcf] sm:$0xff]
  %v3979 = vld [vmem:[#allocation2 + $0xe7] sm:$0xff]
  %v3980 = vld [vmem:[#allocation2 + $0xef] sm:$0xff]
  %v3981 = vld [vmem:[#allocation2 + $0x107] sm:$0xff]
  %v3982 = vld [vmem:[#allocation2 + $0x10f] sm:$0xff]
  %v3983 = vld [vmem:[#allocation2 + $0x127] sm:$0xff]
  %v3984 = vld [vmem:[#allocation2 + $0x12f] sm:$0xff]
  %v3985 = vld [vmem:[#allocation2 + $0x147] sm:$0xff]
  %v3986 = vld [vmem:[#allocation2 + $0x14f] sm:$0xff]
  %v3987 = vld [vmem:[#allocation2 + $0x167] sm:$0xff]
  %v3988 = vld [vmem:[#allocation2 + $0x16f] sm:$0xff]
  %v3989 = vld [vmem:[#allocation2 + $0x187] sm:$0xff]
  %v3990 = vld [vmem:[#allocation2 + $0x18f] sm:$0xff]
  %v3991 = vld [vmem:[#allocation2 + $0x1a7] sm:$0xff]
  %v3992 = vld [vmem:[#allocation2 + $0x1af] sm:$0xff]
  %v3993 = vld [vmem:[#allocation2 + $0x1c7] sm:$0xff]
  %v3994 = vld [vmem:[#allocation2 + $0x1cf] sm:$0xff]
  %v3995 = vld [vmem:[#allocation2 + $0x1e7] sm:$0xff]
  %v3996 = vld [vmem:[#allocation2 + $0x1ef] sm:$0xff]
  %v3997 = vld [vmem:[#allocation2 + $0x247] sm:$0xff]
  %v3998 = vld [vmem:[#allocation2 + $0x24f] sm:$0xff]
  %v3999 = vld [vmem:[#allocation2 + $0x267] sm:$0xff]
  %v4000 = vld [vmem:[#allocation2 + $0x26f] sm:$0xff]
  %v4001 = vld [vmem:[#allocation2 + $0x287] sm:$0xff]
  %v4002 = vld [vmem:[#allocation2 + $0x28f] sm:$0xff]
  %v4003 = vld [vmem:[#allocation2 + $0x2a7] sm:$0xff]
  %v4004 = vld [vmem:[#allocation2 + $0x2af] sm:$0xff]
  %v4005 = vld [vmem:[#allocation2 + $0x2c7] sm:$0xff]
  %v4006 = vld [vmem:[#allocation2 + $0x2cf] sm:$0xff]
  %v4007 = vld [vmem:[#allocation2 + $0x2e7] sm:$0xff]
  %v4008 = vld [vmem:[#allocation2 + $0x2ef] sm:$0xff]
  %v4009 = vld [vmem:[#allocation2 + $0x307] sm:$0xff]
  %v4010 = vld [vmem:[#allocation2 + $0x30f] sm:$0xff]
  %v4011 = vld [vmem:[#allocation2 + $0x327] sm:$0xff]
  %v4012 = vld [vmem:[#allocation2 + $0x32f] sm:$0xff]
  %v4013 = vld [vmem:[#allocation2 + $0x347] sm:$0xff]
  %v4014 = vld [vmem:[#allocation2 + $0x34f] sm:$0xff]
  %v4015 = vld [vmem:[#allocation2 + $0x367] sm:$0xff]
  %v4016 = vld [vmem:[#allocation2 + $0x36f] sm:$0xff]
  %v4017 = vld [vmem:[#allocation2 + $0x387] sm:$0xff]
  %v4018 = vld [vmem:[#allocation2 + $0x38f] sm:$0xff]
  %v4019 = vld [vmem:[#allocation2 + $0x3a7] sm:$0xff]
  %v4020 = vld [vmem:[#allocation2 + $0x3af] sm:$0xff]
  %v4021 = vld [vmem:[#allocation2 + $0x3c7] sm:$0xff]
  %v4022 = vld [vmem:[#allocation2 + $0x3cf] sm:$0xff]
  %v4023 = vld [vmem:[#allocation2 + $0x3e7] sm:$0xff]
  %v4024 = vld [vmem:[#allocation2 + $0x3ef] sm:$0xff]
  %v4025 = vld [vmem:[#allocation2 + $0x407] sm:$0xff]
  %v4026 = vld [vmem:[#allocation2 + $0x40f] sm:$0xff]
  %v4027 = vld [vmem:[#allocation2 + $0x427] sm:$0xff]
  %v4028 = vld [vmem:[#allocation2 + $0x42f] sm:$0xff]
  %v4029 = vld [vmem:[%s4] sm:$0xff]
  %v4030 = vld [vmem:[%s4 + $0x8] sm:$0xff]
  %v4031 = vld [vmem:[%s4 + $0x10] sm:$0xff]
  %v4032 = vld [vmem:[%s4 + $0x18] sm:$0xff]
  %v4033 = vld [vmem:[%s4 + $0x20] sm:$0xff]
  %v4034 = vld [vmem:[%s4 + $0x28] sm:$0xff]
  %v4035 = vld [vmem:[%s4 + $0x30] sm:$0xff]
  %v4036 = vld [vmem:[%s4 + $0x38] sm:$0xff]
  %v4037 = vld [vmem:[%s4 + $0x40] sm:$0xff]
  %v4038 = vld [vmem:[%s4 + $0x48] sm:$0xff]
  %v4039 = vld [vmem:[%s4 + $0x50] sm:$0xff]
  %v4040 = vld [vmem:[%s4 + $0x58] sm:$0xff]
  %v4041 = vld [vmem:[%s4 + $0x60] sm:$0xff]
  %v4042 = vld [vmem:[%s4 + $0x68] sm:$0xff]
  %v4043 = vld [vmem:[%s4 + $0x70] sm:$0xff]
  %v4044 = vld [vmem:[%s4 + $0x78] sm:$0xff]
  %v4045 = vld [vmem:[#allocation2 + $0x8] sm:$0xff]
  %v4046 = vld [vmem:[#allocation2 + $0x10] sm:$0xff]
  %v4047 = vld [vmem:[#allocation2 + $0x28] sm:$0xff]
  %v4048 = vld [vmem:[#allocation2 + $0x30] sm:$0xff]
  %v4049 = vld [vmem:[#allocation2 + $0x48] sm:$0xff]
  %v4050 = vld [vmem:[#allocation2 + $0x50] sm:$0xff]
  %v4051 = vld [vmem:[#allocation2 + $0x68] sm:$0xff]
  %v4052 = vld [vmem:[#allocation2 + $0x70] sm:$0xff]
  %v4053 = vld [vmem:[#allocation2 + $0x88] sm:$0xff]
  %v4054 = vld [vmem:[#allocation2 + $0x90] sm:$0xff]
  %v4055 = vld [vmem:[#allocation2 + $0xa8] sm:$0xff]
  %v4056 = vld [vmem:[#allocation2 + $0xb0] sm:$0xff]
  %v4057 = vld [vmem:[#allocation2 + $0xc8] sm:$0xff]
  %v4058 = vld [vmem:[#allocation2 + $0xd0] sm:$0xff]
  %v4059 = vld [vmem:[#allocation2 + $0xe8] sm:$0xff]
  %v4060 = vld [vmem:[#allocation2 + $0xf0] sm:$0xff]
  %v4061 = vld [vmem:[#allocation2 + $0x108] sm:$0xff]
  %v4062 = vld [vmem:[#allocation2 + $0x110] sm:$0xff]
  %v4063 = vld [vmem:[#allocation2 + $0x128] sm:$0xff]
  %v4064 = vld [vmem:[#allocation2 + $0x130] sm:$0xff]
  %v4065 = vld [vmem:[#allocation2 + $0x148] sm:$0xff]
  %v4066 = vld [vmem:[#allocation2 + $0x150] sm:$0xff]
  %v4067 = vld [vmem:[#allocation2 + $0x168] sm:$0xff]
  %v4068 = vld [vmem:[#allocation2 + $0x170] sm:$0xff]
  %v4069 = vld [vmem:[#allocation2 + $0x188] sm:$0xff]
  %v4070 = vld [vmem:[#allocation2 + $0x190] sm:$0xff]
  %v4071 = vld [vmem:[#allocation2 + $0x1a8] sm:$0xff]
  %v4072 = vld [vmem:[#allocation2 + $0x1b0] sm:$0xff]
  %v4073 = vld [vmem:[#allocation2 + $0x1c8] sm:$0xff]
  %v4074 = vld [vmem:[#allocation2 + $0x1d0] sm:$0xff]
  %v4075 = vld [vmem:[#allocation2 + $0x1e8] sm:$0xff]
  %v4076 = vld [vmem:[#allocation2 + $0x1f0] sm:$0xff]
  %v4077 = vld [vmem:[#allocation2 + $0x248] sm:$0xff]
  %v4078 = vld [vmem:[#allocation2 + $0x250] sm:$0xff]
  %v4079 = vld [vmem:[#allocation2 + $0x268] sm:$0xff]
  %v4080 = vld [vmem:[#allocation2 + $0x270] sm:$0xff]
  %v4081 = vld [vmem:[#allocation2 + $0x288] sm:$0xff]
  %v4082 = vld [vmem:[#allocation2 + $0x290] sm:$0xff]
  %v4083 = vld [vmem:[#allocation2 + $0x2a8] sm:$0xff]
  %v4084 = vld [vmem:[#allocation2 + $0x2b0] sm:$0xff]
  %v4085 = vld [vmem:[#allocation2 + $0x2c8] sm:$0xff]
  %v4086 = vld [vmem:[#allocation2 + $0x2d0] sm:$0xff]
  %v4087 = vld [vmem:[#allocation2 + $0x2e8] sm:$0xff]
  %v4088 = vld [vmem:[#allocation2 + $0x2f0] sm:$0xff]
  %v4089 = vld [vmem:[#allocation2 + $0x308] sm:$0xff]
  %v4090 = vld [vmem:[#allocation2 + $0x310] sm:$0xff]
  %v4091 = vld [vmem:[#allocation2 + $0x328] sm:$0xff]
  %v4092 = vld [vmem:[#allocation2 + $0x330] sm:$0xff]
  %v4093 = vld [vmem:[#allocation2 + $0x348] sm:$0xff]
  %v4094 = vld [vmem:[#allocation2 + $0x350] sm:$0xff]
  %v4095 = vld [vmem:[#allocation2 + $0x368] sm:$0xff]
  %v4096 = vld [vmem:[#allocation2 + $0x370] sm:$0xff]
  %v4097 = vld [vmem:[#allocation2 + $0x388] sm:$0xff]
  %v4098 = vld [vmem:[#allocation2 + $0x390] sm:$0xff]
  %v4099 = vld [vmem:[#allocation2 + $0x3a8] sm:$0xff]
  %v4100 = vld [vmem:[#allocation2 + $0x3b0] sm:$0xff]
  %v4101 = vld [vmem:[#allocation2 + $0x3c8] sm:$0xff]
  %v4102 = vld [vmem:[#allocation2 + $0x3d0] sm:$0xff]
  %v4103 = vld [vmem:[#allocation2 + $0x3e8] sm:$0xff]
  %v4104 = vld [vmem:[#allocation2 + $0x3f0] sm:$0xff]
  %v4105 = vld [vmem:[#allocation2 + $0x408] sm:$0xff]
  %v4106 = vld [vmem:[#allocation2 + $0x410] sm:$0xff]
  %v4107 = vld [vmem:[#allocation2 + $0x428] sm:$0xff]
  %v4108 = vld [vmem:[#allocation2 + $0x430] sm:$0xff]
  %s4109 = scalar_lea.vmem %s4, 128
  %v4110 = vld [vmem:[%s4109] sm:$0xff]
  %v4111 = vld [vmem:[%s4109 + $0x8] sm:$0xff]
  %v4112 = vld [vmem:[%s4109 + $0x10] sm:$0xff]
  %v4113 = vld [vmem:[%s4109 + $0x18] sm:$0xff]
  %v4114 = vld [vmem:[%s4109 + $0x20] sm:$0xff]
  %v4115 = vld [vmem:[%s4109 + $0x28] sm:$0xff]
  %v4116 = vld [vmem:[%s4109 + $0x30] sm:$0xff]
  %v4117 = vld [vmem:[%s4109 + $0x38] sm:$0xff]
  %v4118 = vld [vmem:[%s4109 + $0x40] sm:$0xff]
  %v4119 = vld [vmem:[%s4109 + $0x48] sm:$0xff]
  %v4120 = vld [vmem:[%s4109 + $0x50] sm:$0xff]
  %v4121 = vld [vmem:[%s4109 + $0x58] sm:$0xff]
  %v4122 = vld [vmem:[%s4109 + $0x60] sm:$0xff]
  %v4123 = vld [vmem:[%s4109 + $0x68] sm:$0xff]
  %v4124 = vld [vmem:[%s4109 + $0x70] sm:$0xff]
  %v4125 = vld [vmem:[%s4109 + $0x78] sm:$0xff]
  %4126 = vmatpush.msra.mxu0 %v4125
  %4127 = vmatpush.msra.mxu0 %v4124
  %4128 = vmatpush.msra.mxu0 %v4123
  %4129 = vmatpush.msra.mxu0 %v4122
  %4130 = vmatpush.msra.mxu0 %v4121
  %4131 = vmatpush.msra.mxu0 %v4120
  %4132 = vmatpush.msra.mxu0 %v4119
  %4133 = vmatpush.msra.mxu0 %v4118
  %4134 = vmatpush.msra.mxu0 %v4117
  %4135 = vmatpush.msra.mxu0 %v4116
  %4136 = vmatpush.msra.mxu0 %v4115
  %4137 = vmatpush.msra.mxu0 %v4114
  %4138 = vmatpush.msra.mxu0 %v4113
  %4139 = vmatpush.msra.mxu0 %v4112
  %4140 = vmatpush.msra.mxu0 %v4111
  %4141 = vmatpush.msra.mxu0 %v4110
  %4142 = vmatmul.f32.gmra.mxu0 %v4045
  %v4143 = vpop.f32.mrf.mxu0
  %v4144 = vadd.f32 0.0, %v4143
  %4145 = vmatmul.f32.gmra.mxu0 %v4046
  %v4146 = vpop.f32.mrf.mxu0
  %v4147 = vadd.f32 0.0, %v4146
  %4148 = vmatmul.f32.gmra.mxu0 %v4047
  %v4149 = vpop.f32.mrf.mxu0
  %v4150 = vadd.f32 0.0, %v4149
  %4151 = vmatmul.f32.gmra.mxu0 %v4048
  %v4152 = vpop.f32.mrf.mxu0
  %v4153 = vadd.f32 0.0, %v4152
  %4154 = vmatmul.f32.gmra.mxu0 %v4049
  %v4155 = vpop.f32.mrf.mxu0
  %v4156 = vadd.f32 0.0, %v4155
  %4157 = vmatmul.f32.gmra.mxu0 %v4050
  %v4158 = vpop.f32.mrf.mxu0
  %v4159 = vadd.f32 0.0, %v4158
  %4160 = vmatmul.f32.gmra.mxu0 %v4051
  %v4161 = vpop.f32.mrf.mxu0
  %v4162 = vadd.f32 0.0, %v4161
  %4163 = vmatmul.f32.gmra.mxu0 %v4052
  %v4164 = vpop.f32.mrf.mxu0
  %v4165 = vadd.f32 0.0, %v4164
  %4166 = vmatmul.f32.gmra.mxu0 %v4053
  %v4167 = vpop.f32.mrf.mxu0
  %v4168 = vadd.f32 0.0, %v4167
  %4169 = vmatmul.f32.gmra.mxu0 %v4054
  %v4170 = vpop.f32.mrf.mxu0
  %v4171 = vadd.f32 0.0, %v4170
  %4172 = vmatmul.f32.gmra.mxu0 %v4055
  %v4173 = vpop.f32.mrf.mxu0
  %v4174 = vadd.f32 0.0, %v4173
  %4175 = vmatmul.f32.gmra.mxu0 %v4056
  %v4176 = vpop.f32.mrf.mxu0
  %v4177 = vadd.f32 0.0, %v4176
  %4178 = vmatmul.f32.gmra.mxu0 %v4057
  %v4179 = vpop.f32.mrf.mxu0
  %v4180 = vadd.f32 0.0, %v4179
  %4181 = vmatmul.f32.gmra.mxu0 %v4058
  %v4182 = vpop.f32.mrf.mxu0
  %v4183 = vadd.f32 0.0, %v4182
  %4184 = vmatmul.f32.gmra.mxu0 %v4059
  %v4185 = vpop.f32.mrf.mxu0
  %v4186 = vadd.f32 0.0, %v4185
  %4187 = vmatmul.f32.gmra.mxu0 %v4060
  %v4188 = vpop.f32.mrf.mxu0
  %v4189 = vadd.f32 0.0, %v4188
  %4190 = vmatmul.f32.gmra.mxu0 %v4061
  %v4191 = vpop.f32.mrf.mxu0
  %v4192 = vadd.f32 0.0, %v4191
  %4193 = vmatmul.f32.gmra.mxu0 %v4062
  %v4194 = vpop.f32.mrf.mxu0
  %v4195 = vadd.f32 0.0, %v4194
  %4196 = vmatmul.f32.gmra.mxu0 %v4063
  %v4197 = vpop.f32.mrf.mxu0
  %v4198 = vadd.f32 0.0, %v4197
  %4199 = vmatmul.f32.gmra.mxu0 %v4064
  %v4200 = vpop.f32.mrf.mxu0
  %v4201 = vadd.f32 0.0, %v4200
  %4202 = vmatmul.f32.gmra.mxu0 %v4065
  %v4203 = vpop.f32.mrf.mxu0
  %v4204 = vadd.f32 0.0, %v4203
  %4205 = vmatmul.f32.gmra.mxu0 %v4066
  %v4206 = vpop.f32.mrf.mxu0
  %v4207 = vadd.f32 0.0, %v4206
  %4208 = vmatmul.f32.gmra.mxu0 %v4067
  %v4209 = vpop.f32.mrf.mxu0
  %v4210 = vadd.f32 0.0, %v4209
  %4211 = vmatmul.f32.gmra.mxu0 %v4068
  %v4212 = vpop.f32.mrf.mxu0
  %v4213 = vadd.f32 0.0, %v4212
  %4214 = vmatmul.f32.gmra.mxu0 %v4069
  %v4215 = vpop.f32.mrf.mxu0
  %v4216 = vadd.f32 0.0, %v4215
  %4217 = vmatmul.f32.gmra.mxu0 %v4070
  %v4218 = vpop.f32.mrf.mxu0
  %v4219 = vadd.f32 0.0, %v4218
  %4220 = vmatmul.f32.gmra.mxu0 %v4071
  %v4221 = vpop.f32.mrf.mxu0
  %v4222 = vadd.f32 0.0, %v4221
  %4223 = vmatmul.f32.gmra.mxu0 %v4072
  %v4224 = vpop.f32.mrf.mxu0
  %v4225 = vadd.f32 0.0, %v4224
  %4226 = vmatmul.f32.gmra.mxu0 %v4073
  %v4227 = vpop.f32.mrf.mxu0
  %v4228 = vadd.f32 0.0, %v4227
  %4229 = vmatmul.f32.gmra.mxu0 %v4074
  %v4230 = vpop.f32.mrf.mxu0
  %v4231 = vadd.f32 0.0, %v4230
  %4232 = vmatmul.f32.gmra.mxu0 %v4075
  %v4233 = vpop.f32.mrf.mxu0
  %v4234 = vadd.f32 0.0, %v4233
  %4235 = vmatmul.f32.gmra.mxu0 %v4076
  %v4236 = vpop.f32.mrf.mxu0
  %v4237 = vadd.f32 0.0, %v4236
  %4238 = vmatmul.f32.gmra.mxu0 %v4077
  %v4239 = vpop.f32.mrf.mxu0
  %v4240 = vadd.f32 0.0, %v4239
  %4241 = vmatmul.f32.gmra.mxu0 %v4078
  %v4242 = vpop.f32.mrf.mxu0
  %v4243 = vadd.f32 0.0, %v4242
  %4244 = vmatmul.f32.gmra.mxu0 %v4079
  %v4245 = vpop.f32.mrf.mxu0
  %v4246 = vadd.f32 0.0, %v4245
  %4247 = vmatmul.f32.gmra.mxu0 %v4080
  %v4248 = vpop.f32.mrf.mxu0
  %v4249 = vadd.f32 0.0, %v4248
  %4250 = vmatmul.f32.gmra.mxu0 %v4081
  %v4251 = vpop.f32.mrf.mxu0
  %v4252 = vadd.f32 0.0, %v4251
  %4253 = vmatmul.f32.gmra.mxu0 %v4082
  %v4254 = vpop.f32.mrf.mxu0
  %v4255 = vadd.f32 0.0, %v4254
  %4256 = vmatmul.f32.gmra.mxu0 %v4083
  %v4257 = vpop.f32.mrf.mxu0
  %v4258 = vadd.f32 0.0, %v4257
  %4259 = vmatmul.f32.gmra.mxu0 %v4084
  %v4260 = vpop.f32.mrf.mxu0
  %v4261 = vadd.f32 0.0, %v4260
  %4262 = vmatmul.f32.gmra.mxu0 %v4085
  %v4263 = vpop.f32.mrf.mxu0
  %v4264 = vadd.f32 0.0, %v4263
  %4265 = vmatmul.f32.gmra.mxu0 %v4086
  %v4266 = vpop.f32.mrf.mxu0
  %v4267 = vadd.f32 0.0, %v4266
  %4268 = vmatmul.f32.gmra.mxu0 %v4087
  %v4269 = vpop.f32.mrf.mxu0
  %v4270 = vadd.f32 0.0, %v4269
  %4271 = vmatmul.f32.gmra.mxu0 %v4088
  %v4272 = vpop.f32.mrf.mxu0
  %v4273 = vadd.f32 0.0, %v4272
  %4274 = vmatmul.f32.gmra.mxu0 %v4089
  %v4275 = vpop.f32.mrf.mxu0
  %v4276 = vadd.f32 0.0, %v4275
  %4277 = vmatmul.f32.gmra.mxu0 %v4090
  %v4278 = vpop.f32.mrf.mxu0
  %v4279 = vadd.f32 0.0, %v4278
  %4280 = vmatmul.f32.gmra.mxu0 %v4091
  %v4281 = vpop.f32.mrf.mxu0
  %v4282 = vadd.f32 0.0, %v4281
  %4283 = vmatmul.f32.gmra.mxu0 %v4092
  %v4284 = vpop.f32.mrf.mxu0
  %v4285 = vadd.f32 0.0, %v4284
  %4286 = vmatmul.f32.gmra.mxu0 %v4093
  %v4287 = vpop.f32.mrf.mxu0
  %v4288 = vadd.f32 0.0, %v4287
  %4289 = vmatmul.f32.gmra.mxu0 %v4094
  %v4290 = vpop.f32.mrf.mxu0
  %v4291 = vadd.f32 0.0, %v4290
  %4292 = vmatmul.f32.gmra.mxu0 %v4095
  %v4293 = vpop.f32.mrf.mxu0
  %v4294 = vadd.f32 0.0, %v4293
  %4295 = vmatmul.f32.gmra.mxu0 %v4096
  %v4296 = vpop.f32.mrf.mxu0
  %v4297 = vadd.f32 0.0, %v4296
  %4298 = vmatmul.f32.gmra.mxu0 %v4097
  %v4299 = vpop.f32.mrf.mxu0
  %v4300 = vadd.f32 0.0, %v4299
  %4301 = vmatmul.f32.gmra.mxu0 %v4098
  %v4302 = vpop.f32.mrf.mxu0
  %v4303 = vadd.f32 0.0, %v4302
  %4304 = vmatmul.f32.gmra.mxu0 %v4099
  %v4305 = vpop.f32.mrf.mxu0
  %v4306 = vadd.f32 0.0, %v4305
  %4307 = vmatmul.f32.gmra.mxu0 %v4100
  %v4308 = vpop.f32.mrf.mxu0
  %v4309 = vadd.f32 0.0, %v4308
  %4310 = vmatmul.f32.gmra.mxu0 %v4101
  %v4311 = vpop.f32.mrf.mxu0
  %v4312 = vadd.f32 0.0, %v4311
  %4313 = vmatmul.f32.gmra.mxu0 %v4102
  %v4314 = vpop.f32.mrf.mxu0
  %v4315 = vadd.f32 0.0, %v4314
  %4316 = vmatmul.f32.gmra.mxu0 %v4103
  %v4317 = vpop.f32.mrf.mxu0
  %v4318 = vadd.f32 0.0, %v4317
  %4319 = vmatmul.f32.gmra.mxu0 %v4104
  %v4320 = vpop.f32.mrf.mxu0
  %v4321 = vadd.f32 0.0, %v4320
  %4322 = vmatmul.f32.gmra.mxu0 %v4105
  %v4323 = vpop.f32.mrf.mxu0
  %v4324 = vadd.f32 0.0, %v4323
  %4325 = vmatmul.f32.gmra.mxu0 %v4106
  %v4326 = vpop.f32.mrf.mxu0
  %v4327 = vadd.f32 0.0, %v4326
  %4328 = vmatmul.f32.gmra.mxu0 %v4107
  %v4329 = vpop.f32.mrf.mxu0
  %v4330 = vadd.f32 0.0, %v4329
  %4331 = vmatmul.f32.gmra.mxu0 %v4108
  %v4332 = vpop.f32.mrf.mxu0
  %v4333 = vadd.f32 0.0, %v4332
  %4334 = vdwg.mxu0
  %4335 = vmatpush.msra.mxu0 %v4044
  %4336 = vmatpush.msra.mxu0 %v4043
  %4337 = vmatpush.msra.mxu0 %v4042
  %4338 = vmatpush.msra.mxu0 %v4041
  %4339 = vmatpush.msra.mxu0 %v4040
  %4340 = vmatpush.msra.mxu0 %v4039
  %4341 = vmatpush.msra.mxu0 %v4038
  %4342 = vmatpush.msra.mxu0 %v4037
  %4343 = vmatpush.msra.mxu0 %v4036
  %4344 = vmatpush.msra.mxu0 %v4035
  %4345 = vmatpush.msra.mxu0 %v4034
  %4346 = vmatpush.msra.mxu0 %v4033
  %4347 = vmatpush.msra.mxu0 %v4032
  %4348 = vmatpush.msra.mxu0 %v4031
  %4349 = vmatpush.msra.mxu0 %v4030
  %4350 = vmatpush.msra.mxu0 %v4029
  %4351 = vmatmul.f32.gmra.mxu0 %v3965
  %v4352 = vpop.f32.mrf.mxu0
  %v4353 = vadd.f32 %v4144, %v4352
  %4354 = vmatmul.f32.gmra.mxu0 %v3966
  %v4355 = vpop.f32.mrf.mxu0
  %v4356 = vadd.f32 %v4147, %v4355
  %4357 = vmatmul.f32.gmra.mxu0 %v3967
  %v4358 = vpop.f32.mrf.mxu0
  %v4359 = vadd.f32 %v4150, %v4358
  %4360 = vmatmul.f32.gmra.mxu0 %v3968
  %v4361 = vpop.f32.mrf.mxu0
  %v4362 = vadd.f32 %v4153, %v4361
  %4363 = vmatmul.f32.gmra.mxu0 %v3969
  %v4364 = vpop.f32.mrf.mxu0
  %v4365 = vadd.f32 %v4156, %v4364
  %4366 = vmatmul.f32.gmra.mxu0 %v3970
  %v4367 = vpop.f32.mrf.mxu0
  %v4368 = vadd.f32 %v4159, %v4367
  %4369 = vmatmul.f32.gmra.mxu0 %v3971
  %v4370 = vpop.f32.mrf.mxu0
  %v4371 = vadd.f32 %v4162, %v4370
  %4372 = vmatmul.f32.gmra.mxu0 %v3972
  %v4373 = vpop.f32.mrf.mxu0
  %v4374 = vadd.f32 %v4165, %v4373
  %4375 = vmatmul.f32.gmra.mxu0 %v3973
  %v4376 = vpop.f32.mrf.mxu0
  %v4377 = vadd.f32 %v4168, %v4376
  %4378 = vmatmul.f32.gmra.mxu0 %v3974
  %v4379 = vpop.f32.mrf.mxu0
  %v4380 = vadd.f32 %v4171, %v4379
  %4381 = vmatmul.f32.gmra.mxu0 %v3975
  %v4382 = vpop.f32.mrf.mxu0
  %v4383 = vadd.f32 %v4174, %v4382
  %4384 = vmatmul.f32.gmra.mxu0 %v3976
  %v4385 = vpop.f32.mrf.mxu0
  %v4386 = vadd.f32 %v4177, %v4385
  %4387 = vmatmul.f32.gmra.mxu0 %v3977
  %v4388 = vpop.f32.mrf.mxu0
  %v4389 = vadd.f32 %v4180, %v4388
  %4390 = vmatmul.f32.gmra.mxu0 %v3978
  %v4391 = vpop.f32.mrf.mxu0
  %v4392 = vadd.f32 %v4183, %v4391
  %4393 = vmatmul.f32.gmra.mxu0 %v3979
  %v4394 = vpop.f32.mrf.mxu0
  %v4395 = vadd.f32 %v4186, %v4394
  %4396 = vmatmul.f32.gmra.mxu0 %v3980
  %v4397 = vpop.f32.mrf.mxu0
  %v4398 = vadd.f32 %v4189, %v4397
  %4399 = vmatmul.f32.gmra.mxu0 %v3981
  %v4400 = vpop.f32.mrf.mxu0
  %v4401 = vadd.f32 %v4192, %v4400
  %4402 = vmatmul.f32.gmra.mxu0 %v3982
  %v4403 = vpop.f32.mrf.mxu0
  %v4404 = vadd.f32 %v4195, %v4403
  %4405 = vmatmul.f32.gmra.mxu0 %v3983
  %v4406 = vpop.f32.mrf.mxu0
  %v4407 = vadd.f32 %v4198, %v4406
  %4408 = vmatmul.f32.gmra.mxu0 %v3984
  %v4409 = vpop.f32.mrf.mxu0
  %v4410 = vadd.f32 %v4201, %v4409
  %4411 = vmatmul.f32.gmra.mxu0 %v3985
  %v4412 = vpop.f32.mrf.mxu0
  %v4413 = vadd.f32 %v4204, %v4412
  %4414 = vmatmul.f32.gmra.mxu0 %v3986
  %v4415 = vpop.f32.mrf.mxu0
  %v4416 = vadd.f32 %v4207, %v4415
  %4417 = vmatmul.f32.gmra.mxu0 %v3987
  %v4418 = vpop.f32.mrf.mxu0
  %v4419 = vadd.f32 %v4210, %v4418
  %4420 = vmatmul.f32.gmra.mxu0 %v3988
  %v4421 = vpop.f32.mrf.mxu0
  %v4422 = vadd.f32 %v4213, %v4421
  %4423 = vmatmul.f32.gmra.mxu0 %v3989
  %v4424 = vpop.f32.mrf.mxu0
  %v4425 = vadd.f32 %v4216, %v4424
  %4426 = vmatmul.f32.gmra.mxu0 %v3990
  %v4427 = vpop.f32.mrf.mxu0
  %v4428 = vadd.f32 %v4219, %v4427
  %4429 = vmatmul.f32.gmra.mxu0 %v3991
  %v4430 = vpop.f32.mrf.mxu0
  %v4431 = vadd.f32 %v4222, %v4430
  %4432 = vmatmul.f32.gmra.mxu0 %v3992
  %v4433 = vpop.f32.mrf.mxu0
  %v4434 = vadd.f32 %v4225, %v4433
  %4435 = vmatmul.f32.gmra.mxu0 %v3993
  %v4436 = vpop.f32.mrf.mxu0
  %v4437 = vadd.f32 %v4228, %v4436
  %4438 = vmatmul.f32.gmra.mxu0 %v3994
  %v4439 = vpop.f32.mrf.mxu0
  %v4440 = vadd.f32 %v4231, %v4439
  %4441 = vmatmul.f32.gmra.mxu0 %v3995
  %v4442 = vpop.f32.mrf.mxu0
  %v4443 = vadd.f32 %v4234, %v4442
  %4444 = vmatmul.f32.gmra.mxu0 %v3996
  %v4445 = vpop.f32.mrf.mxu0
  %v4446 = vadd.f32 %v4237, %v4445
  %4447 = vmatmul.f32.gmra.mxu0 %v3997
  %v4448 = vpop.f32.mrf.mxu0
  %v4449 = vadd.f32 %v4240, %v4448
  %4450 = vmatmul.f32.gmra.mxu0 %v3998
  %v4451 = vpop.f32.mrf.mxu0
  %v4452 = vadd.f32 %v4243, %v4451
  %4453 = vmatmul.f32.gmra.mxu0 %v3999
  %v4454 = vpop.f32.mrf.mxu0
  %v4455 = vadd.f32 %v4246, %v4454
  %4456 = vmatmul.f32.gmra.mxu0 %v4000
  %v4457 = vpop.f32.mrf.mxu0
  %v4458 = vadd.f32 %v4249, %v4457
  %4459 = vmatmul.f32.gmra.mxu0 %v4001
  %v4460 = vpop.f32.mrf.mxu0
  %v4461 = vadd.f32 %v4252, %v4460
  %4462 = vmatmul.f32.gmra.mxu0 %v4002
  %v4463 = vpop.f32.mrf.mxu0
  %v4464 = vadd.f32 %v4255, %v4463
  %4465 = vmatmul.f32.gmra.mxu0 %v4003
  %v4466 = vpop.f32.mrf.mxu0
  %v4467 = vadd.f32 %v4258, %v4466
  %4468 = vmatmul.f32.gmra.mxu0 %v4004
  %v4469 = vpop.f32.mrf.mxu0
  %v4470 = vadd.f32 %v4261, %v4469
  %4471 = vmatmul.f32.gmra.mxu0 %v4005
  %v4472 = vpop.f32.mrf.mxu0
  %v4473 = vadd.f32 %v4264, %v4472
  %4474 = vmatmul.f32.gmra.mxu0 %v4006
  %v4475 = vpop.f32.mrf.mxu0
  %v4476 = vadd.f32 %v4267, %v4475
  %4477 = vmatmul.f32.gmra.mxu0 %v4007
  %v4478 = vpop.f32.mrf.mxu0
  %v4479 = vadd.f32 %v4270, %v4478
  %4480 = vmatmul.f32.gmra.mxu0 %v4008
  %v4481 = vpop.f32.mrf.mxu0
  %v4482 = vadd.f32 %v4273, %v4481
  %4483 = vmatmul.f32.gmra.mxu0 %v4009
  %v4484 = vpop.f32.mrf.mxu0
  %v4485 = vadd.f32 %v4276, %v4484
  %4486 = vmatmul.f32.gmra.mxu0 %v4010
  %v4487 = vpop.f32.mrf.mxu0
  %v4488 = vadd.f32 %v4279, %v4487
  %4489 = vmatmul.f32.gmra.mxu0 %v4011
  %v4490 = vpop.f32.mrf.mxu0
  %v4491 = vadd.f32 %v4282, %v4490
  %4492 = vmatmul.f32.gmra.mxu0 %v4012
  %v4493 = vpop.f32.mrf.mxu0
  %v4494 = vadd.f32 %v4285, %v4493
  %4495 = vmatmul.f32.gmra.mxu0 %v4013
  %v4496 = vpop.f32.mrf.mxu0
  %v4497 = vadd.f32 %v4288, %v4496
  %4498 = vmatmul.f32.gmra.mxu0 %v4014
  %v4499 = vpop.f32.mrf.mxu0
  %v4500 = vadd.f32 %v4291, %v4499
  %4501 = vmatmul.f32.gmra.mxu0 %v4015
  %v4502 = vpop.f32.mrf.mxu0
  %v4503 = vadd.f32 %v4294, %v4502
  %4504 = vmatmul.f32.gmra.mxu0 %v4016
  %v4505 = vpop.f32.mrf.mxu0
  %v4506 = vadd.f32 %v4297, %v4505
  %4507 = vmatmul.f32.gmra.mxu0 %v4017
  %v4508 = vpop.f32.mrf.mxu0
  %v4509 = vadd.f32 %v4300, %v4508
  %4510 = vmatmul.f32.gmra.mxu0 %v4018
  %v4511 = vpop.f32.mrf.mxu0
  %v4512 = vadd.f32 %v4303, %v4511
  %4513 = vmatmul.f32.gmra.mxu0 %v4019
  %v4514 = vpop.f32.mrf.mxu0
  %v4515 = vadd.f32 %v4306, %v4514
  %4516 = vmatmul.f32.gmra.mxu0 %v4020
  %v4517 = vpop.f32.mrf.mxu0
  %v4518 = vadd.f32 %v4309, %v4517
  %4519 = vmatmul.f32.gmra.mxu0 %v4021
  %v4520 = vpop.f32.mrf.mxu0
  %v4521 = vadd.f32 %v4312, %v4520
  %4522 = vmatmul.f32.gmra.mxu0 %v4022
  %v4523 = vpop.f32.mrf.mxu0
  %v4524 = vadd.f32 %v4315, %v4523
  %4525 = vmatmul.f32.gmra.mxu0 %v4023
  %v4526 = vpop.f32.mrf.mxu0
  %v4527 = vadd.f32 %v4318, %v4526
  %4528 = vmatmul.f32.gmra.mxu0 %v4024
  %v4529 = vpop.f32.mrf.mxu0
  %v4530 = vadd.f32 %v4321, %v4529
  %4531 = vmatmul.f32.gmra.mxu0 %v4025
  %v4532 = vpop.f32.mrf.mxu0
  %v4533 = vadd.f32 %v4324, %v4532
  %4534 = vmatmul.f32.gmra.mxu0 %v4026
  %v4535 = vpop.f32.mrf.mxu0
  %v4536 = vadd.f32 %v4327, %v4535
  %4537 = vmatmul.f32.gmra.mxu0 %v4027
  %v4538 = vpop.f32.mrf.mxu0
  %v4539 = vadd.f32 %v4330, %v4538
  %4540 = vmatmul.f32.gmra.mxu0 %v4028
  %v4541 = vpop.f32.mrf.mxu0
  %v4542 = vadd.f32 %v4333, %v4541
  %4543 = vdwg.mxu0
  %v4544 = vld [vmem:[#allocation2 + $0x9] sm:$0xff]
  %v4545 = vld [vmem:[#allocation2 + $0x11] sm:$0xff]
  %v4546 = vld [vmem:[#allocation2 + $0x29] sm:$0xff]
  %v4547 = vld [vmem:[#allocation2 + $0x31] sm:$0xff]
  %v4548 = vld [vmem:[#allocation2 + $0x49] sm:$0xff]
  %v4549 = vld [vmem:[#allocation2 + $0x51] sm:$0xff]
  %v4550 = vld [vmem:[#allocation2 + $0x69] sm:$0xff]
  %v4551 = vld [vmem:[#allocation2 + $0x71] sm:$0xff]
  %v4552 = vld [vmem:[#allocation2 + $0x89] sm:$0xff]
  %v4553 = vld [vmem:[#allocation2 + $0x91] sm:$0xff]
  %v4554 = vld [vmem:[#allocation2 + $0xa9] sm:$0xff]
  %v4555 = vld [vmem:[#allocation2 + $0xb1] sm:$0xff]
  %v4556 = vld [vmem:[#allocation2 + $0xc9] sm:$0xff]
  %v4557 = vld [vmem:[#allocation2 + $0xd1] sm:$0xff]
  %v4558 = vld [vmem:[#allocation2 + $0xe9] sm:$0xff]
  %v4559 = vld [vmem:[#allocation2 + $0xf1] sm:$0xff]
  %v4560 = vld [vmem:[#allocation2 + $0x109] sm:$0xff]
  %v4561 = vld [vmem:[#allocation2 + $0x111] sm:$0xff]
  %v4562 = vld [vmem:[#allocation2 + $0x129] sm:$0xff]
  %v4563 = vld [vmem:[#allocation2 + $0x131] sm:$0xff]
  %v4564 = vld [vmem:[#allocation2 + $0x149] sm:$0xff]
  %v4565 = vld [vmem:[#allocation2 + $0x151] sm:$0xff]
  %v4566 = vld [vmem:[#allocation2 + $0x169] sm:$0xff]
  %v4567 = vld [vmem:[#allocation2 + $0x171] sm:$0xff]
  %v4568 = vld [vmem:[#allocation2 + $0x189] sm:$0xff]
  %v4569 = vld [vmem:[#allocation2 + $0x191] sm:$0xff]
  %v4570 = vld [vmem:[#allocation2 + $0x1a9] sm:$0xff]
  %v4571 = vld [vmem:[#allocation2 + $0x1b1] sm:$0xff]
  %v4572 = vld [vmem:[#allocation2 + $0x1c9] sm:$0xff]
  %v4573 = vld [vmem:[#allocation2 + $0x1d1] sm:$0xff]
  %v4574 = vld [vmem:[#allocation2 + $0x1e9] sm:$0xff]
  %v4575 = vld [vmem:[#allocation2 + $0x1f1] sm:$0xff]
  %v4576 = vld [vmem:[#allocation2 + $0x249] sm:$0xff]
  %v4577 = vld [vmem:[#allocation2 + $0x251] sm:$0xff]
  %v4578 = vld [vmem:[#allocation2 + $0x269] sm:$0xff]
  %v4579 = vld [vmem:[#allocation2 + $0x271] sm:$0xff]
  %v4580 = vld [vmem:[#allocation2 + $0x289] sm:$0xff]
  %v4581 = vld [vmem:[#allocation2 + $0x291] sm:$0xff]
  %v4582 = vld [vmem:[#allocation2 + $0x2a9] sm:$0xff]
  %v4583 = vld [vmem:[#allocation2 + $0x2b1] sm:$0xff]
  %v4584 = vld [vmem:[#allocation2 + $0x2c9] sm:$0xff]
  %v4585 = vld [vmem:[#allocation2 + $0x2d1] sm:$0xff]
  %v4586 = vld [vmem:[#allocation2 + $0x2e9] sm:$0xff]
  %v4587 = vld [vmem:[#allocation2 + $0x2f1] sm:$0xff]
  %v4588 = vld [vmem:[#allocation2 + $0x309] sm:$0xff]
  %v4589 = vld [vmem:[#allocation2 + $0x311] sm:$0xff]
  %v4590 = vld [vmem:[#allocation2 + $0x329] sm:$0xff]
  %v4591 = vld [vmem:[#allocation2 + $0x331] sm:$0xff]
  %v4592 = vld [vmem:[#allocation2 + $0x349] sm:$0xff]
  %v4593 = vld [vmem:[#allocation2 + $0x351] sm:$0xff]
  %v4594 = vld [vmem:[#allocation2 + $0x369] sm:$0xff]
  %v4595 = vld [vmem:[#allocation2 + $0x371] sm:$0xff]
  %v4596 = vld [vmem:[#allocation2 + $0x389] sm:$0xff]
  %v4597 = vld [vmem:[#allocation2 + $0x391] sm:$0xff]
  %v4598 = vld [vmem:[#allocation2 + $0x3a9] sm:$0xff]
  %v4599 = vld [vmem:[#allocation2 + $0x3b1] sm:$0xff]
  %v4600 = vld [vmem:[#allocation2 + $0x3c9] sm:$0xff]
  %v4601 = vld [vmem:[#allocation2 + $0x3d1] sm:$0xff]
  %v4602 = vld [vmem:[#allocation2 + $0x3e9] sm:$0xff]
  %v4603 = vld [vmem:[#allocation2 + $0x3f1] sm:$0xff]
  %v4604 = vld [vmem:[#allocation2 + $0x409] sm:$0xff]
  %v4605 = vld [vmem:[#allocation2 + $0x411] sm:$0xff]
  %v4606 = vld [vmem:[#allocation2 + $0x429] sm:$0xff]
  %v4607 = vld [vmem:[#allocation2 + $0x431] sm:$0xff]
  %s4608 = scalar_lea.vmem %s4, 256
  %v4609 = vld [vmem:[%s4608] sm:$0xff]
  %v4610 = vld [vmem:[%s4608 + $0x8] sm:$0xff]
  %v4611 = vld [vmem:[%s4608 + $0x10] sm:$0xff]
  %v4612 = vld [vmem:[%s4608 + $0x18] sm:$0xff]
  %v4613 = vld [vmem:[%s4608 + $0x20] sm:$0xff]
  %v4614 = vld [vmem:[%s4608 + $0x28] sm:$0xff]
  %v4615 = vld [vmem:[%s4608 + $0x30] sm:$0xff]
  %v4616 = vld [vmem:[%s4608 + $0x38] sm:$0xff]
  %v4617 = vld [vmem:[%s4608 + $0x40] sm:$0xff]
  %v4618 = vld [vmem:[%s4608 + $0x48] sm:$0xff]
  %v4619 = vld [vmem:[%s4608 + $0x50] sm:$0xff]
  %v4620 = vld [vmem:[%s4608 + $0x58] sm:$0xff]
  %v4621 = vld [vmem:[%s4608 + $0x60] sm:$0xff]
  %v4622 = vld [vmem:[%s4608 + $0x68] sm:$0xff]
  %v4623 = vld [vmem:[%s4608 + $0x70] sm:$0xff]
  %v4624 = vld [vmem:[%s4608 + $0x78] sm:$0xff]
  %4625 = vmatpush.msra.mxu0 %v4624
  %4626 = vmatpush.msra.mxu0 %v4623
  %4627 = vmatpush.msra.mxu0 %v4622
  %4628 = vmatpush.msra.mxu0 %v4621
  %4629 = vmatpush.msra.mxu0 %v4620
  %4630 = vmatpush.msra.mxu0 %v4619
  %4631 = vmatpush.msra.mxu0 %v4618
  %4632 = vmatpush.msra.mxu0 %v4617
  %4633 = vmatpush.msra.mxu0 %v4616
  %4634 = vmatpush.msra.mxu0 %v4615
  %4635 = vmatpush.msra.mxu0 %v4614
  %4636 = vmatpush.msra.mxu0 %v4613
  %4637 = vmatpush.msra.mxu0 %v4612
  %4638 = vmatpush.msra.mxu0 %v4611
  %4639 = vmatpush.msra.mxu0 %v4610
  %4640 = vmatpush.msra.mxu0 %v4609
  %4641 = vmatmul.f32.gmra.mxu0 %v4544
  %v4642 = vpop.f32.mrf.mxu0
  %v4643 = vadd.f32 0.0, %v4642
  %4644 = vmatmul.f32.gmra.mxu0 %v4545
  %v4645 = vpop.f32.mrf.mxu0
  %v4646 = vadd.f32 0.0, %v4645
  %4647 = vmatmul.f32.gmra.mxu0 %v4546
  %v4648 = vpop.f32.mrf.mxu0
  %v4649 = vadd.f32 0.0, %v4648
  %4650 = vmatmul.f32.gmra.mxu0 %v4547
  %v4651 = vpop.f32.mrf.mxu0
  %v4652 = vadd.f32 0.0, %v4651
  %4653 = vmatmul.f32.gmra.mxu0 %v4548
  %v4654 = vpop.f32.mrf.mxu0
  %v4655 = vadd.f32 0.0, %v4654
  %4656 = vmatmul.f32.gmra.mxu0 %v4549
  %v4657 = vpop.f32.mrf.mxu0
  %v4658 = vadd.f32 0.0, %v4657
  %4659 = vmatmul.f32.gmra.mxu0 %v4550
  %v4660 = vpop.f32.mrf.mxu0
  %v4661 = vadd.f32 0.0, %v4660
  %4662 = vmatmul.f32.gmra.mxu0 %v4551
  %v4663 = vpop.f32.mrf.mxu0
  %v4664 = vadd.f32 0.0, %v4663
  %4665 = vmatmul.f32.gmra.mxu0 %v4552
  %v4666 = vpop.f32.mrf.mxu0
  %v4667 = vadd.f32 0.0, %v4666
  %4668 = vmatmul.f32.gmra.mxu0 %v4553
  %v4669 = vpop.f32.mrf.mxu0
  %v4670 = vadd.f32 0.0, %v4669
  %4671 = vmatmul.f32.gmra.mxu0 %v4554
  %v4672 = vpop.f32.mrf.mxu0
  %v4673 = vadd.f32 0.0, %v4672
  %4674 = vmatmul.f32.gmra.mxu0 %v4555
  %v4675 = vpop.f32.mrf.mxu0
  %v4676 = vadd.f32 0.0, %v4675
  %4677 = vmatmul.f32.gmra.mxu0 %v4556
  %v4678 = vpop.f32.mrf.mxu0
  %v4679 = vadd.f32 0.0, %v4678
  %4680 = vmatmul.f32.gmra.mxu0 %v4557
  %v4681 = vpop.f32.mrf.mxu0
  %v4682 = vadd.f32 0.0, %v4681
  %4683 = vmatmul.f32.gmra.mxu0 %v4558
  %v4684 = vpop.f32.mrf.mxu0
  %v4685 = vadd.f32 0.0, %v4684
  %4686 = vmatmul.f32.gmra.mxu0 %v4559
  %v4687 = vpop.f32.mrf.mxu0
  %v4688 = vadd.f32 0.0, %v4687
  %4689 = vmatmul.f32.gmra.mxu0 %v4560
  %v4690 = vpop.f32.mrf.mxu0
  %v4691 = vadd.f32 0.0, %v4690
  %4692 = vmatmul.f32.gmra.mxu0 %v4561
  %v4693 = vpop.f32.mrf.mxu0
  %v4694 = vadd.f32 0.0, %v4693
  %4695 = vmatmul.f32.gmra.mxu0 %v4562
  %v4696 = vpop.f32.mrf.mxu0
  %v4697 = vadd.f32 0.0, %v4696
  %4698 = vmatmul.f32.gmra.mxu0 %v4563
  %v4699 = vpop.f32.mrf.mxu0
  %v4700 = vadd.f32 0.0, %v4699
  %4701 = vmatmul.f32.gmra.mxu0 %v4564
  %v4702 = vpop.f32.mrf.mxu0
  %v4703 = vadd.f32 0.0, %v4702
  %4704 = vmatmul.f32.gmra.mxu0 %v4565
  %v4705 = vpop.f32.mrf.mxu0
  %v4706 = vadd.f32 0.0, %v4705
  %4707 = vmatmul.f32.gmra.mxu0 %v4566
  %v4708 = vpop.f32.mrf.mxu0
  %v4709 = vadd.f32 0.0, %v4708
  %4710 = vmatmul.f32.gmra.mxu0 %v4567
  %v4711 = vpop.f32.mrf.mxu0
  %v4712 = vadd.f32 0.0, %v4711
  %4713 = vmatmul.f32.gmra.mxu0 %v4568
  %v4714 = vpop.f32.mrf.mxu0
  %v4715 = vadd.f32 0.0, %v4714
  %4716 = vmatmul.f32.gmra.mxu0 %v4569
  %v4717 = vpop.f32.mrf.mxu0
  %v4718 = vadd.f32 0.0, %v4717
  %4719 = vmatmul.f32.gmra.mxu0 %v4570
  %v4720 = vpop.f32.mrf.mxu0
  %v4721 = vadd.f32 0.0, %v4720
  %4722 = vmatmul.f32.gmra.mxu0 %v4571
  %v4723 = vpop.f32.mrf.mxu0
  %v4724 = vadd.f32 0.0, %v4723
  %4725 = vmatmul.f32.gmra.mxu0 %v4572
  %v4726 = vpop.f32.mrf.mxu0
  %v4727 = vadd.f32 0.0, %v4726
  %4728 = vmatmul.f32.gmra.mxu0 %v4573
  %v4729 = vpop.f32.mrf.mxu0
  %v4730 = vadd.f32 0.0, %v4729
  %4731 = vmatmul.f32.gmra.mxu0 %v4574
  %v4732 = vpop.f32.mrf.mxu0
  %v4733 = vadd.f32 0.0, %v4732
  %4734 = vmatmul.f32.gmra.mxu0 %v4575
  %v4735 = vpop.f32.mrf.mxu0
  %v4736 = vadd.f32 0.0, %v4735
  %4737 = vmatmul.f32.gmra.mxu0 %v4576
  %v4738 = vpop.f32.mrf.mxu0
  %v4739 = vadd.f32 0.0, %v4738
  %4740 = vmatmul.f32.gmra.mxu0 %v4577
  %v4741 = vpop.f32.mrf.mxu0
  %v4742 = vadd.f32 0.0, %v4741
  %4743 = vmatmul.f32.gmra.mxu0 %v4578
  %v4744 = vpop.f32.mrf.mxu0
  %v4745 = vadd.f32 0.0, %v4744
  %4746 = vmatmul.f32.gmra.mxu0 %v4579
  %v4747 = vpop.f32.mrf.mxu0
  %v4748 = vadd.f32 0.0, %v4747
  %4749 = vmatmul.f32.gmra.mxu0 %v4580
  %v4750 = vpop.f32.mrf.mxu0
  %v4751 = vadd.f32 0.0, %v4750
  %4752 = vmatmul.f32.gmra.mxu0 %v4581
  %v4753 = vpop.f32.mrf.mxu0
  %v4754 = vadd.f32 0.0, %v4753
  %4755 = vmatmul.f32.gmra.mxu0 %v4582
  %v4756 = vpop.f32.mrf.mxu0
  %v4757 = vadd.f32 0.0, %v4756
  %4758 = vmatmul.f32.gmra.mxu0 %v4583
  %v4759 = vpop.f32.mrf.mxu0
  %v4760 = vadd.f32 0.0, %v4759
  %4761 = vmatmul.f32.gmra.mxu0 %v4584
  %v4762 = vpop.f32.mrf.mxu0
  %v4763 = vadd.f32 0.0, %v4762
  %4764 = vmatmul.f32.gmra.mxu0 %v4585
  %v4765 = vpop.f32.mrf.mxu0
  %v4766 = vadd.f32 0.0, %v4765
  %4767 = vmatmul.f32.gmra.mxu0 %v4586
  %v4768 = vpop.f32.mrf.mxu0
  %v4769 = vadd.f32 0.0, %v4768
  %4770 = vmatmul.f32.gmra.mxu0 %v4587
  %v4771 = vpop.f32.mrf.mxu0
  %v4772 = vadd.f32 0.0, %v4771
  %4773 = vmatmul.f32.gmra.mxu0 %v4588
  %v4774 = vpop.f32.mrf.mxu0
  %v4775 = vadd.f32 0.0, %v4774
  %4776 = vmatmul.f32.gmra.mxu0 %v4589
  %v4777 = vpop.f32.mrf.mxu0
  %v4778 = vadd.f32 0.0, %v4777
  %4779 = vmatmul.f32.gmra.mxu0 %v4590
  %v4780 = vpop.f32.mrf.mxu0
  %v4781 = vadd.f32 0.0, %v4780
  %4782 = vmatmul.f32.gmra.mxu0 %v4591
  %v4783 = vpop.f32.mrf.mxu0
  %v4784 = vadd.f32 0.0, %v4783
  %4785 = vmatmul.f32.gmra.mxu0 %v4592
  %v4786 = vpop.f32.mrf.mxu0
  %v4787 = vadd.f32 0.0, %v4786
  %4788 = vmatmul.f32.gmra.mxu0 %v4593
  %v4789 = vpop.f32.mrf.mxu0
  %v4790 = vadd.f32 0.0, %v4789
  %4791 = vmatmul.f32.gmra.mxu0 %v4594
  %v4792 = vpop.f32.mrf.mxu0
  %v4793 = vadd.f32 0.0, %v4792
  %4794 = vmatmul.f32.gmra.mxu0 %v4595
  %v4795 = vpop.f32.mrf.mxu0
  %v4796 = vadd.f32 0.0, %v4795
  %4797 = vmatmul.f32.gmra.mxu0 %v4596
  %v4798 = vpop.f32.mrf.mxu0
  %v4799 = vadd.f32 0.0, %v4798
  %4800 = vmatmul.f32.gmra.mxu0 %v4597
  %v4801 = vpop.f32.mrf.mxu0
  %v4802 = vadd.f32 0.0, %v4801
  %4803 = vmatmul.f32.gmra.mxu0 %v4598
  %v4804 = vpop.f32.mrf.mxu0
  %v4805 = vadd.f32 0.0, %v4804
  %4806 = vmatmul.f32.gmra.mxu0 %v4599
  %v4807 = vpop.f32.mrf.mxu0
  %v4808 = vadd.f32 0.0, %v4807
  %4809 = vmatmul.f32.gmra.mxu0 %v4600
  %v4810 = vpop.f32.mrf.mxu0
  %v4811 = vadd.f32 0.0, %v4810
  %4812 = vmatmul.f32.gmra.mxu0 %v4601
  %v4813 = vpop.f32.mrf.mxu0
  %v4814 = vadd.f32 0.0, %v4813
  %4815 = vmatmul.f32.gmra.mxu0 %v4602
  %v4816 = vpop.f32.mrf.mxu0
  %v4817 = vadd.f32 0.0, %v4816
  %4818 = vmatmul.f32.gmra.mxu0 %v4603
  %v4819 = vpop.f32.mrf.mxu0
  %v4820 = vadd.f32 0.0, %v4819
  %4821 = vmatmul.f32.gmra.mxu0 %v4604
  %v4822 = vpop.f32.mrf.mxu0
  %v4823 = vadd.f32 0.0, %v4822
  %4824 = vmatmul.f32.gmra.mxu0 %v4605
  %v4825 = vpop.f32.mrf.mxu0
  %v4826 = vadd.f32 0.0, %v4825
  %4827 = vmatmul.f32.gmra.mxu0 %v4606
  %v4828 = vpop.f32.mrf.mxu0
  %v4829 = vadd.f32 0.0, %v4828
  %4830 = vmatmul.f32.gmra.mxu0 %v4607
  %v4831 = vpop.f32.mrf.mxu0
  %v4832 = vadd.f32 0.0, %v4831
  %4833 = vdwg.mxu0
  %v4834 = vadd.f32 %v4353, %v4643
  %v4835 = vadd.f32 %v4356, %v4646
  %v4836 = vadd.f32 %v4359, %v4649
  %v4837 = vadd.f32 %v4362, %v4652
  %v4838 = vadd.f32 %v4365, %v4655
  %v4839 = vadd.f32 %v4368, %v4658
  %v4840 = vadd.f32 %v4371, %v4661
  %v4841 = vadd.f32 %v4374, %v4664
  %v4842 = vadd.f32 %v4377, %v4667
  %v4843 = vadd.f32 %v4380, %v4670
  %v4844 = vadd.f32 %v4383, %v4673
  %v4845 = vadd.f32 %v4386, %v4676
  %v4846 = vadd.f32 %v4389, %v4679
  %v4847 = vadd.f32 %v4392, %v4682
  %v4848 = vadd.f32 %v4395, %v4685
  %v4849 = vadd.f32 %v4398, %v4688
  %v4850 = vadd.f32 %v4401, %v4691
  %v4851 = vadd.f32 %v4404, %v4694
  %v4852 = vadd.f32 %v4407, %v4697
  %v4853 = vadd.f32 %v4410, %v4700
  %v4854 = vadd.f32 %v4413, %v4703
  %v4855 = vadd.f32 %v4416, %v4706
  %v4856 = vadd.f32 %v4419, %v4709
  %v4857 = vadd.f32 %v4422, %v4712
  %v4858 = vadd.f32 %v4425, %v4715
  %v4859 = vadd.f32 %v4428, %v4718
  %v4860 = vadd.f32 %v4431, %v4721
  %v4861 = vadd.f32 %v4434, %v4724
  %v4862 = vadd.f32 %v4437, %v4727
  %v4863 = vadd.f32 %v4440, %v4730
  %v4864 = vadd.f32 %v4443, %v4733
  %v4865 = vadd.f32 %v4446, %v4736
  %v4866 = vadd.f32 %v4449, %v4739
  %v4867 = vadd.f32 %v4452, %v4742
  %v4868 = vadd.f32 %v4455, %v4745
  %v4869 = vadd.f32 %v4458, %v4748
  %v4870 = vadd.f32 %v4461, %v4751
  %v4871 = vadd.f32 %v4464, %v4754
  %v4872 = vadd.f32 %v4467, %v4757
  %v4873 = vadd.f32 %v4470, %v4760
  %v4874 = vadd.f32 %v4473, %v4763
  %v4875 = vadd.f32 %v4476, %v4766
  %v4876 = vadd.f32 %v4479, %v4769
  %v4877 = vadd.f32 %v4482, %v4772
  %v4878 = vadd.f32 %v4485, %v4775
  %v4879 = vadd.f32 %v4488, %v4778
  %v4880 = vadd.f32 %v4491, %v4781
  %v4881 = vadd.f32 %v4494, %v4784
  %v4882 = vadd.f32 %v4497, %v4787
  %v4883 = vadd.f32 %v4500, %v4790
  %v4884 = vadd.f32 %v4503, %v4793
  %v4885 = vadd.f32 %v4506, %v4796
  %v4886 = vadd.f32 %v4509, %v4799
  %v4887 = vadd.f32 %v4512, %v4802
  %v4888 = vadd.f32 %v4515, %v4805
  %v4889 = vadd.f32 %v4518, %v4808
  %v4890 = vadd.f32 %v4521, %v4811
  %v4891 = vadd.f32 %v4524, %v4814
  %v4892 = vadd.f32 %v4527, %v4817
  %v4893 = vadd.f32 %v4530, %v4820
  %v4894 = vadd.f32 %v4533, %v4823
  %v4895 = vadd.f32 %v4536, %v4826
  %v4896 = vadd.f32 %v4539, %v4829
  %v4897 = vadd.f32 %v4542, %v4832
  %v4898 = vld [vmem:[%s234 + $0x7] sm:$0xff]
  %v4899 = vld [vmem:[%s234 + $0xf] sm:$0xff]
  %v4900 = vld [vmem:[%s234 + $0x27] sm:$0xff]
  %v4901 = vld [vmem:[%s234 + $0x2f] sm:$0xff]
  %v4902 = vld [vmem:[%s234 + $0x47] sm:$0xff]
  %v4903 = vld [vmem:[%s234 + $0x4f] sm:$0xff]
  %v4904 = vld [vmem:[%s234 + $0x67] sm:$0xff]
  %v4905 = vld [vmem:[%s234 + $0x6f] sm:$0xff]
  %v4906 = vld [vmem:[%s234 + $0x87] sm:$0xff]
  %v4907 = vld [vmem:[%s234 + $0x8f] sm:$0xff]
  %v4908 = vld [vmem:[%s234 + $0xa7] sm:$0xff]
  %v4909 = vld [vmem:[%s234 + $0xaf] sm:$0xff]
  %v4910 = vld [vmem:[%s234 + $0xc7] sm:$0xff]
  %v4911 = vld [vmem:[%s234 + $0xcf] sm:$0xff]
  %v4912 = vld [vmem:[%s234 + $0xe7] sm:$0xff]
  %v4913 = vld [vmem:[%s234 + $0xef] sm:$0xff]
  %v4914 = vld [vmem:[%s234 + $0x107] sm:$0xff]
  %v4915 = vld [vmem:[%s234 + $0x10f] sm:$0xff]
  %v4916 = vld [vmem:[%s234 + $0x127] sm:$0xff]
  %v4917 = vld [vmem:[%s234 + $0x12f] sm:$0xff]
  %v4918 = vld [vmem:[%s234 + $0x147] sm:$0xff]
  %v4919 = vld [vmem:[%s234 + $0x14f] sm:$0xff]
  %v4920 = vld [vmem:[%s234 + $0x167] sm:$0xff]
  %v4921 = vld [vmem:[%s234 + $0x16f] sm:$0xff]
  %v4922 = vld [vmem:[%s234 + $0x187] sm:$0xff]
  %v4923 = vld [vmem:[%s234 + $0x18f] sm:$0xff]
  %v4924 = vld [vmem:[%s234 + $0x1a7] sm:$0xff]
  %v4925 = vld [vmem:[%s234 + $0x1af] sm:$0xff]
  %v4926 = vld [vmem:[%s234 + $0x1c7] sm:$0xff]
  %v4927 = vld [vmem:[%s234 + $0x1cf] sm:$0xff]
  %v4928 = vld [vmem:[%s234 + $0x1e7] sm:$0xff]
  %v4929 = vld [vmem:[%s234 + $0x1ef] sm:$0xff]
  %v4930 = vld [vmem:[%s234 + $0x247] sm:$0xff]
  %v4931 = vld [vmem:[%s234 + $0x24f] sm:$0xff]
  %v4932 = vld [vmem:[%s234 + $0x267] sm:$0xff]
  %v4933 = vld [vmem:[%s234 + $0x26f] sm:$0xff]
  %v4934 = vld [vmem:[%s234 + $0x287] sm:$0xff]
  %v4935 = vld [vmem:[%s234 + $0x28f] sm:$0xff]
  %v4936 = vld [vmem:[%s234 + $0x2a7] sm:$0xff]
  %v4937 = vld [vmem:[%s234 + $0x2af] sm:$0xff]
  %v4938 = vld [vmem:[%s234 + $0x2c7] sm:$0xff]
  %v4939 = vld [vmem:[%s234 + $0x2cf] sm:$0xff]
  %v4940 = vld [vmem:[%s234 + $0x2e7] sm:$0xff]
  %v4941 = vld [vmem:[%s234 + $0x2ef] sm:$0xff]
  %v4942 = vld [vmem:[%s234 + $0x307] sm:$0xff]
  %v4943 = vld [vmem:[%s234 + $0x30f] sm:$0xff]
  %v4944 = vld [vmem:[%s234 + $0x327] sm:$0xff]
  %v4945 = vld [vmem:[%s234 + $0x32f] sm:$0xff]
  %v4946 = vld [vmem:[%s234 + $0x347] sm:$0xff]
  %v4947 = vld [vmem:[%s234 + $0x34f] sm:$0xff]
  %v4948 = vld [vmem:[%s234 + $0x367] sm:$0xff]
  %v4949 = vld [vmem:[%s234 + $0x36f] sm:$0xff]
  %v4950 = vld [vmem:[%s234 + $0x387] sm:$0xff]
  %v4951 = vld [vmem:[%s234 + $0x38f] sm:$0xff]
  %v4952 = vld [vmem:[%s234 + $0x3a7] sm:$0xff]
  %v4953 = vld [vmem:[%s234 + $0x3af] sm:$0xff]
  %v4954 = vld [vmem:[%s234 + $0x3c7] sm:$0xff]
  %v4955 = vld [vmem:[%s234 + $0x3cf] sm:$0xff]
  %v4956 = vld [vmem:[%s234 + $0x3e7] sm:$0xff]
  %v4957 = vld [vmem:[%s234 + $0x3ef] sm:$0xff]
  %v4958 = vld [vmem:[%s234 + $0x407] sm:$0xff]
  %v4959 = vld [vmem:[%s234 + $0x40f] sm:$0xff]
  %v4960 = vld [vmem:[%s234 + $0x427] sm:$0xff]
  %v4961 = vld [vmem:[%s234 + $0x42f] sm:$0xff]
  %s4962 = scalar_lea.vmem %s4, 384
  %v4963 = vld [vmem:[%s4962] sm:$0xff]
  %v4964 = vld [vmem:[%s4962 + $0x8] sm:$0xff]
  %v4965 = vld [vmem:[%s4962 + $0x10] sm:$0xff]
  %v4966 = vld [vmem:[%s4962 + $0x18] sm:$0xff]
  %v4967 = vld [vmem:[%s4962 + $0x20] sm:$0xff]
  %v4968 = vld [vmem:[%s4962 + $0x28] sm:$0xff]
  %v4969 = vld [vmem:[%s4962 + $0x30] sm:$0xff]
  %v4970 = vld [vmem:[%s4962 + $0x38] sm:$0xff]
  %v4971 = vld [vmem:[%s4962 + $0x40] sm:$0xff]
  %v4972 = vld [vmem:[%s4962 + $0x48] sm:$0xff]
  %v4973 = vld [vmem:[%s4962 + $0x50] sm:$0xff]
  %v4974 = vld [vmem:[%s4962 + $0x58] sm:$0xff]
  %v4975 = vld [vmem:[%s4962 + $0x60] sm:$0xff]
  %v4976 = vld [vmem:[%s4962 + $0x68] sm:$0xff]
  %v4977 = vld [vmem:[%s4962 + $0x70] sm:$0xff]
  %v4978 = vld [vmem:[%s4962 + $0x78] sm:$0xff]
  %4979 = vmatpush.msra.mxu0 %v4978
  %4980 = vmatpush.msra.mxu0 %v4977
  %4981 = vmatpush.msra.mxu0 %v4976
  %4982 = vmatpush.msra.mxu0 %v4975
  %4983 = vmatpush.msra.mxu0 %v4974
  %4984 = vmatpush.msra.mxu0 %v4973
  %4985 = vmatpush.msra.mxu0 %v4972
  %4986 = vmatpush.msra.mxu0 %v4971
  %4987 = vmatpush.msra.mxu0 %v4970
  %4988 = vmatpush.msra.mxu0 %v4969
  %4989 = vmatpush.msra.mxu0 %v4968
  %4990 = vmatpush.msra.mxu0 %v4967
  %4991 = vmatpush.msra.mxu0 %v4966
  %4992 = vmatpush.msra.mxu0 %v4965
  %4993 = vmatpush.msra.mxu0 %v4964
  %4994 = vmatpush.msra.mxu0 %v4963
  %4995 = vmatmul.f32.gmra.mxu0 %v4898
  %v4996 = vpop.f32.mrf.mxu0
  %v4997 = vadd.f32 0.0, %v4996
  %4998 = vmatmul.f32.gmra.mxu0 %v4899
  %v4999 = vpop.f32.mrf.mxu0
  %v5000 = vadd.f32 0.0, %v4999
  %5001 = vmatmul.f32.gmra.mxu0 %v4900
  %v5002 = vpop.f32.mrf.mxu0
  %v5003 = vadd.f32 0.0, %v5002
  %5004 = vmatmul.f32.gmra.mxu0 %v4901
  %v5005 = vpop.f32.mrf.mxu0
  %v5006 = vadd.f32 0.0, %v5005
  %5007 = vmatmul.f32.gmra.mxu0 %v4902
  %v5008 = vpop.f32.mrf.mxu0
  %v5009 = vadd.f32 0.0, %v5008
  %5010 = vmatmul.f32.gmra.mxu0 %v4903
  %v5011 = vpop.f32.mrf.mxu0
  %v5012 = vadd.f32 0.0, %v5011
  %5013 = vmatmul.f32.gmra.mxu0 %v4904
  %v5014 = vpop.f32.mrf.mxu0
  %v5015 = vadd.f32 0.0, %v5014
  %5016 = vmatmul.f32.gmra.mxu0 %v4905
  %v5017 = vpop.f32.mrf.mxu0
  %v5018 = vadd.f32 0.0, %v5017
  %5019 = vmatmul.f32.gmra.mxu0 %v4906
  %v5020 = vpop.f32.mrf.mxu0
  %v5021 = vadd.f32 0.0, %v5020
  %5022 = vmatmul.f32.gmra.mxu0 %v4907
  %v5023 = vpop.f32.mrf.mxu0
  %v5024 = vadd.f32 0.0, %v5023
  %5025 = vmatmul.f32.gmra.mxu0 %v4908
  %v5026 = vpop.f32.mrf.mxu0
  %v5027 = vadd.f32 0.0, %v5026
  %5028 = vmatmul.f32.gmra.mxu0 %v4909
  %v5029 = vpop.f32.mrf.mxu0
  %v5030 = vadd.f32 0.0, %v5029
  %5031 = vmatmul.f32.gmra.mxu0 %v4910
  %v5032 = vpop.f32.mrf.mxu0
  %v5033 = vadd.f32 0.0, %v5032
  %5034 = vmatmul.f32.gmra.mxu0 %v4911
  %v5035 = vpop.f32.mrf.mxu0
  %v5036 = vadd.f32 0.0, %v5035
  %5037 = vmatmul.f32.gmra.mxu0 %v4912
  %v5038 = vpop.f32.mrf.mxu0
  %v5039 = vadd.f32 0.0, %v5038
  %5040 = vmatmul.f32.gmra.mxu0 %v4913
  %v5041 = vpop.f32.mrf.mxu0
  %v5042 = vadd.f32 0.0, %v5041
  %5043 = vmatmul.f32.gmra.mxu0 %v4914
  %v5044 = vpop.f32.mrf.mxu0
  %v5045 = vadd.f32 0.0, %v5044
  %5046 = vmatmul.f32.gmra.mxu0 %v4915
  %v5047 = vpop.f32.mrf.mxu0
  %v5048 = vadd.f32 0.0, %v5047
  %5049 = vmatmul.f32.gmra.mxu0 %v4916
  %v5050 = vpop.f32.mrf.mxu0
  %v5051 = vadd.f32 0.0, %v5050
  %5052 = vmatmul.f32.gmra.mxu0 %v4917
  %v5053 = vpop.f32.mrf.mxu0
  %v5054 = vadd.f32 0.0, %v5053
  %5055 = vmatmul.f32.gmra.mxu0 %v4918
  %v5056 = vpop.f32.mrf.mxu0
  %v5057 = vadd.f32 0.0, %v5056
  %5058 = vmatmul.f32.gmra.mxu0 %v4919
  %v5059 = vpop.f32.mrf.mxu0
  %v5060 = vadd.f32 0.0, %v5059
  %5061 = vmatmul.f32.gmra.mxu0 %v4920
  %v5062 = vpop.f32.mrf.mxu0
  %v5063 = vadd.f32 0.0, %v5062
  %5064 = vmatmul.f32.gmra.mxu0 %v4921
  %v5065 = vpop.f32.mrf.mxu0
  %v5066 = vadd.f32 0.0, %v5065
  %5067 = vmatmul.f32.gmra.mxu0 %v4922
  %v5068 = vpop.f32.mrf.mxu0
  %v5069 = vadd.f32 0.0, %v5068
  %5070 = vmatmul.f32.gmra.mxu0 %v4923
  %v5071 = vpop.f32.mrf.mxu0
  %v5072 = vadd.f32 0.0, %v5071
  %5073 = vmatmul.f32.gmra.mxu0 %v4924
  %v5074 = vpop.f32.mrf.mxu0
  %v5075 = vadd.f32 0.0, %v5074
  %5076 = vmatmul.f32.gmra.mxu0 %v4925
  %v5077 = vpop.f32.mrf.mxu0
  %v5078 = vadd.f32 0.0, %v5077
  %5079 = vmatmul.f32.gmra.mxu0 %v4926
  %v5080 = vpop.f32.mrf.mxu0
  %v5081 = vadd.f32 0.0, %v5080
  %5082 = vmatmul.f32.gmra.mxu0 %v4927
  %v5083 = vpop.f32.mrf.mxu0
  %v5084 = vadd.f32 0.0, %v5083
  %5085 = vmatmul.f32.gmra.mxu0 %v4928
  %v5086 = vpop.f32.mrf.mxu0
  %v5087 = vadd.f32 0.0, %v5086
  %5088 = vmatmul.f32.gmra.mxu0 %v4929
  %v5089 = vpop.f32.mrf.mxu0
  %v5090 = vadd.f32 0.0, %v5089
  %5091 = vmatmul.f32.gmra.mxu0 %v4930
  %v5092 = vpop.f32.mrf.mxu0
  %v5093 = vadd.f32 0.0, %v5092
  %5094 = vmatmul.f32.gmra.mxu0 %v4931
  %v5095 = vpop.f32.mrf.mxu0
  %v5096 = vadd.f32 0.0, %v5095
  %5097 = vmatmul.f32.gmra.mxu0 %v4932
  %v5098 = vpop.f32.mrf.mxu0
  %v5099 = vadd.f32 0.0, %v5098
  %5100 = vmatmul.f32.gmra.mxu0 %v4933
  %v5101 = vpop.f32.mrf.mxu0
  %v5102 = vadd.f32 0.0, %v5101
  %5103 = vmatmul.f32.gmra.mxu0 %v4934
  %v5104 = vpop.f32.mrf.mxu0
  %v5105 = vadd.f32 0.0, %v5104
  %5106 = vmatmul.f32.gmra.mxu0 %v4935
  %v5107 = vpop.f32.mrf.mxu0
  %v5108 = vadd.f32 0.0, %v5107
  %5109 = vmatmul.f32.gmra.mxu0 %v4936
  %v5110 = vpop.f32.mrf.mxu0
  %v5111 = vadd.f32 0.0, %v5110
  %5112 = vmatmul.f32.gmra.mxu0 %v4937
  %v5113 = vpop.f32.mrf.mxu0
  %v5114 = vadd.f32 0.0, %v5113
  %5115 = vmatmul.f32.gmra.mxu0 %v4938
  %v5116 = vpop.f32.mrf.mxu0
  %v5117 = vadd.f32 0.0, %v5116
  %5118 = vmatmul.f32.gmra.mxu0 %v4939
  %v5119 = vpop.f32.mrf.mxu0
  %v5120 = vadd.f32 0.0, %v5119
  %5121 = vmatmul.f32.gmra.mxu0 %v4940
  %v5122 = vpop.f32.mrf.mxu0
  %v5123 = vadd.f32 0.0, %v5122
  %5124 = vmatmul.f32.gmra.mxu0 %v4941
  %v5125 = vpop.f32.mrf.mxu0
  %v5126 = vadd.f32 0.0, %v5125
  %5127 = vmatmul.f32.gmra.mxu0 %v4942
  %v5128 = vpop.f32.mrf.mxu0
  %v5129 = vadd.f32 0.0, %v5128
  %5130 = vmatmul.f32.gmra.mxu0 %v4943
  %v5131 = vpop.f32.mrf.mxu0
  %v5132 = vadd.f32 0.0, %v5131
  %5133 = vmatmul.f32.gmra.mxu0 %v4944
  %v5134 = vpop.f32.mrf.mxu0
  %v5135 = vadd.f32 0.0, %v5134
  %5136 = vmatmul.f32.gmra.mxu0 %v4945
  %v5137 = vpop.f32.mrf.mxu0
  %v5138 = vadd.f32 0.0, %v5137
  %5139 = vmatmul.f32.gmra.mxu0 %v4946
  %v5140 = vpop.f32.mrf.mxu0
  %v5141 = vadd.f32 0.0, %v5140
  %5142 = vmatmul.f32.gmra.mxu0 %v4947
  %v5143 = vpop.f32.mrf.mxu0
  %v5144 = vadd.f32 0.0, %v5143
  %5145 = vmatmul.f32.gmra.mxu0 %v4948
  %v5146 = vpop.f32.mrf.mxu0
  %v5147 = vadd.f32 0.0, %v5146
  %5148 = vmatmul.f32.gmra.mxu0 %v4949
  %v5149 = vpop.f32.mrf.mxu0
  %v5150 = vadd.f32 0.0, %v5149
  %5151 = vmatmul.f32.gmra.mxu0 %v4950
  %v5152 = vpop.f32.mrf.mxu0
  %v5153 = vadd.f32 0.0, %v5152
  %5154 = vmatmul.f32.gmra.mxu0 %v4951
  %v5155 = vpop.f32.mrf.mxu0
  %v5156 = vadd.f32 0.0, %v5155
  %5157 = vmatmul.f32.gmra.mxu0 %v4952
  %v5158 = vpop.f32.mrf.mxu0
  %v5159 = vadd.f32 0.0, %v5158
  %5160 = vmatmul.f32.gmra.mxu0 %v4953
  %v5161 = vpop.f32.mrf.mxu0
  %v5162 = vadd.f32 0.0, %v5161
  %5163 = vmatmul.f32.gmra.mxu0 %v4954
  %v5164 = vpop.f32.mrf.mxu0
  %v5165 = vadd.f32 0.0, %v5164
  %5166 = vmatmul.f32.gmra.mxu0 %v4955
  %v5167 = vpop.f32.mrf.mxu0
  %v5168 = vadd.f32 0.0, %v5167
  %5169 = vmatmul.f32.gmra.mxu0 %v4956
  %v5170 = vpop.f32.mrf.mxu0
  %v5171 = vadd.f32 0.0, %v5170
  %5172 = vmatmul.f32.gmra.mxu0 %v4957
  %v5173 = vpop.f32.mrf.mxu0
  %v5174 = vadd.f32 0.0, %v5173
  %5175 = vmatmul.f32.gmra.mxu0 %v4958
  %v5176 = vpop.f32.mrf.mxu0
  %v5177 = vadd.f32 0.0, %v5176
  %5178 = vmatmul.f32.gmra.mxu0 %v4959
  %v5179 = vpop.f32.mrf.mxu0
  %v5180 = vadd.f32 0.0, %v5179
  %5181 = vmatmul.f32.gmra.mxu0 %v4960
  %v5182 = vpop.f32.mrf.mxu0
  %v5183 = vadd.f32 0.0, %v5182
  %5184 = vmatmul.f32.gmra.mxu0 %v4961
  %v5185 = vpop.f32.mrf.mxu0
  %v5186 = vadd.f32 0.0, %v5185
  %5187 = vdwg.mxu0
  %v5188 = vadd.f32 %v4834, %v4997
  %v5189 = vadd.f32 %v4835, %v5000
  %v5190 = vadd.f32 %v4836, %v5003
  %v5191 = vadd.f32 %v4837, %v5006
  %v5192 = vadd.f32 %v4838, %v5009
  %v5193 = vadd.f32 %v4839, %v5012
  %v5194 = vadd.f32 %v4840, %v5015
  %v5195 = vadd.f32 %v4841, %v5018
  %v5196 = vadd.f32 %v4842, %v5021
  %v5197 = vadd.f32 %v4843, %v5024
  %v5198 = vadd.f32 %v4844, %v5027
  %v5199 = vadd.f32 %v4845, %v5030
  %v5200 = vadd.f32 %v4846, %v5033
  %v5201 = vadd.f32 %v4847, %v5036
  %v5202 = vadd.f32 %v4848, %v5039
  %v5203 = vadd.f32 %v4849, %v5042
  %v5204 = vadd.f32 %v4850, %v5045
  %v5205 = vadd.f32 %v4851, %v5048
  %v5206 = vadd.f32 %v4852, %v5051
  %v5207 = vadd.f32 %v4853, %v5054
  %v5208 = vadd.f32 %v4854, %v5057
  %v5209 = vadd.f32 %v4855, %v5060
  %v5210 = vadd.f32 %v4856, %v5063
  %v5211 = vadd.f32 %v4857, %v5066
  %v5212 = vadd.f32 %v4858, %v5069
  %v5213 = vadd.f32 %v4859, %v5072
  %v5214 = vadd.f32 %v4860, %v5075
  %v5215 = vadd.f32 %v4861, %v5078
  %v5216 = vadd.f32 %v4862, %v5081
  %v5217 = vadd.f32 %v4863, %v5084
  %v5218 = vadd.f32 %v4864, %v5087
  %v5219 = vadd.f32 %v4865, %v5090
  %v5220 = vadd.f32 %v4866, %v5093
  %v5221 = vadd.f32 %v4867, %v5096
  %v5222 = vadd.f32 %v4868, %v5099
  %v5223 = vadd.f32 %v4869, %v5102
  %v5224 = vadd.f32 %v4870, %v5105
  %v5225 = vadd.f32 %v4871, %v5108
  %v5226 = vadd.f32 %v4872, %v5111
  %v5227 = vadd.f32 %v4873, %v5114
  %v5228 = vadd.f32 %v4874, %v5117
  %v5229 = vadd.f32 %v4875, %v5120
  %v5230 = vadd.f32 %v4876, %v5123
  %v5231 = vadd.f32 %v4877, %v5126
  %v5232 = vadd.f32 %v4878, %v5129
  %v5233 = vadd.f32 %v4879, %v5132
  %v5234 = vadd.f32 %v4880, %v5135
  %v5235 = vadd.f32 %v4881, %v5138
  %v5236 = vadd.f32 %v4882, %v5141
  %v5237 = vadd.f32 %v4883, %v5144
  %v5238 = vadd.f32 %v4884, %v5147
  %v5239 = vadd.f32 %v4885, %v5150
  %v5240 = vadd.f32 %v4886, %v5153
  %v5241 = vadd.f32 %v4887, %v5156
  %v5242 = vadd.f32 %v4888, %v5159
  %v5243 = vadd.f32 %v4889, %v5162
  %v5244 = vadd.f32 %v4890, %v5165
  %v5245 = vadd.f32 %v4891, %v5168
  %v5246 = vadd.f32 %v4892, %v5171
  %v5247 = vadd.f32 %v4893, %v5174
  %v5248 = vadd.f32 %v4894, %v5177
  %v5249 = vadd.f32 %v4895, %v5180
  %v5250 = vadd.f32 %v4896, %v5183
  %v5251 = vadd.f32 %v4897, %v5186
  %v5252 = vld [vmem:[%s234 + $0x8] sm:$0xff]
  %v5253 = vld [vmem:[%s234 + $0x10] sm:$0xff]
  %v5254 = vld [vmem:[%s234 + $0x28] sm:$0xff]
  %v5255 = vld [vmem:[%s234 + $0x30] sm:$0xff]
  %v5256 = vld [vmem:[%s234 + $0x48] sm:$0xff]
  %v5257 = vld [vmem:[%s234 + $0x50] sm:$0xff]
  %v5258 = vld [vmem:[%s234 + $0x68] sm:$0xff]
  %v5259 = vld [vmem:[%s234 + $0x70] sm:$0xff]
  %v5260 = vld [vmem:[%s234 + $0x88] sm:$0xff]
  %v5261 = vld [vmem:[%s234 + $0x90] sm:$0xff]
  %v5262 = vld [vmem:[%s234 + $0xa8] sm:$0xff]
  %v5263 = vld [vmem:[%s234 + $0xb0] sm:$0xff]
  %v5264 = vld [vmem:[%s234 + $0xc8] sm:$0xff]
  %v5265 = vld [vmem:[%s234 + $0xd0] sm:$0xff]
  %v5266 = vld [vmem:[%s234 + $0xe8] sm:$0xff]
  %v5267 = vld [vmem:[%s234 + $0xf0] sm:$0xff]
  %v5268 = vld [vmem:[%s234 + $0x108] sm:$0xff]
  %v5269 = vld [vmem:[%s234 + $0x110] sm:$0xff]
  %v5270 = vld [vmem:[%s234 + $0x128] sm:$0xff]
  %v5271 = vld [vmem:[%s234 + $0x130] sm:$0xff]
  %v5272 = vld [vmem:[%s234 + $0x148] sm:$0xff]
  %v5273 = vld [vmem:[%s234 + $0x150] sm:$0xff]
  %v5274 = vld [vmem:[%s234 + $0x168] sm:$0xff]
  %v5275 = vld [vmem:[%s234 + $0x170] sm:$0xff]
  %v5276 = vld [vmem:[%s234 + $0x188] sm:$0xff]
  %v5277 = vld [vmem:[%s234 + $0x190] sm:$0xff]
  %v5278 = vld [vmem:[%s234 + $0x1a8] sm:$0xff]
  %v5279 = vld [vmem:[%s234 + $0x1b0] sm:$0xff]
  %v5280 = vld [vmem:[%s234 + $0x1c8] sm:$0xff]
  %v5281 = vld [vmem:[%s234 + $0x1d0] sm:$0xff]
  %v5282 = vld [vmem:[%s234 + $0x1e8] sm:$0xff]
  %v5283 = vld [vmem:[%s234 + $0x1f0] sm:$0xff]
  %v5284 = vld [vmem:[%s234 + $0x248] sm:$0xff]
  %v5285 = vld [vmem:[%s234 + $0x250] sm:$0xff]
  %v5286 = vld [vmem:[%s234 + $0x268] sm:$0xff]
  %v5287 = vld [vmem:[%s234 + $0x270] sm:$0xff]
  %v5288 = vld [vmem:[%s234 + $0x288] sm:$0xff]
  %v5289 = vld [vmem:[%s234 + $0x290] sm:$0xff]
  %v5290 = vld [vmem:[%s234 + $0x2a8] sm:$0xff]
  %v5291 = vld [vmem:[%s234 + $0x2b0] sm:$0xff]
  %v5292 = vld [vmem:[%s234 + $0x2c8] sm:$0xff]
  %v5293 = vld [vmem:[%s234 + $0x2d0] sm:$0xff]
  %v5294 = vld [vmem:[%s234 + $0x2e8] sm:$0xff]
  %v5295 = vld [vmem:[%s234 + $0x2f0] sm:$0xff]
  %v5296 = vld [vmem:[%s234 + $0x308] sm:$0xff]
  %v5297 = vld [vmem:[%s234 + $0x310] sm:$0xff]
  %v5298 = vld [vmem:[%s234 + $0x328] sm:$0xff]
  %v5299 = vld [vmem:[%s234 + $0x330] sm:$0xff]
  %v5300 = vld [vmem:[%s234 + $0x348] sm:$0xff]
  %v5301 = vld [vmem:[%s234 + $0x350] sm:$0xff]
  %v5302 = vld [vmem:[%s234 + $0x368] sm:$0xff]
  %v5303 = vld [vmem:[%s234 + $0x370] sm:$0xff]
  %v5304 = vld [vmem:[%s234 + $0x388] sm:$0xff]
  %v5305 = vld [vmem:[%s234 + $0x390] sm:$0xff]
  %v5306 = vld [vmem:[%s234 + $0x3a8] sm:$0xff]
  %v5307 = vld [vmem:[%s234 + $0x3b0] sm:$0xff]
  %v5308 = vld [vmem:[%s234 + $0x3c8] sm:$0xff]
  %v5309 = vld [vmem:[%s234 + $0x3d0] sm:$0xff]
  %v5310 = vld [vmem:[%s234 + $0x3e8] sm:$0xff]
  %v5311 = vld [vmem:[%s234 + $0x3f0] sm:$0xff]
  %v5312 = vld [vmem:[%s234 + $0x408] sm:$0xff]
  %v5313 = vld [vmem:[%s234 + $0x410] sm:$0xff]
  %v5314 = vld [vmem:[%s234 + $0x428] sm:$0xff]
  %v5315 = vld [vmem:[%s234 + $0x430] sm:$0xff]
  %s5316 = scalar_lea.vmem %s4, 512
  %v5317 = vld [vmem:[%s5316] sm:$0xff]
  %v5318 = vld [vmem:[%s5316 + $0x8] sm:$0xff]
  %v5319 = vld [vmem:[%s5316 + $0x10] sm:$0xff]
  %v5320 = vld [vmem:[%s5316 + $0x18] sm:$0xff]
  %v5321 = vld [vmem:[%s5316 + $0x20] sm:$0xff]
  %v5322 = vld [vmem:[%s5316 + $0x28] sm:$0xff]
  %v5323 = vld [vmem:[%s5316 + $0x30] sm:$0xff]
  %v5324 = vld [vmem:[%s5316 + $0x38] sm:$0xff]
  %v5325 = vld [vmem:[%s5316 + $0x40] sm:$0xff]
  %v5326 = vld [vmem:[%s5316 + $0x48] sm:$0xff]
  %v5327 = vld [vmem:[%s5316 + $0x50] sm:$0xff]
  %v5328 = vld [vmem:[%s5316 + $0x58] sm:$0xff]
  %v5329 = vld [vmem:[%s5316 + $0x60] sm:$0xff]
  %v5330 = vld [vmem:[%s5316 + $0x68] sm:$0xff]
  %v5331 = vld [vmem:[%s5316 + $0x70] sm:$0xff]
  %v5332 = vld [vmem:[%s5316 + $0x78] sm:$0xff]
  %5333 = vmatpush.msra.mxu0 %v5332
  %5334 = vmatpush.msra.mxu0 %v5331
  %5335 = vmatpush.msra.mxu0 %v5330
  %5336 = vmatpush.msra.mxu0 %v5329
  %5337 = vmatpush.msra.mxu0 %v5328
  %5338 = vmatpush.msra.mxu0 %v5327
  %5339 = vmatpush.msra.mxu0 %v5326
  %5340 = vmatpush.msra.mxu0 %v5325
  %5341 = vmatpush.msra.mxu0 %v5324
  %5342 = vmatpush.msra.mxu0 %v5323
  %5343 = vmatpush.msra.mxu0 %v5322
  %5344 = vmatpush.msra.mxu0 %v5321
  %5345 = vmatpush.msra.mxu0 %v5320
  %5346 = vmatpush.msra.mxu0 %v5319
  %5347 = vmatpush.msra.mxu0 %v5318
  %5348 = vmatpush.msra.mxu0 %v5317
  %5349 = vmatmul.f32.gmra.mxu0 %v5252
  %v5350 = vpop.f32.mrf.mxu0
  %v5351 = vadd.f32 0.0, %v5350
  %5352 = vmatmul.f32.gmra.mxu0 %v5253
  %v5353 = vpop.f32.mrf.mxu0
  %v5354 = vadd.f32 0.0, %v5353
  %5355 = vmatmul.f32.gmra.mxu0 %v5254
  %v5356 = vpop.f32.mrf.mxu0
  %v5357 = vadd.f32 0.0, %v5356
  %5358 = vmatmul.f32.gmra.mxu0 %v5255
  %v5359 = vpop.f32.mrf.mxu0
  %v5360 = vadd.f32 0.0, %v5359
  %5361 = vmatmul.f32.gmra.mxu0 %v5256
  %v5362 = vpop.f32.mrf.mxu0
  %v5363 = vadd.f32 0.0, %v5362
  %5364 = vmatmul.f32.gmra.mxu0 %v5257
  %v5365 = vpop.f32.mrf.mxu0
  %v5366 = vadd.f32 0.0, %v5365
  %5367 = vmatmul.f32.gmra.mxu0 %v5258
  %v5368 = vpop.f32.mrf.mxu0
  %v5369 = vadd.f32 0.0, %v5368
  %5370 = vmatmul.f32.gmra.mxu0 %v5259
  %v5371 = vpop.f32.mrf.mxu0
  %v5372 = vadd.f32 0.0, %v5371
  %5373 = vmatmul.f32.gmra.mxu0 %v5260
  %v5374 = vpop.f32.mrf.mxu0
  %v5375 = vadd.f32 0.0, %v5374
  %5376 = vmatmul.f32.gmra.mxu0 %v5261
  %v5377 = vpop.f32.mrf.mxu0
  %v5378 = vadd.f32 0.0, %v5377
  %5379 = vmatmul.f32.gmra.mxu0 %v5262
  %v5380 = vpop.f32.mrf.mxu0
  %v5381 = vadd.f32 0.0, %v5380
  %5382 = vmatmul.f32.gmra.mxu0 %v5263
  %v5383 = vpop.f32.mrf.mxu0
  %v5384 = vadd.f32 0.0, %v5383
  %5385 = vmatmul.f32.gmra.mxu0 %v5264
  %v5386 = vpop.f32.mrf.mxu0
  %v5387 = vadd.f32 0.0, %v5386
  %5388 = vmatmul.f32.gmra.mxu0 %v5265
  %v5389 = vpop.f32.mrf.mxu0
  %v5390 = vadd.f32 0.0, %v5389
  %5391 = vmatmul.f32.gmra.mxu0 %v5266
  %v5392 = vpop.f32.mrf.mxu0
  %v5393 = vadd.f32 0.0, %v5392
  %5394 = vmatmul.f32.gmra.mxu0 %v5267
  %v5395 = vpop.f32.mrf.mxu0
  %v5396 = vadd.f32 0.0, %v5395
  %5397 = vmatmul.f32.gmra.mxu0 %v5268
  %v5398 = vpop.f32.mrf.mxu0
  %v5399 = vadd.f32 0.0, %v5398
  %5400 = vmatmul.f32.gmra.mxu0 %v5269
  %v5401 = vpop.f32.mrf.mxu0
  %v5402 = vadd.f32 0.0, %v5401
  %5403 = vmatmul.f32.gmra.mxu0 %v5270
  %v5404 = vpop.f32.mrf.mxu0
  %v5405 = vadd.f32 0.0, %v5404
  %5406 = vmatmul.f32.gmra.mxu0 %v5271
  %v5407 = vpop.f32.mrf.mxu0
  %v5408 = vadd.f32 0.0, %v5407
  %5409 = vmatmul.f32.gmra.mxu0 %v5272
  %v5410 = vpop.f32.mrf.mxu0
  %v5411 = vadd.f32 0.0, %v5410
  %5412 = vmatmul.f32.gmra.mxu0 %v5273
  %v5413 = vpop.f32.mrf.mxu0
  %v5414 = vadd.f32 0.0, %v5413
  %5415 = vmatmul.f32.gmra.mxu0 %v5274
  %v5416 = vpop.f32.mrf.mxu0
  %v5417 = vadd.f32 0.0, %v5416
  %5418 = vmatmul.f32.gmra.mxu0 %v5275
  %v5419 = vpop.f32.mrf.mxu0
  %v5420 = vadd.f32 0.0, %v5419
  %5421 = vmatmul.f32.gmra.mxu0 %v5276
  %v5422 = vpop.f32.mrf.mxu0
  %v5423 = vadd.f32 0.0, %v5422
  %5424 = vmatmul.f32.gmra.mxu0 %v5277
  %v5425 = vpop.f32.mrf.mxu0
  %v5426 = vadd.f32 0.0, %v5425
  %5427 = vmatmul.f32.gmra.mxu0 %v5278
  %v5428 = vpop.f32.mrf.mxu0
  %v5429 = vadd.f32 0.0, %v5428
  %5430 = vmatmul.f32.gmra.mxu0 %v5279
  %v5431 = vpop.f32.mrf.mxu0
  %v5432 = vadd.f32 0.0, %v5431
  %5433 = vmatmul.f32.gmra.mxu0 %v5280
  %v5434 = vpop.f32.mrf.mxu0
  %v5435 = vadd.f32 0.0, %v5434
  %5436 = vmatmul.f32.gmra.mxu0 %v5281
  %v5437 = vpop.f32.mrf.mxu0
  %v5438 = vadd.f32 0.0, %v5437
  %5439 = vmatmul.f32.gmra.mxu0 %v5282
  %v5440 = vpop.f32.mrf.mxu0
  %v5441 = vadd.f32 0.0, %v5440
  %5442 = vmatmul.f32.gmra.mxu0 %v5283
  %v5443 = vpop.f32.mrf.mxu0
  %v5444 = vadd.f32 0.0, %v5443
  %5445 = vmatmul.f32.gmra.mxu0 %v5284
  %v5446 = vpop.f32.mrf.mxu0
  %v5447 = vadd.f32 0.0, %v5446
  %5448 = vmatmul.f32.gmra.mxu0 %v5285
  %v5449 = vpop.f32.mrf.mxu0
  %v5450 = vadd.f32 0.0, %v5449
  %5451 = vmatmul.f32.gmra.mxu0 %v5286
  %v5452 = vpop.f32.mrf.mxu0
  %v5453 = vadd.f32 0.0, %v5452
  %5454 = vmatmul.f32.gmra.mxu0 %v5287
  %v5455 = vpop.f32.mrf.mxu0
  %v5456 = vadd.f32 0.0, %v5455
  %5457 = vmatmul.f32.gmra.mxu0 %v5288
  %v5458 = vpop.f32.mrf.mxu0
  %v5459 = vadd.f32 0.0, %v5458
  %5460 = vmatmul.f32.gmra.mxu0 %v5289
  %v5461 = vpop.f32.mrf.mxu0
  %v5462 = vadd.f32 0.0, %v5461
  %5463 = vmatmul.f32.gmra.mxu0 %v5290
  %v5464 = vpop.f32.mrf.mxu0
  %v5465 = vadd.f32 0.0, %v5464
  %5466 = vmatmul.f32.gmra.mxu0 %v5291
  %v5467 = vpop.f32.mrf.mxu0
  %v5468 = vadd.f32 0.0, %v5467
  %5469 = vmatmul.f32.gmra.mxu0 %v5292
  %v5470 = vpop.f32.mrf.mxu0
  %v5471 = vadd.f32 0.0, %v5470
  %5472 = vmatmul.f32.gmra.mxu0 %v5293
  %v5473 = vpop.f32.mrf.mxu0
  %v5474 = vadd.f32 0.0, %v5473
  %5475 = vmatmul.f32.gmra.mxu0 %v5294
  %v5476 = vpop.f32.mrf.mxu0
  %v5477 = vadd.f32 0.0, %v5476
  %5478 = vmatmul.f32.gmra.mxu0 %v5295
  %v5479 = vpop.f32.mrf.mxu0
  %v5480 = vadd.f32 0.0, %v5479
  %5481 = vmatmul.f32.gmra.mxu0 %v5296
  %v5482 = vpop.f32.mrf.mxu0
  %v5483 = vadd.f32 0.0, %v5482
  %5484 = vmatmul.f32.gmra.mxu0 %v5297
  %v5485 = vpop.f32.mrf.mxu0
  %v5486 = vadd.f32 0.0, %v5485
  %5487 = vmatmul.f32.gmra.mxu0 %v5298
  %v5488 = vpop.f32.mrf.mxu0
  %v5489 = vadd.f32 0.0, %v5488
  %5490 = vmatmul.f32.gmra.mxu0 %v5299
  %v5491 = vpop.f32.mrf.mxu0
  %v5492 = vadd.f32 0.0, %v5491
  %5493 = vmatmul.f32.gmra.mxu0 %v5300
  %v5494 = vpop.f32.mrf.mxu0
  %v5495 = vadd.f32 0.0, %v5494
  %5496 = vmatmul.f32.gmra.mxu0 %v5301
  %v5497 = vpop.f32.mrf.mxu0
  %v5498 = vadd.f32 0.0, %v5497
  %5499 = vmatmul.f32.gmra.mxu0 %v5302
  %v5500 = vpop.f32.mrf.mxu0
  %v5501 = vadd.f32 0.0, %v5500
  %5502 = vmatmul.f32.gmra.mxu0 %v5303
  %v5503 = vpop.f32.mrf.mxu0
  %v5504 = vadd.f32 0.0, %v5503
  %5505 = vmatmul.f32.gmra.mxu0 %v5304
  %v5506 = vpop.f32.mrf.mxu0
  %v5507 = vadd.f32 0.0, %v5506
  %5508 = vmatmul.f32.gmra.mxu0 %v5305
  %v5509 = vpop.f32.mrf.mxu0
  %v5510 = vadd.f32 0.0, %v5509
  %5511 = vmatmul.f32.gmra.mxu0 %v5306
  %v5512 = vpop.f32.mrf.mxu0
  %v5513 = vadd.f32 0.0, %v5512
  %5514 = vmatmul.f32.gmra.mxu0 %v5307
  %v5515 = vpop.f32.mrf.mxu0
  %v5516 = vadd.f32 0.0, %v5515
  %5517 = vmatmul.f32.gmra.mxu0 %v5308
  %v5518 = vpop.f32.mrf.mxu0
  %v5519 = vadd.f32 0.0, %v5518
  %5520 = vmatmul.f32.gmra.mxu0 %v5309
  %v5521 = vpop.f32.mrf.mxu0
  %v5522 = vadd.f32 0.0, %v5521
  %5523 = vmatmul.f32.gmra.mxu0 %v5310
  %v5524 = vpop.f32.mrf.mxu0
  %v5525 = vadd.f32 0.0, %v5524
  %5526 = vmatmul.f32.gmra.mxu0 %v5311
  %v5527 = vpop.f32.mrf.mxu0
  %v5528 = vadd.f32 0.0, %v5527
  %5529 = vmatmul.f32.gmra.mxu0 %v5312
  %v5530 = vpop.f32.mrf.mxu0
  %v5531 = vadd.f32 0.0, %v5530
  %5532 = vmatmul.f32.gmra.mxu0 %v5313
  %v5533 = vpop.f32.mrf.mxu0
  %v5534 = vadd.f32 0.0, %v5533
  %5535 = vmatmul.f32.gmra.mxu0 %v5314
  %v5536 = vpop.f32.mrf.mxu0
  %v5537 = vadd.f32 0.0, %v5536
  %5538 = vmatmul.f32.gmra.mxu0 %v5315
  %v5539 = vpop.f32.mrf.mxu0
  %v5540 = vadd.f32 0.0, %v5539
  %5541 = vdwg.mxu0
  %v5542 = vadd.f32 %v5188, %v5351
  %v5543 = vadd.f32 %v5189, %v5354
  %v5544 = vadd.f32 %v5190, %v5357
  %v5545 = vadd.f32 %v5191, %v5360
  %v5546 = vadd.f32 %v5192, %v5363
  %v5547 = vadd.f32 %v5193, %v5366
  %v5548 = vadd.f32 %v5194, %v5369
  %v5549 = vadd.f32 %v5195, %v5372
  %v5550 = vadd.f32 %v5196, %v5375
  %v5551 = vadd.f32 %v5197, %v5378
  %v5552 = vadd.f32 %v5198, %v5381
  %v5553 = vadd.f32 %v5199, %v5384
  %v5554 = vadd.f32 %v5200, %v5387
  %v5555 = vadd.f32 %v5201, %v5390
  %v5556 = vadd.f32 %v5202, %v5393
  %v5557 = vadd.f32 %v5203, %v5396
  %v5558 = vadd.f32 %v5204, %v5399
  %v5559 = vadd.f32 %v5205, %v5402
  %v5560 = vadd.f32 %v5206, %v5405
  %v5561 = vadd.f32 %v5207, %v5408
  %v5562 = vadd.f32 %v5208, %v5411
  %v5563 = vadd.f32 %v5209, %v5414
  %v5564 = vadd.f32 %v5210, %v5417
  %v5565 = vadd.f32 %v5211, %v5420
  %v5566 = vadd.f32 %v5212, %v5423
  %v5567 = vadd.f32 %v5213, %v5426
  %v5568 = vadd.f32 %v5214, %v5429
  %v5569 = vadd.f32 %v5215, %v5432
  %v5570 = vadd.f32 %v5216, %v5435
  %v5571 = vadd.f32 %v5217, %v5438
  %v5572 = vadd.f32 %v5218, %v5441
  %v5573 = vadd.f32 %v5219, %v5444
  %v5574 = vadd.f32 %v5220, %v5447
  %v5575 = vadd.f32 %v5221, %v5450
  %v5576 = vadd.f32 %v5222, %v5453
  %v5577 = vadd.f32 %v5223, %v5456
  %v5578 = vadd.f32 %v5224, %v5459
  %v5579 = vadd.f32 %v5225, %v5462
  %v5580 = vadd.f32 %v5226, %v5465
  %v5581 = vadd.f32 %v5227, %v5468
  %v5582 = vadd.f32 %v5228, %v5471
  %v5583 = vadd.f32 %v5229, %v5474
  %v5584 = vadd.f32 %v5230, %v5477
  %v5585 = vadd.f32 %v5231, %v5480
  %v5586 = vadd.f32 %v5232, %v5483
  %v5587 = vadd.f32 %v5233, %v5486
  %v5588 = vadd.f32 %v5234, %v5489
  %v5589 = vadd.f32 %v5235, %v5492
  %v5590 = vadd.f32 %v5236, %v5495
  %v5591 = vadd.f32 %v5237, %v5498
  %v5592 = vadd.f32 %v5238, %v5501
  %v5593 = vadd.f32 %v5239, %v5504
  %v5594 = vadd.f32 %v5240, %v5507
  %v5595 = vadd.f32 %v5241, %v5510
  %v5596 = vadd.f32 %v5242, %v5513
  %v5597 = vadd.f32 %v5243, %v5516
  %v5598 = vadd.f32 %v5244, %v5519
  %v5599 = vadd.f32 %v5245, %v5522
  %v5600 = vadd.f32 %v5246, %v5525
  %v5601 = vadd.f32 %v5247, %v5528
  %v5602 = vadd.f32 %v5248, %v5531
  %v5603 = vadd.f32 %v5249, %v5534
  %v5604 = vadd.f32 %v5250, %v5537
  %v5605 = vadd.f32 %v5251, %v5540
  %v5606 = vld [vmem:[%s234 + $0x9] sm:$0xff]
  %v5607 = vld [vmem:[%s234 + $0x11] sm:$0xff]
  %v5608 = vld [vmem:[%s234 + $0x29] sm:$0xff]
  %v5609 = vld [vmem:[%s234 + $0x31] sm:$0xff]
  %v5610 = vld [vmem:[%s234 + $0x49] sm:$0xff]
  %v5611 = vld [vmem:[%s234 + $0x51] sm:$0xff]
  %v5612 = vld [vmem:[%s234 + $0x69] sm:$0xff]
  %v5613 = vld [vmem:[%s234 + $0x71] sm:$0xff]
  %v5614 = vld [vmem:[%s234 + $0x89] sm:$0xff]
  %v5615 = vld [vmem:[%s234 + $0x91] sm:$0xff]
  %v5616 = vld [vmem:[%s234 + $0xa9] sm:$0xff]
  %v5617 = vld [vmem:[%s234 + $0xb1] sm:$0xff]
  %v5618 = vld [vmem:[%s234 + $0xc9] sm:$0xff]
  %v5619 = vld [vmem:[%s234 + $0xd1] sm:$0xff]
  %v5620 = vld [vmem:[%s234 + $0xe9] sm:$0xff]
  %v5621 = vld [vmem:[%s234 + $0xf1] sm:$0xff]
  %v5622 = vld [vmem:[%s234 + $0x109] sm:$0xff]
  %v5623 = vld [vmem:[%s234 + $0x111] sm:$0xff]
  %v5624 = vld [vmem:[%s234 + $0x129] sm:$0xff]
  %v5625 = vld [vmem:[%s234 + $0x131] sm:$0xff]
  %v5626 = vld [vmem:[%s234 + $0x149] sm:$0xff]
  %v5627 = vld [vmem:[%s234 + $0x151] sm:$0xff]
  %v5628 = vld [vmem:[%s234 + $0x169] sm:$0xff]
  %v5629 = vld [vmem:[%s234 + $0x171] sm:$0xff]
  %v5630 = vld [vmem:[%s234 + $0x189] sm:$0xff]
  %v5631 = vld [vmem:[%s234 + $0x191] sm:$0xff]
  %v5632 = vld [vmem:[%s234 + $0x1a9] sm:$0xff]
  %v5633 = vld [vmem:[%s234 + $0x1b1] sm:$0xff]
  %v5634 = vld [vmem:[%s234 + $0x1c9] sm:$0xff]
  %v5635 = vld [vmem:[%s234 + $0x1d1] sm:$0xff]
  %v5636 = vld [vmem:[%s234 + $0x1e9] sm:$0xff]
  %v5637 = vld [vmem:[%s234 + $0x1f1] sm:$0xff]
  %v5638 = vld [vmem:[%s234 + $0x249] sm:$0xff]
  %v5639 = vld [vmem:[%s234 + $0x251] sm:$0xff]
  %v5640 = vld [vmem:[%s234 + $0x269] sm:$0xff]
  %v5641 = vld [vmem:[%s234 + $0x271] sm:$0xff]
  %v5642 = vld [vmem:[%s234 + $0x289] sm:$0xff]
  %v5643 = vld [vmem:[%s234 + $0x291] sm:$0xff]
  %v5644 = vld [vmem:[%s234 + $0x2a9] sm:$0xff]
  %v5645 = vld [vmem:[%s234 + $0x2b1] sm:$0xff]
  %v5646 = vld [vmem:[%s234 + $0x2c9] sm:$0xff]
  %v5647 = vld [vmem:[%s234 + $0x2d1] sm:$0xff]
  %v5648 = vld [vmem:[%s234 + $0x2e9] sm:$0xff]
  %v5649 = vld [vmem:[%s234 + $0x2f1] sm:$0xff]
  %v5650 = vld [vmem:[%s234 + $0x309] sm:$0xff]
  %v5651 = vld [vmem:[%s234 + $0x311] sm:$0xff]
  %v5652 = vld [vmem:[%s234 + $0x329] sm:$0xff]
  %v5653 = vld [vmem:[%s234 + $0x331] sm:$0xff]
  %v5654 = vld [vmem:[%s234 + $0x349] sm:$0xff]
  %v5655 = vld [vmem:[%s234 + $0x351] sm:$0xff]
  %v5656 = vld [vmem:[%s234 + $0x369] sm:$0xff]
  %v5657 = vld [vmem:[%s234 + $0x371] sm:$0xff]
  %v5658 = vld [vmem:[%s234 + $0x389] sm:$0xff]
  %v5659 = vld [vmem:[%s234 + $0x391] sm:$0xff]
  %v5660 = vld [vmem:[%s234 + $0x3a9] sm:$0xff]
  %v5661 = vld [vmem:[%s234 + $0x3b1] sm:$0xff]
  %v5662 = vld [vmem:[%s234 + $0x3c9] sm:$0xff]
  %v5663 = vld [vmem:[%s234 + $0x3d1] sm:$0xff]
  %v5664 = vld [vmem:[%s234 + $0x3e9] sm:$0xff]
  %v5665 = vld [vmem:[%s234 + $0x3f1] sm:$0xff]
  %v5666 = vld [vmem:[%s234 + $0x409] sm:$0xff]
  %v5667 = vld [vmem:[%s234 + $0x411] sm:$0xff]
  %v5668 = vld [vmem:[%s234 + $0x429] sm:$0xff]
  %v5669 = vld [vmem:[%s234 + $0x431] sm:$0xff]
  %s5670 = scalar_lea.vmem %s4, 640
  %v5671 = vld [vmem:[%s5670] sm:$0xff]
  %v5672 = vld [vmem:[%s5670 + $0x8] sm:$0xff]
  %v5673 = vld [vmem:[%s5670 + $0x10] sm:$0xff]
  %v5674 = vld [vmem:[%s5670 + $0x18] sm:$0xff]
  %v5675 = vld [vmem:[%s5670 + $0x20] sm:$0xff]
  %v5676 = vld [vmem:[%s5670 + $0x28] sm:$0xff]
  %v5677 = vld [vmem:[%s5670 + $0x30] sm:$0xff]
  %v5678 = vld [vmem:[%s5670 + $0x38] sm:$0xff]
  %v5679 = vld [vmem:[%s5670 + $0x40] sm:$0xff]
  %v5680 = vld [vmem:[%s5670 + $0x48] sm:$0xff]
  %v5681 = vld [vmem:[%s5670 + $0x50] sm:$0xff]
  %v5682 = vld [vmem:[%s5670 + $0x58] sm:$0xff]
  %v5683 = vld [vmem:[%s5670 + $0x60] sm:$0xff]
  %v5684 = vld [vmem:[%s5670 + $0x68] sm:$0xff]
  %v5685 = vld [vmem:[%s5670 + $0x70] sm:$0xff]
  %v5686 = vld [vmem:[%s5670 + $0x78] sm:$0xff]
  %5687 = vmatpush.msra.mxu0 %v5686
  %5688 = vmatpush.msra.mxu0 %v5685
  %5689 = vmatpush.msra.mxu0 %v5684
  %5690 = vmatpush.msra.mxu0 %v5683
  %5691 = vmatpush.msra.mxu0 %v5682
  %5692 = vmatpush.msra.mxu0 %v5681
  %5693 = vmatpush.msra.mxu0 %v5680
  %5694 = vmatpush.msra.mxu0 %v5679
  %5695 = vmatpush.msra.mxu0 %v5678
  %5696 = vmatpush.msra.mxu0 %v5677
  %5697 = vmatpush.msra.mxu0 %v5676
  %5698 = vmatpush.msra.mxu0 %v5675
  %5699 = vmatpush.msra.mxu0 %v5674
  %5700 = vmatpush.msra.mxu0 %v5673
  %5701 = vmatpush.msra.mxu0 %v5672
  %5702 = vmatpush.msra.mxu0 %v5671
  %5703 = vmatmul.f32.gmra.mxu0 %v5606
  %v5704 = vpop.f32.mrf.mxu0
  %v5705 = vadd.f32 0.0, %v5704
  %5706 = vmatmul.f32.gmra.mxu0 %v5607
  %v5707 = vpop.f32.mrf.mxu0
  %v5708 = vadd.f32 0.0, %v5707
  %5709 = vmatmul.f32.gmra.mxu0 %v5608
  %v5710 = vpop.f32.mrf.mxu0
  %v5711 = vadd.f32 0.0, %v5710
  %5712 = vmatmul.f32.gmra.mxu0 %v5609
  %v5713 = vpop.f32.mrf.mxu0
  %v5714 = vadd.f32 0.0, %v5713
  %5715 = vmatmul.f32.gmra.mxu0 %v5610
  %v5716 = vpop.f32.mrf.mxu0
  %v5717 = vadd.f32 0.0, %v5716
  %5718 = vmatmul.f32.gmra.mxu0 %v5611
  %v5719 = vpop.f32.mrf.mxu0
  %v5720 = vadd.f32 0.0, %v5719
  %5721 = vmatmul.f32.gmra.mxu0 %v5612
  %v5722 = vpop.f32.mrf.mxu0
  %v5723 = vadd.f32 0.0, %v5722
  %5724 = vmatmul.f32.gmra.mxu0 %v5613
  %v5725 = vpop.f32.mrf.mxu0
  %v5726 = vadd.f32 0.0, %v5725
  %5727 = vmatmul.f32.gmra.mxu0 %v5614
  %v5728 = vpop.f32.mrf.mxu0
  %v5729 = vadd.f32 0.0, %v5728
  %5730 = vmatmul.f32.gmra.mxu0 %v5615
  %v5731 = vpop.f32.mrf.mxu0
  %v5732 = vadd.f32 0.0, %v5731
  %5733 = vmatmul.f32.gmra.mxu0 %v5616
  %v5734 = vpop.f32.mrf.mxu0
  %v5735 = vadd.f32 0.0, %v5734
  %5736 = vmatmul.f32.gmra.mxu0 %v5617
  %v5737 = vpop.f32.mrf.mxu0
  %v5738 = vadd.f32 0.0, %v5737
  %5739 = vmatmul.f32.gmra.mxu0 %v5618
  %v5740 = vpop.f32.mrf.mxu0
  %v5741 = vadd.f32 0.0, %v5740
  %5742 = vmatmul.f32.gmra.mxu0 %v5619
  %v5743 = vpop.f32.mrf.mxu0
  %v5744 = vadd.f32 0.0, %v5743
  %5745 = vmatmul.f32.gmra.mxu0 %v5620
  %v5746 = vpop.f32.mrf.mxu0
  %v5747 = vadd.f32 0.0, %v5746
  %5748 = vmatmul.f32.gmra.mxu0 %v5621
  %v5749 = vpop.f32.mrf.mxu0
  %v5750 = vadd.f32 0.0, %v5749
  %5751 = vmatmul.f32.gmra.mxu0 %v5622
  %v5752 = vpop.f32.mrf.mxu0
  %v5753 = vadd.f32 0.0, %v5752
  %5754 = vmatmul.f32.gmra.mxu0 %v5623
  %v5755 = vpop.f32.mrf.mxu0
  %v5756 = vadd.f32 0.0, %v5755
  %5757 = vmatmul.f32.gmra.mxu0 %v5624
  %v5758 = vpop.f32.mrf.mxu0
  %v5759 = vadd.f32 0.0, %v5758
  %5760 = vmatmul.f32.gmra.mxu0 %v5625
  %v5761 = vpop.f32.mrf.mxu0
  %v5762 = vadd.f32 0.0, %v5761
  %5763 = vmatmul.f32.gmra.mxu0 %v5626
  %v5764 = vpop.f32.mrf.mxu0
  %v5765 = vadd.f32 0.0, %v5764
  %5766 = vmatmul.f32.gmra.mxu0 %v5627
  %v5767 = vpop.f32.mrf.mxu0
  %v5768 = vadd.f32 0.0, %v5767
  %5769 = vmatmul.f32.gmra.mxu0 %v5628
  %v5770 = vpop.f32.mrf.mxu0
  %v5771 = vadd.f32 0.0, %v5770
  %5772 = vmatmul.f32.gmra.mxu0 %v5629
  %v5773 = vpop.f32.mrf.mxu0
  %v5774 = vadd.f32 0.0, %v5773
  %5775 = vmatmul.f32.gmra.mxu0 %v5630
  %v5776 = vpop.f32.mrf.mxu0
  %v5777 = vadd.f32 0.0, %v5776
  %5778 = vmatmul.f32.gmra.mxu0 %v5631
  %v5779 = vpop.f32.mrf.mxu0
  %v5780 = vadd.f32 0.0, %v5779
  %5781 = vmatmul.f32.gmra.mxu0 %v5632
  %v5782 = vpop.f32.mrf.mxu0
  %v5783 = vadd.f32 0.0, %v5782
  %5784 = vmatmul.f32.gmra.mxu0 %v5633
  %v5785 = vpop.f32.mrf.mxu0
  %v5786 = vadd.f32 0.0, %v5785
  %5787 = vmatmul.f32.gmra.mxu0 %v5634
  %v5788 = vpop.f32.mrf.mxu0
  %v5789 = vadd.f32 0.0, %v5788
  %5790 = vmatmul.f32.gmra.mxu0 %v5635
  %v5791 = vpop.f32.mrf.mxu0
  %v5792 = vadd.f32 0.0, %v5791
  %5793 = vmatmul.f32.gmra.mxu0 %v5636
  %v5794 = vpop.f32.mrf.mxu0
  %v5795 = vadd.f32 0.0, %v5794
  %5796 = vmatmul.f32.gmra.mxu0 %v5637
  %v5797 = vpop.f32.mrf.mxu0
  %v5798 = vadd.f32 0.0, %v5797
  %5799 = vmatmul.f32.gmra.mxu0 %v5638
  %v5800 = vpop.f32.mrf.mxu0
  %v5801 = vadd.f32 0.0, %v5800
  %5802 = vmatmul.f32.gmra.mxu0 %v5639
  %v5803 = vpop.f32.mrf.mxu0
  %v5804 = vadd.f32 0.0, %v5803
  %5805 = vmatmul.f32.gmra.mxu0 %v5640
  %v5806 = vpop.f32.mrf.mxu0
  %v5807 = vadd.f32 0.0, %v5806
  %5808 = vmatmul.f32.gmra.mxu0 %v5641
  %v5809 = vpop.f32.mrf.mxu0
  %v5810 = vadd.f32 0.0, %v5809
  %5811 = vmatmul.f32.gmra.mxu0 %v5642
  %v5812 = vpop.f32.mrf.mxu0
  %v5813 = vadd.f32 0.0, %v5812
  %5814 = vmatmul.f32.gmra.mxu0 %v5643
  %v5815 = vpop.f32.mrf.mxu0
  %v5816 = vadd.f32 0.0, %v5815
  %5817 = vmatmul.f32.gmra.mxu0 %v5644
  %v5818 = vpop.f32.mrf.mxu0
  %v5819 = vadd.f32 0.0, %v5818
  %5820 = vmatmul.f32.gmra.mxu0 %v5645
  %v5821 = vpop.f32.mrf.mxu0
  %v5822 = vadd.f32 0.0, %v5821
  %5823 = vmatmul.f32.gmra.mxu0 %v5646
  %v5824 = vpop.f32.mrf.mxu0
  %v5825 = vadd.f32 0.0, %v5824
  %5826 = vmatmul.f32.gmra.mxu0 %v5647
  %v5827 = vpop.f32.mrf.mxu0
  %v5828 = vadd.f32 0.0, %v5827
  %5829 = vmatmul.f32.gmra.mxu0 %v5648
  %v5830 = vpop.f32.mrf.mxu0
  %v5831 = vadd.f32 0.0, %v5830
  %5832 = vmatmul.f32.gmra.mxu0 %v5649
  %v5833 = vpop.f32.mrf.mxu0
  %v5834 = vadd.f32 0.0, %v5833
  %5835 = vmatmul.f32.gmra.mxu0 %v5650
  %v5836 = vpop.f32.mrf.mxu0
  %v5837 = vadd.f32 0.0, %v5836
  %5838 = vmatmul.f32.gmra.mxu0 %v5651
  %v5839 = vpop.f32.mrf.mxu0
  %v5840 = vadd.f32 0.0, %v5839
  %5841 = vmatmul.f32.gmra.mxu0 %v5652
  %v5842 = vpop.f32.mrf.mxu0
  %v5843 = vadd.f32 0.0, %v5842
  %5844 = vmatmul.f32.gmra.mxu0 %v5653
  %v5845 = vpop.f32.mrf.mxu0
  %v5846 = vadd.f32 0.0, %v5845
  %5847 = vmatmul.f32.gmra.mxu0 %v5654
  %v5848 = vpop.f32.mrf.mxu0
  %v5849 = vadd.f32 0.0, %v5848
  %5850 = vmatmul.f32.gmra.mxu0 %v5655
  %v5851 = vpop.f32.mrf.mxu0
  %v5852 = vadd.f32 0.0, %v5851
  %5853 = vmatmul.f32.gmra.mxu0 %v5656
  %v5854 = vpop.f32.mrf.mxu0
  %v5855 = vadd.f32 0.0, %v5854
  %5856 = vmatmul.f32.gmra.mxu0 %v5657
  %v5857 = vpop.f32.mrf.mxu0
  %v5858 = vadd.f32 0.0, %v5857
  %5859 = vmatmul.f32.gmra.mxu0 %v5658
  %v5860 = vpop.f32.mrf.mxu0
  %v5861 = vadd.f32 0.0, %v5860
  %5862 = vmatmul.f32.gmra.mxu0 %v5659
  %v5863 = vpop.f32.mrf.mxu0
  %v5864 = vadd.f32 0.0, %v5863
  %5865 = vmatmul.f32.gmra.mxu0 %v5660
  %v5866 = vpop.f32.mrf.mxu0
  %v5867 = vadd.f32 0.0, %v5866
  %5868 = vmatmul.f32.gmra.mxu0 %v5661
  %v5869 = vpop.f32.mrf.mxu0
  %v5870 = vadd.f32 0.0, %v5869
  %5871 = vmatmul.f32.gmra.mxu0 %v5662
  %v5872 = vpop.f32.mrf.mxu0
  %v5873 = vadd.f32 0.0, %v5872
  %5874 = vmatmul.f32.gmra.mxu0 %v5663
  %v5875 = vpop.f32.mrf.mxu0
  %v5876 = vadd.f32 0.0, %v5875
  %5877 = vmatmul.f32.gmra.mxu0 %v5664
  %v5878 = vpop.f32.mrf.mxu0
  %v5879 = vadd.f32 0.0, %v5878
  %5880 = vmatmul.f32.gmra.mxu0 %v5665
  %v5881 = vpop.f32.mrf.mxu0
  %v5882 = vadd.f32 0.0, %v5881
  %5883 = vmatmul.f32.gmra.mxu0 %v5666
  %v5884 = vpop.f32.mrf.mxu0
  %v5885 = vadd.f32 0.0, %v5884
  %5886 = vmatmul.f32.gmra.mxu0 %v5667
  %v5887 = vpop.f32.mrf.mxu0
  %v5888 = vadd.f32 0.0, %v5887
  %5889 = vmatmul.f32.gmra.mxu0 %v5668
  %v5890 = vpop.f32.mrf.mxu0
  %v5891 = vadd.f32 0.0, %v5890
  %5892 = vmatmul.f32.gmra.mxu0 %v5669
  %v5893 = vpop.f32.mrf.mxu0
  %v5894 = vadd.f32 0.0, %v5893
  %5895 = vdwg.mxu0
  %v5896 = vadd.f32 %v5542, %v5705
  %v5897 = vadd.f32 %v5543, %v5708
  %v5898 = vadd.f32 %v5544, %v5711
  %v5899 = vadd.f32 %v5545, %v5714
  %v5900 = vadd.f32 %v5546, %v5717
  %v5901 = vadd.f32 %v5547, %v5720
  %v5902 = vadd.f32 %v5548, %v5723
  %v5903 = vadd.f32 %v5549, %v5726
  %v5904 = vadd.f32 %v5550, %v5729
  %v5905 = vadd.f32 %v5551, %v5732
  %v5906 = vadd.f32 %v5552, %v5735
  %v5907 = vadd.f32 %v5553, %v5738
  %v5908 = vadd.f32 %v5554, %v5741
  %v5909 = vadd.f32 %v5555, %v5744
  %v5910 = vadd.f32 %v5556, %v5747
  %v5911 = vadd.f32 %v5557, %v5750
  %v5912 = vadd.f32 %v5558, %v5753
  %v5913 = vadd.f32 %v5559, %v5756
  %v5914 = vadd.f32 %v5560, %v5759
  %v5915 = vadd.f32 %v5561, %v5762
  %v5916 = vadd.f32 %v5562, %v5765
  %v5917 = vadd.f32 %v5563, %v5768
  %v5918 = vadd.f32 %v5564, %v5771
  %v5919 = vadd.f32 %v5565, %v5774
  %v5920 = vadd.f32 %v5566, %v5777
  %v5921 = vadd.f32 %v5567, %v5780
  %v5922 = vadd.f32 %v5568, %v5783
  %v5923 = vadd.f32 %v5569, %v5786
  %v5924 = vadd.f32 %v5570, %v5789
  %v5925 = vadd.f32 %v5571, %v5792
  %v5926 = vadd.f32 %v5572, %v5795
  %v5927 = vadd.f32 %v5573, %v5798
  %v5928 = vadd.f32 %v5574, %v5801
  %v5929 = vadd.f32 %v5575, %v5804
  %v5930 = vadd.f32 %v5576, %v5807
  %v5931 = vadd.f32 %v5577, %v5810
  %v5932 = vadd.f32 %v5578, %v5813
  %v5933 = vadd.f32 %v5579, %v5816
  %v5934 = vadd.f32 %v5580, %v5819
  %v5935 = vadd.f32 %v5581, %v5822
  %v5936 = vadd.f32 %v5582, %v5825
  %v5937 = vadd.f32 %v5583, %v5828
  %v5938 = vadd.f32 %v5584, %v5831
  %v5939 = vadd.f32 %v5585, %v5834
  %v5940 = vadd.f32 %v5586, %v5837
  %v5941 = vadd.f32 %v5587, %v5840
  %v5942 = vadd.f32 %v5588, %v5843
  %v5943 = vadd.f32 %v5589, %v5846
  %v5944 = vadd.f32 %v5590, %v5849
  %v5945 = vadd.f32 %v5591, %v5852
  %v5946 = vadd.f32 %v5592, %v5855
  %v5947 = vadd.f32 %v5593, %v5858
  %v5948 = vadd.f32 %v5594, %v5861
  %v5949 = vadd.f32 %v5595, %v5864
  %v5950 = vadd.f32 %v5596, %v5867
  %v5951 = vadd.f32 %v5597, %v5870
  %v5952 = vadd.f32 %v5598, %v5873
  %v5953 = vadd.f32 %v5599, %v5876
  %v5954 = vadd.f32 %v5600, %v5879
  %v5955 = vadd.f32 %v5601, %v5882
  %v5956 = vadd.f32 %v5602, %v5885
  %v5957 = vadd.f32 %v5603, %v5888
  %v5958 = vadd.f32 %v5604, %v5891
  %v5959 = vadd.f32 %v5605, %v5894
  %v5960 = vld [vmem:[%s2295 + $0x7] sm:$0xff]
  %v5961 = vld [vmem:[%s2295 + $0xf] sm:$0xff]
  %v5962 = vld [vmem:[%s2295 + $0x27] sm:$0xff]
  %v5963 = vld [vmem:[%s2295 + $0x2f] sm:$0xff]
  %v5964 = vld [vmem:[%s2295 + $0x47] sm:$0xff]
  %v5965 = vld [vmem:[%s2295 + $0x4f] sm:$0xff]
  %v5966 = vld [vmem:[%s2295 + $0x67] sm:$0xff]
  %v5967 = vld [vmem:[%s2295 + $0x6f] sm:$0xff]
  %v5968 = vld [vmem:[%s2295 + $0x87] sm:$0xff]
  %v5969 = vld [vmem:[%s2295 + $0x8f] sm:$0xff]
  %v5970 = vld [vmem:[%s2295 + $0xa7] sm:$0xff]
  %v5971 = vld [vmem:[%s2295 + $0xaf] sm:$0xff]
  %v5972 = vld [vmem:[%s2295 + $0xc7] sm:$0xff]
  %v5973 = vld [vmem:[%s2295 + $0xcf] sm:$0xff]
  %v5974 = vld [vmem:[%s2295 + $0xe7] sm:$0xff]
  %v5975 = vld [vmem:[%s2295 + $0xef] sm:$0xff]
  %v5976 = vld [vmem:[%s2295 + $0x107] sm:$0xff]
  %v5977 = vld [vmem:[%s2295 + $0x10f] sm:$0xff]
  %v5978 = vld [vmem:[%s2295 + $0x127] sm:$0xff]
  %v5979 = vld [vmem:[%s2295 + $0x12f] sm:$0xff]
  %v5980 = vld [vmem:[%s2295 + $0x147] sm:$0xff]
  %v5981 = vld [vmem:[%s2295 + $0x14f] sm:$0xff]
  %v5982 = vld [vmem:[%s2295 + $0x167] sm:$0xff]
  %v5983 = vld [vmem:[%s2295 + $0x16f] sm:$0xff]
  %v5984 = vld [vmem:[%s2295 + $0x187] sm:$0xff]
  %v5985 = vld [vmem:[%s2295 + $0x18f] sm:$0xff]
  %v5986 = vld [vmem:[%s2295 + $0x1a7] sm:$0xff]
  %v5987 = vld [vmem:[%s2295 + $0x1af] sm:$0xff]
  %v5988 = vld [vmem:[%s2295 + $0x1c7] sm:$0xff]
  %v5989 = vld [vmem:[%s2295 + $0x1cf] sm:$0xff]
  %v5990 = vld [vmem:[%s2295 + $0x1e7] sm:$0xff]
  %v5991 = vld [vmem:[%s2295 + $0x1ef] sm:$0xff]
  %v5992 = vld [vmem:[%s2295 + $0x247] sm:$0xff]
  %v5993 = vld [vmem:[%s2295 + $0x24f] sm:$0xff]
  %v5994 = vld [vmem:[%s2295 + $0x267] sm:$0xff]
  %v5995 = vld [vmem:[%s2295 + $0x26f] sm:$0xff]
  %v5996 = vld [vmem:[%s2295 + $0x287] sm:$0xff]
  %v5997 = vld [vmem:[%s2295 + $0x28f] sm:$0xff]
  %v5998 = vld [vmem:[%s2295 + $0x2a7] sm:$0xff]
  %v5999 = vld [vmem:[%s2295 + $0x2af] sm:$0xff]
  %v6000 = vld [vmem:[%s2295 + $0x2c7] sm:$0xff]
  %v6001 = vld [vmem:[%s2295 + $0x2cf] sm:$0xff]
  %v6002 = vld [vmem:[%s2295 + $0x2e7] sm:$0xff]
  %v6003 = vld [vmem:[%s2295 + $0x2ef] sm:$0xff]
  %v6004 = vld [vmem:[%s2295 + $0x307] sm:$0xff]
  %v6005 = vld [vmem:[%s2295 + $0x30f] sm:$0xff]
  %v6006 = vld [vmem:[%s2295 + $0x327] sm:$0xff]
  %v6007 = vld [vmem:[%s2295 + $0x32f] sm:$0xff]
  %v6008 = vld [vmem:[%s2295 + $0x347] sm:$0xff]
  %v6009 = vld [vmem:[%s2295 + $0x34f] sm:$0xff]
  %v6010 = vld [vmem:[%s2295 + $0x367] sm:$0xff]
  %v6011 = vld [vmem:[%s2295 + $0x36f] sm:$0xff]
  %v6012 = vld [vmem:[%s2295 + $0x387] sm:$0xff]
  %v6013 = vld [vmem:[%s2295 + $0x38f] sm:$0xff]
  %v6014 = vld [vmem:[%s2295 + $0x3a7] sm:$0xff]
  %v6015 = vld [vmem:[%s2295 + $0x3af] sm:$0xff]
  %v6016 = vld [vmem:[%s2295 + $0x3c7] sm:$0xff]
  %v6017 = vld [vmem:[%s2295 + $0x3cf] sm:$0xff]
  %v6018 = vld [vmem:[%s2295 + $0x3e7] sm:$0xff]
  %v6019 = vld [vmem:[%s2295 + $0x3ef] sm:$0xff]
  %v6020 = vld [vmem:[%s2295 + $0x407] sm:$0xff]
  %v6021 = vld [vmem:[%s2295 + $0x40f] sm:$0xff]
  %v6022 = vld [vmem:[%s2295 + $0x427] sm:$0xff]
  %v6023 = vld [vmem:[%s2295 + $0x42f] sm:$0xff]
  %s6024 = scalar_lea.vmem %s4, 768
  %v6025 = vld [vmem:[%s6024] sm:$0xff]
  %v6026 = vld [vmem:[%s6024 + $0x8] sm:$0xff]
  %v6027 = vld [vmem:[%s6024 + $0x10] sm:$0xff]
  %v6028 = vld [vmem:[%s6024 + $0x18] sm:$0xff]
  %v6029 = vld [vmem:[%s6024 + $0x20] sm:$0xff]
  %v6030 = vld [vmem:[%s6024 + $0x28] sm:$0xff]
  %v6031 = vld [vmem:[%s6024 + $0x30] sm:$0xff]
  %v6032 = vld [vmem:[%s6024 + $0x38] sm:$0xff]
  %v6033 = vld [vmem:[%s6024 + $0x40] sm:$0xff]
  %v6034 = vld [vmem:[%s6024 + $0x48] sm:$0xff]
  %v6035 = vld [vmem:[%s6024 + $0x50] sm:$0xff]
  %v6036 = vld [vmem:[%s6024 + $0x58] sm:$0xff]
  %v6037 = vld [vmem:[%s6024 + $0x60] sm:$0xff]
  %v6038 = vld [vmem:[%s6024 + $0x68] sm:$0xff]
  %v6039 = vld [vmem:[%s6024 + $0x70] sm:$0xff]
  %v6040 = vld [vmem:[%s6024 + $0x78] sm:$0xff]
  %6041 = vmatpush.msra.mxu0 %v6040
  %6042 = vmatpush.msra.mxu0 %v6039
  %6043 = vmatpush.msra.mxu0 %v6038
  %6044 = vmatpush.msra.mxu0 %v6037
  %6045 = vmatpush.msra.mxu0 %v6036
  %6046 = vmatpush.msra.mxu0 %v6035
  %6047 = vmatpush.msra.mxu0 %v6034
  %6048 = vmatpush.msra.mxu0 %v6033
  %6049 = vmatpush.msra.mxu0 %v6032
  %6050 = vmatpush.msra.mxu0 %v6031
  %6051 = vmatpush.msra.mxu0 %v6030
  %6052 = vmatpush.msra.mxu0 %v6029
  %6053 = vmatpush.msra.mxu0 %v6028
  %6054 = vmatpush.msra.mxu0 %v6027
  %6055 = vmatpush.msra.mxu0 %v6026
  %6056 = vmatpush.msra.mxu0 %v6025
  %6057 = vmatmul.f32.gmra.mxu0 %v5960
  %v6058 = vpop.f32.mrf.mxu0
  %v6059 = vadd.f32 0.0, %v6058
  %6060 = vmatmul.f32.gmra.mxu0 %v5961
  %v6061 = vpop.f32.mrf.mxu0
  %v6062 = vadd.f32 0.0, %v6061
  %6063 = vmatmul.f32.gmra.mxu0 %v5962
  %v6064 = vpop.f32.mrf.mxu0
  %v6065 = vadd.f32 0.0, %v6064
  %6066 = vmatmul.f32.gmra.mxu0 %v5963
  %v6067 = vpop.f32.mrf.mxu0
  %v6068 = vadd.f32 0.0, %v6067
  %6069 = vmatmul.f32.gmra.mxu0 %v5964
  %v6070 = vpop.f32.mrf.mxu0
  %v6071 = vadd.f32 0.0, %v6070
  %6072 = vmatmul.f32.gmra.mxu0 %v5965
  %v6073 = vpop.f32.mrf.mxu0
  %v6074 = vadd.f32 0.0, %v6073
  %6075 = vmatmul.f32.gmra.mxu0 %v5966
  %v6076 = vpop.f32.mrf.mxu0
  %v6077 = vadd.f32 0.0, %v6076
  %6078 = vmatmul.f32.gmra.mxu0 %v5967
  %v6079 = vpop.f32.mrf.mxu0
  %v6080 = vadd.f32 0.0, %v6079
  %6081 = vmatmul.f32.gmra.mxu0 %v5968
  %v6082 = vpop.f32.mrf.mxu0
  %v6083 = vadd.f32 0.0, %v6082
  %6084 = vmatmul.f32.gmra.mxu0 %v5969
  %v6085 = vpop.f32.mrf.mxu0
  %v6086 = vadd.f32 0.0, %v6085
  %6087 = vmatmul.f32.gmra.mxu0 %v5970
  %v6088 = vpop.f32.mrf.mxu0
  %v6089 = vadd.f32 0.0, %v6088
  %6090 = vmatmul.f32.gmra.mxu0 %v5971
  %v6091 = vpop.f32.mrf.mxu0
  %v6092 = vadd.f32 0.0, %v6091
  %6093 = vmatmul.f32.gmra.mxu0 %v5972
  %v6094 = vpop.f32.mrf.mxu0
  %v6095 = vadd.f32 0.0, %v6094
  %6096 = vmatmul.f32.gmra.mxu0 %v5973
  %v6097 = vpop.f32.mrf.mxu0
  %v6098 = vadd.f32 0.0, %v6097
  %6099 = vmatmul.f32.gmra.mxu0 %v5974
  %v6100 = vpop.f32.mrf.mxu0
  %v6101 = vadd.f32 0.0, %v6100
  %6102 = vmatmul.f32.gmra.mxu0 %v5975
  %v6103 = vpop.f32.mrf.mxu0
  %v6104 = vadd.f32 0.0, %v6103
  %6105 = vmatmul.f32.gmra.mxu0 %v5976
  %v6106 = vpop.f32.mrf.mxu0
  %v6107 = vadd.f32 0.0, %v6106
  %6108 = vmatmul.f32.gmra.mxu0 %v5977
  %v6109 = vpop.f32.mrf.mxu0
  %v6110 = vadd.f32 0.0, %v6109
  %6111 = vmatmul.f32.gmra.mxu0 %v5978
  %v6112 = vpop.f32.mrf.mxu0
  %v6113 = vadd.f32 0.0, %v6112
  %6114 = vmatmul.f32.gmra.mxu0 %v5979
  %v6115 = vpop.f32.mrf.mxu0
  %v6116 = vadd.f32 0.0, %v6115
  %6117 = vmatmul.f32.gmra.mxu0 %v5980
  %v6118 = vpop.f32.mrf.mxu0
  %v6119 = vadd.f32 0.0, %v6118
  %6120 = vmatmul.f32.gmra.mxu0 %v5981
  %v6121 = vpop.f32.mrf.mxu0
  %v6122 = vadd.f32 0.0, %v6121
  %6123 = vmatmul.f32.gmra.mxu0 %v5982
  %v6124 = vpop.f32.mrf.mxu0
  %v6125 = vadd.f32 0.0, %v6124
  %6126 = vmatmul.f32.gmra.mxu0 %v5983
  %v6127 = vpop.f32.mrf.mxu0
  %v6128 = vadd.f32 0.0, %v6127
  %6129 = vmatmul.f32.gmra.mxu0 %v5984
  %v6130 = vpop.f32.mrf.mxu0
  %v6131 = vadd.f32 0.0, %v6130
  %6132 = vmatmul.f32.gmra.mxu0 %v5985
  %v6133 = vpop.f32.mrf.mxu0
  %v6134 = vadd.f32 0.0, %v6133
  %6135 = vmatmul.f32.gmra.mxu0 %v5986
  %v6136 = vpop.f32.mrf.mxu0
  %v6137 = vadd.f32 0.0, %v6136
  %6138 = vmatmul.f32.gmra.mxu0 %v5987
  %v6139 = vpop.f32.mrf.mxu0
  %v6140 = vadd.f32 0.0, %v6139
  %6141 = vmatmul.f32.gmra.mxu0 %v5988
  %v6142 = vpop.f32.mrf.mxu0
  %v6143 = vadd.f32 0.0, %v6142
  %6144 = vmatmul.f32.gmra.mxu0 %v5989
  %v6145 = vpop.f32.mrf.mxu0
  %v6146 = vadd.f32 0.0, %v6145
  %6147 = vmatmul.f32.gmra.mxu0 %v5990
  %v6148 = vpop.f32.mrf.mxu0
  %v6149 = vadd.f32 0.0, %v6148
  %6150 = vmatmul.f32.gmra.mxu0 %v5991
  %v6151 = vpop.f32.mrf.mxu0
  %v6152 = vadd.f32 0.0, %v6151
  %6153 = vmatmul.f32.gmra.mxu0 %v5992
  %v6154 = vpop.f32.mrf.mxu0
  %v6155 = vadd.f32 0.0, %v6154
  %6156 = vmatmul.f32.gmra.mxu0 %v5993
  %v6157 = vpop.f32.mrf.mxu0
  %v6158 = vadd.f32 0.0, %v6157
  %6159 = vmatmul.f32.gmra.mxu0 %v5994
  %v6160 = vpop.f32.mrf.mxu0
  %v6161 = vadd.f32 0.0, %v6160
  %6162 = vmatmul.f32.gmra.mxu0 %v5995
  %v6163 = vpop.f32.mrf.mxu0
  %v6164 = vadd.f32 0.0, %v6163
  %6165 = vmatmul.f32.gmra.mxu0 %v5996
  %v6166 = vpop.f32.mrf.mxu0
  %v6167 = vadd.f32 0.0, %v6166
  %6168 = vmatmul.f32.gmra.mxu0 %v5997
  %v6169 = vpop.f32.mrf.mxu0
  %v6170 = vadd.f32 0.0, %v6169
  %6171 = vmatmul.f32.gmra.mxu0 %v5998
  %v6172 = vpop.f32.mrf.mxu0
  %v6173 = vadd.f32 0.0, %v6172
  %6174 = vmatmul.f32.gmra.mxu0 %v5999
  %v6175 = vpop.f32.mrf.mxu0
  %v6176 = vadd.f32 0.0, %v6175
  %6177 = vmatmul.f32.gmra.mxu0 %v6000
  %v6178 = vpop.f32.mrf.mxu0
  %v6179 = vadd.f32 0.0, %v6178
  %6180 = vmatmul.f32.gmra.mxu0 %v6001
  %v6181 = vpop.f32.mrf.mxu0
  %v6182 = vadd.f32 0.0, %v6181
  %6183 = vmatmul.f32.gmra.mxu0 %v6002
  %v6184 = vpop.f32.mrf.mxu0
  %v6185 = vadd.f32 0.0, %v6184
  %6186 = vmatmul.f32.gmra.mxu0 %v6003
  %v6187 = vpop.f32.mrf.mxu0
  %v6188 = vadd.f32 0.0, %v6187
  %6189 = vmatmul.f32.gmra.mxu0 %v6004
  %v6190 = vpop.f32.mrf.mxu0
  %v6191 = vadd.f32 0.0, %v6190
  %6192 = vmatmul.f32.gmra.mxu0 %v6005
  %v6193 = vpop.f32.mrf.mxu0
  %v6194 = vadd.f32 0.0, %v6193
  %6195 = vmatmul.f32.gmra.mxu0 %v6006
  %v6196 = vpop.f32.mrf.mxu0
  %v6197 = vadd.f32 0.0, %v6196
  %6198 = vmatmul.f32.gmra.mxu0 %v6007
  %v6199 = vpop.f32.mrf.mxu0
  %v6200 = vadd.f32 0.0, %v6199
  %6201 = vmatmul.f32.gmra.mxu0 %v6008
  %v6202 = vpop.f32.mrf.mxu0
  %v6203 = vadd.f32 0.0, %v6202
  %6204 = vmatmul.f32.gmra.mxu0 %v6009
  %v6205 = vpop.f32.mrf.mxu0
  %v6206 = vadd.f32 0.0, %v6205
  %6207 = vmatmul.f32.gmra.mxu0 %v6010
  %v6208 = vpop.f32.mrf.mxu0
  %v6209 = vadd.f32 0.0, %v6208
  %6210 = vmatmul.f32.gmra.mxu0 %v6011
  %v6211 = vpop.f32.mrf.mxu0
  %v6212 = vadd.f32 0.0, %v6211
  %6213 = vmatmul.f32.gmra.mxu0 %v6012
  %v6214 = vpop.f32.mrf.mxu0
  %v6215 = vadd.f32 0.0, %v6214
  %6216 = vmatmul.f32.gmra.mxu0 %v6013
  %v6217 = vpop.f32.mrf.mxu0
  %v6218 = vadd.f32 0.0, %v6217
  %6219 = vmatmul.f32.gmra.mxu0 %v6014
  %v6220 = vpop.f32.mrf.mxu0
  %v6221 = vadd.f32 0.0, %v6220
  %6222 = vmatmul.f32.gmra.mxu0 %v6015
  %v6223 = vpop.f32.mrf.mxu0
  %v6224 = vadd.f32 0.0, %v6223
  %6225 = vmatmul.f32.gmra.mxu0 %v6016
  %v6226 = vpop.f32.mrf.mxu0
  %v6227 = vadd.f32 0.0, %v6226
  %6228 = vmatmul.f32.gmra.mxu0 %v6017
  %v6229 = vpop.f32.mrf.mxu0
  %v6230 = vadd.f32 0.0, %v6229
  %6231 = vmatmul.f32.gmra.mxu0 %v6018
  %v6232 = vpop.f32.mrf.mxu0
  %v6233 = vadd.f32 0.0, %v6232
  %6234 = vmatmul.f32.gmra.mxu0 %v6019
  %v6235 = vpop.f32.mrf.mxu0
  %v6236 = vadd.f32 0.0, %v6235
  %6237 = vmatmul.f32.gmra.mxu0 %v6020
  %v6238 = vpop.f32.mrf.mxu0
  %v6239 = vadd.f32 0.0, %v6238
  %6240 = vmatmul.f32.gmra.mxu0 %v6021
  %v6241 = vpop.f32.mrf.mxu0
  %v6242 = vadd.f32 0.0, %v6241
  %6243 = vmatmul.f32.gmra.mxu0 %v6022
  %v6244 = vpop.f32.mrf.mxu0
  %v6245 = vadd.f32 0.0, %v6244
  %6246 = vmatmul.f32.gmra.mxu0 %v6023
  %v6247 = vpop.f32.mrf.mxu0
  %v6248 = vadd.f32 0.0, %v6247
  %6249 = vdwg.mxu0
  %v6250 = vadd.f32 %v5896, %v6059
  %v6251 = vadd.f32 %v5897, %v6062
  %v6252 = vadd.f32 %v5898, %v6065
  %v6253 = vadd.f32 %v5899, %v6068
  %v6254 = vadd.f32 %v5900, %v6071
  %v6255 = vadd.f32 %v5901, %v6074
  %v6256 = vadd.f32 %v5902, %v6077
  %v6257 = vadd.f32 %v5903, %v6080
  %v6258 = vadd.f32 %v5904, %v6083
  %v6259 = vadd.f32 %v5905, %v6086
  %v6260 = vadd.f32 %v5906, %v6089
  %v6261 = vadd.f32 %v5907, %v6092
  %v6262 = vadd.f32 %v5908, %v6095
  %v6263 = vadd.f32 %v5909, %v6098
  %v6264 = vadd.f32 %v5910, %v6101
  %v6265 = vadd.f32 %v5911, %v6104
  %v6266 = vadd.f32 %v5912, %v6107
  %v6267 = vadd.f32 %v5913, %v6110
  %v6268 = vadd.f32 %v5914, %v6113
  %v6269 = vadd.f32 %v5915, %v6116
  %v6270 = vadd.f32 %v5916, %v6119
  %v6271 = vadd.f32 %v5917, %v6122
  %v6272 = vadd.f32 %v5918, %v6125
  %v6273 = vadd.f32 %v5919, %v6128
  %v6274 = vadd.f32 %v5920, %v6131
  %v6275 = vadd.f32 %v5921, %v6134
  %v6276 = vadd.f32 %v5922, %v6137
  %v6277 = vadd.f32 %v5923, %v6140
  %v6278 = vadd.f32 %v5924, %v6143
  %v6279 = vadd.f32 %v5925, %v6146
  %v6280 = vadd.f32 %v5926, %v6149
  %v6281 = vadd.f32 %v5927, %v6152
  %v6282 = vadd.f32 %v5928, %v6155
  %v6283 = vadd.f32 %v5929, %v6158
  %v6284 = vadd.f32 %v5930, %v6161
  %v6285 = vadd.f32 %v5931, %v6164
  %v6286 = vadd.f32 %v5932, %v6167
  %v6287 = vadd.f32 %v5933, %v6170
  %v6288 = vadd.f32 %v5934, %v6173
  %v6289 = vadd.f32 %v5935, %v6176
  %v6290 = vadd.f32 %v5936, %v6179
  %v6291 = vadd.f32 %v5937, %v6182
  %v6292 = vadd.f32 %v5938, %v6185
  %v6293 = vadd.f32 %v5939, %v6188
  %v6294 = vadd.f32 %v5940, %v6191
  %v6295 = vadd.f32 %v5941, %v6194
  %v6296 = vadd.f32 %v5942, %v6197
  %v6297 = vadd.f32 %v5943, %v6200
  %v6298 = vadd.f32 %v5944, %v6203
  %v6299 = vadd.f32 %v5945, %v6206
  %v6300 = vadd.f32 %v5946, %v6209
  %v6301 = vadd.f32 %v5947, %v6212
  %v6302 = vadd.f32 %v5948, %v6215
  %v6303 = vadd.f32 %v5949, %v6218
  %v6304 = vadd.f32 %v5950, %v6221
  %v6305 = vadd.f32 %v5951, %v6224
  %v6306 = vadd.f32 %v5952, %v6227
  %v6307 = vadd.f32 %v5953, %v6230
  %v6308 = vadd.f32 %v5954, %v6233
  %v6309 = vadd.f32 %v5955, %v6236
  %v6310 = vadd.f32 %v5956, %v6239
  %v6311 = vadd.f32 %v5957, %v6242
  %v6312 = vadd.f32 %v5958, %v6245
  %v6313 = vadd.f32 %v5959, %v6248
  %v6314 = vld [vmem:[%s2295 + $0x8] sm:$0xff]
  %v6315 = vld [vmem:[%s2295 + $0x10] sm:$0xff]
  %v6316 = vld [vmem:[%s2295 + $0x28] sm:$0xff]
  %v6317 = vld [vmem:[%s2295 + $0x30] sm:$0xff]
  %v6318 = vld [vmem:[%s2295 + $0x48] sm:$0xff]
  %v6319 = vld [vmem:[%s2295 + $0x50] sm:$0xff]
  %v6320 = vld [vmem:[%s2295 + $0x68] sm:$0xff]
  %v6321 = vld [vmem:[%s2295 + $0x70] sm:$0xff]
  %v6322 = vld [vmem:[%s2295 + $0x88] sm:$0xff]
  %v6323 = vld [vmem:[%s2295 + $0x90] sm:$0xff]
  %v6324 = vld [vmem:[%s2295 + $0xa8] sm:$0xff]
  %v6325 = vld [vmem:[%s2295 + $0xb0] sm:$0xff]
  %v6326 = vld [vmem:[%s2295 + $0xc8] sm:$0xff]
  %v6327 = vld [vmem:[%s2295 + $0xd0] sm:$0xff]
  %v6328 = vld [vmem:[%s2295 + $0xe8] sm:$0xff]
  %v6329 = vld [vmem:[%s2295 + $0xf0] sm:$0xff]
  %v6330 = vld [vmem:[%s2295 + $0x108] sm:$0xff]
  %v6331 = vld [vmem:[%s2295 + $0x110] sm:$0xff]
  %v6332 = vld [vmem:[%s2295 + $0x128] sm:$0xff]
  %v6333 = vld [vmem:[%s2295 + $0x130] sm:$0xff]
  %v6334 = vld [vmem:[%s2295 + $0x148] sm:$0xff]
  %v6335 = vld [vmem:[%s2295 + $0x150] sm:$0xff]
  %v6336 = vld [vmem:[%s2295 + $0x168] sm:$0xff]
  %v6337 = vld [vmem:[%s2295 + $0x170] sm:$0xff]
  %v6338 = vld [vmem:[%s2295 + $0x188] sm:$0xff]
  %v6339 = vld [vmem:[%s2295 + $0x190] sm:$0xff]
  %v6340 = vld [vmem:[%s2295 + $0x1a8] sm:$0xff]
  %v6341 = vld [vmem:[%s2295 + $0x1b0] sm:$0xff]
  %v6342 = vld [vmem:[%s2295 + $0x1c8] sm:$0xff]
  %v6343 = vld [vmem:[%s2295 + $0x1d0] sm:$0xff]
  %v6344 = vld [vmem:[%s2295 + $0x1e8] sm:$0xff]
  %v6345 = vld [vmem:[%s2295 + $0x1f0] sm:$0xff]
  %v6346 = vld [vmem:[%s2295 + $0x248] sm:$0xff]
  %v6347 = vld [vmem:[%s2295 + $0x250] sm:$0xff]
  %v6348 = vld [vmem:[%s2295 + $0x268] sm:$0xff]
  %v6349 = vld [vmem:[%s2295 + $0x270] sm:$0xff]
  %v6350 = vld [vmem:[%s2295 + $0x288] sm:$0xff]
  %v6351 = vld [vmem:[%s2295 + $0x290] sm:$0xff]
  %v6352 = vld [vmem:[%s2295 + $0x2a8] sm:$0xff]
  %v6353 = vld [vmem:[%s2295 + $0x2b0] sm:$0xff]
  %v6354 = vld [vmem:[%s2295 + $0x2c8] sm:$0xff]
  %v6355 = vld [vmem:[%s2295 + $0x2d0] sm:$0xff]
  %v6356 = vld [vmem:[%s2295 + $0x2e8] sm:$0xff]
  %v6357 = vld [vmem:[%s2295 + $0x2f0] sm:$0xff]
  %v6358 = vld [vmem:[%s2295 + $0x308] sm:$0xff]
  %v6359 = vld [vmem:[%s2295 + $0x310] sm:$0xff]
  %v6360 = vld [vmem:[%s2295 + $0x328] sm:$0xff]
  %v6361 = vld [vmem:[%s2295 + $0x330] sm:$0xff]
  %v6362 = vld [vmem:[%s2295 + $0x348] sm:$0xff]
  %v6363 = vld [vmem:[%s2295 + $0x350] sm:$0xff]
  %v6364 = vld [vmem:[%s2295 + $0x368] sm:$0xff]
  %v6365 = vld [vmem:[%s2295 + $0x370] sm:$0xff]
  %v6366 = vld [vmem:[%s2295 + $0x388] sm:$0xff]
  %v6367 = vld [vmem:[%s2295 + $0x390] sm:$0xff]
  %v6368 = vld [vmem:[%s2295 + $0x3a8] sm:$0xff]
  %v6369 = vld [vmem:[%s2295 + $0x3b0] sm:$0xff]
  %v6370 = vld [vmem:[%s2295 + $0x3c8] sm:$0xff]
  %v6371 = vld [vmem:[%s2295 + $0x3d0] sm:$0xff]
  %v6372 = vld [vmem:[%s2295 + $0x3e8] sm:$0xff]
  %v6373 = vld [vmem:[%s2295 + $0x3f0] sm:$0xff]
  %v6374 = vld [vmem:[%s2295 + $0x408] sm:$0xff]
  %v6375 = vld [vmem:[%s2295 + $0x410] sm:$0xff]
  %v6376 = vld [vmem:[%s2295 + $0x428] sm:$0xff]
  %v6377 = vld [vmem:[%s2295 + $0x430] sm:$0xff]
  %s6378 = scalar_lea.vmem %s4, 896
  %v6379 = vld [vmem:[%s6378] sm:$0xff]
  %v6380 = vld [vmem:[%s6378 + $0x8] sm:$0xff]
  %v6381 = vld [vmem:[%s6378 + $0x10] sm:$0xff]
  %v6382 = vld [vmem:[%s6378 + $0x18] sm:$0xff]
  %v6383 = vld [vmem:[%s6378 + $0x20] sm:$0xff]
  %v6384 = vld [vmem:[%s6378 + $0x28] sm:$0xff]
  %v6385 = vld [vmem:[%s6378 + $0x30] sm:$0xff]
  %v6386 = vld [vmem:[%s6378 + $0x38] sm:$0xff]
  %v6387 = vld [vmem:[%s6378 + $0x40] sm:$0xff]
  %v6388 = vld [vmem:[%s6378 + $0x48] sm:$0xff]
  %v6389 = vld [vmem:[%s6378 + $0x50] sm:$0xff]
  %v6390 = vld [vmem:[%s6378 + $0x58] sm:$0xff]
  %v6391 = vld [vmem:[%s6378 + $0x60] sm:$0xff]
  %v6392 = vld [vmem:[%s6378 + $0x68] sm:$0xff]
  %v6393 = vld [vmem:[%s6378 + $0x70] sm:$0xff]
  %v6394 = vld [vmem:[%s6378 + $0x78] sm:$0xff]
  %6395 = vmatpush.msra.mxu0 %v6394
  %6396 = vmatpush.msra.mxu0 %v6393
  %6397 = vmatpush.msra.mxu0 %v6392
  %6398 = vmatpush.msra.mxu0 %v6391
  %6399 = vmatpush.msra.mxu0 %v6390
  %6400 = vmatpush.msra.mxu0 %v6389
  %6401 = vmatpush.msra.mxu0 %v6388
  %6402 = vmatpush.msra.mxu0 %v6387
  %6403 = vmatpush.msra.mxu0 %v6386
  %6404 = vmatpush.msra.mxu0 %v6385
  %6405 = vmatpush.msra.mxu0 %v6384
  %6406 = vmatpush.msra.mxu0 %v6383
  %6407 = vmatpush.msra.mxu0 %v6382
  %6408 = vmatpush.msra.mxu0 %v6381
  %6409 = vmatpush.msra.mxu0 %v6380
  %6410 = vmatpush.msra.mxu0 %v6379
  %6411 = vmatmul.f32.gmra.mxu0 %v6314
  %v6412 = vpop.f32.mrf.mxu0
  %v6413 = vadd.f32 0.0, %v6412
  %6414 = vmatmul.f32.gmra.mxu0 %v6315
  %v6415 = vpop.f32.mrf.mxu0
  %v6416 = vadd.f32 0.0, %v6415
  %6417 = vmatmul.f32.gmra.mxu0 %v6316
  %v6418 = vpop.f32.mrf.mxu0
  %v6419 = vadd.f32 0.0, %v6418
  %6420 = vmatmul.f32.gmra.mxu0 %v6317
  %v6421 = vpop.f32.mrf.mxu0
  %v6422 = vadd.f32 0.0, %v6421
  %6423 = vmatmul.f32.gmra.mxu0 %v6318
  %v6424 = vpop.f32.mrf.mxu0
  %v6425 = vadd.f32 0.0, %v6424
  %6426 = vmatmul.f32.gmra.mxu0 %v6319
  %v6427 = vpop.f32.mrf.mxu0
  %v6428 = vadd.f32 0.0, %v6427
  %6429 = vmatmul.f32.gmra.mxu0 %v6320
  %v6430 = vpop.f32.mrf.mxu0
  %v6431 = vadd.f32 0.0, %v6430
  %6432 = vmatmul.f32.gmra.mxu0 %v6321
  %v6433 = vpop.f32.mrf.mxu0
  %v6434 = vadd.f32 0.0, %v6433
  %6435 = vmatmul.f32.gmra.mxu0 %v6322
  %v6436 = vpop.f32.mrf.mxu0
  %v6437 = vadd.f32 0.0, %v6436
  %6438 = vmatmul.f32.gmra.mxu0 %v6323
  %v6439 = vpop.f32.mrf.mxu0
  %v6440 = vadd.f32 0.0, %v6439
  %6441 = vmatmul.f32.gmra.mxu0 %v6324
  %v6442 = vpop.f32.mrf.mxu0
  %v6443 = vadd.f32 0.0, %v6442
  %6444 = vmatmul.f32.gmra.mxu0 %v6325
  %v6445 = vpop.f32.mrf.mxu0
  %v6446 = vadd.f32 0.0, %v6445
  %6447 = vmatmul.f32.gmra.mxu0 %v6326
  %v6448 = vpop.f32.mrf.mxu0
  %v6449 = vadd.f32 0.0, %v6448
  %6450 = vmatmul.f32.gmra.mxu0 %v6327
  %v6451 = vpop.f32.mrf.mxu0
  %v6452 = vadd.f32 0.0, %v6451
  %6453 = vmatmul.f32.gmra.mxu0 %v6328
  %v6454 = vpop.f32.mrf.mxu0
  %v6455 = vadd.f32 0.0, %v6454
  %6456 = vmatmul.f32.gmra.mxu0 %v6329
  %v6457 = vpop.f32.mrf.mxu0
  %v6458 = vadd.f32 0.0, %v6457
  %6459 = vmatmul.f32.gmra.mxu0 %v6330
  %v6460 = vpop.f32.mrf.mxu0
  %v6461 = vadd.f32 0.0, %v6460
  %6462 = vmatmul.f32.gmra.mxu0 %v6331
  %v6463 = vpop.f32.mrf.mxu0
  %v6464 = vadd.f32 0.0, %v6463
  %6465 = vmatmul.f32.gmra.mxu0 %v6332
  %v6466 = vpop.f32.mrf.mxu0
  %v6467 = vadd.f32 0.0, %v6466
  %6468 = vmatmul.f32.gmra.mxu0 %v6333
  %v6469 = vpop.f32.mrf.mxu0
  %v6470 = vadd.f32 0.0, %v6469
  %6471 = vmatmul.f32.gmra.mxu0 %v6334
  %v6472 = vpop.f32.mrf.mxu0
  %v6473 = vadd.f32 0.0, %v6472
  %6474 = vmatmul.f32.gmra.mxu0 %v6335
  %v6475 = vpop.f32.mrf.mxu0
  %v6476 = vadd.f32 0.0, %v6475
  %6477 = vmatmul.f32.gmra.mxu0 %v6336
  %v6478 = vpop.f32.mrf.mxu0
  %v6479 = vadd.f32 0.0, %v6478
  %6480 = vmatmul.f32.gmra.mxu0 %v6337
  %v6481 = vpop.f32.mrf.mxu0
  %v6482 = vadd.f32 0.0, %v6481
  %6483 = vmatmul.f32.gmra.mxu0 %v6338
  %v6484 = vpop.f32.mrf.mxu0
  %v6485 = vadd.f32 0.0, %v6484
  %6486 = vmatmul.f32.gmra.mxu0 %v6339
  %v6487 = vpop.f32.mrf.mxu0
  %v6488 = vadd.f32 0.0, %v6487
  %6489 = vmatmul.f32.gmra.mxu0 %v6340
  %v6490 = vpop.f32.mrf.mxu0
  %v6491 = vadd.f32 0.0, %v6490
  %6492 = vmatmul.f32.gmra.mxu0 %v6341
  %v6493 = vpop.f32.mrf.mxu0
  %v6494 = vadd.f32 0.0, %v6493
  %6495 = vmatmul.f32.gmra.mxu0 %v6342
  %v6496 = vpop.f32.mrf.mxu0
  %v6497 = vadd.f32 0.0, %v6496
  %6498 = vmatmul.f32.gmra.mxu0 %v6343
  %v6499 = vpop.f32.mrf.mxu0
  %v6500 = vadd.f32 0.0, %v6499
  %6501 = vmatmul.f32.gmra.mxu0 %v6344
  %v6502 = vpop.f32.mrf.mxu0
  %v6503 = vadd.f32 0.0, %v6502
  %6504 = vmatmul.f32.gmra.mxu0 %v6345
  %v6505 = vpop.f32.mrf.mxu0
  %v6506 = vadd.f32 0.0, %v6505
  %6507 = vmatmul.f32.gmra.mxu0 %v6346
  %v6508 = vpop.f32.mrf.mxu0
  %v6509 = vadd.f32 0.0, %v6508
  %6510 = vmatmul.f32.gmra.mxu0 %v6347
  %v6511 = vpop.f32.mrf.mxu0
  %v6512 = vadd.f32 0.0, %v6511
  %6513 = vmatmul.f32.gmra.mxu0 %v6348
  %v6514 = vpop.f32.mrf.mxu0
  %v6515 = vadd.f32 0.0, %v6514
  %6516 = vmatmul.f32.gmra.mxu0 %v6349
  %v6517 = vpop.f32.mrf.mxu0
  %v6518 = vadd.f32 0.0, %v6517
  %6519 = vmatmul.f32.gmra.mxu0 %v6350
  %v6520 = vpop.f32.mrf.mxu0
  %v6521 = vadd.f32 0.0, %v6520
  %6522 = vmatmul.f32.gmra.mxu0 %v6351
  %v6523 = vpop.f32.mrf.mxu0
  %v6524 = vadd.f32 0.0, %v6523
  %6525 = vmatmul.f32.gmra.mxu0 %v6352
  %v6526 = vpop.f32.mrf.mxu0
  %v6527 = vadd.f32 0.0, %v6526
  %6528 = vmatmul.f32.gmra.mxu0 %v6353
  %v6529 = vpop.f32.mrf.mxu0
  %v6530 = vadd.f32 0.0, %v6529
  %6531 = vmatmul.f32.gmra.mxu0 %v6354
  %v6532 = vpop.f32.mrf.mxu0
  %v6533 = vadd.f32 0.0, %v6532
  %6534 = vmatmul.f32.gmra.mxu0 %v6355
  %v6535 = vpop.f32.mrf.mxu0
  %v6536 = vadd.f32 0.0, %v6535
  %6537 = vmatmul.f32.gmra.mxu0 %v6356
  %v6538 = vpop.f32.mrf.mxu0
  %v6539 = vadd.f32 0.0, %v6538
  %6540 = vmatmul.f32.gmra.mxu0 %v6357
  %v6541 = vpop.f32.mrf.mxu0
  %v6542 = vadd.f32 0.0, %v6541
  %6543 = vmatmul.f32.gmra.mxu0 %v6358
  %v6544 = vpop.f32.mrf.mxu0
  %v6545 = vadd.f32 0.0, %v6544
  %6546 = vmatmul.f32.gmra.mxu0 %v6359
  %v6547 = vpop.f32.mrf.mxu0
  %v6548 = vadd.f32 0.0, %v6547
  %6549 = vmatmul.f32.gmra.mxu0 %v6360
  %v6550 = vpop.f32.mrf.mxu0
  %v6551 = vadd.f32 0.0, %v6550
  %6552 = vmatmul.f32.gmra.mxu0 %v6361
  %v6553 = vpop.f32.mrf.mxu0
  %v6554 = vadd.f32 0.0, %v6553
  %6555 = vmatmul.f32.gmra.mxu0 %v6362
  %v6556 = vpop.f32.mrf.mxu0
  %v6557 = vadd.f32 0.0, %v6556
  %6558 = vmatmul.f32.gmra.mxu0 %v6363
  %v6559 = vpop.f32.mrf.mxu0
  %v6560 = vadd.f32 0.0, %v6559
  %6561 = vmatmul.f32.gmra.mxu0 %v6364
  %v6562 = vpop.f32.mrf.mxu0
  %v6563 = vadd.f32 0.0, %v6562
  %6564 = vmatmul.f32.gmra.mxu0 %v6365
  %v6565 = vpop.f32.mrf.mxu0
  %v6566 = vadd.f32 0.0, %v6565
  %6567 = vmatmul.f32.gmra.mxu0 %v6366
  %v6568 = vpop.f32.mrf.mxu0
  %v6569 = vadd.f32 0.0, %v6568
  %6570 = vmatmul.f32.gmra.mxu0 %v6367
  %v6571 = vpop.f32.mrf.mxu0
  %v6572 = vadd.f32 0.0, %v6571
  %6573 = vmatmul.f32.gmra.mxu0 %v6368
  %v6574 = vpop.f32.mrf.mxu0
  %v6575 = vadd.f32 0.0, %v6574
  %6576 = vmatmul.f32.gmra.mxu0 %v6369
  %v6577 = vpop.f32.mrf.mxu0
  %v6578 = vadd.f32 0.0, %v6577
  %6579 = vmatmul.f32.gmra.mxu0 %v6370
  %v6580 = vpop.f32.mrf.mxu0
  %v6581 = vadd.f32 0.0, %v6580
  %6582 = vmatmul.f32.gmra.mxu0 %v6371
  %v6583 = vpop.f32.mrf.mxu0
  %v6584 = vadd.f32 0.0, %v6583
  %6585 = vmatmul.f32.gmra.mxu0 %v6372
  %v6586 = vpop.f32.mrf.mxu0
  %v6587 = vadd.f32 0.0, %v6586
  %6588 = vmatmul.f32.gmra.mxu0 %v6373
  %v6589 = vpop.f32.mrf.mxu0
  %v6590 = vadd.f32 0.0, %v6589
  %6591 = vmatmul.f32.gmra.mxu0 %v6374
  %v6592 = vpop.f32.mrf.mxu0
  %v6593 = vadd.f32 0.0, %v6592
  %6594 = vmatmul.f32.gmra.mxu0 %v6375
  %v6595 = vpop.f32.mrf.mxu0
  %v6596 = vadd.f32 0.0, %v6595
  %6597 = vmatmul.f32.gmra.mxu0 %v6376
  %v6598 = vpop.f32.mrf.mxu0
  %v6599 = vadd.f32 0.0, %v6598
  %6600 = vmatmul.f32.gmra.mxu0 %v6377
  %v6601 = vpop.f32.mrf.mxu0
  %v6602 = vadd.f32 0.0, %v6601
  %6603 = vdwg.mxu0
  %v6604 = vadd.f32 %v6250, %v6413
  %v6605 = vadd.f32 %v6251, %v6416
  %v6606 = vadd.f32 %v6252, %v6419
  %v6607 = vadd.f32 %v6253, %v6422
  %v6608 = vadd.f32 %v6254, %v6425
  %v6609 = vadd.f32 %v6255, %v6428
  %v6610 = vadd.f32 %v6256, %v6431
  %v6611 = vadd.f32 %v6257, %v6434
  %v6612 = vadd.f32 %v6258, %v6437
  %v6613 = vadd.f32 %v6259, %v6440
  %v6614 = vadd.f32 %v6260, %v6443
  %v6615 = vadd.f32 %v6261, %v6446
  %v6616 = vadd.f32 %v6262, %v6449
  %v6617 = vadd.f32 %v6263, %v6452
  %v6618 = vadd.f32 %v6264, %v6455
  %v6619 = vadd.f32 %v6265, %v6458
  %v6620 = vadd.f32 %v6266, %v6461
  %v6621 = vadd.f32 %v6267, %v6464
  %v6622 = vadd.f32 %v6268, %v6467
  %v6623 = vadd.f32 %v6269, %v6470
  %v6624 = vadd.f32 %v6270, %v6473
  %v6625 = vadd.f32 %v6271, %v6476
  %v6626 = vadd.f32 %v6272, %v6479
  %v6627 = vadd.f32 %v6273, %v6482
  %v6628 = vadd.f32 %v6274, %v6485
  %v6629 = vadd.f32 %v6275, %v6488
  %v6630 = vadd.f32 %v6276, %v6491
  %v6631 = vadd.f32 %v6277, %v6494
  %v6632 = vadd.f32 %v6278, %v6497
  %v6633 = vadd.f32 %v6279, %v6500
  %v6634 = vadd.f32 %v6280, %v6503
  %v6635 = vadd.f32 %v6281, %v6506
  %v6636 = vadd.f32 %v6282, %v6509
  %v6637 = vadd.f32 %v6283, %v6512
  %v6638 = vadd.f32 %v6284, %v6515
  %v6639 = vadd.f32 %v6285, %v6518
  %v6640 = vadd.f32 %v6286, %v6521
  %v6641 = vadd.f32 %v6287, %v6524
  %v6642 = vadd.f32 %v6288, %v6527
  %v6643 = vadd.f32 %v6289, %v6530
  %v6644 = vadd.f32 %v6290, %v6533
  %v6645 = vadd.f32 %v6291, %v6536
  %v6646 = vadd.f32 %v6292, %v6539
  %v6647 = vadd.f32 %v6293, %v6542
  %v6648 = vadd.f32 %v6294, %v6545
  %v6649 = vadd.f32 %v6295, %v6548
  %v6650 = vadd.f32 %v6296, %v6551
  %v6651 = vadd.f32 %v6297, %v6554
  %v6652 = vadd.f32 %v6298, %v6557
  %v6653 = vadd.f32 %v6299, %v6560
  %v6654 = vadd.f32 %v6300, %v6563
  %v6655 = vadd.f32 %v6301, %v6566
  %v6656 = vadd.f32 %v6302, %v6569
  %v6657 = vadd.f32 %v6303, %v6572
  %v6658 = vadd.f32 %v6304, %v6575
  %v6659 = vadd.f32 %v6305, %v6578
  %v6660 = vadd.f32 %v6306, %v6581
  %v6661 = vadd.f32 %v6307, %v6584
  %v6662 = vadd.f32 %v6308, %v6587
  %v6663 = vadd.f32 %v6309, %v6590
  %v6664 = vadd.f32 %v6310, %v6593
  %v6665 = vadd.f32 %v6311, %v6596
  %v6666 = vadd.f32 %v6312, %v6599
  %v6667 = vadd.f32 %v6313, %v6602
  %v6668 = vld [vmem:[%s2295 + $0x9] sm:$0xff]
  %v6669 = vld [vmem:[%s2295 + $0x11] sm:$0xff]
  %v6670 = vld [vmem:[%s2295 + $0x29] sm:$0xff]
  %v6671 = vld [vmem:[%s2295 + $0x31] sm:$0xff]
  %v6672 = vld [vmem:[%s2295 + $0x49] sm:$0xff]
  %v6673 = vld [vmem:[%s2295 + $0x51] sm:$0xff]
  %v6674 = vld [vmem:[%s2295 + $0x69] sm:$0xff]
  %v6675 = vld [vmem:[%s2295 + $0x71] sm:$0xff]
  %v6676 = vld [vmem:[%s2295 + $0x89] sm:$0xff]
  %v6677 = vld [vmem:[%s2295 + $0x91] sm:$0xff]
  %v6678 = vld [vmem:[%s2295 + $0xa9] sm:$0xff]
  %v6679 = vld [vmem:[%s2295 + $0xb1] sm:$0xff]
  %v6680 = vld [vmem:[%s2295 + $0xc9] sm:$0xff]
  %v6681 = vld [vmem:[%s2295 + $0xd1] sm:$0xff]
  %v6682 = vld [vmem:[%s2295 + $0xe9] sm:$0xff]
  %v6683 = vld [vmem:[%s2295 + $0xf1] sm:$0xff]
  %v6684 = vld [vmem:[%s2295 + $0x109] sm:$0xff]
  %v6685 = vld [vmem:[%s2295 + $0x111] sm:$0xff]
  %v6686 = vld [vmem:[%s2295 + $0x129] sm:$0xff]
  %v6687 = vld [vmem:[%s2295 + $0x131] sm:$0xff]
  %v6688 = vld [vmem:[%s2295 + $0x149] sm:$0xff]
  %v6689 = vld [vmem:[%s2295 + $0x151] sm:$0xff]
  %v6690 = vld [vmem:[%s2295 + $0x169] sm:$0xff]
  %v6691 = vld [vmem:[%s2295 + $0x171] sm:$0xff]
  %v6692 = vld [vmem:[%s2295 + $0x189] sm:$0xff]
  %v6693 = vld [vmem:[%s2295 + $0x191] sm:$0xff]
  %v6694 = vld [vmem:[%s2295 + $0x1a9] sm:$0xff]
  %v6695 = vld [vmem:[%s2295 + $0x1b1] sm:$0xff]
  %v6696 = vld [vmem:[%s2295 + $0x1c9] sm:$0xff]
  %v6697 = vld [vmem:[%s2295 + $0x1d1] sm:$0xff]
  %v6698 = vld [vmem:[%s2295 + $0x1e9] sm:$0xff]
  %v6699 = vld [vmem:[%s2295 + $0x1f1] sm:$0xff]
  %v6700 = vld [vmem:[%s2295 + $0x249] sm:$0xff]
  %v6701 = vld [vmem:[%s2295 + $0x251] sm:$0xff]
  %v6702 = vld [vmem:[%s2295 + $0x269] sm:$0xff]
  %v6703 = vld [vmem:[%s2295 + $0x271] sm:$0xff]
  %v6704 = vld [vmem:[%s2295 + $0x289] sm:$0xff]
  %v6705 = vld [vmem:[%s2295 + $0x291] sm:$0xff]
  %v6706 = vld [vmem:[%s2295 + $0x2a9] sm:$0xff]
  %v6707 = vld [vmem:[%s2295 + $0x2b1] sm:$0xff]
  %v6708 = vld [vmem:[%s2295 + $0x2c9] sm:$0xff]
  %v6709 = vld [vmem:[%s2295 + $0x2d1] sm:$0xff]
  %v6710 = vld [vmem:[%s2295 + $0x2e9] sm:$0xff]
  %v6711 = vld [vmem:[%s2295 + $0x2f1] sm:$0xff]
  %v6712 = vld [vmem:[%s2295 + $0x309] sm:$0xff]
  %v6713 = vld [vmem:[%s2295 + $0x311] sm:$0xff]
  %v6714 = vld [vmem:[%s2295 + $0x329] sm:$0xff]
  %v6715 = vld [vmem:[%s2295 + $0x331] sm:$0xff]
  %v6716 = vld [vmem:[%s2295 + $0x349] sm:$0xff]
  %v6717 = vld [vmem:[%s2295 + $0x351] sm:$0xff]
  %v6718 = vld [vmem:[%s2295 + $0x369] sm:$0xff]
  %v6719 = vld [vmem:[%s2295 + $0x371] sm:$0xff]
  %v6720 = vld [vmem:[%s2295 + $0x389] sm:$0xff]
  %v6721 = vld [vmem:[%s2295 + $0x391] sm:$0xff]
  %v6722 = vld [vmem:[%s2295 + $0x3a9] sm:$0xff]
  %v6723 = vld [vmem:[%s2295 + $0x3b1] sm:$0xff]
  %v6724 = vld [vmem:[%s2295 + $0x3c9] sm:$0xff]
  %v6725 = vld [vmem:[%s2295 + $0x3d1] sm:$0xff]
  %v6726 = vld [vmem:[%s2295 + $0x3e9] sm:$0xff]
  %v6727 = vld [vmem:[%s2295 + $0x3f1] sm:$0xff]
  %v6728 = vld [vmem:[%s2295 + $0x409] sm:$0xff]
  %v6729 = vld [vmem:[%s2295 + $0x411] sm:$0xff]
  %v6730 = vld [vmem:[%s2295 + $0x429] sm:$0xff]
  %v6731 = vld [vmem:[%s2295 + $0x431] sm:$0xff]
  %s6732 = scalar_lea.vmem %s4, 1024
  %v6733 = vld [vmem:[%s6732] sm:$0xff]
  %v6734 = vld [vmem:[%s6732 + $0x8] sm:$0xff]
  %v6735 = vld [vmem:[%s6732 + $0x10] sm:$0xff]
  %v6736 = vld [vmem:[%s6732 + $0x18] sm:$0xff]
  %v6737 = vld [vmem:[%s6732 + $0x20] sm:$0xff]
  %v6738 = vld [vmem:[%s6732 + $0x28] sm:$0xff]
  %v6739 = vld [vmem:[%s6732 + $0x30] sm:$0xff]
  %v6740 = vld [vmem:[%s6732 + $0x38] sm:$0xff]
  %v6741 = vld [vmem:[%s6732 + $0x40] sm:$0xff]
  %v6742 = vld [vmem:[%s6732 + $0x48] sm:$0xff]
  %v6743 = vld [vmem:[%s6732 + $0x50] sm:$0xff]
  %v6744 = vld [vmem:[%s6732 + $0x58] sm:$0xff]
  %v6745 = vld [vmem:[%s6732 + $0x60] sm:$0xff]
  %v6746 = vld [vmem:[%s6732 + $0x68] sm:$0xff]
  %v6747 = vld [vmem:[%s6732 + $0x70] sm:$0xff]
  %v6748 = vld [vmem:[%s6732 + $0x78] sm:$0xff]
  %6749 = vmatpush.msra.mxu0 %v6748
  %6750 = vmatpush.msra.mxu0 %v6747
  %6751 = vmatpush.msra.mxu0 %v6746
  %6752 = vmatpush.msra.mxu0 %v6745
  %6753 = vmatpush.msra.mxu0 %v6744
  %6754 = vmatpush.msra.mxu0 %v6743
  %6755 = vmatpush.msra.mxu0 %v6742
  %6756 = vmatpush.msra.mxu0 %v6741
  %6757 = vmatpush.msra.mxu0 %v6740
  %6758 = vmatpush.msra.mxu0 %v6739
  %6759 = vmatpush.msra.mxu0 %v6738
  %6760 = vmatpush.msra.mxu0 %v6737
  %6761 = vmatpush.msra.mxu0 %v6736
  %6762 = vmatpush.msra.mxu0 %v6735
  %6763 = vmatpush.msra.mxu0 %v6734
  %6764 = vmatpush.msra.mxu0 %v6733
  %6765 = vmatmul.f32.gmra.mxu0 %v6668
  %v6766 = vpop.f32.mrf.mxu0
  %v6767 = vadd.f32 0.0, %v6766
  %6768 = vmatmul.f32.gmra.mxu0 %v6669
  %v6769 = vpop.f32.mrf.mxu0
  %v6770 = vadd.f32 0.0, %v6769
  %6771 = vmatmul.f32.gmra.mxu0 %v6670
  %v6772 = vpop.f32.mrf.mxu0
  %v6773 = vadd.f32 0.0, %v6772
  %6774 = vmatmul.f32.gmra.mxu0 %v6671
  %v6775 = vpop.f32.mrf.mxu0
  %v6776 = vadd.f32 0.0, %v6775
  %6777 = vmatmul.f32.gmra.mxu0 %v6672
  %v6778 = vpop.f32.mrf.mxu0
  %v6779 = vadd.f32 0.0, %v6778
  %6780 = vmatmul.f32.gmra.mxu0 %v6673
  %v6781 = vpop.f32.mrf.mxu0
  %v6782 = vadd.f32 0.0, %v6781
  %6783 = vmatmul.f32.gmra.mxu0 %v6674
  %v6784 = vpop.f32.mrf.mxu0
  %v6785 = vadd.f32 0.0, %v6784
  %6786 = vmatmul.f32.gmra.mxu0 %v6675
  %v6787 = vpop.f32.mrf.mxu0
  %v6788 = vadd.f32 0.0, %v6787
  %6789 = vmatmul.f32.gmra.mxu0 %v6676
  %v6790 = vpop.f32.mrf.mxu0
  %v6791 = vadd.f32 0.0, %v6790
  %6792 = vmatmul.f32.gmra.mxu0 %v6677
  %v6793 = vpop.f32.mrf.mxu0
  %v6794 = vadd.f32 0.0, %v6793
  %6795 = vmatmul.f32.gmra.mxu0 %v6678
  %v6796 = vpop.f32.mrf.mxu0
  %v6797 = vadd.f32 0.0, %v6796
  %6798 = vmatmul.f32.gmra.mxu0 %v6679
  %v6799 = vpop.f32.mrf.mxu0
  %v6800 = vadd.f32 0.0, %v6799
  %6801 = vmatmul.f32.gmra.mxu0 %v6680
  %v6802 = vpop.f32.mrf.mxu0
  %v6803 = vadd.f32 0.0, %v6802
  %6804 = vmatmul.f32.gmra.mxu0 %v6681
  %v6805 = vpop.f32.mrf.mxu0
  %v6806 = vadd.f32 0.0, %v6805
  %6807 = vmatmul.f32.gmra.mxu0 %v6682
  %v6808 = vpop.f32.mrf.mxu0
  %v6809 = vadd.f32 0.0, %v6808
  %6810 = vmatmul.f32.gmra.mxu0 %v6683
  %v6811 = vpop.f32.mrf.mxu0
  %v6812 = vadd.f32 0.0, %v6811
  %6813 = vmatmul.f32.gmra.mxu0 %v6684
  %v6814 = vpop.f32.mrf.mxu0
  %v6815 = vadd.f32 0.0, %v6814
  %6816 = vmatmul.f32.gmra.mxu0 %v6685
  %v6817 = vpop.f32.mrf.mxu0
  %v6818 = vadd.f32 0.0, %v6817
  %6819 = vmatmul.f32.gmra.mxu0 %v6686
  %v6820 = vpop.f32.mrf.mxu0
  %v6821 = vadd.f32 0.0, %v6820
  %6822 = vmatmul.f32.gmra.mxu0 %v6687
  %v6823 = vpop.f32.mrf.mxu0
  %v6824 = vadd.f32 0.0, %v6823
  %6825 = vmatmul.f32.gmra.mxu0 %v6688
  %v6826 = vpop.f32.mrf.mxu0
  %v6827 = vadd.f32 0.0, %v6826
  %6828 = vmatmul.f32.gmra.mxu0 %v6689
  %v6829 = vpop.f32.mrf.mxu0
  %v6830 = vadd.f32 0.0, %v6829
  %6831 = vmatmul.f32.gmra.mxu0 %v6690
  %v6832 = vpop.f32.mrf.mxu0
  %v6833 = vadd.f32 0.0, %v6832
  %6834 = vmatmul.f32.gmra.mxu0 %v6691
  %v6835 = vpop.f32.mrf.mxu0
  %v6836 = vadd.f32 0.0, %v6835
  %6837 = vmatmul.f32.gmra.mxu0 %v6692
  %v6838 = vpop.f32.mrf.mxu0
  %v6839 = vadd.f32 0.0, %v6838
  %6840 = vmatmul.f32.gmra.mxu0 %v6693
  %v6841 = vpop.f32.mrf.mxu0
  %v6842 = vadd.f32 0.0, %v6841
  %6843 = vmatmul.f32.gmra.mxu0 %v6694
  %v6844 = vpop.f32.mrf.mxu0
  %v6845 = vadd.f32 0.0, %v6844
  %6846 = vmatmul.f32.gmra.mxu0 %v6695
  %v6847 = vpop.f32.mrf.mxu0
  %v6848 = vadd.f32 0.0, %v6847
  %6849 = vmatmul.f32.gmra.mxu0 %v6696
  %v6850 = vpop.f32.mrf.mxu0
  %v6851 = vadd.f32 0.0, %v6850
  %6852 = vmatmul.f32.gmra.mxu0 %v6697
  %v6853 = vpop.f32.mrf.mxu0
  %v6854 = vadd.f32 0.0, %v6853
  %6855 = vmatmul.f32.gmra.mxu0 %v6698
  %v6856 = vpop.f32.mrf.mxu0
  %v6857 = vadd.f32 0.0, %v6856
  %6858 = vmatmul.f32.gmra.mxu0 %v6699
  %v6859 = vpop.f32.mrf.mxu0
  %v6860 = vadd.f32 0.0, %v6859
  %6861 = vmatmul.f32.gmra.mxu0 %v6700
  %v6862 = vpop.f32.mrf.mxu0
  %v6863 = vadd.f32 0.0, %v6862
  %6864 = vmatmul.f32.gmra.mxu0 %v6701
  %v6865 = vpop.f32.mrf.mxu0
  %v6866 = vadd.f32 0.0, %v6865
  %6867 = vmatmul.f32.gmra.mxu0 %v6702
  %v6868 = vpop.f32.mrf.mxu0
  %v6869 = vadd.f32 0.0, %v6868
  %6870 = vmatmul.f32.gmra.mxu0 %v6703
  %v6871 = vpop.f32.mrf.mxu0
  %v6872 = vadd.f32 0.0, %v6871
  %6873 = vmatmul.f32.gmra.mxu0 %v6704
  %v6874 = vpop.f32.mrf.mxu0
  %v6875 = vadd.f32 0.0, %v6874
  %6876 = vmatmul.f32.gmra.mxu0 %v6705
  %v6877 = vpop.f32.mrf.mxu0
  %v6878 = vadd.f32 0.0, %v6877
  %6879 = vmatmul.f32.gmra.mxu0 %v6706
  %v6880 = vpop.f32.mrf.mxu0
  %v6881 = vadd.f32 0.0, %v6880
  %6882 = vmatmul.f32.gmra.mxu0 %v6707
  %v6883 = vpop.f32.mrf.mxu0
  %v6884 = vadd.f32 0.0, %v6883
  %6885 = vmatmul.f32.gmra.mxu0 %v6708
  %v6886 = vpop.f32.mrf.mxu0
  %v6887 = vadd.f32 0.0, %v6886
  %6888 = vmatmul.f32.gmra.mxu0 %v6709
  %v6889 = vpop.f32.mrf.mxu0
  %v6890 = vadd.f32 0.0, %v6889
  %6891 = vmatmul.f32.gmra.mxu0 %v6710
  %v6892 = vpop.f32.mrf.mxu0
  %v6893 = vadd.f32 0.0, %v6892
  %6894 = vmatmul.f32.gmra.mxu0 %v6711
  %v6895 = vpop.f32.mrf.mxu0
  %v6896 = vadd.f32 0.0, %v6895
  %6897 = vmatmul.f32.gmra.mxu0 %v6712
  %v6898 = vpop.f32.mrf.mxu0
  %v6899 = vadd.f32 0.0, %v6898
  %6900 = vmatmul.f32.gmra.mxu0 %v6713
  %v6901 = vpop.f32.mrf.mxu0
  %v6902 = vadd.f32 0.0, %v6901
  %6903 = vmatmul.f32.gmra.mxu0 %v6714
  %v6904 = vpop.f32.mrf.mxu0
  %v6905 = vadd.f32 0.0, %v6904
  %6906 = vmatmul.f32.gmra.mxu0 %v6715
  %v6907 = vpop.f32.mrf.mxu0
  %v6908 = vadd.f32 0.0, %v6907
  %6909 = vmatmul.f32.gmra.mxu0 %v6716
  %v6910 = vpop.f32.mrf.mxu0
  %v6911 = vadd.f32 0.0, %v6910
  %6912 = vmatmul.f32.gmra.mxu0 %v6717
  %v6913 = vpop.f32.mrf.mxu0
  %v6914 = vadd.f32 0.0, %v6913
  %6915 = vmatmul.f32.gmra.mxu0 %v6718
  %v6916 = vpop.f32.mrf.mxu0
  %v6917 = vadd.f32 0.0, %v6916
  %6918 = vmatmul.f32.gmra.mxu0 %v6719
  %v6919 = vpop.f32.mrf.mxu0
  %v6920 = vadd.f32 0.0, %v6919
  %6921 = vmatmul.f32.gmra.mxu0 %v6720
  %v6922 = vpop.f32.mrf.mxu0
  %v6923 = vadd.f32 0.0, %v6922
  %6924 = vmatmul.f32.gmra.mxu0 %v6721
  %v6925 = vpop.f32.mrf.mxu0
  %v6926 = vadd.f32 0.0, %v6925
  %6927 = vmatmul.f32.gmra.mxu0 %v6722
  %v6928 = vpop.f32.mrf.mxu0
  %v6929 = vadd.f32 0.0, %v6928
  %6930 = vmatmul.f32.gmra.mxu0 %v6723
  %v6931 = vpop.f32.mrf.mxu0
  %v6932 = vadd.f32 0.0, %v6931
  %6933 = vmatmul.f32.gmra.mxu0 %v6724
  %v6934 = vpop.f32.mrf.mxu0
  %v6935 = vadd.f32 0.0, %v6934
  %6936 = vmatmul.f32.gmra.mxu0 %v6725
  %v6937 = vpop.f32.mrf.mxu0
  %v6938 = vadd.f32 0.0, %v6937
  %6939 = vmatmul.f32.gmra.mxu0 %v6726
  %v6940 = vpop.f32.mrf.mxu0
  %v6941 = vadd.f32 0.0, %v6940
  %6942 = vmatmul.f32.gmra.mxu0 %v6727
  %v6943 = vpop.f32.mrf.mxu0
  %v6944 = vadd.f32 0.0, %v6943
  %6945 = vmatmul.f32.gmra.mxu0 %v6728
  %v6946 = vpop.f32.mrf.mxu0
  %v6947 = vadd.f32 0.0, %v6946
  %6948 = vmatmul.f32.gmra.mxu0 %v6729
  %v6949 = vpop.f32.mrf.mxu0
  %v6950 = vadd.f32 0.0, %v6949
  %6951 = vmatmul.f32.gmra.mxu0 %v6730
  %v6952 = vpop.f32.mrf.mxu0
  %v6953 = vadd.f32 0.0, %v6952
  %6954 = vmatmul.f32.gmra.mxu0 %v6731
  %v6955 = vpop.f32.mrf.mxu0
  %v6956 = vadd.f32 0.0, %v6955
  %6957 = vdwg.mxu0
  %v6958 = vadd.f32 %v6604, %v6767
  %v6959 = vadd.f32 %v6605, %v6770
  %v6960 = vadd.f32 %v6606, %v6773
  %v6961 = vadd.f32 %v6607, %v6776
  %v6962 = vadd.f32 %v6608, %v6779
  %v6963 = vadd.f32 %v6609, %v6782
  %v6964 = vadd.f32 %v6610, %v6785
  %v6965 = vadd.f32 %v6611, %v6788
  %v6966 = vadd.f32 %v6612, %v6791
  %v6967 = vadd.f32 %v6613, %v6794
  %v6968 = vadd.f32 %v6614, %v6797
  %v6969 = vadd.f32 %v6615, %v6800
  %v6970 = vadd.f32 %v6616, %v6803
  %v6971 = vadd.f32 %v6617, %v6806
  %v6972 = vadd.f32 %v6618, %v6809
  %v6973 = vadd.f32 %v6619, %v6812
  %v6974 = vadd.f32 %v6620, %v6815
  %v6975 = vadd.f32 %v6621, %v6818
  %v6976 = vadd.f32 %v6622, %v6821
  %v6977 = vadd.f32 %v6623, %v6824
  %v6978 = vadd.f32 %v6624, %v6827
  %v6979 = vadd.f32 %v6625, %v6830
  %v6980 = vadd.f32 %v6626, %v6833
  %v6981 = vadd.f32 %v6627, %v6836
  %v6982 = vadd.f32 %v6628, %v6839
  %v6983 = vadd.f32 %v6629, %v6842
  %v6984 = vadd.f32 %v6630, %v6845
  %v6985 = vadd.f32 %v6631, %v6848
  %v6986 = vadd.f32 %v6632, %v6851
  %v6987 = vadd.f32 %v6633, %v6854
  %v6988 = vadd.f32 %v6634, %v6857
  %v6989 = vadd.f32 %v6635, %v6860
  %v6990 = vadd.f32 %v6636, %v6863
  %v6991 = vadd.f32 %v6637, %v6866
  %v6992 = vadd.f32 %v6638, %v6869
  %v6993 = vadd.f32 %v6639, %v6872
  %v6994 = vadd.f32 %v6640, %v6875
  %v6995 = vadd.f32 %v6641, %v6878
  %v6996 = vadd.f32 %v6642, %v6881
  %v6997 = vadd.f32 %v6643, %v6884
  %v6998 = vadd.f32 %v6644, %v6887
  %v6999 = vadd.f32 %v6645, %v6890
  %v7000 = vadd.f32 %v6646, %v6893
  %v7001 = vadd.f32 %v6647, %v6896
  %v7002 = vadd.f32 %v6648, %v6899
  %v7003 = vadd.f32 %v6649, %v6902
  %v7004 = vadd.f32 %v6650, %v6905
  %v7005 = vadd.f32 %v6651, %v6908
  %v7006 = vadd.f32 %v6652, %v6911
  %v7007 = vadd.f32 %v6653, %v6914
  %v7008 = vadd.f32 %v6654, %v6917
  %v7009 = vadd.f32 %v6655, %v6920
  %v7010 = vadd.f32 %v6656, %v6923
  %v7011 = vadd.f32 %v6657, %v6926
  %v7012 = vadd.f32 %v6658, %v6929
  %v7013 = vadd.f32 %v6659, %v6932
  %v7014 = vadd.f32 %v6660, %v6935
  %v7015 = vadd.f32 %v6661, %v6938
  %v7016 = vadd.f32 %v6662, %v6941
  %v7017 = vadd.f32 %v6663, %v6944
  %v7018 = vadd.f32 %v6664, %v6947
  %v7019 = vadd.f32 %v6665, %v6950
  %v7020 = vadd.f32 %v6666, %v6953
  %v7021 = vadd.f32 %v6667, %v6956
  %v7022 = vadd.f32 %v6958, %v6959
  %v7023 = vadd.f32 %v7022, %v6960
  %v7024 = vadd.f32 %v7023, %v6961
  %v7025 = vadd.f32 %v7024, %v6962
  %v7026 = vadd.f32 %v7025, %v6963
  %v7027 = vadd.f32 %v7026, %v6964
  %v7028 = vadd.f32 %v7027, %v6965
  %v7029 = vadd.f32 %v7028, %v6966
  %v7030 = vadd.f32 %v7029, %v6967
  %v7031 = vadd.f32 %v7030, %v6968
  %v7032 = vadd.f32 %v7031, %v6969
  %v7033 = vadd.f32 %v7032, %v6970
  %v7034 = vadd.f32 %v7033, %v6971
  %v7035 = vadd.f32 %v7034, %v6972
  %v7036 = vadd.f32 %v7035, %v6973
  %v7037 = vadd.f32 %v7036, %v6974
  %v7038 = vadd.f32 %v7037, %v6975
  %v7039 = vadd.f32 %v7038, %v6976
  %v7040 = vadd.f32 %v7039, %v6977
  %v7041 = vadd.f32 %v7040, %v6978
  %v7042 = vadd.f32 %v7041, %v6979
  %v7043 = vadd.f32 %v7042, %v6980
  %v7044 = vadd.f32 %v7043, %v6981
  %v7045 = vadd.f32 %v7044, %v6982
  %v7046 = vadd.f32 %v7045, %v6983
  %v7047 = vadd.f32 %v7046, %v6984
  %v7048 = vadd.f32 %v7047, %v6985
  %v7049 = vadd.f32 %v7048, %v6986
  %v7050 = vadd.f32 %v7049, %v6987
  %v7051 = vadd.f32 %v7050, %v6988
  %v7052 = vadd.f32 %v7051, %v6989
  %v7053 = vadd.f32 %v7052, %v6990
  %v7054 = vadd.f32 %v7053, %v6991
  %v7055 = vadd.f32 %v7054, %v6992
  %v7056 = vadd.f32 %v7055, %v6993
  %v7057 = vadd.f32 %v7056, %v6994
  %v7058 = vadd.f32 %v7057, %v6995
  %v7059 = vadd.f32 %v7058, %v6996
  %v7060 = vadd.f32 %v7059, %v6997
  %v7061 = vadd.f32 %v7060, %v6998
  %v7062 = vadd.f32 %v7061, %v6999
  %v7063 = vadd.f32 %v7062, %v7000
  %v7064 = vadd.f32 %v7063, %v7001
  %v7065 = vadd.f32 %v7064, %v7002
  %v7066 = vadd.f32 %v7065, %v7003
  %v7067 = vadd.f32 %v7066, %v7004
  %v7068 = vadd.f32 %v7067, %v7005
  %v7069 = vadd.f32 %v7068, %v7006
  %v7070 = vadd.f32 %v7069, %v7007
  %v7071 = vadd.f32 %v7070, %v7008
  %v7072 = vadd.f32 %v7071, %v7009
  %v7073 = vadd.f32 %v7072, %v7010
  %v7074 = vadd.f32 %v7073, %v7011
  %v7075 = vadd.f32 %v7074, %v7012
  %v7076 = vadd.f32 %v7075, %v7013
  %v7077 = vadd.f32 %v7076, %v7014
  %v7078 = vadd.f32 %v7077, %v7015
  %v7079 = vadd.f32 %v7078, %v7016
  %v7080 = vadd.f32 %v7079, %v7017
  %v7081 = vadd.f32 %v7080, %v7018
  %v7082 = vadd.f32 %v7081, %v7019
  %v7083 = vadd.f32 %v7082, %v7020
  %v7084 = vadd.f32 %v7083, %v7021
  %v7085 = vrot.slane %v7084, 4
  %v7086 = vadd.f32 %v7084, %v7085
  %v7087 = vrot.slane %v7086, 2
  %v7088 = vadd.f32 %v7086, %v7087
  %v7089 = vrot.slane %v7088, 1
  %v7090 = vadd.f32 %v7088, %v7089
  %v7091 = vmul.f32 %v7090, 0.001953125
  %v7092 = vsub.f32 %v6958, %v7091
  %v7093 = vsub.f32 %v6959, %v7091
  %v7094 = vsub.f32 %v6960, %v7091
  %v7095 = vsub.f32 %v6961, %v7091
  %v7096 = vsub.f32 %v6962, %v7091
  %v7097 = vsub.f32 %v6963, %v7091
  %v7098 = vsub.f32 %v6964, %v7091
  %v7099 = vsub.f32 %v6965, %v7091
  %v7100 = vsub.f32 %v6966, %v7091
  %v7101 = vsub.f32 %v6967, %v7091
  %v7102 = vsub.f32 %v6968, %v7091
  %v7103 = vsub.f32 %v6969, %v7091
  %v7104 = vsub.f32 %v6970, %v7091
  %v7105 = vsub.f32 %v6971, %v7091
  %v7106 = vsub.f32 %v6972, %v7091
  %v7107 = vsub.f32 %v6973, %v7091
  %v7108 = vsub.f32 %v6974, %v7091
  %v7109 = vsub.f32 %v6975, %v7091
  %v7110 = vsub.f32 %v6976, %v7091
  %v7111 = vsub.f32 %v6977, %v7091
  %v7112 = vsub.f32 %v6978, %v7091
  %v7113 = vsub.f32 %v6979, %v7091
  %v7114 = vsub.f32 %v6980, %v7091
  %v7115 = vsub.f32 %v6981, %v7091
  %v7116 = vsub.f32 %v6982, %v7091
  %v7117 = vsub.f32 %v6983, %v7091
  %v7118 = vsub.f32 %v6984, %v7091
  %v7119 = vsub.f32 %v6985, %v7091
  %v7120 = vsub.f32 %v6986, %v7091
  %v7121 = vsub.f32 %v6987, %v7091
  %v7122 = vsub.f32 %v6988, %v7091
  %v7123 = vsub.f32 %v6989, %v7091
  %v7124 = vsub.f32 %v6990, %v7091
  %v7125 = vsub.f32 %v6991, %v7091
  %v7126 = vsub.f32 %v6992, %v7091
  %v7127 = vsub.f32 %v6993, %v7091
  %v7128 = vsub.f32 %v6994, %v7091
  %v7129 = vsub.f32 %v6995, %v7091
  %v7130 = vsub.f32 %v6996, %v7091
  %v7131 = vsub.f32 %v6997, %v7091
  %v7132 = vsub.f32 %v6998, %v7091
  %v7133 = vsub.f32 %v6999, %v7091
  %v7134 = vsub.f32 %v7000, %v7091
  %v7135 = vsub.f32 %v7001, %v7091
  %v7136 = vsub.f32 %v7002, %v7091
  %v7137 = vsub.f32 %v7003, %v7091
  %v7138 = vsub.f32 %v7004, %v7091
  %v7139 = vsub.f32 %v7005, %v7091
  %v7140 = vsub.f32 %v7006, %v7091
  %v7141 = vsub.f32 %v7007, %v7091
  %v7142 = vsub.f32 %v7008, %v7091
  %v7143 = vsub.f32 %v7009, %v7091
  %v7144 = vsub.f32 %v7010, %v7091
  %v7145 = vsub.f32 %v7011, %v7091
  %v7146 = vsub.f32 %v7012, %v7091
  %v7147 = vsub.f32 %v7013, %v7091
  %v7148 = vsub.f32 %v7014, %v7091
  %v7149 = vsub.f32 %v7015, %v7091
  %v7150 = vsub.f32 %v7016, %v7091
  %v7151 = vsub.f32 %v7017, %v7091
  %v7152 = vsub.f32 %v7018, %v7091
  %v7153 = vsub.f32 %v7019, %v7091
  %v7154 = vsub.f32 %v7020, %v7091
  %v7155 = vsub.f32 %v7021, %v7091
  %v7156 = vmul.f32 %v7092, %v7092
  %v7157 = vmul.f32 %v7093, %v7093
  %v7158 = vmul.f32 %v7094, %v7094
  %v7159 = vmul.f32 %v7095, %v7095
  %v7160 = vmul.f32 %v7096, %v7096
  %v7161 = vmul.f32 %v7097, %v7097
  %v7162 = vmul.f32 %v7098, %v7098
  %v7163 = vmul.f32 %v7099, %v7099
  %v7164 = vmul.f32 %v7100, %v7100
  %v7165 = vmul.f32 %v7101, %v7101
  %v7166 = vmul.f32 %v7102, %v7102
  %v7167 = vmul.f32 %v7103, %v7103
  %v7168 = vmul.f32 %v7104, %v7104
  %v7169 = vmul.f32 %v7105, %v7105
  %v7170 = vmul.f32 %v7106, %v7106
  %v7171 = vmul.f32 %v7107, %v7107
  %v7172 = vmul.f32 %v7108, %v7108
  %v7173 = vmul.f32 %v7109, %v7109
  %v7174 = vmul.f32 %v7110, %v7110
  %v7175 = vmul.f32 %v7111, %v7111
  %v7176 = vmul.f32 %v7112, %v7112
  %v7177 = vmul.f32 %v7113, %v7113
  %v7178 = vmul.f32 %v7114, %v7114
  %v7179 = vmul.f32 %v7115, %v7115
  %v7180 = vmul.f32 %v7116, %v7116
  %v7181 = vmul.f32 %v7117, %v7117
  %v7182 = vmul.f32 %v7118, %v7118
  %v7183 = vmul.f32 %v7119, %v7119
  %v7184 = vmul.f32 %v7120, %v7120
  %v7185 = vmul.f32 %v7121, %v7121
  %v7186 = vmul.f32 %v7122, %v7122
  %v7187 = vmul.f32 %v7123, %v7123
  %v7188 = vmul.f32 %v7124, %v7124
  %v7189 = vmul.f32 %v7125, %v7125
  %v7190 = vmul.f32 %v7126, %v7126
  %v7191 = vmul.f32 %v7127, %v7127
  %v7192 = vmul.f32 %v7128, %v7128
  %v7193 = vmul.f32 %v7129, %v7129
  %v7194 = vmul.f32 %v7130, %v7130
  %v7195 = vmul.f32 %v7131, %v7131
  %v7196 = vmul.f32 %v7132, %v7132
  %v7197 = vmul.f32 %v7133, %v7133
  %v7198 = vmul.f32 %v7134, %v7134
  %v7199 = vmul.f32 %v7135, %v7135
  %v7200 = vmul.f32 %v7136, %v7136
  %v7201 = vmul.f32 %v7137, %v7137
  %v7202 = vmul.f32 %v7138, %v7138
  %v7203 = vmul.f32 %v7139, %v7139
  %v7204 = vmul.f32 %v7140, %v7140
  %v7205 = vmul.f32 %v7141, %v7141
  %v7206 = vmul.f32 %v7142, %v7142
  %v7207 = vmul.f32 %v7143, %v7143
  %v7208 = vmul.f32 %v7144, %v7144
  %v7209 = vmul.f32 %v7145, %v7145
  %v7210 = vmul.f32 %v7146, %v7146
  %v7211 = vmul.f32 %v7147, %v7147
  %v7212 = vmul.f32 %v7148, %v7148
  %v7213 = vmul.f32 %v7149, %v7149
  %v7214 = vmul.f32 %v7150, %v7150
  %v7215 = vmul.f32 %v7151, %v7151
  %v7216 = vmul.f32 %v7152, %v7152
  %v7217 = vmul.f32 %v7153, %v7153
  %v7218 = vmul.f32 %v7154, %v7154
  %v7219 = vmul.f32 %v7155, %v7155
  %v7220 = vadd.f32 %v7156, %v7157
  %v7221 = vadd.f32 %v7220, %v7158
  %v7222 = vadd.f32 %v7221, %v7159
  %v7223 = vadd.f32 %v7222, %v7160
  %v7224 = vadd.f32 %v7223, %v7161
  %v7225 = vadd.f32 %v7224, %v7162
  %v7226 = vadd.f32 %v7225, %v7163
  %v7227 = vadd.f32 %v7226, %v7164
  %v7228 = vadd.f32 %v7227, %v7165
  %v7229 = vadd.f32 %v7228, %v7166
  %v7230 = vadd.f32 %v7229, %v7167
  %v7231 = vadd.f32 %v7230, %v7168
  %v7232 = vadd.f32 %v7231, %v7169
  %v7233 = vadd.f32 %v7232, %v7170
  %v7234 = vadd.f32 %v7233, %v7171
  %v7235 = vadd.f32 %v7234, %v7172
  %v7236 = vadd.f32 %v7235, %v7173
  %v7237 = vadd.f32 %v7236, %v7174
  %v7238 = vadd.f32 %v7237, %v7175
  %v7239 = vadd.f32 %v7238, %v7176
  %v7240 = vadd.f32 %v7239, %v7177
  %v7241 = vadd.f32 %v7240, %v7178
  %v7242 = vadd.f32 %v7241, %v7179
  %v7243 = vadd.f32 %v7242, %v7180
  %v7244 = vadd.f32 %v7243, %v7181
  %v7245 = vadd.f32 %v7244, %v7182
  %v7246 = vadd.f32 %v7245, %v7183
  %v7247 = vadd.f32 %v7246, %v7184
  %v7248 = vadd.f32 %v7247, %v7185
  %v7249 = vadd.f32 %v7248, %v7186
  %v7250 = vadd.f32 %v7249, %v7187
  %v7251 = vadd.f32 %v7250, %v7188
  %v7252 = vadd.f32 %v7251, %v7189
  %v7253 = vadd.f32 %v7252, %v7190
  %v7254 = vadd.f32 %v7253, %v7191
  %v7255 = vadd.f32 %v7254, %v7192
  %v7256 = vadd.f32 %v7255, %v7193
  %v7257 = vadd.f32 %v7256, %v7194
  %v7258 = vadd.f32 %v7257, %v7195
  %v7259 = vadd.f32 %v7258, %v7196
  %v7260 = vadd.f32 %v7259, %v7197
  %v7261 = vadd.f32 %v7260, %v7198
  %v7262 = vadd.f32 %v7261, %v7199
  %v7263 = vadd.f32 %v7262, %v7200
  %v7264 = vadd.f32 %v7263, %v7201
  %v7265 = vadd.f32 %v7264, %v7202
  %v7266 = vadd.f32 %v7265, %v7203
  %v7267 = vadd.f32 %v7266, %v7204
  %v7268 = vadd.f32 %v7267, %v7205
  %v7269 = vadd.f32 %v7268, %v7206
  %v7270 = vadd.f32 %v7269, %v7207
  %v7271 = vadd.f32 %v7270, %v7208
  %v7272 = vadd.f32 %v7271, %v7209
  %v7273 = vadd.f32 %v7272, %v7210
  %v7274 = vadd.f32 %v7273, %v7211
  %v7275 = vadd.f32 %v7274, %v7212
  %v7276 = vadd.f32 %v7275, %v7213
  %v7277 = vadd.f32 %v7276, %v7214
  %v7278 = vadd.f32 %v7277, %v7215
  %v7279 = vadd.f32 %v7278, %v7216
  %v7280 = vadd.f32 %v7279, %v7217
  %v7281 = vadd.f32 %v7280, %v7218
  %v7282 = vadd.f32 %v7281, %v7219
  %v7283 = vrot.slane %v7282, 4
  %v7284 = vadd.f32 %v7282, %v7283
  %v7285 = vrot.slane %v7284, 2
  %v7286 = vadd.f32 %v7284, %v7285
  %v7287 = vrot.slane %v7286, 1
  %v7288 = vadd.f32 %v7286, %v7287
  %v7289 = vmul.f32 %v7288, 0.001953125
  %v7290 = vadd.f32 %v7289, 1e-05
  %v7291 = vrsqrt.pop %v7290
  %v7292 = vmul.f32 %v7291, %v7290
  %v7293 = vmul.f32 %v7292, %v7291
  %v7294 = vmul.f32 0.5, %v7293
  %v7295 = vsub.f32 1.5, %v7294
  %v7296 = vmul.f32 %v7291, %v7295
  %vm7297 = vweird.f32 %v7290
  %vm7298 = vweird.f32 %v7291
  %vm7299 = vmor %vm7297, %vm7298
  %v7300 = vsel %vm7299, %v7291, %v7296
  %v7301 = vmul.f32 %v7092, %v7300
  %v7302 = vmul.f32 %v7093, %v7300
  %v7303 = vmul.f32 %v7094, %v7300
  %v7304 = vmul.f32 %v7095, %v7300
  %v7305 = vmul.f32 %v7096, %v7300
  %v7306 = vmul.f32 %v7097, %v7300
  %v7307 = vmul.f32 %v7098, %v7300
  %v7308 = vmul.f32 %v7099, %v7300
  %v7309 = vmul.f32 %v7100, %v7300
  %v7310 = vmul.f32 %v7101, %v7300
  %v7311 = vmul.f32 %v7102, %v7300
  %v7312 = vmul.f32 %v7103, %v7300
  %v7313 = vmul.f32 %v7104, %v7300
  %v7314 = vmul.f32 %v7105, %v7300
  %v7315 = vmul.f32 %v7106, %v7300
  %v7316 = vmul.f32 %v7107, %v7300
  %v7317 = vmul.f32 %v7108, %v7300
  %v7318 = vmul.f32 %v7109, %v7300
  %v7319 = vmul.f32 %v7110, %v7300
  %v7320 = vmul.f32 %v7111, %v7300
  %v7321 = vmul.f32 %v7112, %v7300
  %v7322 = vmul.f32 %v7113, %v7300
  %v7323 = vmul.f32 %v7114, %v7300
  %v7324 = vmul.f32 %v7115, %v7300
  %v7325 = vmul.f32 %v7116, %v7300
  %v7326 = vmul.f32 %v7117, %v7300
  %v7327 = vmul.f32 %v7118, %v7300
  %v7328 = vmul.f32 %v7119, %v7300
  %v7329 = vmul.f32 %v7120, %v7300
  %v7330 = vmul.f32 %v7121, %v7300
  %v7331 = vmul.f32 %v7122, %v7300
  %v7332 = vmul.f32 %v7123, %v7300
  %v7333 = vmul.f32 %v7124, %v7300
  %v7334 = vmul.f32 %v7125, %v7300
  %v7335 = vmul.f32 %v7126, %v7300
  %v7336 = vmul.f32 %v7127, %v7300
  %v7337 = vmul.f32 %v7128, %v7300
  %v7338 = vmul.f32 %v7129, %v7300
  %v7339 = vmul.f32 %v7130, %v7300
  %v7340 = vmul.f32 %v7131, %v7300
  %v7341 = vmul.f32 %v7132, %v7300
  %v7342 = vmul.f32 %v7133, %v7300
  %v7343 = vmul.f32 %v7134, %v7300
  %v7344 = vmul.f32 %v7135, %v7300
  %v7345 = vmul.f32 %v7136, %v7300
  %v7346 = vmul.f32 %v7137, %v7300
  %v7347 = vmul.f32 %v7138, %v7300
  %v7348 = vmul.f32 %v7139, %v7300
  %v7349 = vmul.f32 %v7140, %v7300
  %v7350 = vmul.f32 %v7141, %v7300
  %v7351 = vmul.f32 %v7142, %v7300
  %v7352 = vmul.f32 %v7143, %v7300
  %v7353 = vmul.f32 %v7144, %v7300
  %v7354 = vmul.f32 %v7145, %v7300
  %v7355 = vmul.f32 %v7146, %v7300
  %v7356 = vmul.f32 %v7147, %v7300
  %v7357 = vmul.f32 %v7148, %v7300
  %v7358 = vmul.f32 %v7149, %v7300
  %v7359 = vmul.f32 %v7150, %v7300
  %v7360 = vmul.f32 %v7151, %v7300
  %v7361 = vmul.f32 %v7152, %v7300
  %v7362 = vmul.f32 %v7153, %v7300
  %v7363 = vmul.f32 %v7154, %v7300
  %v7364 = vmul.f32 %v7155, %v7300
  %v7365 = vld [vmem:[%s5] sm:$0x1]
  %v7367 = vperm.slane %v7365, 0
  %v7369 = vmul.f32 %v7301, %v7367
  %v7370 = vmul.f32 %v7302, %v7367
  %v7371 = vmul.f32 %v7303, %v7367
  %v7372 = vmul.f32 %v7304, %v7367
  %v7373 = vmul.f32 %v7305, %v7367
  %v7374 = vmul.f32 %v7306, %v7367
  %v7375 = vmul.f32 %v7307, %v7367
  %v7376 = vmul.f32 %v7308, %v7367
  %v7377 = vmul.f32 %v7309, %v7367
  %v7378 = vmul.f32 %v7310, %v7367
  %v7379 = vmul.f32 %v7311, %v7367
  %v7380 = vmul.f32 %v7312, %v7367
  %v7381 = vmul.f32 %v7313, %v7367
  %v7382 = vmul.f32 %v7314, %v7367
  %v7383 = vmul.f32 %v7315, %v7367
  %v7384 = vmul.f32 %v7316, %v7367
  %v7385 = vmul.f32 %v7317, %v7367
  %v7386 = vmul.f32 %v7318, %v7367
  %v7387 = vmul.f32 %v7319, %v7367
  %v7388 = vmul.f32 %v7320, %v7367
  %v7389 = vmul.f32 %v7321, %v7367
  %v7390 = vmul.f32 %v7322, %v7367
  %v7391 = vmul.f32 %v7323, %v7367
  %v7392 = vmul.f32 %v7324, %v7367
  %v7393 = vmul.f32 %v7325, %v7367
  %v7394 = vmul.f32 %v7326, %v7367
  %v7395 = vmul.f32 %v7327, %v7367
  %v7396 = vmul.f32 %v7328, %v7367
  %v7397 = vmul.f32 %v7329, %v7367
  %v7398 = vmul.f32 %v7330, %v7367
  %v7399 = vmul.f32 %v7331, %v7367
  %v7400 = vmul.f32 %v7332, %v7367
  %v7401 = vmul.f32 %v7333, %v7367
  %v7402 = vmul.f32 %v7334, %v7367
  %v7403 = vmul.f32 %v7335, %v7367
  %v7404 = vmul.f32 %v7336, %v7367
  %v7405 = vmul.f32 %v7337, %v7367
  %v7406 = vmul.f32 %v7338, %v7367
  %v7407 = vmul.f32 %v7339, %v7367
  %v7408 = vmul.f32 %v7340, %v7367
  %v7409 = vmul.f32 %v7341, %v7367
  %v7410 = vmul.f32 %v7342, %v7367
  %v7411 = vmul.f32 %v7343, %v7367
  %v7412 = vmul.f32 %v7344, %v7367
  %v7413 = vmul.f32 %v7345, %v7367
  %v7414 = vmul.f32 %v7346, %v7367
  %v7415 = vmul.f32 %v7347, %v7367
  %v7416 = vmul.f32 %v7348, %v7367
  %v7417 = vmul.f32 %v7349, %v7367
  %v7418 = vmul.f32 %v7350, %v7367
  %v7419 = vmul.f32 %v7351, %v7367
  %v7420 = vmul.f32 %v7352, %v7367
  %v7421 = vmul.f32 %v7353, %v7367
  %v7422 = vmul.f32 %v7354, %v7367
  %v7423 = vmul.f32 %v7355, %v7367
  %v7424 = vmul.f32 %v7356, %v7367
  %v7425 = vmul.f32 %v7357, %v7367
  %v7426 = vmul.f32 %v7358, %v7367
  %v7427 = vmul.f32 %v7359, %v7367
  %v7428 = vmul.f32 %v7360, %v7367
  %v7429 = vmul.f32 %v7361, %v7367
  %v7430 = vmul.f32 %v7362, %v7367
  %v7431 = vmul.f32 %v7363, %v7367
  %v7432 = vmul.f32 %v7364, %v7367
  %v7433 = vld [vmem:[%s6] sm:$0x1]
  %v7435 = vperm.slane %v7433, 0
  %v7437 = vadd.f32 %v7369, %v7435
  %v7438 = vadd.f32 %v7370, %v7435
  %v7439 = vadd.f32 %v7371, %v7435
  %v7440 = vadd.f32 %v7372, %v7435
  %v7441 = vadd.f32 %v7373, %v7435
  %v7442 = vadd.f32 %v7374, %v7435
  %v7443 = vadd.f32 %v7375, %v7435
  %v7444 = vadd.f32 %v7376, %v7435
  %v7445 = vadd.f32 %v7377, %v7435
  %v7446 = vadd.f32 %v7378, %v7435
  %v7447 = vadd.f32 %v7379, %v7435
  %v7448 = vadd.f32 %v7380, %v7435
  %v7449 = vadd.f32 %v7381, %v7435
  %v7450 = vadd.f32 %v7382, %v7435
  %v7451 = vadd.f32 %v7383, %v7435
  %v7452 = vadd.f32 %v7384, %v7435
  %v7453 = vadd.f32 %v7385, %v7435
  %v7454 = vadd.f32 %v7386, %v7435
  %v7455 = vadd.f32 %v7387, %v7435
  %v7456 = vadd.f32 %v7388, %v7435
  %v7457 = vadd.f32 %v7389, %v7435
  %v7458 = vadd.f32 %v7390, %v7435
  %v7459 = vadd.f32 %v7391, %v7435
  %v7460 = vadd.f32 %v7392, %v7435
  %v7461 = vadd.f32 %v7393, %v7435
  %v7462 = vadd.f32 %v7394, %v7435
  %v7463 = vadd.f32 %v7395, %v7435
  %v7464 = vadd.f32 %v7396, %v7435
  %v7465 = vadd.f32 %v7397, %v7435
  %v7466 = vadd.f32 %v7398, %v7435
  %v7467 = vadd.f32 %v7399, %v7435
  %v7468 = vadd.f32 %v7400, %v7435
  %v7469 = vadd.f32 %v7401, %v7435
  %v7470 = vadd.f32 %v7402, %v7435
  %v7471 = vadd.f32 %v7403, %v7435
  %v7472 = vadd.f32 %v7404, %v7435
  %v7473 = vadd.f32 %v7405, %v7435
  %v7474 = vadd.f32 %v7406, %v7435
  %v7475 = vadd.f32 %v7407, %v7435
  %v7476 = vadd.f32 %v7408, %v7435
  %v7477 = vadd.f32 %v7409, %v7435
  %v7478 = vadd.f32 %v7410, %v7435
  %v7479 = vadd.f32 %v7411, %v7435
  %v7480 = vadd.f32 %v7412, %v7435
  %v7481 = vadd.f32 %v7413, %v7435
  %v7482 = vadd.f32 %v7414, %v7435
  %v7483 = vadd.f32 %v7415, %v7435
  %v7484 = vadd.f32 %v7416, %v7435
  %v7485 = vadd.f32 %v7417, %v7435
  %v7486 = vadd.f32 %v7418, %v7435
  %v7487 = vadd.f32 %v7419, %v7435
  %v7488 = vadd.f32 %v7420, %v7435
  %v7489 = vadd.f32 %v7421, %v7435
  %v7490 = vadd.f32 %v7422, %v7435
  %v7491 = vadd.f32 %v7423, %v7435
  %v7492 = vadd.f32 %v7424, %v7435
  %v7493 = vadd.f32 %v7425, %v7435
  %v7494 = vadd.f32 %v7426, %v7435
  %v7495 = vadd.f32 %v7427, %v7435
  %v7496 = vadd.f32 %v7428, %v7435
  %v7497 = vadd.f32 %v7429, %v7435
  %v7498 = vadd.f32 %v7430, %v7435
  %v7499 = vadd.f32 %v7431, %v7435
  %v7500 = vadd.f32 %v7432, %v7435
  %v7501 = vadd.f32 %v7437, %v26
  %v7502 = vadd.f32 %v7438, %v27
  %v7503 = vadd.f32 %v7439, %v28
  %v7504 = vadd.f32 %v7440, %v29
  %v7505 = vadd.f32 %v7441, %v30
  %v7506 = vadd.f32 %v7442, %v31
  %v7507 = vadd.f32 %v7443, %v32
  %v7508 = vadd.f32 %v7444, %v33
  %v7509 = vadd.f32 %v7445, %v34
  %v7510 = vadd.f32 %v7446, %v35
  %v7511 = vadd.f32 %v7447, %v36
  %v7512 = vadd.f32 %v7448, %v37
  %v7513 = vadd.f32 %v7449, %v38
  %v7514 = vadd.f32 %v7450, %v39
  %v7515 = vadd.f32 %v7451, %v40
  %v7516 = vadd.f32 %v7452, %v41
  %v7517 = vadd.f32 %v7453, %v42
  %v7518 = vadd.f32 %v7454, %v43
  %v7519 = vadd.f32 %v7455, %v44
  %v7520 = vadd.f32 %v7456, %v45
  %v7521 = vadd.f32 %v7457, %v46
  %v7522 = vadd.f32 %v7458, %v47
  %v7523 = vadd.f32 %v7459, %v48
  %v7524 = vadd.f32 %v7460, %v49
  %v7525 = vadd.f32 %v7461, %v50
  %v7526 = vadd.f32 %v7462, %v51
  %v7527 = vadd.f32 %v7463, %v52
  %v7528 = vadd.f32 %v7464, %v53
  %v7529 = vadd.f32 %v7465, %v54
  %v7530 = vadd.f32 %v7466, %v55
  %v7531 = vadd.f32 %v7467, %v56
  %v7532 = vadd.f32 %v7468, %v57
  %v7533 = vadd.f32 %v7469, %v58
  %v7534 = vadd.f32 %v7470, %v59
  %v7535 = vadd.f32 %v7471, %v60
  %v7536 = vadd.f32 %v7472, %v61
  %v7537 = vadd.f32 %v7473, %v62
  %v7538 = vadd.f32 %v7474, %v63
  %v7539 = vadd.f32 %v7475, %v64
  %v7540 = vadd.f32 %v7476, %v65
  %v7541 = vadd.f32 %v7477, %v66
  %v7542 = vadd.f32 %v7478, %v67
  %v7543 = vadd.f32 %v7479, %v68
  %v7544 = vadd.f32 %v7480, %v69
  %v7545 = vadd.f32 %v7481, %v70
  %v7546 = vadd.f32 %v7482, %v71
  %v7547 = vadd.f32 %v7483, %v72
  %v7548 = vadd.f32 %v7484, %v73
  %v7549 = vadd.f32 %v7485, %v74
  %v7550 = vadd.f32 %v7486, %v75
  %v7551 = vadd.f32 %v7487, %v76
  %v7552 = vadd.f32 %v7488, %v77
  %v7553 = vadd.f32 %v7489, %v78
  %v7554 = vadd.f32 %v7490, %v79
  %v7555 = vadd.f32 %v7491, %v80
  %v7556 = vadd.f32 %v7492, %v81
  %v7557 = vadd.f32 %v7493, %v82
  %v7558 = vadd.f32 %v7494, %v83
  %v7559 = vadd.f32 %v7495, %v84
  %v7560 = vadd.f32 %v7496, %v85
  %v7561 = vadd.f32 %v7497, %v86
  %v7562 = vadd.f32 %v7498, %v87
  %v7563 = vadd.f32 %v7499, %v88
  %v7564 = vadd.f32 %v7500, %v89
  %v7565 = vmax.f32 %v7501, 0.0
  %v7566 = vmax.f32 %v7502, 0.0
  %v7567 = vmax.f32 %v7503, 0.0
  %v7568 = vmax.f32 %v7504, 0.0
  %v7569 = vmax.f32 %v7505, 0.0
  %v7570 = vmax.f32 %v7506, 0.0
  %v7571 = vmax.f32 %v7507, 0.0
  %v7572 = vmax.f32 %v7508, 0.0
  %v7573 = vmax.f32 %v7509, 0.0
  %v7574 = vmax.f32 %v7510, 0.0
  %v7575 = vmax.f32 %v7511, 0.0
  %v7576 = vmax.f32 %v7512, 0.0
  %v7577 = vmax.f32 %v7513, 0.0
  %v7578 = vmax.f32 %v7514, 0.0
  %v7579 = vmax.f32 %v7515, 0.0
  %v7580 = vmax.f32 %v7516, 0.0
  %v7581 = vmax.f32 %v7517, 0.0
  %v7582 = vmax.f32 %v7518, 0.0
  %v7583 = vmax.f32 %v7519, 0.0
  %v7584 = vmax.f32 %v7520, 0.0
  %v7585 = vmax.f32 %v7521, 0.0
  %v7586 = vmax.f32 %v7522, 0.0
  %v7587 = vmax.f32 %v7523, 0.0
  %v7588 = vmax.f32 %v7524, 0.0
  %v7589 = vmax.f32 %v7525, 0.0
  %v7590 = vmax.f32 %v7526, 0.0
  %v7591 = vmax.f32 %v7527, 0.0
  %v7592 = vmax.f32 %v7528, 0.0
  %v7593 = vmax.f32 %v7529, 0.0
  %v7594 = vmax.f32 %v7530, 0.0
  %v7595 = vmax.f32 %v7531, 0.0
  %v7596 = vmax.f32 %v7532, 0.0
  %v7597 = vmax.f32 %v7533, 0.0
  %v7598 = vmax.f32 %v7534, 0.0
  %v7599 = vmax.f32 %v7535, 0.0
  %v7600 = vmax.f32 %v7536, 0.0
  %v7601 = vmax.f32 %v7537, 0.0
  %v7602 = vmax.f32 %v7538, 0.0
  %v7603 = vmax.f32 %v7539, 0.0
  %v7604 = vmax.f32 %v7540, 0.0
  %v7605 = vmax.f32 %v7541, 0.0
  %v7606 = vmax.f32 %v7542, 0.0
  %v7607 = vmax.f32 %v7543, 0.0
  %v7608 = vmax.f32 %v7544, 0.0
  %v7609 = vmax.f32 %v7545, 0.0
  %v7610 = vmax.f32 %v7546, 0.0
  %v7611 = vmax.f32 %v7547, 0.0
  %v7612 = vmax.f32 %v7548, 0.0
  %v7613 = vmax.f32 %v7549, 0.0
  %v7614 = vmax.f32 %v7550, 0.0
  %v7615 = vmax.f32 %v7551, 0.0
  %v7616 = vmax.f32 %v7552, 0.0
  %v7617 = vmax.f32 %v7553, 0.0
  %v7618 = vmax.f32 %v7554, 0.0
  %v7619 = vmax.f32 %v7555, 0.0
  %v7620 = vmax.f32 %v7556, 0.0
  %v7621 = vmax.f32 %v7557, 0.0
  %v7622 = vmax.f32 %v7558, 0.0
  %v7623 = vmax.f32 %v7559, 0.0
  %v7624 = vmax.f32 %v7560, 0.0
  %v7625 = vmax.f32 %v7561, 0.0
  %v7626 = vmax.f32 %v7562, 0.0
  %v7627 = vmax.f32 %v7563, 0.0
  %v7628 = vmax.f32 %v7564, 0.0
  %7629 = vst.msk [vmem:[%s7] sm:$0xff] %vm235, %v7565
  %7630 = vst.msk [vmem:[%s7 + $0x8] sm:$0xff] %vm235, %v7566
  %7631 = vst.msk [vmem:[%s7 + $0x10] sm:$0xff] %vm235, %v7567
  %7632 = vst.msk [vmem:[%s7 + $0x18] sm:$0xff] %vm235, %v7568
  %7633 = vst.msk [vmem:[%s7 + $0x20] sm:$0xff] %vm235, %v7569
  %7634 = vst.msk [vmem:[%s7 + $0x28] sm:$0xff] %vm235, %v7570
  %7635 = vst.msk [vmem:[%s7 + $0x30] sm:$0xff] %vm235, %v7571
  %7636 = vst.msk [vmem:[%s7 + $0x38] sm:$0xff] %vm235, %v7572
  %7637 = vst.msk [vmem:[%s7 + $0x40] sm:$0xff] %vm235, %v7573
  %7638 = vst.msk [vmem:[%s7 + $0x48] sm:$0xff] %vm235, %v7574
  %7639 = vst.msk [vmem:[%s7 + $0x50] sm:$0xff] %vm235, %v7575
  %7640 = vst.msk [vmem:[%s7 + $0x58] sm:$0xff] %vm235, %v7576
  %7641 = vst.msk [vmem:[%s7 + $0x60] sm:$0xff] %vm235, %v7577
  %7642 = vst.msk [vmem:[%s7 + $0x68] sm:$0xff] %vm235, %v7578
  %7643 = vst.msk [vmem:[%s7 + $0x70] sm:$0xff] %vm235, %v7579
  %7644 = vst.msk [vmem:[%s7 + $0x78] sm:$0xff] %vm235, %v7580
  %7645 = vst.msk [vmem:[%s7 + $0x80] sm:$0xff] %vm235, %v7581
  %7646 = vst.msk [vmem:[%s7 + $0x88] sm:$0xff] %vm235, %v7582
  %7647 = vst.msk [vmem:[%s7 + $0x90] sm:$0xff] %vm235, %v7583
  %7648 = vst.msk [vmem:[%s7 + $0x98] sm:$0xff] %vm235, %v7584
  %7649 = vst.msk [vmem:[%s7 + $0xa0] sm:$0xff] %vm235, %v7585
  %7650 = vst.msk [vmem:[%s7 + $0xa8] sm:$0xff] %vm235, %v7586
  %7651 = vst.msk [vmem:[%s7 + $0xb0] sm:$0xff] %vm235, %v7587
  %7652 = vst.msk [vmem:[%s7 + $0xb8] sm:$0xff] %vm235, %v7588
  %7653 = vst.msk [vmem:[%s7 + $0xc0] sm:$0xff] %vm235, %v7589
  %7654 = vst.msk [vmem:[%s7 + $0xc8] sm:$0xff] %vm235, %v7590
  %7655 = vst.msk [vmem:[%s7 + $0xd0] sm:$0xff] %vm235, %v7591
  %7656 = vst.msk [vmem:[%s7 + $0xd8] sm:$0xff] %vm235, %v7592
  %7657 = vst.msk [vmem:[%s7 + $0xe0] sm:$0xff] %vm235, %v7593
  %7658 = vst.msk [vmem:[%s7 + $0xe8] sm:$0xff] %vm235, %v7594
  %7659 = vst.msk [vmem:[%s7 + $0xf0] sm:$0xff] %vm235, %v7595
  %7660 = vst.msk [vmem:[%s7 + $0xf8] sm:$0xff] %vm235, %v7596
  %7661 = vst.msk [vmem:[%s7 + $0x100] sm:$0xff] %vm235, %v7597
  %7662 = vst.msk [vmem:[%s7 + $0x108] sm:$0xff] %vm235, %v7598
  %7663 = vst.msk [vmem:[%s7 + $0x110] sm:$0xff] %vm235, %v7599
  %7664 = vst.msk [vmem:[%s7 + $0x118] sm:$0xff] %vm235, %v7600
  %7665 = vst.msk [vmem:[%s7 + $0x120] sm:$0xff] %vm235, %v7601
  %7666 = vst.msk [vmem:[%s7 + $0x128] sm:$0xff] %vm235, %v7602
  %7667 = vst.msk [vmem:[%s7 + $0x130] sm:$0xff] %vm235, %v7603
  %7668 = vst.msk [vmem:[%s7 + $0x138] sm:$0xff] %vm235, %v7604
  %7669 = vst.msk [vmem:[%s7 + $0x140] sm:$0xff] %vm235, %v7605
  %7670 = vst.msk [vmem:[%s7 + $0x148] sm:$0xff] %vm235, %v7606
  %7671 = vst.msk [vmem:[%s7 + $0x150] sm:$0xff] %vm235, %v7607
  %7672 = vst.msk [vmem:[%s7 + $0x158] sm:$0xff] %vm235, %v7608
  %7673 = vst.msk [vmem:[%s7 + $0x160] sm:$0xff] %vm235, %v7609
  %7674 = vst.msk [vmem:[%s7 + $0x168] sm:$0xff] %vm235, %v7610
  %7675 = vst.msk [vmem:[%s7 + $0x170] sm:$0xff] %vm235, %v7611
  %7676 = vst.msk [vmem:[%s7 + $0x178] sm:$0xff] %vm235, %v7612
  %7677 = vst.msk [vmem:[%s7 + $0x180] sm:$0xff] %vm235, %v7613
  %7678 = vst.msk [vmem:[%s7 + $0x188] sm:$0xff] %vm235, %v7614
  %7679 = vst.msk [vmem:[%s7 + $0x190] sm:$0xff] %vm235, %v7615
  %7680 = vst.msk [vmem:[%s7 + $0x198] sm:$0xff] %vm235, %v7616
  %7681 = vst.msk [vmem:[%s7 + $0x1a0] sm:$0xff] %vm235, %v7617
  %7682 = vst.msk [vmem:[%s7 + $0x1a8] sm:$0xff] %vm235, %v7618
  %7683 = vst.msk [vmem:[%s7 + $0x1b0] sm:$0xff] %vm235, %v7619
  %7684 = vst.msk [vmem:[%s7 + $0x1b8] sm:$0xff] %vm235, %v7620
  %7685 = vst.msk [vmem:[%s7 + $0x1c0] sm:$0xff] %vm235, %v7621
  %7686 = vst.msk [vmem:[%s7 + $0x1c8] sm:$0xff] %vm235, %v7622
  %7687 = vst.msk [vmem:[%s7 + $0x1d0] sm:$0xff] %vm235, %v7623
  %7688 = vst.msk [vmem:[%s7 + $0x1d8] sm:$0xff] %vm235, %v7624
  %7689 = vst.msk [vmem:[%s7 + $0x1e0] sm:$0xff] %vm235, %v7625
  %7690 = vst.msk [vmem:[%s7 + $0x1e8] sm:$0xff] %vm235, %v7626
  %7691 = vst.msk [vmem:[%s7 + $0x1f0] sm:$0xff] %vm235, %v7627
  %7692 = vst.msk [vmem:[%s7 + $0x1f8] sm:$0xff] %vm235, %v7628
  // Predicated region
  $region30: #{residual_forward.1} parent=0 // pred_check
    _
  $region31: #{residual_forward.1} parent=0 // pred_check_branch
    %7694 = sbr.rel (0) target = $region33
  $region32: #{residual_forward.1} parent=0 // pred_region
    _
  $region33: #{residual_forward.1} parent=0 // pred_fallthru
    _
  // Predicated region
  $region34: #{residual_forward.1} parent=0 // pred_check
    _
  $region35: #{residual_forward.1} parent=0 // pred_check_branch
    %7696 = sbr.rel (0) target = $region37
  $region36: #{residual_forward.1} parent=0 // pred_region
    _
  $region37: #{residual_forward.1} parent=0 // pred_fallthru
    _

</llo_original>
